<compile_context>
chip_gen: v6e
topology: v6e:2x2x1
jax: 0.10.0
libtpu: 0.0.40
codegen_flags: <defaults>
</compile_context>

<pallas_src>
import functools

import jax
import jax.numpy as jnp
from jax import lax
from jax.experimental import pallas as pl
from jax.experimental.pallas import tpu as pltpu


def _make_band_matrices(w_hwio, R, W, C):
    """Repack a (3,3,C,C) HWIO conv kernel into 3 banded (G,G) MXU matrices.

    G = R*W*C lanes hold R image rows (row-major (j, w, c)).  Band dp gives the
    contribution of input row-group (g + dp - 1) to output row-group g,
    including the 3x3 tap weights, the width lane shift and the width zero
    padding (out-of-range taps simply have no entry), so the whole 3x3 conv is
        out[g] = sum_dp  slab[g + dp] @ band[dp]        (slab has zero halos).
    """
    G = R * W * C
    lane = jnp.arange(G)
    j = lane // (W * C)          # row index within the group
    w = (lane // C) % W          # width position
    c = lane % C                 # channel
    j_in, j_out = j[:, None], j[None, :]
    w_in, w_out = w[:, None], w[None, :]
    ci, co = c[:, None], c[None, :]
    dx = w_in - w_out + 1                                     # (G, G)
    bands = []
    for dp in range(3):
        dy = R * (dp - 1) + j_in - j_out + 1                  # (G, G)
        valid = (dy >= 0) & (dy <= 2) & (dx >= 0) & (dx <= 2)
        vals = w_hwio[jnp.clip(dy, 0, 2), jnp.clip(dx, 0, 2), ci, co]
        bands.append(jnp.where(valid, vals, 0.0))
    return jnp.stack(bands, axis=0).astype(jnp.float32)       # (3, G, G)


def _identity_block_kernel(xp_ref, b1_ref, b2_ref, fold_ref, o_ref, slab_ref,
                           *, inv_count, eps):
    N, Hg, G = xp_ref.shape
    NH = N * Hg
    f32 = jnp.float32

    def mxu(a, b):
        # Full-f32 MXU matmul: HIGHEST avoids the default bf16 truncation which
        # would put ~1e-3 relative error into the conv taps / BN statistics.
        return jnp.dot(a, b, preferred_element_type=f32,
                       precision=lax.Precision.HIGHEST)

    fold = fold_ref[...]                     # (G, G) per-channel lane fold
    ones8 = jnp.ones((8, NH), f32)           # MXU row-reduction (8 identical rows)

    def conv3x3(band_ref):
        # 3 banded MXU matmuls; the height halo comes from the zero row-groups
        # already sitting in slab_ref, read at sublane offset dp (plain loads,
        # no pltpu.roll / edge masks, no repack).
        acc = mxu(slab_ref[:, 0:Hg, :].reshape(NH, G), band_ref[0])
        acc = acc + mxu(slab_ref[:, 1:Hg + 1, :].reshape(NH, G), band_ref[1])
        acc = acc + mxu(slab_ref[:, 2:Hg + 2, :].reshape(NH, G), band_ref[2])
        return acc                            # (NH, G) f32

    def batchnorm(y):
        # Two-pass training-mode BN (biased variance, gamma=1, beta=0).  Both
        # the row reduction (ones-matmul) and the per-channel lane fold run on
        # the MXU; only the cheap elementwise part stays on the VPU/EUP.
        mean = mxu(mxu(ones8, y), fold)[0:1, :] * inv_count          # (1, G)
        yc = y - mean
        var = mxu(mxu(ones8, yc * yc), fold)[0:1, :] * inv_count     # (1, G)
        return yc * lax.rsqrt(var + eps)

    # Build the haloed slab for conv1: zero halo row-groups + interior copy.
    zero_row = jnp.zeros((N, 1, G), f32)
    slab_ref[:, 0:1, :] = zero_row
    slab_ref[:, Hg + 1:Hg + 2, :] = zero_row
    xp = xp_ref[...].astype(f32)                                     # (N, Hg, G)
    slab_ref[:, 1:Hg + 1, :] = xp

    # conv1 -> bn1 -> relu
    out1 = jnp.maximum(batchnorm(conv3x3(b1_ref)), 0.0)              # (NH, G)

    # Reuse the same scratch slab (halos still zero) as the conv2 input.
    slab_ref[:, 1:Hg + 1, :] = out1.reshape(N, Hg, G)

    # conv2 -> bn2 -> raw identity residual add -> relu
    resid = xp.reshape(NH, G)
    out2 = batchnorm(conv3x3(b2_ref)) + resid
    o_ref[...] = jnp.maximum(out2, 0.0).reshape(N, Hg, G).astype(o_ref.dtype)


def identity_block_nhwc(x_nhwc, w1_hwio, w2_hwio, eps=1e-5):
    """x: (N, H, W, C) f32; w*: (3, 3, C, C) HWIO.  Whole block, one kernel."""
    N, H, W, C = x_nhwc.shape
    assert w1_hwio.shape == (3, 3, C, C) and w2_hwio.shape == (3, 3, C, C), \
        "raw-identity residual requires in_planes == out_planes (stride=1)"
    WC = W * C
    # Pack R image rows per lane group so the lane axis is a multiple of 128
    # (lane-dense vregs, unmasked stores); fall back to R=1 if impossible.
    R = 1
    for r in range(1, H + 1):
        if H % r == 0 and (r * WC) % 128 == 0:
            R = r
            break
    G = R * WC
    Hg = H // R

    xp = x_nhwc.reshape(N, Hg, G)               # pure reshape, no data movement
    b1 = _make_band_matrices(w1_hwio, R, W, C)  # (3, G, G)
    b2 = _make_band_matrices(w2_hwio, R, W, C)
    lane_c = jnp.arange(G) % C
    fold = (lane_c[:, None] == lane_c[None, :]).astype(jnp.float32)   # (G, G)

    kernel = functools.partial(_identity_block_kernel,
                               inv_count=1.0 / float(N * H * W), eps=eps)
    vmem = pl.BlockSpec(memory_space=pltpu.MemorySpace.VMEM)
    out = pl.pallas_call(
        kernel,
        out_shape=jax.ShapeDtypeStruct((N, Hg, G), x_nhwc.dtype),
        in_specs=[vmem, vmem, vmem, vmem],
        out_specs=vmem,
        scratch_shapes=[pltpu.VMEM((N, Hg + 2, G), jnp.float32)],
    )(xp, b1, b2, fold)
    return out.reshape(N, H, W, C)


def identity_block(x_nchw, w1_hwio, w2_hwio):
    """PyTorch-facing wrapper: NCHW in, NCHW out."""
    x = jnp.transpose(x_nchw, (0, 2, 3, 1))
    y = identity_block_nhwc(x, w1_hwio, w2_hwio)
    return jnp.transpose(y, (0, 3, 1, 2))


def reference(x_nchw, w1_hwio, w2_hwio, eps=1e-5):
    """Pure-JAX reference of the same forward pass (for correctness check)."""
    def conv(x, w):
        return jax.lax.conv_general_dilated(
            x, w, window_strides=(1, 1), padding=((1, 1), (1, 1)),
            dimension_numbers=("NCHW", "HWIO", "NCHW"))

    def bn(y):
        mean = jnp.mean(y, axis=(0, 2, 3), keepdims=True)
        var = jnp.mean((y - mean) ** 2, axis=(0, 2, 3), keepdims=True)
        return (y - mean) / jnp.sqrt(var + eps)

    out = jax.nn.relu(bn(conv(x_nchw, w1_hwio)))
    out = bn(conv(out, w2_hwio)) + x_nchw
    return jax.nn.relu(out)


if __name__ == "__main__":
    # Small shapes: batch=2, in_planes=out_planes=4, spatial=16x16, stride=1.
    N, C, H, W = 2, 4, 16, 16
    key = jax.random.PRNGKey(0)
    kx, k1, k2 = jax.random.split(key, 3)

    x = jax.random.normal(kx, (N, C, H, W), dtype=jnp.float32)
    fan_in = 9 * C
    w1 = jax.random.normal(k1, (3, 3, C, C), dtype=jnp.float32) / jnp.sqrt(fan_in)
    w2 = jax.random.normal(k2, (3, 3, C, C), dtype=jnp.float32) / jnp.sqrt(fan_in)

    out = jax.jit(identity_block)(x, w1, w2)
    out = jax.block_until_ready(out)

    ref = reference(x, w1, w2)
    assert out.shape == (N, C, H, W)
    assert jnp.allclose(out, ref, atol=1e-3, rtol=1e-3), "mismatch vs JAX reference"

    print("KERNEL_OK")
</pallas_src>

<mosaic_0001>
module attributes {stable_mosaic.version = 11 : i64} {
  func.func @_identity_block_kernel(%arg0: memref<2x8x128xf32, #tpu.memory_space<vmem>>, %arg1: memref<3x128x128xf32, #tpu.memory_space<vmem>>, %arg2: memref<3x128x128xf32, #tpu.memory_space<vmem>>, %arg3: memref<128x128xf32, #tpu.memory_space<vmem>>, %arg4: memref<2x8x128xf32, #tpu.memory_space<vmem>>, %arg5: memref<2x10x128xf32, #tpu.memory_space<vmem>>) attributes {dimension_semantics = [], scalar_prefetch = 0 : i64, scratch_operands = 1 : i64, tpu.core_type = #tpu.core_type<tc>} {
    %c0 = arith.constant 0 : index
    %c0_0 = arith.constant 0 : index
    %0 = vector.load %arg3[%c0, %c0_0] : memref<128x128xf32, #tpu.memory_space<vmem>>, vector<128x128xf32>
    %cst = arith.constant 1.000000e+00 : f32
    %1 = vector.broadcast %cst : f32 to vector<8x16xf32>
    %cst_1 = arith.constant 0.000000e+00 : f32
    %2 = vector.broadcast %cst_1 : f32 to vector<2x1x128xf32>
    %c0_2 = arith.constant 0 : index
    %c0_3 = arith.constant 0 : index
    %c0_4 = arith.constant 0 : index
    %3 = vector.load %arg5[%c0_2, %c0_3, %c0_4] : memref<2x10x128xf32, #tpu.memory_space<vmem>>, vector<2x1x128xf32>
    tpu.vector_store %arg5[%c0_2, %c0_3, %c0_4], %2 {strides = array<i32>} : memref<2x10x128xf32, #tpu.memory_space<vmem>>, vector<2x1x128xf32>,
    %c0_5 = arith.constant 0 : index
    %c9 = arith.constant 9 : index
    %c0_6 = arith.constant 0 : index
    %4 = vector.load %arg5[%c0_5, %c9, %c0_6] : memref<2x10x128xf32, #tpu.memory_space<vmem>>, vector<2x1x128xf32>
    tpu.vector_store %arg5[%c0_5, %c9, %c0_6], %2 {strides = array<i32>} : memref<2x10x128xf32, #tpu.memory_space<vmem>>, vector<2x1x128xf32>,
    %c0_7 = arith.constant 0 : index
    %c0_8 = arith.constant 0 : index
    %c0_9 = arith.constant 0 : index
    %5 = vector.load %arg0[%c0_7, %c0_8, %c0_9] : memref<2x8x128xf32, #tpu.memory_space<vmem>>, vector<2x8x128xf32>
    %c0_10 = arith.constant 0 : index
    %c1 = arith.constant 1 : index
    %c0_11 = arith.constant 0 : index
    %6 = vector.load %arg5[%c0_10, %c1, %c0_11] : memref<2x10x128xf32, #tpu.memory_space<vmem>>, vector<2x8x128xf32>
    tpu.vector_store %arg5[%c0_10, %c1, %c0_11], %5 {strides = array<i32>} : memref<2x10x128xf32, #tpu.memory_space<vmem>>, vector<2x8x128xf32>,
    %c0_12 = arith.constant 0 : index
    %c0_13 = arith.constant 0 : index
    %c0_14 = arith.constant 0 : index
    %7 = vector.load %arg5[%c0_12, %c0_13, %c0_14] : memref<2x10x128xf32, #tpu.memory_space<vmem>>, vector<2x8x128xf32>
    %8 = vector.shape_cast %7 : vector<2x8x128xf32> to vector<16x128xf32>
    %c0_15 = arith.constant 0 : index
    %c0_16 = arith.constant 0 : index
    %c0_17 = arith.constant 0 : index
    %9 = vector.load %arg1[%c0_15, %c0_16, %c0_17] : memref<3x128x128xf32, #tpu.memory_space<vmem>>, vector<1x128x128xf32>
    %10 = vector.shape_cast %9 : vector<1x128x128xf32> to vector<128x128xf32>
    %cst_18 = arith.constant dense<0.000000e+00> : vector<16x128xf32>
    %11 = tpu.matmul %8, %10, %cst_18 {dimension_numbers = #tpu.dot_dimension_numbers<[1], [0], [0], [1], [0, 0, 1, 1], [], []>, precision = #tpu.contract_precision<fp32>} : vector<16x128xf32>, vector<128x128xf32>, vector<16x128xf32> -> vector<16x128xf32>
    %c0_19 = arith.constant 0 : index
    %c1_20 = arith.constant 1 : index
    %c0_21 = arith.constant 0 : index
    %12 = vector.load %arg5[%c0_19, %c1_20, %c0_21] : memref<2x10x128xf32, #tpu.memory_space<vmem>>, vector<2x8x128xf32>
    %13 = vector.shape_cast %12 : vector<2x8x128xf32> to vector<16x128xf32>
    %c1_22 = arith.constant 1 : index
    %c0_23 = arith.constant 0 : index
    %c0_24 = arith.constant 0 : index
    %14 = vector.load %arg1[%c1_22, %c0_23, %c0_24] : memref<3x128x128xf32, #tpu.memory_space<vmem>>, vector<1x128x128xf32>
    %15 = vector.shape_cast %14 : vector<1x128x128xf32> to vector<128x128xf32>
    %cst_25 = arith.constant dense<0.000000e+00> : vector<16x128xf32>
    %16 = tpu.matmul %13, %15, %cst_25 {dimension_numbers = #tpu.dot_dimension_numbers<[1], [0], [0], [1], [0, 0, 1, 1], [], []>, precision = #tpu.contract_precision<fp32>} : vector<16x128xf32>, vector<128x128xf32>, vector<16x128xf32> -> vector<16x128xf32>
    %17 = arith.addf %11, %16 : vector<16x128xf32>
    %c0_26 = arith.constant 0 : index
    %c2 = arith.constant 2 : index
    %c0_27 = arith.constant 0 : index
    %18 = vector.load %arg5[%c0_26, %c2, %c0_27] : memref<2x10x128xf32, #tpu.memory_space<vmem>>, vector<2x8x128xf32>
    %19 = vector.shape_cast %18 : vector<2x8x128xf32> to vector<16x128xf32>
    %c2_28 = arith.constant 2 : index
    %c0_29 = arith.constant 0 : index
    %c0_30 = arith.constant 0 : index
    %20 = vector.load %arg1[%c2_28, %c0_29, %c0_30] : memref<3x128x128xf32, #tpu.memory_space<vmem>>, vector<1x128x128xf32>
    %21 = vector.shape_cast %20 : vector<1x128x128xf32> to vector<128x128xf32>
    %cst_31 = arith.constant dense<0.000000e+00> : vector<16x128xf32>
    %22 = tpu.matmul %19, %21, %cst_31 {dimension_numbers = #tpu.dot_dimension_numbers<[1], [0], [0], [1], [0, 0, 1, 1], [], []>, precision = #tpu.contract_precision<fp32>} : vector<16x128xf32>, vector<128x128xf32>, vector<16x128xf32> -> vector<16x128xf32>
    %23 = arith.addf %17, %22 : vector<16x128xf32>
    %cst_32 = arith.constant dense<0.000000e+00> : vector<8x128xf32>
    %24 = tpu.matmul %1, %23, %cst_32 {dimension_numbers = #tpu.dot_dimension_numbers<[1], [0], [0], [1], [0, 0, 1, 1], [], []>, precision = #tpu.contract_precision<fp32>} : vector<8x16xf32>, vector<16x128xf32>, vector<8x128xf32> -> vector<8x128xf32>
    %cst_33 = arith.constant dense<0.000000e+00> : vector<8x128xf32>
    %25 = tpu.matmul %24, %0, %cst_33 {dimension_numbers = #tpu.dot_dimension_numbers<[1], [0], [0], [1], [0, 0, 1, 1], [], []>, precision = #tpu.contract_precision<fp32>} : vector<8x128xf32>, vector<128x128xf32>, vector<8x128xf32> -> vector<8x128xf32>
    %26 = vector.extract_strided_slice %25 {offsets = [0, 0], sizes = [1, 128], strides = [1, 1]} : vector<8x128xf32> to vector<1x128xf32>
    %cst_34 = arith.constant 0.001953125 : f32
    %27 = vector.broadcast %cst_34 : f32 to vector<1x128xf32>
    %28 = arith.mulf %26, %27 : vector<1x128xf32>
    %29 = vector.broadcast %28 : vector<1x128xf32> to vector<16x128xf32>
    %30 = arith.subf %23, %29 : vector<16x128xf32>
    %31 = arith.mulf %30, %30 : vector<16x128xf32>
    %cst_35 = arith.constant dense<0.000000e+00> : vector<8x128xf32>
    %32 = tpu.matmul %1, %31, %cst_35 {dimension_numbers = #tpu.dot_dimension_numbers<[1], [0], [0], [1], [0, 0, 1, 1], [], []>, precision = #tpu.contract_precision<fp32>} : vector<8x16xf32>, vector<16x128xf32>, vector<8x128xf32> -> vector<8x128xf32>
    %cst_36 = arith.constant dense<0.000000e+00> : vector<8x128xf32>
    %33 = tpu.matmul %32, %0, %cst_36 {dimension_numbers = #tpu.dot_dimension_numbers<[1], [0], [0], [1], [0, 0, 1, 1], [], []>, precision = #tpu.contract_precision<fp32>} : vector<8x128xf32>, vector<128x128xf32>, vector<8x128xf32> -> vector<8x128xf32>
    %34 = vector.extract_strided_slice %33 {offsets = [0, 0], sizes = [1, 128], strides = [1, 1]} : vector<8x128xf32> to vector<1x128xf32>
    %cst_37 = arith.constant 0.001953125 : f32
    %35 = vector.broadcast %cst_37 : f32 to vector<1x128xf32>
    %36 = arith.mulf %34, %35 : vector<1x128xf32>
    %cst_38 = arith.constant 9.99999974E-6 : f32
    %37 = vector.broadcast %cst_38 : f32 to vector<1x128xf32>
    %38 = arith.addf %36, %37 : vector<1x128xf32>
    %39 = math.rsqrt %38 : vector<1x128xf32>
    %40 = vector.broadcast %39 : vector<1x128xf32> to vector<16x128xf32>
    %41 = arith.mulf %30, %40 : vector<16x128xf32>
    %cst_39 = arith.constant 0.000000e+00 : f32
    %42 = vector.broadcast %cst_39 : f32 to vector<16x128xf32>
    %43 = arith.maximumf %41, %42 : vector<16x128xf32>
    %44 = vector.shape_cast %43 : vector<16x128xf32> to vector<2x8x128xf32>
    %c0_40 = arith.constant 0 : index
    %c1_41 = arith.constant 1 : index
    %c0_42 = arith.constant 0 : index
    %45 = vector.load %arg5[%c0_40, %c1_41, %c0_42] : memref<2x10x128xf32, #tpu.memory_space<vmem>>, vector<2x8x128xf32>
    tpu.vector_store %arg5[%c0_40, %c1_41, %c0_42], %44 {strides = array<i32>} : memref<2x10x128xf32, #tpu.memory_space<vmem>>, vector<2x8x128xf32>,
    %46 = vector.shape_cast %5 : vector<2x8x128xf32> to vector<16x128xf32>
    %c0_43 = arith.constant 0 : index
    %c0_44 = arith.constant 0 : index
    %c0_45 = arith.constant 0 : index
    %47 = vector.load %arg5[%c0_43, %c0_44, %c0_45] : memref<2x10x128xf32, #tpu.memory_space<vmem>>, vector<2x8x128xf32>
    %48 = vector.shape_cast %47 : vector<2x8x128xf32> to vector<16x128xf32>
    %c0_46 = arith.constant 0 : index
    %c0_47 = arith.constant 0 : index
    %c0_48 = arith.constant 0 : index
    %49 = vector.load %arg2[%c0_46, %c0_47, %c0_48] : memref<3x128x128xf32, #tpu.memory_space<vmem>>, vector<1x128x128xf32>
    %50 = vector.shape_cast %49 : vector<1x128x128xf32> to vector<128x128xf32>
    %cst_49 = arith.constant dense<0.000000e+00> : vector<16x128xf32>
    %51 = tpu.matmul %48, %50, %cst_49 {dimension_numbers = #tpu.dot_dimension_numbers<[1], [0], [0], [1], [0, 0, 1, 1], [], []>, precision = #tpu.contract_precision<fp32>} : vector<16x128xf32>, vector<128x128xf32>, vector<16x128xf32> -> vector<16x128xf32>
    %c0_50 = arith.constant 0 : index
    %c1_51 = arith.constant 1 : index
    %c0_52 = arith.constant 0 : index
    %52 = vector.load %arg5[%c0_50, %c1_51, %c0_52] : memref<2x10x128xf32, #tpu.memory_space<vmem>>, vector<2x8x128xf32>
    %53 = vector.shape_cast %52 : vector<2x8x128xf32> to vector<16x128xf32>
    %c1_53 = arith.constant 1 : index
    %c0_54 = arith.constant 0 : index
    %c0_55 = arith.constant 0 : index
    %54 = vector.load %arg2[%c1_53, %c0_54, %c0_55] : memref<3x128x128xf32, #tpu.memory_space<vmem>>, vector<1x128x128xf32>
    %55 = vector.shape_cast %54 : vector<1x128x128xf32> to vector<128x128xf32>
    %cst_56 = arith.constant dense<0.000000e+00> : vector<16x128xf32>
    %56 = tpu.matmul %53, %55, %cst_56 {dimension_numbers = #tpu.dot_dimension_numbers<[1], [0], [0], [1], [0, 0, 1, 1], [], []>, precision = #tpu.contract_precision<fp32>} : vector<16x128xf32>, vector<128x128xf32>, vector<16x128xf32> -> vector<16x128xf32>
    %57 = arith.addf %51, %56 : vector<16x128xf32>
    %c0_57 = arith.constant 0 : index
    %c2_58 = arith.constant 2 : index
    %c0_59 = arith.constant 0 : index
    %58 = vector.load %arg5[%c0_57, %c2_58, %c0_59] : memref<2x10x128xf32, #tpu.memory_space<vmem>>, vector<2x8x128xf32>
    %59 = vector.shape_cast %58 : vector<2x8x128xf32> to vector<16x128xf32>
    %c2_60 = arith.constant 2 : index
    %c0_61 = arith.constant 0 : index
    %c0_62 = arith.constant 0 : index
    %60 = vector.load %arg2[%c2_60, %c0_61, %c0_62] : memref<3x128x128xf32, #tpu.memory_space<vmem>>, vector<1x128x128xf32>
    %61 = vector.shape_cast %60 : vector<1x128x128xf32> to vector<128x128xf32>
    %cst_63 = arith.constant dense<0.000000e+00> : vector<16x128xf32>
    %62 = tpu.matmul %59, %61, %cst_63 {dimension_numbers = #tpu.dot_dimension_numbers<[1], [0], [0], [1], [0, 0, 1, 1], [], []>, precision = #tpu.contract_precision<fp32>} : vector<16x128xf32>, vector<128x128xf32>, vector<16x128xf32> -> vector<16x128xf32>
    %63 = arith.addf %57, %62 : vector<16x128xf32>
    %cst_64 = arith.constant dense<0.000000e+00> : vector<8x128xf32>
    %64 = tpu.matmul %1, %63, %cst_64 {dimension_numbers = #tpu.dot_dimension_numbers<[1], [0], [0], [1], [0, 0, 1, 1], [], []>, precision = #tpu.contract_precision<fp32>} : vector<8x16xf32>, vector<16x128xf32>, vector<8x128xf32> -> vector<8x128xf32>
    %cst_65 = arith.constant dense<0.000000e+00> : vector<8x128xf32>
    %65 = tpu.matmul %64, %0, %cst_65 {dimension_numbers = #tpu.dot_dimension_numbers<[1], [0], [0], [1], [0, 0, 1, 1], [], []>, precision = #tpu.contract_precision<fp32>} : vector<8x128xf32>, vector<128x128xf32>, vector<8x128xf32> -> vector<8x128xf32>
    %66 = vector.extract_strided_slice %65 {offsets = [0, 0], sizes = [1, 128], strides = [1, 1]} : vector<8x128xf32> to vector<1x128xf32>
    %cst_66 = arith.constant 0.001953125 : f32
    %67 = vector.broadcast %cst_66 : f32 to vector<1x128xf32>
    %68 = arith.mulf %66, %67 : vector<1x128xf32>
    %69 = vector.broadcast %68 : vector<1x128xf32> to vector<16x128xf32>
    %70 = arith.subf %63, %69 : vector<16x128xf32>
    %71 = arith.mulf %70, %70 : vector<16x128xf32>
    %cst_67 = arith.constant dense<0.000000e+00> : vector<8x128xf32>
    %72 = tpu.matmul %1, %71, %cst_67 {dimension_numbers = #tpu.dot_dimension_numbers<[1], [0], [0], [1], [0, 0, 1, 1], [], []>, precision = #tpu.contract_precision<fp32>} : vector<8x16xf32>, vector<16x128xf32>, vector<8x128xf32> -> vector<8x128xf32>
    %cst_68 = arith.constant dense<0.000000e+00> : vector<8x128xf32>
    %73 = tpu.matmul %72, %0, %cst_68 {dimension_numbers = #tpu.dot_dimension_numbers<[1], [0], [0], [1], [0, 0, 1, 1], [], []>, precision = #tpu.contract_precision<fp32>} : vector<8x128xf32>, vector<128x128xf32>, vector<8x128xf32> -> vector<8x128xf32>
    %74 = vector.extract_strided_slice %73 {offsets = [0, 0], sizes = [1, 128], strides = [1, 1]} : vector<8x128xf32> to vector<1x128xf32>
    %cst_69 = arith.constant 0.001953125 : f32
    %75 = vector.broadcast %cst_69 : f32 to vector<1x128xf32>
    %76 = arith.mulf %74, %75 : vector<1x128xf32>
    %cst_70 = arith.constant 9.99999974E-6 : f32
    %77 = vector.broadcast %cst_70 : f32 to vector<1x128xf32>
    %78 = arith.addf %76, %77 : vector<1x128xf32>
    %79 = math.rsqrt %78 : vector<1x128xf32>
    %80 = vector.broadcast %79 : vector<1x128xf32> to vector<16x128xf32>
    %81 = arith.mulf %70, %80 : vector<16x128xf32>
    %82 = arith.addf %81, %46 : vector<16x128xf32>
    %cst_71 = arith.constant 0.000000e+00 : f32
    %83 = vector.broadcast %cst_71 : f32 to vector<16x128xf32>
    %84 = arith.maximumf %82, %83 : vector<16x128xf32>
    %85 = vector.shape_cast %84 : vector<16x128xf32> to vector<2x8x128xf32>
    %c0_72 = arith.constant 0 : index
    %c0_73 = arith.constant 0 : index
    %c0_74 = arith.constant 0 : index
    %86 = vector.load %arg4[%c0_72, %c0_73, %c0_74] : memref<2x8x128xf32, #tpu.memory_space<vmem>>, vector<2x8x128xf32>
    tpu.vector_store %arg4[%c0_72, %c0_73, %c0_74], %85 {strides = array<i32>} : memref<2x8x128xf32, #tpu.memory_space<vmem>>, vector<2x8x128xf32>,
    return
  }
}

</mosaic_0001>

<llo_original>
// kernel: identity_block.1
$region0: #{identity_block.1}
  #allocation0 [shape = 'u32[]', space=smem, size = 0x4, offset = 0x4, fixed_abs, tag = 'smem constant byte address 0x4 - core index']
  #allocation1 [shape = 'u32[144,128]{1,0:T(1,128)}', space=vmem, size = 0x12000, scoped, tag = 'internal scratch']
  #allocation2 [shape = 'f32[2,10,128]{2,1,0:T(8,128)}', space=vmem, size = 0x4000, scoped, tag = 'scratch operand']
  %s0 = inlined_call_operand.vmem [shape: f32[2,8,128], index: 0, kind: input, shape index: {}]
  %s1 = inlined_call_operand.vmem [shape: f32[3,128,128], index: 1, kind: input, shape index: {}]
  %s2 = inlined_call_operand.vmem [shape: f32[3,128,128], index: 2, kind: input, shape index: {}]
  %s3 = inlined_call_operand.vmem [shape: f32[128,128], index: 3, kind: input, shape index: {}]
  %s4 = inlined_call_operand.vmem [shape: f32[2,8,128], index: 4, kind: output, shape index: {}]
  %s5 = sld [smem:[#allocation0]]
  $region26: #{identity_block.1} parent=0
    _
  %s7 = ssub.s32 1, %s5
  %s8 = scalar_select 0, %s7, %s5
  // Predicated region
  $region2: #{identity_block.1} parent=0 // pred_check
    _
  $region3: #{identity_block.1} parent=0 // pred_check_branch
    %10 = sbr.rel (0) target = $region5
  $region4: #{identity_block.1} parent=0 // pred_region
    _
  $region5: #{identity_block.1} parent=0 // pred_fallthru
    _
  // Predicated region
  $region6: #{identity_block.1} parent=0 // pred_check
    _
  $region7: #{identity_block.1} parent=0 // pred_check_branch
    %12 = sbr.rel (0) target = $region9
  $region8: #{identity_block.1} parent=0 // pred_region
    _
  $region9: #{identity_block.1} parent=0 // pred_fallthru
    _
  // Predicated region
  $region10: #{identity_block.1} parent=0 // pred_check
    _
  $region11: #{identity_block.1} parent=0 // pred_check_branch
    %14 = sbr.rel (0) target = $region13
  $region12: #{identity_block.1} parent=0 // pred_region
    _
  $region13: #{identity_block.1} parent=0 // pred_fallthru
    _
  // Predicated region
  $region14: #{identity_block.1} parent=0 // pred_check
    _
  $region15: #{identity_block.1} parent=0 // pred_check_branch
    %16 = sbr.rel (0) target = $region17
  $region16: #{identity_block.1} parent=0 // pred_region
    _
  $region17: #{identity_block.1} parent=0 // pred_fallthru
    _
  %v17 = vld [vmem:[%s3] sm:$0xff]
  %v18 = vld [vmem:[%s3 + $0x8] sm:$0xff]
  %v19 = vld [vmem:[%s3 + $0x10] sm:$0xff]
  %v20 = vld [vmem:[%s3 + $0x18] sm:$0xff]
  %v21 = vld [vmem:[%s3 + $0x20] sm:$0xff]
  %v22 = vld [vmem:[%s3 + $0x28] sm:$0xff]
  %v23 = vld [vmem:[%s3 + $0x30] sm:$0xff]
  %v24 = vld [vmem:[%s3 + $0x38] sm:$0xff]
  %v25 = vld [vmem:[%s3 + $0x40] sm:$0xff]
  %v26 = vld [vmem:[%s3 + $0x48] sm:$0xff]
  %v27 = vld [vmem:[%s3 + $0x50] sm:$0xff]
  %v28 = vld [vmem:[%s3 + $0x58] sm:$0xff]
  %v29 = vld [vmem:[%s3 + $0x60] sm:$0xff]
  %v30 = vld [vmem:[%s3 + $0x68] sm:$0xff]
  %v31 = vld [vmem:[%s3 + $0x70] sm:$0xff]
  %v32 = vld [vmem:[%s3 + $0x78] sm:$0xff]
  %33 = vst [vmem:[#allocation2] sm:$0x1] 0.0
  %34 = vst [vmem:[#allocation2 + $0x10] sm:$0x1] 0.0
  %35 = vst [vmem:[#allocation2 + $0x9] sm:$0x1] 0.0
  %36 = vst [vmem:[#allocation2 + $0x19] sm:$0x1] 0.0
  %v37 = vld [vmem:[%s0] sm:$0xff]
  %v38 = vld [vmem:[%s0 + $0x8] sm:$0xff]
  %39 = vst [vmem:[#allocation2 + $0x1] sm:$0xff] %v37
  %40 = vst [vmem:[#allocation2 + $0x11] sm:$0xff] %v38
  %v41 = vld [vmem:[#allocation2] sm:$0xff]
  %v42 = vld [vmem:[#allocation2 + $0x10] sm:$0xff]
  %v43 = vld [vmem:[%s1] sm:$0xff]
  %v44 = vld [vmem:[%s1 + $0x8] sm:$0xff]
  %v45 = vld [vmem:[%s1 + $0x10] sm:$0xff]
  %v46 = vld [vmem:[%s1 + $0x18] sm:$0xff]
  %v47 = vld [vmem:[%s1 + $0x20] sm:$0xff]
  %v48 = vld [vmem:[%s1 + $0x28] sm:$0xff]
  %v49 = vld [vmem:[%s1 + $0x30] sm:$0xff]
  %v50 = vld [vmem:[%s1 + $0x38] sm:$0xff]
  %v51 = vld [vmem:[%s1 + $0x40] sm:$0xff]
  %v52 = vld [vmem:[%s1 + $0x48] sm:$0xff]
  %v53 = vld [vmem:[%s1 + $0x50] sm:$0xff]
  %v54 = vld [vmem:[%s1 + $0x58] sm:$0xff]
  %v55 = vld [vmem:[%s1 + $0x60] sm:$0xff]
  %v56 = vld [vmem:[%s1 + $0x68] sm:$0xff]
  %v57 = vld [vmem:[%s1 + $0x70] sm:$0xff]
  %v58 = vld [vmem:[%s1 + $0x78] sm:$0xff]
  %v59 = vld [vmem:[#allocation2 + $0x1] sm:$0xff]
  %v60 = vld [vmem:[#allocation2 + $0x11] sm:$0xff]
  %s61 = scalar_lea.vmem %s1, 128
  %v62 = vld [vmem:[%s61] sm:$0xff]
  %v63 = vld [vmem:[%s61 + $0x8] sm:$0xff]
  %v64 = vld [vmem:[%s61 + $0x10] sm:$0xff]
  %v65 = vld [vmem:[%s61 + $0x18] sm:$0xff]
  %v66 = vld [vmem:[%s61 + $0x20] sm:$0xff]
  %v67 = vld [vmem:[%s61 + $0x28] sm:$0xff]
  %v68 = vld [vmem:[%s61 + $0x30] sm:$0xff]
  %v69 = vld [vmem:[%s61 + $0x38] sm:$0xff]
  %v70 = vld [vmem:[%s61 + $0x40] sm:$0xff]
  %v71 = vld [vmem:[%s61 + $0x48] sm:$0xff]
  %v72 = vld [vmem:[%s61 + $0x50] sm:$0xff]
  %v73 = vld [vmem:[%s61 + $0x58] sm:$0xff]
  %v74 = vld [vmem:[%s61 + $0x60] sm:$0xff]
  %v75 = vld [vmem:[%s61 + $0x68] sm:$0xff]
  %v76 = vld [vmem:[%s61 + $0x70] sm:$0xff]
  %v77 = vld [vmem:[%s61 + $0x78] sm:$0xff]
  %78 = vmatprep.subr.mxu0 0.0
  %v79 = vand.u32 %v77, 4294901760
  %80 = vmatpush1.msra.mxu0 %v79
  %81 = vmatprep.subr.mxu0 0.0
  %v82 = vand.u32 %v76, 4294901760
  %83 = vmatpush1.msra.mxu0 %v82
  %84 = vmatprep.subr.mxu0 0.0
  %v85 = vand.u32 %v75, 4294901760
  %86 = vmatpush1.msra.mxu0 %v85
  %87 = vmatprep.subr.mxu0 0.0
  %v88 = vand.u32 %v74, 4294901760
  %89 = vmatpush1.msra.mxu0 %v88
  %90 = vmatprep.subr.mxu0 0.0
  %v91 = vand.u32 %v73, 4294901760
  %92 = vmatpush1.msra.mxu0 %v91
  %93 = vmatprep.subr.mxu0 0.0
  %v94 = vand.u32 %v72, 4294901760
  %95 = vmatpush1.msra.mxu0 %v94
  %96 = vmatprep.subr.mxu0 0.0
  %v97 = vand.u32 %v71, 4294901760
  %98 = vmatpush1.msra.mxu0 %v97
  %99 = vmatprep.subr.mxu0 0.0
  %v100 = vand.u32 %v70, 4294901760
  %101 = vmatpush1.msra.mxu0 %v100
  %102 = vmatprep.subr.mxu0 0.0
  %v103 = vand.u32 %v69, 4294901760
  %104 = vmatpush1.msra.mxu0 %v103
  %105 = vmatprep.subr.mxu0 0.0
  %v106 = vand.u32 %v68, 4294901760
  %107 = vmatpush1.msra.mxu0 %v106
  %108 = vmatprep.subr.mxu0 0.0
  %v109 = vand.u32 %v67, 4294901760
  %110 = vmatpush1.msra.mxu0 %v109
  %111 = vmatprep.subr.mxu0 0.0
  %v112 = vand.u32 %v66, 4294901760
  %113 = vmatpush1.msra.mxu0 %v112
  %114 = vmatprep.subr.mxu0 0.0
  %v115 = vand.u32 %v65, 4294901760
  %116 = vmatpush1.msra.mxu0 %v115
  %117 = vmatprep.subr.mxu0 0.0
  %v118 = vand.u32 %v64, 4294901760
  %119 = vmatpush1.msra.mxu0 %v118
  %120 = vmatprep.subr.mxu0 0.0
  %v121 = vand.u32 %v63, 4294901760
  %122 = vmatpush1.msra.mxu0 %v121
  %123 = vmatprep.subr.mxu0 0.0
  %v124 = vand.u32 %v62, 4294901760
  %125 = vmatpush1.msra.mxu0 %v124
  %126 = vmatprep.subr.mxu0 0.0
  %127 = vmatpush2.msra.mxu0 0.0
  %128 = vmatprep.subr.mxu0 0.0
  %129 = vmatpush2.msra.mxu0 0.0
  %130 = vmatprep.subr.mxu0 0.0
  %131 = vmatpush2.msra.mxu0 0.0
  %132 = vmatprep.subr.mxu0 0.0
  %133 = vmatpush2.msra.mxu0 0.0
  %134 = vmatprep.subr.mxu0 0.0
  %135 = vmatpush2.msra.mxu0 0.0
  %136 = vmatprep.subr.mxu0 0.0
  %137 = vmatpush2.msra.mxu0 0.0
  %138 = vmatprep.subr.mxu0 0.0
  %139 = vmatpush2.msra.mxu0 0.0
  %140 = vmatprep.subr.mxu0 0.0
  %141 = vmatpush2.msra.mxu0 0.0
  %142 = vmatprep.subr.mxu0 0.0
  %143 = vmatpush2.msra.mxu0 0.0
  %144 = vmatprep.subr.mxu0 0.0
  %145 = vmatpush2.msra.mxu0 0.0
  %146 = vmatprep.subr.mxu0 0.0
  %147 = vmatpush2.msra.mxu0 0.0
  %148 = vmatprep.subr.mxu0 0.0
  %149 = vmatpush2.msra.mxu0 0.0
  %150 = vmatprep.subr.mxu0 0.0
  %151 = vmatpush2.msra.mxu0 0.0
  %152 = vmatprep.subr.mxu0 0.0
  %153 = vmatpush2.msra.mxu0 0.0
  %154 = vmatprep.subr.mxu0 0.0
  %155 = vmatpush2.msra.mxu0 0.0
  %156 = vmatprep.subr.mxu0 0.0
  %157 = vmatpush2.msra.mxu0 0.0
  %158 = vmatprep.mubr.f32.mxu0 0.0
  %v159 = vand.u32 %v59, 4294901760
  %v160 = vsub.f32 %v59, %v159
  %v161 = vand.u32 %v160, 4294901760
  %v162 = vsub.f32 %v160, %v161
  %v163 = vand.u32 %v162, 4294901760
  %164 = vmatmul.mubr.f32.gmra.mxu0 %v163
  %v165 = vpop.f32.mrf.mxu0
  %v166 = vadd.f32 0.0, %v165
  %v167 = vpop.f32.mrf.mxu0
  %168 = vmatprep.mubr.f32.mxu0 0.0
  %v169 = vand.u32 %v60, 4294901760
  %v170 = vsub.f32 %v60, %v169
  %v171 = vand.u32 %v170, 4294901760
  %v172 = vsub.f32 %v170, %v171
  %v173 = vand.u32 %v172, 4294901760
  %174 = vmatmul.mubr.f32.gmra.mxu0 %v173
  %v175 = vpop.f32.mrf.mxu0
  %v176 = vadd.f32 0.0, %v175
  %v177 = vpop.f32.mrf.mxu0
  %178 = vdwg.mxu0
  %179 = vmatprep.subr.mxu0 0.0
  %v180 = vand.u32 %v77, 4294901760
  %v181 = vsub.f32 %v77, %v180
  %v182 = vand.u32 %v181, 4294901760
  %v183 = vsub.f32 %v181, %v182
  %v184 = vand.u32 %v183, 4294901760
  %185 = vmatpush1.msra.mxu0 %v184
  %186 = vmatprep.subr.mxu0 0.0
  %v187 = vand.u32 %v76, 4294901760
  %v188 = vsub.f32 %v76, %v187
  %v189 = vand.u32 %v188, 4294901760
  %v190 = vsub.f32 %v188, %v189
  %v191 = vand.u32 %v190, 4294901760
  %192 = vmatpush1.msra.mxu0 %v191
  %193 = vmatprep.subr.mxu0 0.0
  %v194 = vand.u32 %v75, 4294901760
  %v195 = vsub.f32 %v75, %v194
  %v196 = vand.u32 %v195, 4294901760
  %v197 = vsub.f32 %v195, %v196
  %v198 = vand.u32 %v197, 4294901760
  %199 = vmatpush1.msra.mxu0 %v198
  %200 = vmatprep.subr.mxu0 0.0
  %v201 = vand.u32 %v74, 4294901760
  %v202 = vsub.f32 %v74, %v201
  %v203 = vand.u32 %v202, 4294901760
  %v204 = vsub.f32 %v202, %v203
  %v205 = vand.u32 %v204, 4294901760
  %206 = vmatpush1.msra.mxu0 %v205
  %207 = vmatprep.subr.mxu0 0.0
  %v208 = vand.u32 %v73, 4294901760
  %v209 = vsub.f32 %v73, %v208
  %v210 = vand.u32 %v209, 4294901760
  %v211 = vsub.f32 %v209, %v210
  %v212 = vand.u32 %v211, 4294901760
  %213 = vmatpush1.msra.mxu0 %v212
  %214 = vmatprep.subr.mxu0 0.0
  %v215 = vand.u32 %v72, 4294901760
  %v216 = vsub.f32 %v72, %v215
  %v217 = vand.u32 %v216, 4294901760
  %v218 = vsub.f32 %v216, %v217
  %v219 = vand.u32 %v218, 4294901760
  %220 = vmatpush1.msra.mxu0 %v219
  %221 = vmatprep.subr.mxu0 0.0
  %v222 = vand.u32 %v71, 4294901760
  %v223 = vsub.f32 %v71, %v222
  %v224 = vand.u32 %v223, 4294901760
  %v225 = vsub.f32 %v223, %v224
  %v226 = vand.u32 %v225, 4294901760
  %227 = vmatpush1.msra.mxu0 %v226
  %228 = vmatprep.subr.mxu0 0.0
  %v229 = vand.u32 %v70, 4294901760
  %v230 = vsub.f32 %v70, %v229
  %v231 = vand.u32 %v230, 4294901760
  %v232 = vsub.f32 %v230, %v231
  %v233 = vand.u32 %v232, 4294901760
  %234 = vmatpush1.msra.mxu0 %v233
  %235 = vmatprep.subr.mxu0 0.0
  %v236 = vand.u32 %v69, 4294901760
  %v237 = vsub.f32 %v69, %v236
  %v238 = vand.u32 %v237, 4294901760
  %v239 = vsub.f32 %v237, %v238
  %v240 = vand.u32 %v239, 4294901760
  %241 = vmatpush1.msra.mxu0 %v240
  %242 = vmatprep.subr.mxu0 0.0
  %v243 = vand.u32 %v68, 4294901760
  %v244 = vsub.f32 %v68, %v243
  %v245 = vand.u32 %v244, 4294901760
  %v246 = vsub.f32 %v244, %v245
  %v247 = vand.u32 %v246, 4294901760
  %248 = vmatpush1.msra.mxu0 %v247
  %249 = vmatprep.subr.mxu0 0.0
  %v250 = vand.u32 %v67, 4294901760
  %v251 = vsub.f32 %v67, %v250
  %v252 = vand.u32 %v251, 4294901760
  %v253 = vsub.f32 %v251, %v252
  %v254 = vand.u32 %v253, 4294901760
  %255 = vmatpush1.msra.mxu0 %v254
  %256 = vmatprep.subr.mxu0 0.0
  %v257 = vand.u32 %v66, 4294901760
  %v258 = vsub.f32 %v66, %v257
  %v259 = vand.u32 %v258, 4294901760
  %v260 = vsub.f32 %v258, %v259
  %v261 = vand.u32 %v260, 4294901760
  %262 = vmatpush1.msra.mxu0 %v261
  %263 = vmatprep.subr.mxu0 0.0
  %v264 = vand.u32 %v65, 4294901760
  %v265 = vsub.f32 %v65, %v264
  %v266 = vand.u32 %v265, 4294901760
  %v267 = vsub.f32 %v265, %v266
  %v268 = vand.u32 %v267, 4294901760
  %269 = vmatpush1.msra.mxu0 %v268
  %270 = vmatprep.subr.mxu0 0.0
  %v271 = vand.u32 %v64, 4294901760
  %v272 = vsub.f32 %v64, %v271
  %v273 = vand.u32 %v272, 4294901760
  %v274 = vsub.f32 %v272, %v273
  %v275 = vand.u32 %v274, 4294901760
  %276 = vmatpush1.msra.mxu0 %v275
  %277 = vmatprep.subr.mxu0 0.0
  %v278 = vand.u32 %v63, 4294901760
  %v279 = vsub.f32 %v63, %v278
  %v280 = vand.u32 %v279, 4294901760
  %v281 = vsub.f32 %v279, %v280
  %v282 = vand.u32 %v281, 4294901760
  %283 = vmatpush1.msra.mxu0 %v282
  %284 = vmatprep.subr.mxu0 0.0
  %v285 = vand.u32 %v62, 4294901760
  %v286 = vsub.f32 %v62, %v285
  %v287 = vand.u32 %v286, 4294901760
  %v288 = vsub.f32 %v286, %v287
  %v289 = vand.u32 %v288, 4294901760
  %290 = vmatpush1.msra.mxu0 %v289
  %291 = vmatprep.subr.mxu0 0.0
  %292 = vmatpush2.msra.mxu0 0.0
  %293 = vmatprep.subr.mxu0 0.0
  %294 = vmatpush2.msra.mxu0 0.0
  %295 = vmatprep.subr.mxu0 0.0
  %296 = vmatpush2.msra.mxu0 0.0
  %297 = vmatprep.subr.mxu0 0.0
  %298 = vmatpush2.msra.mxu0 0.0
  %299 = vmatprep.subr.mxu0 0.0
  %300 = vmatpush2.msra.mxu0 0.0
  %301 = vmatprep.subr.mxu0 0.0
  %302 = vmatpush2.msra.mxu0 0.0
  %303 = vmatprep.subr.mxu0 0.0
  %304 = vmatpush2.msra.mxu0 0.0
  %305 = vmatprep.subr.mxu0 0.0
  %306 = vmatpush2.msra.mxu0 0.0
  %307 = vmatprep.subr.mxu0 0.0
  %308 = vmatpush2.msra.mxu0 0.0
  %309 = vmatprep.subr.mxu0 0.0
  %310 = vmatpush2.msra.mxu0 0.0
  %311 = vmatprep.subr.mxu0 0.0
  %312 = vmatpush2.msra.mxu0 0.0
  %313 = vmatprep.subr.mxu0 0.0
  %314 = vmatpush2.msra.mxu0 0.0
  %315 = vmatprep.subr.mxu0 0.0
  %316 = vmatpush2.msra.mxu0 0.0
  %317 = vmatprep.subr.mxu0 0.0
  %318 = vmatpush2.msra.mxu0 0.0
  %319 = vmatprep.subr.mxu0 0.0
  %320 = vmatpush2.msra.mxu0 0.0
  %321 = vmatprep.subr.mxu0 0.0
  %322 = vmatpush2.msra.mxu0 0.0
  %323 = vmatprep.mubr.f32.mxu0 0.0
  %v324 = vand.u32 %v59, 4294901760
  %325 = vmatmul.mubr.f32.gmra.mxu0 %v324
  %v326 = vpop.f32.mrf.mxu0
  %v327 = vadd.f32 %v166, %v326
  %v328 = vpop.f32.mrf.mxu0
  %329 = vmatprep.mubr.f32.mxu0 0.0
  %v330 = vand.u32 %v60, 4294901760
  %331 = vmatmul.mubr.f32.gmra.mxu0 %v330
  %v332 = vpop.f32.mrf.mxu0
  %v333 = vadd.f32 %v176, %v332
  %v334 = vpop.f32.mrf.mxu0
  %335 = vdwg.mxu0
  %336 = vmatprep.subr.mxu0 0.0
  %v337 = vand.u32 %v77, 4294901760
  %v338 = vsub.f32 %v77, %v337
  %339 = vmatpush1.msra.mxu0 %v338
  %340 = vmatprep.subr.mxu0 0.0
  %v341 = vand.u32 %v76, 4294901760
  %v342 = vsub.f32 %v76, %v341
  %343 = vmatpush1.msra.mxu0 %v342
  %344 = vmatprep.subr.mxu0 0.0
  %v345 = vand.u32 %v75, 4294901760
  %v346 = vsub.f32 %v75, %v345
  %347 = vmatpush1.msra.mxu0 %v346
  %348 = vmatprep.subr.mxu0 0.0
  %v349 = vand.u32 %v74, 4294901760
  %v350 = vsub.f32 %v74, %v349
  %351 = vmatpush1.msra.mxu0 %v350
  %352 = vmatprep.subr.mxu0 0.0
  %v353 = vand.u32 %v73, 4294901760
  %v354 = vsub.f32 %v73, %v353
  %355 = vmatpush1.msra.mxu0 %v354
  %356 = vmatprep.subr.mxu0 0.0
  %v357 = vand.u32 %v72, 4294901760
  %v358 = vsub.f32 %v72, %v357
  %359 = vmatpush1.msra.mxu0 %v358
  %360 = vmatprep.subr.mxu0 0.0
  %v361 = vand.u32 %v71, 4294901760
  %v362 = vsub.f32 %v71, %v361
  %363 = vmatpush1.msra.mxu0 %v362
  %364 = vmatprep.subr.mxu0 0.0
  %v365 = vand.u32 %v70, 4294901760
  %v366 = vsub.f32 %v70, %v365
  %367 = vmatpush1.msra.mxu0 %v366
  %368 = vmatprep.subr.mxu0 0.0
  %v369 = vand.u32 %v69, 4294901760
  %v370 = vsub.f32 %v69, %v369
  %371 = vmatpush1.msra.mxu0 %v370
  %372 = vmatprep.subr.mxu0 0.0
  %v373 = vand.u32 %v68, 4294901760
  %v374 = vsub.f32 %v68, %v373
  %375 = vmatpush1.msra.mxu0 %v374
  %376 = vmatprep.subr.mxu0 0.0
  %v377 = vand.u32 %v67, 4294901760
  %v378 = vsub.f32 %v67, %v377
  %379 = vmatpush1.msra.mxu0 %v378
  %380 = vmatprep.subr.mxu0 0.0
  %v381 = vand.u32 %v66, 4294901760
  %v382 = vsub.f32 %v66, %v381
  %383 = vmatpush1.msra.mxu0 %v382
  %384 = vmatprep.subr.mxu0 0.0
  %v385 = vand.u32 %v65, 4294901760
  %v386 = vsub.f32 %v65, %v385
  %387 = vmatpush1.msra.mxu0 %v386
  %388 = vmatprep.subr.mxu0 0.0
  %v389 = vand.u32 %v64, 4294901760
  %v390 = vsub.f32 %v64, %v389
  %391 = vmatpush1.msra.mxu0 %v390
  %392 = vmatprep.subr.mxu0 0.0
  %v393 = vand.u32 %v63, 4294901760
  %v394 = vsub.f32 %v63, %v393
  %395 = vmatpush1.msra.mxu0 %v394
  %396 = vmatprep.subr.mxu0 0.0
  %v397 = vand.u32 %v62, 4294901760
  %v398 = vsub.f32 %v62, %v397
  %399 = vmatpush1.msra.mxu0 %v398
  %400 = vmatprep.subr.mxu0 0.0
  %401 = vmatpush2.msra.mxu0 0.0
  %402 = vmatprep.subr.mxu0 0.0
  %403 = vmatpush2.msra.mxu0 0.0
  %404 = vmatprep.subr.mxu0 0.0
  %405 = vmatpush2.msra.mxu0 0.0
  %406 = vmatprep.subr.mxu0 0.0
  %407 = vmatpush2.msra.mxu0 0.0
  %408 = vmatprep.subr.mxu0 0.0
  %409 = vmatpush2.msra.mxu0 0.0
  %410 = vmatprep.subr.mxu0 0.0
  %411 = vmatpush2.msra.mxu0 0.0
  %412 = vmatprep.subr.mxu0 0.0
  %413 = vmatpush2.msra.mxu0 0.0
  %414 = vmatprep.subr.mxu0 0.0
  %415 = vmatpush2.msra.mxu0 0.0
  %416 = vmatprep.subr.mxu0 0.0
  %417 = vmatpush2.msra.mxu0 0.0
  %418 = vmatprep.subr.mxu0 0.0
  %419 = vmatpush2.msra.mxu0 0.0
  %420 = vmatprep.subr.mxu0 0.0
  %421 = vmatpush2.msra.mxu0 0.0
  %422 = vmatprep.subr.mxu0 0.0
  %423 = vmatpush2.msra.mxu0 0.0
  %424 = vmatprep.subr.mxu0 0.0
  %425 = vmatpush2.msra.mxu0 0.0
  %426 = vmatprep.subr.mxu0 0.0
  %427 = vmatpush2.msra.mxu0 0.0
  %428 = vmatprep.subr.mxu0 0.0
  %429 = vmatpush2.msra.mxu0 0.0
  %430 = vmatprep.subr.mxu0 0.0
  %431 = vmatpush2.msra.mxu0 0.0
  %432 = vmatprep.mubr.f32.mxu0 0.0
  %v433 = vand.u32 %v59, 4294901760
  %v434 = vsub.f32 %v59, %v433
  %435 = vmatmul.mubr.f32.gmra.mxu0 %v434
  %v436 = vpop.f32.mrf.mxu0
  %v437 = vadd.f32 %v327, %v436
  %v438 = vpop.f32.mrf.mxu0
  %439 = vmatprep.mubr.f32.mxu0 0.0
  %v440 = vand.u32 %v60, 4294901760
  %v441 = vsub.f32 %v60, %v440
  %442 = vmatmul.mubr.f32.gmra.mxu0 %v441
  %v443 = vpop.f32.mrf.mxu0
  %v444 = vadd.f32 %v333, %v443
  %v445 = vpop.f32.mrf.mxu0
  %446 = vdwg.mxu0
  %447 = vmatprep.subr.mxu0 0.0
  %v448 = vand.u32 %v77, 4294901760
  %449 = vmatpush1.msra.mxu0 %v448
  %450 = vmatprep.subr.mxu0 0.0
  %v451 = vand.u32 %v76, 4294901760
  %452 = vmatpush1.msra.mxu0 %v451
  %453 = vmatprep.subr.mxu0 0.0
  %v454 = vand.u32 %v75, 4294901760
  %455 = vmatpush1.msra.mxu0 %v454
  %456 = vmatprep.subr.mxu0 0.0
  %v457 = vand.u32 %v74, 4294901760
  %458 = vmatpush1.msra.mxu0 %v457
  %459 = vmatprep.subr.mxu0 0.0
  %v460 = vand.u32 %v73, 4294901760
  %461 = vmatpush1.msra.mxu0 %v460
  %462 = vmatprep.subr.mxu0 0.0
  %v463 = vand.u32 %v72, 4294901760
  %464 = vmatpush1.msra.mxu0 %v463
  %465 = vmatprep.subr.mxu0 0.0
  %v466 = vand.u32 %v71, 4294901760
  %467 = vmatpush1.msra.mxu0 %v466
  %468 = vmatprep.subr.mxu0 0.0
  %v469 = vand.u32 %v70, 4294901760
  %470 = vmatpush1.msra.mxu0 %v469
  %471 = vmatprep.subr.mxu0 0.0
  %v472 = vand.u32 %v69, 4294901760
  %473 = vmatpush1.msra.mxu0 %v472
  %474 = vmatprep.subr.mxu0 0.0
  %v475 = vand.u32 %v68, 4294901760
  %476 = vmatpush1.msra.mxu0 %v475
  %477 = vmatprep.subr.mxu0 0.0
  %v478 = vand.u32 %v67, 4294901760
  %479 = vmatpush1.msra.mxu0 %v478
  %480 = vmatprep.subr.mxu0 0.0
  %v481 = vand.u32 %v66, 4294901760
  %482 = vmatpush1.msra.mxu0 %v481
  %483 = vmatprep.subr.mxu0 0.0
  %v484 = vand.u32 %v65, 4294901760
  %485 = vmatpush1.msra.mxu0 %v484
  %486 = vmatprep.subr.mxu0 0.0
  %v487 = vand.u32 %v64, 4294901760
  %488 = vmatpush1.msra.mxu0 %v487
  %489 = vmatprep.subr.mxu0 0.0
  %v490 = vand.u32 %v63, 4294901760
  %491 = vmatpush1.msra.mxu0 %v490
  %492 = vmatprep.subr.mxu0 0.0
  %v493 = vand.u32 %v62, 4294901760
  %494 = vmatpush1.msra.mxu0 %v493
  %495 = vmatprep.subr.mxu0 0.0
  %496 = vmatpush2.msra.mxu0 0.0
  %497 = vmatprep.subr.mxu0 0.0
  %498 = vmatpush2.msra.mxu0 0.0
  %499 = vmatprep.subr.mxu0 0.0
  %500 = vmatpush2.msra.mxu0 0.0
  %501 = vmatprep.subr.mxu0 0.0
  %502 = vmatpush2.msra.mxu0 0.0
  %503 = vmatprep.subr.mxu0 0.0
  %504 = vmatpush2.msra.mxu0 0.0
  %505 = vmatprep.subr.mxu0 0.0
  %506 = vmatpush2.msra.mxu0 0.0
  %507 = vmatprep.subr.mxu0 0.0
  %508 = vmatpush2.msra.mxu0 0.0
  %509 = vmatprep.subr.mxu0 0.0
  %510 = vmatpush2.msra.mxu0 0.0
  %511 = vmatprep.subr.mxu0 0.0
  %512 = vmatpush2.msra.mxu0 0.0
  %513 = vmatprep.subr.mxu0 0.0
  %514 = vmatpush2.msra.mxu0 0.0
  %515 = vmatprep.subr.mxu0 0.0
  %516 = vmatpush2.msra.mxu0 0.0
  %517 = vmatprep.subr.mxu0 0.0
  %518 = vmatpush2.msra.mxu0 0.0
  %519 = vmatprep.subr.mxu0 0.0
  %520 = vmatpush2.msra.mxu0 0.0
  %521 = vmatprep.subr.mxu0 0.0
  %522 = vmatpush2.msra.mxu0 0.0
  %523 = vmatprep.subr.mxu0 0.0
  %524 = vmatpush2.msra.mxu0 0.0
  %525 = vmatprep.subr.mxu0 0.0
  %526 = vmatpush2.msra.mxu0 0.0
  %527 = vmatprep.mubr.f32.mxu0 0.0
  %v528 = vand.u32 %v59, 4294901760
  %v529 = vsub.f32 %v59, %v528
  %v530 = vand.u32 %v529, 4294901760
  %531 = vmatmul.mubr.f32.gmra.mxu0 %v530
  %v532 = vpop.f32.mrf.mxu0
  %v533 = vadd.f32 %v437, %v532
  %v534 = vpop.f32.mrf.mxu0
  %535 = vmatprep.mubr.f32.mxu0 0.0
  %v536 = vand.u32 %v60, 4294901760
  %v537 = vsub.f32 %v60, %v536
  %v538 = vand.u32 %v537, 4294901760
  %539 = vmatmul.mubr.f32.gmra.mxu0 %v538
  %v540 = vpop.f32.mrf.mxu0
  %v541 = vadd.f32 %v444, %v540
  %v542 = vpop.f32.mrf.mxu0
  %543 = vdwg.mxu0
  %544 = vmatprep.subr.mxu0 0.0
  %v545 = vand.u32 %v77, 4294901760
  %v546 = vsub.f32 %v77, %v545
  %v547 = vand.u32 %v546, 4294901760
  %548 = vmatpush1.msra.mxu0 %v547
  %549 = vmatprep.subr.mxu0 0.0
  %v550 = vand.u32 %v76, 4294901760
  %v551 = vsub.f32 %v76, %v550
  %v552 = vand.u32 %v551, 4294901760
  %553 = vmatpush1.msra.mxu0 %v552
  %554 = vmatprep.subr.mxu0 0.0
  %v555 = vand.u32 %v75, 4294901760
  %v556 = vsub.f32 %v75, %v555
  %v557 = vand.u32 %v556, 4294901760
  %558 = vmatpush1.msra.mxu0 %v557
  %559 = vmatprep.subr.mxu0 0.0
  %v560 = vand.u32 %v74, 4294901760
  %v561 = vsub.f32 %v74, %v560
  %v562 = vand.u32 %v561, 4294901760
  %563 = vmatpush1.msra.mxu0 %v562
  %564 = vmatprep.subr.mxu0 0.0
  %v565 = vand.u32 %v73, 4294901760
  %v566 = vsub.f32 %v73, %v565
  %v567 = vand.u32 %v566, 4294901760
  %568 = vmatpush1.msra.mxu0 %v567
  %569 = vmatprep.subr.mxu0 0.0
  %v570 = vand.u32 %v72, 4294901760
  %v571 = vsub.f32 %v72, %v570
  %v572 = vand.u32 %v571, 4294901760
  %573 = vmatpush1.msra.mxu0 %v572
  %574 = vmatprep.subr.mxu0 0.0
  %v575 = vand.u32 %v71, 4294901760
  %v576 = vsub.f32 %v71, %v575
  %v577 = vand.u32 %v576, 4294901760
  %578 = vmatpush1.msra.mxu0 %v577
  %579 = vmatprep.subr.mxu0 0.0
  %v580 = vand.u32 %v70, 4294901760
  %v581 = vsub.f32 %v70, %v580
  %v582 = vand.u32 %v581, 4294901760
  %583 = vmatpush1.msra.mxu0 %v582
  %584 = vmatprep.subr.mxu0 0.0
  %v585 = vand.u32 %v69, 4294901760
  %v586 = vsub.f32 %v69, %v585
  %v587 = vand.u32 %v586, 4294901760
  %588 = vmatpush1.msra.mxu0 %v587
  %589 = vmatprep.subr.mxu0 0.0
  %v590 = vand.u32 %v68, 4294901760
  %v591 = vsub.f32 %v68, %v590
  %v592 = vand.u32 %v591, 4294901760
  %593 = vmatpush1.msra.mxu0 %v592
  %594 = vmatprep.subr.mxu0 0.0
  %v595 = vand.u32 %v67, 4294901760
  %v596 = vsub.f32 %v67, %v595
  %v597 = vand.u32 %v596, 4294901760
  %598 = vmatpush1.msra.mxu0 %v597
  %599 = vmatprep.subr.mxu0 0.0
  %v600 = vand.u32 %v66, 4294901760
  %v601 = vsub.f32 %v66, %v600
  %v602 = vand.u32 %v601, 4294901760
  %603 = vmatpush1.msra.mxu0 %v602
  %604 = vmatprep.subr.mxu0 0.0
  %v605 = vand.u32 %v65, 4294901760
  %v606 = vsub.f32 %v65, %v605
  %v607 = vand.u32 %v606, 4294901760
  %608 = vmatpush1.msra.mxu0 %v607
  %609 = vmatprep.subr.mxu0 0.0
  %v610 = vand.u32 %v64, 4294901760
  %v611 = vsub.f32 %v64, %v610
  %v612 = vand.u32 %v611, 4294901760
  %613 = vmatpush1.msra.mxu0 %v612
  %614 = vmatprep.subr.mxu0 0.0
  %v615 = vand.u32 %v63, 4294901760
  %v616 = vsub.f32 %v63, %v615
  %v617 = vand.u32 %v616, 4294901760
  %618 = vmatpush1.msra.mxu0 %v617
  %619 = vmatprep.subr.mxu0 0.0
  %v620 = vand.u32 %v62, 4294901760
  %v621 = vsub.f32 %v62, %v620
  %v622 = vand.u32 %v621, 4294901760
  %623 = vmatpush1.msra.mxu0 %v622
  %624 = vmatprep.subr.mxu0 0.0
  %625 = vmatpush2.msra.mxu0 0.0
  %626 = vmatprep.subr.mxu0 0.0
  %627 = vmatpush2.msra.mxu0 0.0
  %628 = vmatprep.subr.mxu0 0.0
  %629 = vmatpush2.msra.mxu0 0.0
  %630 = vmatprep.subr.mxu0 0.0
  %631 = vmatpush2.msra.mxu0 0.0
  %632 = vmatprep.subr.mxu0 0.0
  %633 = vmatpush2.msra.mxu0 0.0
  %634 = vmatprep.subr.mxu0 0.0
  %635 = vmatpush2.msra.mxu0 0.0
  %636 = vmatprep.subr.mxu0 0.0
  %637 = vmatpush2.msra.mxu0 0.0
  %638 = vmatprep.subr.mxu0 0.0
  %639 = vmatpush2.msra.mxu0 0.0
  %640 = vmatprep.subr.mxu0 0.0
  %641 = vmatpush2.msra.mxu0 0.0
  %642 = vmatprep.subr.mxu0 0.0
  %643 = vmatpush2.msra.mxu0 0.0
  %644 = vmatprep.subr.mxu0 0.0
  %645 = vmatpush2.msra.mxu0 0.0
  %646 = vmatprep.subr.mxu0 0.0
  %647 = vmatpush2.msra.mxu0 0.0
  %648 = vmatprep.subr.mxu0 0.0
  %649 = vmatpush2.msra.mxu0 0.0
  %650 = vmatprep.subr.mxu0 0.0
  %651 = vmatpush2.msra.mxu0 0.0
  %652 = vmatprep.subr.mxu0 0.0
  %653 = vmatpush2.msra.mxu0 0.0
  %654 = vmatprep.subr.mxu0 0.0
  %655 = vmatpush2.msra.mxu0 0.0
  %656 = vmatprep.mubr.f32.mxu0 0.0
  %v657 = vand.u32 %v59, 4294901760
  %658 = vmatmul.mubr.f32.gmra.mxu0 %v657
  %v659 = vpop.f32.mrf.mxu0
  %v660 = vadd.f32 %v533, %v659
  %v661 = vpop.f32.mrf.mxu0
  %662 = vmatprep.mubr.f32.mxu0 0.0
  %v663 = vand.u32 %v60, 4294901760
  %664 = vmatmul.mubr.f32.gmra.mxu0 %v663
  %v665 = vpop.f32.mrf.mxu0
  %v666 = vadd.f32 %v541, %v665
  %v667 = vpop.f32.mrf.mxu0
  %668 = vdwg.mxu0
  %669 = vmatprep.subr.mxu0 0.0
  %v670 = vand.u32 %v77, 4294901760
  %671 = vmatpush1.msra.mxu0 %v670
  %672 = vmatprep.subr.mxu0 0.0
  %v673 = vand.u32 %v76, 4294901760
  %674 = vmatpush1.msra.mxu0 %v673
  %675 = vmatprep.subr.mxu0 0.0
  %v676 = vand.u32 %v75, 4294901760
  %677 = vmatpush1.msra.mxu0 %v676
  %678 = vmatprep.subr.mxu0 0.0
  %v679 = vand.u32 %v74, 4294901760
  %680 = vmatpush1.msra.mxu0 %v679
  %681 = vmatprep.subr.mxu0 0.0
  %v682 = vand.u32 %v73, 4294901760
  %683 = vmatpush1.msra.mxu0 %v682
  %684 = vmatprep.subr.mxu0 0.0
  %v685 = vand.u32 %v72, 4294901760
  %686 = vmatpush1.msra.mxu0 %v685
  %687 = vmatprep.subr.mxu0 0.0
  %v688 = vand.u32 %v71, 4294901760
  %689 = vmatpush1.msra.mxu0 %v688
  %690 = vmatprep.subr.mxu0 0.0
  %v691 = vand.u32 %v70, 4294901760
  %692 = vmatpush1.msra.mxu0 %v691
  %693 = vmatprep.subr.mxu0 0.0
  %v694 = vand.u32 %v69, 4294901760
  %695 = vmatpush1.msra.mxu0 %v694
  %696 = vmatprep.subr.mxu0 0.0
  %v697 = vand.u32 %v68, 4294901760
  %698 = vmatpush1.msra.mxu0 %v697
  %699 = vmatprep.subr.mxu0 0.0
  %v700 = vand.u32 %v67, 4294901760
  %701 = vmatpush1.msra.mxu0 %v700
  %702 = vmatprep.subr.mxu0 0.0
  %v703 = vand.u32 %v66, 4294901760
  %704 = vmatpush1.msra.mxu0 %v703
  %705 = vmatprep.subr.mxu0 0.0
  %v706 = vand.u32 %v65, 4294901760
  %707 = vmatpush1.msra.mxu0 %v706
  %708 = vmatprep.subr.mxu0 0.0
  %v709 = vand.u32 %v64, 4294901760
  %710 = vmatpush1.msra.mxu0 %v709
  %711 = vmatprep.subr.mxu0 0.0
  %v712 = vand.u32 %v63, 4294901760
  %713 = vmatpush1.msra.mxu0 %v712
  %714 = vmatprep.subr.mxu0 0.0
  %v715 = vand.u32 %v62, 4294901760
  %716 = vmatpush1.msra.mxu0 %v715
  %717 = vmatprep.subr.mxu0 0.0
  %718 = vmatpush2.msra.mxu0 0.0
  %719 = vmatprep.subr.mxu0 0.0
  %720 = vmatpush2.msra.mxu0 0.0
  %721 = vmatprep.subr.mxu0 0.0
  %722 = vmatpush2.msra.mxu0 0.0
  %723 = vmatprep.subr.mxu0 0.0
  %724 = vmatpush2.msra.mxu0 0.0
  %725 = vmatprep.subr.mxu0 0.0
  %726 = vmatpush2.msra.mxu0 0.0
  %727 = vmatprep.subr.mxu0 0.0
  %728 = vmatpush2.msra.mxu0 0.0
  %729 = vmatprep.subr.mxu0 0.0
  %730 = vmatpush2.msra.mxu0 0.0
  %731 = vmatprep.subr.mxu0 0.0
  %732 = vmatpush2.msra.mxu0 0.0
  %733 = vmatprep.subr.mxu0 0.0
  %734 = vmatpush2.msra.mxu0 0.0
  %735 = vmatprep.subr.mxu0 0.0
  %736 = vmatpush2.msra.mxu0 0.0
  %737 = vmatprep.subr.mxu0 0.0
  %738 = vmatpush2.msra.mxu0 0.0
  %739 = vmatprep.subr.mxu0 0.0
  %740 = vmatpush2.msra.mxu0 0.0
  %741 = vmatprep.subr.mxu0 0.0
  %742 = vmatpush2.msra.mxu0 0.0
  %743 = vmatprep.subr.mxu0 0.0
  %744 = vmatpush2.msra.mxu0 0.0
  %745 = vmatprep.subr.mxu0 0.0
  %746 = vmatpush2.msra.mxu0 0.0
  %747 = vmatprep.subr.mxu0 0.0
  %748 = vmatpush2.msra.mxu0 0.0
  %749 = vmatprep.mubr.f32.mxu0 0.0
  %v750 = vand.u32 %v59, 4294901760
  %751 = vmatmul.mubr.f32.gmra.mxu0 %v750
  %v752 = vpop.f32.mrf.mxu0
  %v753 = vadd.f32 %v660, %v752
  %v754 = vpop.f32.mrf.mxu0
  %755 = vmatprep.mubr.f32.mxu0 0.0
  %v756 = vand.u32 %v60, 4294901760
  %757 = vmatmul.mubr.f32.gmra.mxu0 %v756
  %v758 = vpop.f32.mrf.mxu0
  %v759 = vadd.f32 %v666, %v758
  %v760 = vpop.f32.mrf.mxu0
  %761 = vdwg.mxu0
  %762 = vmatprep.subr.mxu0 0.0
  %v763 = vand.u32 %v58, 4294901760
  %764 = vmatpush1.msra.mxu0 %v763
  %765 = vmatprep.subr.mxu0 0.0
  %v766 = vand.u32 %v57, 4294901760
  %767 = vmatpush1.msra.mxu0 %v766
  %768 = vmatprep.subr.mxu0 0.0
  %v769 = vand.u32 %v56, 4294901760
  %770 = vmatpush1.msra.mxu0 %v769
  %771 = vmatprep.subr.mxu0 0.0
  %v772 = vand.u32 %v55, 4294901760
  %773 = vmatpush1.msra.mxu0 %v772
  %774 = vmatprep.subr.mxu0 0.0
  %v775 = vand.u32 %v54, 4294901760
  %776 = vmatpush1.msra.mxu0 %v775
  %777 = vmatprep.subr.mxu0 0.0
  %v778 = vand.u32 %v53, 4294901760
  %779 = vmatpush1.msra.mxu0 %v778
  %780 = vmatprep.subr.mxu0 0.0
  %v781 = vand.u32 %v52, 4294901760
  %782 = vmatpush1.msra.mxu0 %v781
  %783 = vmatprep.subr.mxu0 0.0
  %v784 = vand.u32 %v51, 4294901760
  %785 = vmatpush1.msra.mxu0 %v784
  %786 = vmatprep.subr.mxu0 0.0
  %v787 = vand.u32 %v50, 4294901760
  %788 = vmatpush1.msra.mxu0 %v787
  %789 = vmatprep.subr.mxu0 0.0
  %v790 = vand.u32 %v49, 4294901760
  %791 = vmatpush1.msra.mxu0 %v790
  %792 = vmatprep.subr.mxu0 0.0
  %v793 = vand.u32 %v48, 4294901760
  %794 = vmatpush1.msra.mxu0 %v793
  %795 = vmatprep.subr.mxu0 0.0
  %v796 = vand.u32 %v47, 4294901760
  %797 = vmatpush1.msra.mxu0 %v796
  %798 = vmatprep.subr.mxu0 0.0
  %v799 = vand.u32 %v46, 4294901760
  %800 = vmatpush1.msra.mxu0 %v799
  %801 = vmatprep.subr.mxu0 0.0
  %v802 = vand.u32 %v45, 4294901760
  %803 = vmatpush1.msra.mxu0 %v802
  %804 = vmatprep.subr.mxu0 0.0
  %v805 = vand.u32 %v44, 4294901760
  %806 = vmatpush1.msra.mxu0 %v805
  %807 = vmatprep.subr.mxu0 0.0
  %v808 = vand.u32 %v43, 4294901760
  %809 = vmatpush1.msra.mxu0 %v808
  %810 = vmatprep.subr.mxu0 0.0
  %811 = vmatpush2.msra.mxu0 0.0
  %812 = vmatprep.subr.mxu0 0.0
  %813 = vmatpush2.msra.mxu0 0.0
  %814 = vmatprep.subr.mxu0 0.0
  %815 = vmatpush2.msra.mxu0 0.0
  %816 = vmatprep.subr.mxu0 0.0
  %817 = vmatpush2.msra.mxu0 0.0
  %818 = vmatprep.subr.mxu0 0.0
  %819 = vmatpush2.msra.mxu0 0.0
  %820 = vmatprep.subr.mxu0 0.0
  %821 = vmatpush2.msra.mxu0 0.0
  %822 = vmatprep.subr.mxu0 0.0
  %823 = vmatpush2.msra.mxu0 0.0
  %824 = vmatprep.subr.mxu0 0.0
  %825 = vmatpush2.msra.mxu0 0.0
  %826 = vmatprep.subr.mxu0 0.0
  %827 = vmatpush2.msra.mxu0 0.0
  %828 = vmatprep.subr.mxu0 0.0
  %829 = vmatpush2.msra.mxu0 0.0
  %830 = vmatprep.subr.mxu0 0.0
  %831 = vmatpush2.msra.mxu0 0.0
  %832 = vmatprep.subr.mxu0 0.0
  %833 = vmatpush2.msra.mxu0 0.0
  %834 = vmatprep.subr.mxu0 0.0
  %835 = vmatpush2.msra.mxu0 0.0
  %836 = vmatprep.subr.mxu0 0.0
  %837 = vmatpush2.msra.mxu0 0.0
  %838 = vmatprep.subr.mxu0 0.0
  %839 = vmatpush2.msra.mxu0 0.0
  %840 = vmatprep.subr.mxu0 0.0
  %841 = vmatpush2.msra.mxu0 0.0
  %842 = vmatprep.mubr.f32.mxu0 0.0
  %v843 = vand.u32 %v41, 4294901760
  %v844 = vsub.f32 %v41, %v843
  %v845 = vand.u32 %v844, 4294901760
  %v846 = vsub.f32 %v844, %v845
  %v847 = vand.u32 %v846, 4294901760
  %848 = vmatmul.mubr.f32.gmra.mxu0 %v847
  %v849 = vpop.f32.mrf.mxu0
  %v850 = vadd.f32 %v753, %v849
  %v851 = vpop.f32.mrf.mxu0
  %852 = vmatprep.mubr.f32.mxu0 0.0
  %v853 = vand.u32 %v42, 4294901760
  %v854 = vsub.f32 %v42, %v853
  %v855 = vand.u32 %v854, 4294901760
  %v856 = vsub.f32 %v854, %v855
  %v857 = vand.u32 %v856, 4294901760
  %858 = vmatmul.mubr.f32.gmra.mxu0 %v857
  %v859 = vpop.f32.mrf.mxu0
  %v860 = vadd.f32 %v759, %v859
  %v861 = vpop.f32.mrf.mxu0
  %862 = vdwg.mxu0
  %863 = vmatprep.subr.mxu0 0.0
  %v864 = vand.u32 %v58, 4294901760
  %v865 = vsub.f32 %v58, %v864
  %v866 = vand.u32 %v865, 4294901760
  %v867 = vsub.f32 %v865, %v866
  %v868 = vand.u32 %v867, 4294901760
  %869 = vmatpush1.msra.mxu0 %v868
  %870 = vmatprep.subr.mxu0 0.0
  %v871 = vand.u32 %v57, 4294901760
  %v872 = vsub.f32 %v57, %v871
  %v873 = vand.u32 %v872, 4294901760
  %v874 = vsub.f32 %v872, %v873
  %v875 = vand.u32 %v874, 4294901760
  %876 = vmatpush1.msra.mxu0 %v875
  %877 = vmatprep.subr.mxu0 0.0
  %v878 = vand.u32 %v56, 4294901760
  %v879 = vsub.f32 %v56, %v878
  %v880 = vand.u32 %v879, 4294901760
  %v881 = vsub.f32 %v879, %v880
  %v882 = vand.u32 %v881, 4294901760
  %883 = vmatpush1.msra.mxu0 %v882
  %884 = vmatprep.subr.mxu0 0.0
  %v885 = vand.u32 %v55, 4294901760
  %v886 = vsub.f32 %v55, %v885
  %v887 = vand.u32 %v886, 4294901760
  %v888 = vsub.f32 %v886, %v887
  %v889 = vand.u32 %v888, 4294901760
  %890 = vmatpush1.msra.mxu0 %v889
  %891 = vmatprep.subr.mxu0 0.0
  %v892 = vand.u32 %v54, 4294901760
  %v893 = vsub.f32 %v54, %v892
  %v894 = vand.u32 %v893, 4294901760
  %v895 = vsub.f32 %v893, %v894
  %v896 = vand.u32 %v895, 4294901760
  %897 = vmatpush1.msra.mxu0 %v896
  %898 = vmatprep.subr.mxu0 0.0
  %v899 = vand.u32 %v53, 4294901760
  %v900 = vsub.f32 %v53, %v899
  %v901 = vand.u32 %v900, 4294901760
  %v902 = vsub.f32 %v900, %v901
  %v903 = vand.u32 %v902, 4294901760
  %904 = vmatpush1.msra.mxu0 %v903
  %905 = vmatprep.subr.mxu0 0.0
  %v906 = vand.u32 %v52, 4294901760
  %v907 = vsub.f32 %v52, %v906
  %v908 = vand.u32 %v907, 4294901760
  %v909 = vsub.f32 %v907, %v908
  %v910 = vand.u32 %v909, 4294901760
  %911 = vmatpush1.msra.mxu0 %v910
  %912 = vmatprep.subr.mxu0 0.0
  %v913 = vand.u32 %v51, 4294901760
  %v914 = vsub.f32 %v51, %v913
  %v915 = vand.u32 %v914, 4294901760
  %v916 = vsub.f32 %v914, %v915
  %v917 = vand.u32 %v916, 4294901760
  %918 = vmatpush1.msra.mxu0 %v917
  %919 = vmatprep.subr.mxu0 0.0
  %v920 = vand.u32 %v50, 4294901760
  %v921 = vsub.f32 %v50, %v920
  %v922 = vand.u32 %v921, 4294901760
  %v923 = vsub.f32 %v921, %v922
  %v924 = vand.u32 %v923, 4294901760
  %925 = vmatpush1.msra.mxu0 %v924
  %926 = vmatprep.subr.mxu0 0.0
  %v927 = vand.u32 %v49, 4294901760
  %v928 = vsub.f32 %v49, %v927
  %v929 = vand.u32 %v928, 4294901760
  %v930 = vsub.f32 %v928, %v929
  %v931 = vand.u32 %v930, 4294901760
  %932 = vmatpush1.msra.mxu0 %v931
  %933 = vmatprep.subr.mxu0 0.0
  %v934 = vand.u32 %v48, 4294901760
  %v935 = vsub.f32 %v48, %v934
  %v936 = vand.u32 %v935, 4294901760
  %v937 = vsub.f32 %v935, %v936
  %v938 = vand.u32 %v937, 4294901760
  %939 = vmatpush1.msra.mxu0 %v938
  %940 = vmatprep.subr.mxu0 0.0
  %v941 = vand.u32 %v47, 4294901760
  %v942 = vsub.f32 %v47, %v941
  %v943 = vand.u32 %v942, 4294901760
  %v944 = vsub.f32 %v942, %v943
  %v945 = vand.u32 %v944, 4294901760
  %946 = vmatpush1.msra.mxu0 %v945
  %947 = vmatprep.subr.mxu0 0.0
  %v948 = vand.u32 %v46, 4294901760
  %v949 = vsub.f32 %v46, %v948
  %v950 = vand.u32 %v949, 4294901760
  %v951 = vsub.f32 %v949, %v950
  %v952 = vand.u32 %v951, 4294901760
  %953 = vmatpush1.msra.mxu0 %v952
  %954 = vmatprep.subr.mxu0 0.0
  %v955 = vand.u32 %v45, 4294901760
  %v956 = vsub.f32 %v45, %v955
  %v957 = vand.u32 %v956, 4294901760
  %v958 = vsub.f32 %v956, %v957
  %v959 = vand.u32 %v958, 4294901760
  %960 = vmatpush1.msra.mxu0 %v959
  %961 = vmatprep.subr.mxu0 0.0
  %v962 = vand.u32 %v44, 4294901760
  %v963 = vsub.f32 %v44, %v962
  %v964 = vand.u32 %v963, 4294901760
  %v965 = vsub.f32 %v963, %v964
  %v966 = vand.u32 %v965, 4294901760
  %967 = vmatpush1.msra.mxu0 %v966
  %968 = vmatprep.subr.mxu0 0.0
  %v969 = vand.u32 %v43, 4294901760
  %v970 = vsub.f32 %v43, %v969
  %v971 = vand.u32 %v970, 4294901760
  %v972 = vsub.f32 %v970, %v971
  %v973 = vand.u32 %v972, 4294901760
  %974 = vmatpush1.msra.mxu0 %v973
  %975 = vmatprep.subr.mxu0 0.0
  %976 = vmatpush2.msra.mxu0 0.0
  %977 = vmatprep.subr.mxu0 0.0
  %978 = vmatpush2.msra.mxu0 0.0
  %979 = vmatprep.subr.mxu0 0.0
  %980 = vmatpush2.msra.mxu0 0.0
  %981 = vmatprep.subr.mxu0 0.0
  %982 = vmatpush2.msra.mxu0 0.0
  %983 = vmatprep.subr.mxu0 0.0
  %984 = vmatpush2.msra.mxu0 0.0
  %985 = vmatprep.subr.mxu0 0.0
  %986 = vmatpush2.msra.mxu0 0.0
  %987 = vmatprep.subr.mxu0 0.0
  %988 = vmatpush2.msra.mxu0 0.0
  %989 = vmatprep.subr.mxu0 0.0
  %990 = vmatpush2.msra.mxu0 0.0
  %991 = vmatprep.subr.mxu0 0.0
  %992 = vmatpush2.msra.mxu0 0.0
  %993 = vmatprep.subr.mxu0 0.0
  %994 = vmatpush2.msra.mxu0 0.0
  %995 = vmatprep.subr.mxu0 0.0
  %996 = vmatpush2.msra.mxu0 0.0
  %997 = vmatprep.subr.mxu0 0.0
  %998 = vmatpush2.msra.mxu0 0.0
  %999 = vmatprep.subr.mxu0 0.0
  %1000 = vmatpush2.msra.mxu0 0.0
  %1001 = vmatprep.subr.mxu0 0.0
  %1002 = vmatpush2.msra.mxu0 0.0
  %1003 = vmatprep.subr.mxu0 0.0
  %1004 = vmatpush2.msra.mxu0 0.0
  %1005 = vmatprep.subr.mxu0 0.0
  %1006 = vmatpush2.msra.mxu0 0.0
  %1007 = vmatprep.mubr.f32.mxu0 0.0
  %v1008 = vand.u32 %v41, 4294901760
  %1009 = vmatmul.mubr.f32.gmra.mxu0 %v1008
  %v1010 = vpop.f32.mrf.mxu0
  %v1011 = vadd.f32 %v850, %v1010
  %v1012 = vpop.f32.mrf.mxu0
  %1013 = vmatprep.mubr.f32.mxu0 0.0
  %v1014 = vand.u32 %v42, 4294901760
  %1015 = vmatmul.mubr.f32.gmra.mxu0 %v1014
  %v1016 = vpop.f32.mrf.mxu0
  %v1017 = vadd.f32 %v860, %v1016
  %v1018 = vpop.f32.mrf.mxu0
  %1019 = vdwg.mxu0
  %1020 = vmatprep.subr.mxu0 0.0
  %v1021 = vand.u32 %v58, 4294901760
  %v1022 = vsub.f32 %v58, %v1021
  %1023 = vmatpush1.msra.mxu0 %v1022
  %1024 = vmatprep.subr.mxu0 0.0
  %v1025 = vand.u32 %v57, 4294901760
  %v1026 = vsub.f32 %v57, %v1025
  %1027 = vmatpush1.msra.mxu0 %v1026
  %1028 = vmatprep.subr.mxu0 0.0
  %v1029 = vand.u32 %v56, 4294901760
  %v1030 = vsub.f32 %v56, %v1029
  %1031 = vmatpush1.msra.mxu0 %v1030
  %1032 = vmatprep.subr.mxu0 0.0
  %v1033 = vand.u32 %v55, 4294901760
  %v1034 = vsub.f32 %v55, %v1033
  %1035 = vmatpush1.msra.mxu0 %v1034
  %1036 = vmatprep.subr.mxu0 0.0
  %v1037 = vand.u32 %v54, 4294901760
  %v1038 = vsub.f32 %v54, %v1037
  %1039 = vmatpush1.msra.mxu0 %v1038
  %1040 = vmatprep.subr.mxu0 0.0
  %v1041 = vand.u32 %v53, 4294901760
  %v1042 = vsub.f32 %v53, %v1041
  %1043 = vmatpush1.msra.mxu0 %v1042
  %1044 = vmatprep.subr.mxu0 0.0
  %v1045 = vand.u32 %v52, 4294901760
  %v1046 = vsub.f32 %v52, %v1045
  %1047 = vmatpush1.msra.mxu0 %v1046
  %1048 = vmatprep.subr.mxu0 0.0
  %v1049 = vand.u32 %v51, 4294901760
  %v1050 = vsub.f32 %v51, %v1049
  %1051 = vmatpush1.msra.mxu0 %v1050
  %1052 = vmatprep.subr.mxu0 0.0
  %v1053 = vand.u32 %v50, 4294901760
  %v1054 = vsub.f32 %v50, %v1053
  %1055 = vmatpush1.msra.mxu0 %v1054
  %1056 = vmatprep.subr.mxu0 0.0
  %v1057 = vand.u32 %v49, 4294901760
  %v1058 = vsub.f32 %v49, %v1057
  %1059 = vmatpush1.msra.mxu0 %v1058
  %1060 = vmatprep.subr.mxu0 0.0
  %v1061 = vand.u32 %v48, 4294901760
  %v1062 = vsub.f32 %v48, %v1061
  %1063 = vmatpush1.msra.mxu0 %v1062
  %1064 = vmatprep.subr.mxu0 0.0
  %v1065 = vand.u32 %v47, 4294901760
  %v1066 = vsub.f32 %v47, %v1065
  %1067 = vmatpush1.msra.mxu0 %v1066
  %1068 = vmatprep.subr.mxu0 0.0
  %v1069 = vand.u32 %v46, 4294901760
  %v1070 = vsub.f32 %v46, %v1069
  %1071 = vmatpush1.msra.mxu0 %v1070
  %1072 = vmatprep.subr.mxu0 0.0
  %v1073 = vand.u32 %v45, 4294901760
  %v1074 = vsub.f32 %v45, %v1073
  %1075 = vmatpush1.msra.mxu0 %v1074
  %1076 = vmatprep.subr.mxu0 0.0
  %v1077 = vand.u32 %v44, 4294901760
  %v1078 = vsub.f32 %v44, %v1077
  %1079 = vmatpush1.msra.mxu0 %v1078
  %1080 = vmatprep.subr.mxu0 0.0
  %v1081 = vand.u32 %v43, 4294901760
  %v1082 = vsub.f32 %v43, %v1081
  %1083 = vmatpush1.msra.mxu0 %v1082
  %1084 = vmatprep.subr.mxu0 0.0
  %1085 = vmatpush2.msra.mxu0 0.0
  %1086 = vmatprep.subr.mxu0 0.0
  %1087 = vmatpush2.msra.mxu0 0.0
  %1088 = vmatprep.subr.mxu0 0.0
  %1089 = vmatpush2.msra.mxu0 0.0
  %1090 = vmatprep.subr.mxu0 0.0
  %1091 = vmatpush2.msra.mxu0 0.0
  %1092 = vmatprep.subr.mxu0 0.0
  %1093 = vmatpush2.msra.mxu0 0.0
  %1094 = vmatprep.subr.mxu0 0.0
  %1095 = vmatpush2.msra.mxu0 0.0
  %1096 = vmatprep.subr.mxu0 0.0
  %1097 = vmatpush2.msra.mxu0 0.0
  %1098 = vmatprep.subr.mxu0 0.0
  %1099 = vmatpush2.msra.mxu0 0.0
  %1100 = vmatprep.subr.mxu0 0.0
  %1101 = vmatpush2.msra.mxu0 0.0
  %1102 = vmatprep.subr.mxu0 0.0
  %1103 = vmatpush2.msra.mxu0 0.0
  %1104 = vmatprep.subr.mxu0 0.0
  %1105 = vmatpush2.msra.mxu0 0.0
  %1106 = vmatprep.subr.mxu0 0.0
  %1107 = vmatpush2.msra.mxu0 0.0
  %1108 = vmatprep.subr.mxu0 0.0
  %1109 = vmatpush2.msra.mxu0 0.0
  %1110 = vmatprep.subr.mxu0 0.0
  %1111 = vmatpush2.msra.mxu0 0.0
  %1112 = vmatprep.subr.mxu0 0.0
  %1113 = vmatpush2.msra.mxu0 0.0
  %1114 = vmatprep.subr.mxu0 0.0
  %1115 = vmatpush2.msra.mxu0 0.0
  %1116 = vmatprep.mubr.f32.mxu0 0.0
  %v1117 = vand.u32 %v41, 4294901760
  %v1118 = vsub.f32 %v41, %v1117
  %1119 = vmatmul.mubr.f32.gmra.mxu0 %v1118
  %v1120 = vpop.f32.mrf.mxu0
  %v1121 = vadd.f32 %v1011, %v1120
  %v1122 = vpop.f32.mrf.mxu0
  %1123 = vmatprep.mubr.f32.mxu0 0.0
  %v1124 = vand.u32 %v42, 4294901760
  %v1125 = vsub.f32 %v42, %v1124
  %1126 = vmatmul.mubr.f32.gmra.mxu0 %v1125
  %v1127 = vpop.f32.mrf.mxu0
  %v1128 = vadd.f32 %v1017, %v1127
  %v1129 = vpop.f32.mrf.mxu0
  %1130 = vdwg.mxu0
  %1131 = vmatprep.subr.mxu0 0.0
  %v1132 = vand.u32 %v58, 4294901760
  %1133 = vmatpush1.msra.mxu0 %v1132
  %1134 = vmatprep.subr.mxu0 0.0
  %v1135 = vand.u32 %v57, 4294901760
  %1136 = vmatpush1.msra.mxu0 %v1135
  %1137 = vmatprep.subr.mxu0 0.0
  %v1138 = vand.u32 %v56, 4294901760
  %1139 = vmatpush1.msra.mxu0 %v1138
  %1140 = vmatprep.subr.mxu0 0.0
  %v1141 = vand.u32 %v55, 4294901760
  %1142 = vmatpush1.msra.mxu0 %v1141
  %1143 = vmatprep.subr.mxu0 0.0
  %v1144 = vand.u32 %v54, 4294901760
  %1145 = vmatpush1.msra.mxu0 %v1144
  %1146 = vmatprep.subr.mxu0 0.0
  %v1147 = vand.u32 %v53, 4294901760
  %1148 = vmatpush1.msra.mxu0 %v1147
  %1149 = vmatprep.subr.mxu0 0.0
  %v1150 = vand.u32 %v52, 4294901760
  %1151 = vmatpush1.msra.mxu0 %v1150
  %1152 = vmatprep.subr.mxu0 0.0
  %v1153 = vand.u32 %v51, 4294901760
  %1154 = vmatpush1.msra.mxu0 %v1153
  %1155 = vmatprep.subr.mxu0 0.0
  %v1156 = vand.u32 %v50, 4294901760
  %1157 = vmatpush1.msra.mxu0 %v1156
  %1158 = vmatprep.subr.mxu0 0.0
  %v1159 = vand.u32 %v49, 4294901760
  %1160 = vmatpush1.msra.mxu0 %v1159
  %1161 = vmatprep.subr.mxu0 0.0
  %v1162 = vand.u32 %v48, 4294901760
  %1163 = vmatpush1.msra.mxu0 %v1162
  %1164 = vmatprep.subr.mxu0 0.0
  %v1165 = vand.u32 %v47, 4294901760
  %1166 = vmatpush1.msra.mxu0 %v1165
  %1167 = vmatprep.subr.mxu0 0.0
  %v1168 = vand.u32 %v46, 4294901760
  %1169 = vmatpush1.msra.mxu0 %v1168
  %1170 = vmatprep.subr.mxu0 0.0
  %v1171 = vand.u32 %v45, 4294901760
  %1172 = vmatpush1.msra.mxu0 %v1171
  %1173 = vmatprep.subr.mxu0 0.0
  %v1174 = vand.u32 %v44, 4294901760
  %1175 = vmatpush1.msra.mxu0 %v1174
  %1176 = vmatprep.subr.mxu0 0.0
  %v1177 = vand.u32 %v43, 4294901760
  %1178 = vmatpush1.msra.mxu0 %v1177
  %1179 = vmatprep.subr.mxu0 0.0
  %1180 = vmatpush2.msra.mxu0 0.0
  %1181 = vmatprep.subr.mxu0 0.0
  %1182 = vmatpush2.msra.mxu0 0.0
  %1183 = vmatprep.subr.mxu0 0.0
  %1184 = vmatpush2.msra.mxu0 0.0
  %1185 = vmatprep.subr.mxu0 0.0
  %1186 = vmatpush2.msra.mxu0 0.0
  %1187 = vmatprep.subr.mxu0 0.0
  %1188 = vmatpush2.msra.mxu0 0.0
  %1189 = vmatprep.subr.mxu0 0.0
  %1190 = vmatpush2.msra.mxu0 0.0
  %1191 = vmatprep.subr.mxu0 0.0
  %1192 = vmatpush2.msra.mxu0 0.0
  %1193 = vmatprep.subr.mxu0 0.0
  %1194 = vmatpush2.msra.mxu0 0.0
  %1195 = vmatprep.subr.mxu0 0.0
  %1196 = vmatpush2.msra.mxu0 0.0
  %1197 = vmatprep.subr.mxu0 0.0
  %1198 = vmatpush2.msra.mxu0 0.0
  %1199 = vmatprep.subr.mxu0 0.0
  %1200 = vmatpush2.msra.mxu0 0.0
  %1201 = vmatprep.subr.mxu0 0.0
  %1202 = vmatpush2.msra.mxu0 0.0
  %1203 = vmatprep.subr.mxu0 0.0
  %1204 = vmatpush2.msra.mxu0 0.0
  %1205 = vmatprep.subr.mxu0 0.0
  %1206 = vmatpush2.msra.mxu0 0.0
  %1207 = vmatprep.subr.mxu0 0.0
  %1208 = vmatpush2.msra.mxu0 0.0
  %1209 = vmatprep.subr.mxu0 0.0
  %1210 = vmatpush2.msra.mxu0 0.0
  %1211 = vmatprep.mubr.f32.mxu0 0.0
  %v1212 = vand.u32 %v41, 4294901760
  %v1213 = vsub.f32 %v41, %v1212
  %v1214 = vand.u32 %v1213, 4294901760
  %1215 = vmatmul.mubr.f32.gmra.mxu0 %v1214
  %v1216 = vpop.f32.mrf.mxu0
  %v1217 = vadd.f32 %v1121, %v1216
  %v1218 = vpop.f32.mrf.mxu0
  %1219 = vmatprep.mubr.f32.mxu0 0.0
  %v1220 = vand.u32 %v42, 4294901760
  %v1221 = vsub.f32 %v42, %v1220
  %v1222 = vand.u32 %v1221, 4294901760
  %1223 = vmatmul.mubr.f32.gmra.mxu0 %v1222
  %v1224 = vpop.f32.mrf.mxu0
  %v1225 = vadd.f32 %v1128, %v1224
  %v1226 = vpop.f32.mrf.mxu0
  %1227 = vdwg.mxu0
  %1228 = vmatprep.subr.mxu0 0.0
  %v1229 = vand.u32 %v58, 4294901760
  %v1230 = vsub.f32 %v58, %v1229
  %v1231 = vand.u32 %v1230, 4294901760
  %1232 = vmatpush1.msra.mxu0 %v1231
  %1233 = vmatprep.subr.mxu0 0.0
  %v1234 = vand.u32 %v57, 4294901760
  %v1235 = vsub.f32 %v57, %v1234
  %v1236 = vand.u32 %v1235, 4294901760
  %1237 = vmatpush1.msra.mxu0 %v1236
  %1238 = vmatprep.subr.mxu0 0.0
  %v1239 = vand.u32 %v56, 4294901760
  %v1240 = vsub.f32 %v56, %v1239
  %v1241 = vand.u32 %v1240, 4294901760
  %1242 = vmatpush1.msra.mxu0 %v1241
  %1243 = vmatprep.subr.mxu0 0.0
  %v1244 = vand.u32 %v55, 4294901760
  %v1245 = vsub.f32 %v55, %v1244
  %v1246 = vand.u32 %v1245, 4294901760
  %1247 = vmatpush1.msra.mxu0 %v1246
  %1248 = vmatprep.subr.mxu0 0.0
  %v1249 = vand.u32 %v54, 4294901760
  %v1250 = vsub.f32 %v54, %v1249
  %v1251 = vand.u32 %v1250, 4294901760
  %1252 = vmatpush1.msra.mxu0 %v1251
  %1253 = vmatprep.subr.mxu0 0.0
  %v1254 = vand.u32 %v53, 4294901760
  %v1255 = vsub.f32 %v53, %v1254
  %v1256 = vand.u32 %v1255, 4294901760
  %1257 = vmatpush1.msra.mxu0 %v1256
  %1258 = vmatprep.subr.mxu0 0.0
  %v1259 = vand.u32 %v52, 4294901760
  %v1260 = vsub.f32 %v52, %v1259
  %v1261 = vand.u32 %v1260, 4294901760
  %1262 = vmatpush1.msra.mxu0 %v1261
  %1263 = vmatprep.subr.mxu0 0.0
  %v1264 = vand.u32 %v51, 4294901760
  %v1265 = vsub.f32 %v51, %v1264
  %v1266 = vand.u32 %v1265, 4294901760
  %1267 = vmatpush1.msra.mxu0 %v1266
  %1268 = vmatprep.subr.mxu0 0.0
  %v1269 = vand.u32 %v50, 4294901760
  %v1270 = vsub.f32 %v50, %v1269
  %v1271 = vand.u32 %v1270, 4294901760
  %1272 = vmatpush1.msra.mxu0 %v1271
  %1273 = vmatprep.subr.mxu0 0.0
  %v1274 = vand.u32 %v49, 4294901760
  %v1275 = vsub.f32 %v49, %v1274
  %v1276 = vand.u32 %v1275, 4294901760
  %1277 = vmatpush1.msra.mxu0 %v1276
  %1278 = vmatprep.subr.mxu0 0.0
  %v1279 = vand.u32 %v48, 4294901760
  %v1280 = vsub.f32 %v48, %v1279
  %v1281 = vand.u32 %v1280, 4294901760
  %1282 = vmatpush1.msra.mxu0 %v1281
  %1283 = vmatprep.subr.mxu0 0.0
  %v1284 = vand.u32 %v47, 4294901760
  %v1285 = vsub.f32 %v47, %v1284
  %v1286 = vand.u32 %v1285, 4294901760
  %1287 = vmatpush1.msra.mxu0 %v1286
  %1288 = vmatprep.subr.mxu0 0.0
  %v1289 = vand.u32 %v46, 4294901760
  %v1290 = vsub.f32 %v46, %v1289
  %v1291 = vand.u32 %v1290, 4294901760
  %1292 = vmatpush1.msra.mxu0 %v1291
  %1293 = vmatprep.subr.mxu0 0.0
  %v1294 = vand.u32 %v45, 4294901760
  %v1295 = vsub.f32 %v45, %v1294
  %v1296 = vand.u32 %v1295, 4294901760
  %1297 = vmatpush1.msra.mxu0 %v1296
  %1298 = vmatprep.subr.mxu0 0.0
  %v1299 = vand.u32 %v44, 4294901760
  %v1300 = vsub.f32 %v44, %v1299
  %v1301 = vand.u32 %v1300, 4294901760
  %1302 = vmatpush1.msra.mxu0 %v1301
  %1303 = vmatprep.subr.mxu0 0.0
  %v1304 = vand.u32 %v43, 4294901760
  %v1305 = vsub.f32 %v43, %v1304
  %v1306 = vand.u32 %v1305, 4294901760
  %1307 = vmatpush1.msra.mxu0 %v1306
  %1308 = vmatprep.subr.mxu0 0.0
  %1309 = vmatpush2.msra.mxu0 0.0
  %1310 = vmatprep.subr.mxu0 0.0
  %1311 = vmatpush2.msra.mxu0 0.0
  %1312 = vmatprep.subr.mxu0 0.0
  %1313 = vmatpush2.msra.mxu0 0.0
  %1314 = vmatprep.subr.mxu0 0.0
  %1315 = vmatpush2.msra.mxu0 0.0
  %1316 = vmatprep.subr.mxu0 0.0
  %1317 = vmatpush2.msra.mxu0 0.0
  %1318 = vmatprep.subr.mxu0 0.0
  %1319 = vmatpush2.msra.mxu0 0.0
  %1320 = vmatprep.subr.mxu0 0.0
  %1321 = vmatpush2.msra.mxu0 0.0
  %1322 = vmatprep.subr.mxu0 0.0
  %1323 = vmatpush2.msra.mxu0 0.0
  %1324 = vmatprep.subr.mxu0 0.0
  %1325 = vmatpush2.msra.mxu0 0.0
  %1326 = vmatprep.subr.mxu0 0.0
  %1327 = vmatpush2.msra.mxu0 0.0
  %1328 = vmatprep.subr.mxu0 0.0
  %1329 = vmatpush2.msra.mxu0 0.0
  %1330 = vmatprep.subr.mxu0 0.0
  %1331 = vmatpush2.msra.mxu0 0.0
  %1332 = vmatprep.subr.mxu0 0.0
  %1333 = vmatpush2.msra.mxu0 0.0
  %1334 = vmatprep.subr.mxu0 0.0
  %1335 = vmatpush2.msra.mxu0 0.0
  %1336 = vmatprep.subr.mxu0 0.0
  %1337 = vmatpush2.msra.mxu0 0.0
  %1338 = vmatprep.subr.mxu0 0.0
  %1339 = vmatpush2.msra.mxu0 0.0
  %1340 = vmatprep.mubr.f32.mxu0 0.0
  %v1341 = vand.u32 %v41, 4294901760
  %1342 = vmatmul.mubr.f32.gmra.mxu0 %v1341
  %v1343 = vpop.f32.mrf.mxu0
  %v1344 = vadd.f32 %v1217, %v1343
  %v1345 = vpop.f32.mrf.mxu0
  %1346 = vmatprep.mubr.f32.mxu0 0.0
  %v1347 = vand.u32 %v42, 4294901760
  %1348 = vmatmul.mubr.f32.gmra.mxu0 %v1347
  %v1349 = vpop.f32.mrf.mxu0
  %v1350 = vadd.f32 %v1225, %v1349
  %v1351 = vpop.f32.mrf.mxu0
  %1352 = vdwg.mxu0
  %1353 = vmatprep.subr.mxu0 0.0
  %v1354 = vand.u32 %v58, 4294901760
  %1355 = vmatpush1.msra.mxu0 %v1354
  %1356 = vmatprep.subr.mxu0 0.0
  %v1357 = vand.u32 %v57, 4294901760
  %1358 = vmatpush1.msra.mxu0 %v1357
  %1359 = vmatprep.subr.mxu0 0.0
  %v1360 = vand.u32 %v56, 4294901760
  %1361 = vmatpush1.msra.mxu0 %v1360
  %1362 = vmatprep.subr.mxu0 0.0
  %v1363 = vand.u32 %v55, 4294901760
  %1364 = vmatpush1.msra.mxu0 %v1363
  %1365 = vmatprep.subr.mxu0 0.0
  %v1366 = vand.u32 %v54, 4294901760
  %1367 = vmatpush1.msra.mxu0 %v1366
  %1368 = vmatprep.subr.mxu0 0.0
  %v1369 = vand.u32 %v53, 4294901760
  %1370 = vmatpush1.msra.mxu0 %v1369
  %1371 = vmatprep.subr.mxu0 0.0
  %v1372 = vand.u32 %v52, 4294901760
  %1373 = vmatpush1.msra.mxu0 %v1372
  %1374 = vmatprep.subr.mxu0 0.0
  %v1375 = vand.u32 %v51, 4294901760
  %1376 = vmatpush1.msra.mxu0 %v1375
  %1377 = vmatprep.subr.mxu0 0.0
  %v1378 = vand.u32 %v50, 4294901760
  %1379 = vmatpush1.msra.mxu0 %v1378
  %1380 = vmatprep.subr.mxu0 0.0
  %v1381 = vand.u32 %v49, 4294901760
  %1382 = vmatpush1.msra.mxu0 %v1381
  %1383 = vmatprep.subr.mxu0 0.0
  %v1384 = vand.u32 %v48, 4294901760
  %1385 = vmatpush1.msra.mxu0 %v1384
  %1386 = vmatprep.subr.mxu0 0.0
  %v1387 = vand.u32 %v47, 4294901760
  %1388 = vmatpush1.msra.mxu0 %v1387
  %1389 = vmatprep.subr.mxu0 0.0
  %v1390 = vand.u32 %v46, 4294901760
  %1391 = vmatpush1.msra.mxu0 %v1390
  %1392 = vmatprep.subr.mxu0 0.0
  %v1393 = vand.u32 %v45, 4294901760
  %1394 = vmatpush1.msra.mxu0 %v1393
  %1395 = vmatprep.subr.mxu0 0.0
  %v1396 = vand.u32 %v44, 4294901760
  %1397 = vmatpush1.msra.mxu0 %v1396
  %1398 = vmatprep.subr.mxu0 0.0
  %v1399 = vand.u32 %v43, 4294901760
  %1400 = vmatpush1.msra.mxu0 %v1399
  %1401 = vmatprep.subr.mxu0 0.0
  %1402 = vmatpush2.msra.mxu0 0.0
  %1403 = vmatprep.subr.mxu0 0.0
  %1404 = vmatpush2.msra.mxu0 0.0
  %1405 = vmatprep.subr.mxu0 0.0
  %1406 = vmatpush2.msra.mxu0 0.0
  %1407 = vmatprep.subr.mxu0 0.0
  %1408 = vmatpush2.msra.mxu0 0.0
  %1409 = vmatprep.subr.mxu0 0.0
  %1410 = vmatpush2.msra.mxu0 0.0
  %1411 = vmatprep.subr.mxu0 0.0
  %1412 = vmatpush2.msra.mxu0 0.0
  %1413 = vmatprep.subr.mxu0 0.0
  %1414 = vmatpush2.msra.mxu0 0.0
  %1415 = vmatprep.subr.mxu0 0.0
  %1416 = vmatpush2.msra.mxu0 0.0
  %1417 = vmatprep.subr.mxu0 0.0
  %1418 = vmatpush2.msra.mxu0 0.0
  %1419 = vmatprep.subr.mxu0 0.0
  %1420 = vmatpush2.msra.mxu0 0.0
  %1421 = vmatprep.subr.mxu0 0.0
  %1422 = vmatpush2.msra.mxu0 0.0
  %1423 = vmatprep.subr.mxu0 0.0
  %1424 = vmatpush2.msra.mxu0 0.0
  %1425 = vmatprep.subr.mxu0 0.0
  %1426 = vmatpush2.msra.mxu0 0.0
  %1427 = vmatprep.subr.mxu0 0.0
  %1428 = vmatpush2.msra.mxu0 0.0
  %1429 = vmatprep.subr.mxu0 0.0
  %1430 = vmatpush2.msra.mxu0 0.0
  %1431 = vmatprep.subr.mxu0 0.0
  %1432 = vmatpush2.msra.mxu0 0.0
  %1433 = vmatprep.mubr.f32.mxu0 0.0
  %v1434 = vand.u32 %v41, 4294901760
  %1435 = vmatmul.mubr.f32.gmra.mxu0 %v1434
  %v1436 = vpop.f32.mrf.mxu0
  %v1437 = vadd.f32 %v1344, %v1436
  %v1438 = vpop.f32.mrf.mxu0
  %1439 = vmatprep.mubr.f32.mxu0 0.0
  %v1440 = vand.u32 %v42, 4294901760
  %1441 = vmatmul.mubr.f32.gmra.mxu0 %v1440
  %v1442 = vpop.f32.mrf.mxu0
  %v1443 = vadd.f32 %v1350, %v1442
  %v1444 = vpop.f32.mrf.mxu0
  %1445 = vdwg.mxu0
  %v1446 = vld [vmem:[#allocation2 + $0x2] sm:$0xff]
  %v1447 = vld [vmem:[#allocation2 + $0x12] sm:$0xff]
  %s1448 = scalar_lea.vmem %s1, 256
  %v1449 = vld [vmem:[%s1448] sm:$0xff]
  %v1450 = vld [vmem:[%s1448 + $0x8] sm:$0xff]
  %v1451 = vld [vmem:[%s1448 + $0x10] sm:$0xff]
  %v1452 = vld [vmem:[%s1448 + $0x18] sm:$0xff]
  %v1453 = vld [vmem:[%s1448 + $0x20] sm:$0xff]
  %v1454 = vld [vmem:[%s1448 + $0x28] sm:$0xff]
  %v1455 = vld [vmem:[%s1448 + $0x30] sm:$0xff]
  %v1456 = vld [vmem:[%s1448 + $0x38] sm:$0xff]
  %v1457 = vld [vmem:[%s1448 + $0x40] sm:$0xff]
  %v1458 = vld [vmem:[%s1448 + $0x48] sm:$0xff]
  %v1459 = vld [vmem:[%s1448 + $0x50] sm:$0xff]
  %v1460 = vld [vmem:[%s1448 + $0x58] sm:$0xff]
  %v1461 = vld [vmem:[%s1448 + $0x60] sm:$0xff]
  %v1462 = vld [vmem:[%s1448 + $0x68] sm:$0xff]
  %v1463 = vld [vmem:[%s1448 + $0x70] sm:$0xff]
  %v1464 = vld [vmem:[%s1448 + $0x78] sm:$0xff]
  %1465 = vmatprep.subr.mxu0 0.0
  %v1466 = vand.u32 %v1464, 4294901760
  %1467 = vmatpush1.msra.mxu0 %v1466
  %1468 = vmatprep.subr.mxu0 0.0
  %v1469 = vand.u32 %v1463, 4294901760
  %1470 = vmatpush1.msra.mxu0 %v1469
  %1471 = vmatprep.subr.mxu0 0.0
  %v1472 = vand.u32 %v1462, 4294901760
  %1473 = vmatpush1.msra.mxu0 %v1472
  %1474 = vmatprep.subr.mxu0 0.0
  %v1475 = vand.u32 %v1461, 4294901760
  %1476 = vmatpush1.msra.mxu0 %v1475
  %1477 = vmatprep.subr.mxu0 0.0
  %v1478 = vand.u32 %v1460, 4294901760
  %1479 = vmatpush1.msra.mxu0 %v1478
  %1480 = vmatprep.subr.mxu0 0.0
  %v1481 = vand.u32 %v1459, 4294901760
  %1482 = vmatpush1.msra.mxu0 %v1481
  %1483 = vmatprep.subr.mxu0 0.0
  %v1484 = vand.u32 %v1458, 4294901760
  %1485 = vmatpush1.msra.mxu0 %v1484
  %1486 = vmatprep.subr.mxu0 0.0
  %v1487 = vand.u32 %v1457, 4294901760
  %1488 = vmatpush1.msra.mxu0 %v1487
  %1489 = vmatprep.subr.mxu0 0.0
  %v1490 = vand.u32 %v1456, 4294901760
  %1491 = vmatpush1.msra.mxu0 %v1490
  %1492 = vmatprep.subr.mxu0 0.0
  %v1493 = vand.u32 %v1455, 4294901760
  %1494 = vmatpush1.msra.mxu0 %v1493
  %1495 = vmatprep.subr.mxu0 0.0
  %v1496 = vand.u32 %v1454, 4294901760
  %1497 = vmatpush1.msra.mxu0 %v1496
  %1498 = vmatprep.subr.mxu0 0.0
  %v1499 = vand.u32 %v1453, 4294901760
  %1500 = vmatpush1.msra.mxu0 %v1499
  %1501 = vmatprep.subr.mxu0 0.0
  %v1502 = vand.u32 %v1452, 4294901760
  %1503 = vmatpush1.msra.mxu0 %v1502
  %1504 = vmatprep.subr.mxu0 0.0
  %v1505 = vand.u32 %v1451, 4294901760
  %1506 = vmatpush1.msra.mxu0 %v1505
  %1507 = vmatprep.subr.mxu0 0.0
  %v1508 = vand.u32 %v1450, 4294901760
  %1509 = vmatpush1.msra.mxu0 %v1508
  %1510 = vmatprep.subr.mxu0 0.0
  %v1511 = vand.u32 %v1449, 4294901760
  %1512 = vmatpush1.msra.mxu0 %v1511
  %1513 = vmatprep.subr.mxu0 0.0
  %1514 = vmatpush2.msra.mxu0 0.0
  %1515 = vmatprep.subr.mxu0 0.0
  %1516 = vmatpush2.msra.mxu0 0.0
  %1517 = vmatprep.subr.mxu0 0.0
  %1518 = vmatpush2.msra.mxu0 0.0
  %1519 = vmatprep.subr.mxu0 0.0
  %1520 = vmatpush2.msra.mxu0 0.0
  %1521 = vmatprep.subr.mxu0 0.0
  %1522 = vmatpush2.msra.mxu0 0.0
  %1523 = vmatprep.subr.mxu0 0.0
  %1524 = vmatpush2.msra.mxu0 0.0
  %1525 = vmatprep.subr.mxu0 0.0
  %1526 = vmatpush2.msra.mxu0 0.0
  %1527 = vmatprep.subr.mxu0 0.0
  %1528 = vmatpush2.msra.mxu0 0.0
  %1529 = vmatprep.subr.mxu0 0.0
  %1530 = vmatpush2.msra.mxu0 0.0
  %1531 = vmatprep.subr.mxu0 0.0
  %1532 = vmatpush2.msra.mxu0 0.0
  %1533 = vmatprep.subr.mxu0 0.0
  %1534 = vmatpush2.msra.mxu0 0.0
  %1535 = vmatprep.subr.mxu0 0.0
  %1536 = vmatpush2.msra.mxu0 0.0
  %1537 = vmatprep.subr.mxu0 0.0
  %1538 = vmatpush2.msra.mxu0 0.0
  %1539 = vmatprep.subr.mxu0 0.0
  %1540 = vmatpush2.msra.mxu0 0.0
  %1541 = vmatprep.subr.mxu0 0.0
  %1542 = vmatpush2.msra.mxu0 0.0
  %1543 = vmatprep.subr.mxu0 0.0
  %1544 = vmatpush2.msra.mxu0 0.0
  %1545 = vmatprep.mubr.f32.mxu0 0.0
  %v1546 = vand.u32 %v1446, 4294901760
  %v1547 = vsub.f32 %v1446, %v1546
  %v1548 = vand.u32 %v1547, 4294901760
  %v1549 = vsub.f32 %v1547, %v1548
  %v1550 = vand.u32 %v1549, 4294901760
  %1551 = vmatmul.mubr.f32.gmra.mxu0 %v1550
  %v1552 = vpop.f32.mrf.mxu0
  %v1553 = vadd.f32 0.0, %v1552
  %v1554 = vpop.f32.mrf.mxu0
  %1555 = vmatprep.mubr.f32.mxu0 0.0
  %v1556 = vand.u32 %v1447, 4294901760
  %v1557 = vsub.f32 %v1447, %v1556
  %v1558 = vand.u32 %v1557, 4294901760
  %v1559 = vsub.f32 %v1557, %v1558
  %v1560 = vand.u32 %v1559, 4294901760
  %1561 = vmatmul.mubr.f32.gmra.mxu0 %v1560
  %v1562 = vpop.f32.mrf.mxu0
  %v1563 = vadd.f32 0.0, %v1562
  %v1564 = vpop.f32.mrf.mxu0
  %1565 = vdwg.mxu0
  %1566 = vmatprep.subr.mxu0 0.0
  %v1567 = vand.u32 %v1464, 4294901760
  %v1568 = vsub.f32 %v1464, %v1567
  %v1569 = vand.u32 %v1568, 4294901760
  %v1570 = vsub.f32 %v1568, %v1569
  %v1571 = vand.u32 %v1570, 4294901760
  %1572 = vmatpush1.msra.mxu0 %v1571
  %1573 = vmatprep.subr.mxu0 0.0
  %v1574 = vand.u32 %v1463, 4294901760
  %v1575 = vsub.f32 %v1463, %v1574
  %v1576 = vand.u32 %v1575, 4294901760
  %v1577 = vsub.f32 %v1575, %v1576
  %v1578 = vand.u32 %v1577, 4294901760
  %1579 = vmatpush1.msra.mxu0 %v1578
  %1580 = vmatprep.subr.mxu0 0.0
  %v1581 = vand.u32 %v1462, 4294901760
  %v1582 = vsub.f32 %v1462, %v1581
  %v1583 = vand.u32 %v1582, 4294901760
  %v1584 = vsub.f32 %v1582, %v1583
  %v1585 = vand.u32 %v1584, 4294901760
  %1586 = vmatpush1.msra.mxu0 %v1585
  %1587 = vmatprep.subr.mxu0 0.0
  %v1588 = vand.u32 %v1461, 4294901760
  %v1589 = vsub.f32 %v1461, %v1588
  %v1590 = vand.u32 %v1589, 4294901760
  %v1591 = vsub.f32 %v1589, %v1590
  %v1592 = vand.u32 %v1591, 4294901760
  %1593 = vmatpush1.msra.mxu0 %v1592
  %1594 = vmatprep.subr.mxu0 0.0
  %v1595 = vand.u32 %v1460, 4294901760
  %v1596 = vsub.f32 %v1460, %v1595
  %v1597 = vand.u32 %v1596, 4294901760
  %v1598 = vsub.f32 %v1596, %v1597
  %v1599 = vand.u32 %v1598, 4294901760
  %1600 = vmatpush1.msra.mxu0 %v1599
  %1601 = vmatprep.subr.mxu0 0.0
  %v1602 = vand.u32 %v1459, 4294901760
  %v1603 = vsub.f32 %v1459, %v1602
  %v1604 = vand.u32 %v1603, 4294901760
  %v1605 = vsub.f32 %v1603, %v1604
  %v1606 = vand.u32 %v1605, 4294901760
  %1607 = vmatpush1.msra.mxu0 %v1606
  %1608 = vmatprep.subr.mxu0 0.0
  %v1609 = vand.u32 %v1458, 4294901760
  %v1610 = vsub.f32 %v1458, %v1609
  %v1611 = vand.u32 %v1610, 4294901760
  %v1612 = vsub.f32 %v1610, %v1611
  %v1613 = vand.u32 %v1612, 4294901760
  %1614 = vmatpush1.msra.mxu0 %v1613
  %1615 = vmatprep.subr.mxu0 0.0
  %v1616 = vand.u32 %v1457, 4294901760
  %v1617 = vsub.f32 %v1457, %v1616
  %v1618 = vand.u32 %v1617, 4294901760
  %v1619 = vsub.f32 %v1617, %v1618
  %v1620 = vand.u32 %v1619, 4294901760
  %1621 = vmatpush1.msra.mxu0 %v1620
  %1622 = vmatprep.subr.mxu0 0.0
  %v1623 = vand.u32 %v1456, 4294901760
  %v1624 = vsub.f32 %v1456, %v1623
  %v1625 = vand.u32 %v1624, 4294901760
  %v1626 = vsub.f32 %v1624, %v1625
  %v1627 = vand.u32 %v1626, 4294901760
  %1628 = vmatpush1.msra.mxu0 %v1627
  %1629 = vmatprep.subr.mxu0 0.0
  %v1630 = vand.u32 %v1455, 4294901760
  %v1631 = vsub.f32 %v1455, %v1630
  %v1632 = vand.u32 %v1631, 4294901760
  %v1633 = vsub.f32 %v1631, %v1632
  %v1634 = vand.u32 %v1633, 4294901760
  %1635 = vmatpush1.msra.mxu0 %v1634
  %1636 = vmatprep.subr.mxu0 0.0
  %v1637 = vand.u32 %v1454, 4294901760
  %v1638 = vsub.f32 %v1454, %v1637
  %v1639 = vand.u32 %v1638, 4294901760
  %v1640 = vsub.f32 %v1638, %v1639
  %v1641 = vand.u32 %v1640, 4294901760
  %1642 = vmatpush1.msra.mxu0 %v1641
  %1643 = vmatprep.subr.mxu0 0.0
  %v1644 = vand.u32 %v1453, 4294901760
  %v1645 = vsub.f32 %v1453, %v1644
  %v1646 = vand.u32 %v1645, 4294901760
  %v1647 = vsub.f32 %v1645, %v1646
  %v1648 = vand.u32 %v1647, 4294901760
  %1649 = vmatpush1.msra.mxu0 %v1648
  %1650 = vmatprep.subr.mxu0 0.0
  %v1651 = vand.u32 %v1452, 4294901760
  %v1652 = vsub.f32 %v1452, %v1651
  %v1653 = vand.u32 %v1652, 4294901760
  %v1654 = vsub.f32 %v1652, %v1653
  %v1655 = vand.u32 %v1654, 4294901760
  %1656 = vmatpush1.msra.mxu0 %v1655
  %1657 = vmatprep.subr.mxu0 0.0
  %v1658 = vand.u32 %v1451, 4294901760
  %v1659 = vsub.f32 %v1451, %v1658
  %v1660 = vand.u32 %v1659, 4294901760
  %v1661 = vsub.f32 %v1659, %v1660
  %v1662 = vand.u32 %v1661, 4294901760
  %1663 = vmatpush1.msra.mxu0 %v1662
  %1664 = vmatprep.subr.mxu0 0.0
  %v1665 = vand.u32 %v1450, 4294901760
  %v1666 = vsub.f32 %v1450, %v1665
  %v1667 = vand.u32 %v1666, 4294901760
  %v1668 = vsub.f32 %v1666, %v1667
  %v1669 = vand.u32 %v1668, 4294901760
  %1670 = vmatpush1.msra.mxu0 %v1669
  %1671 = vmatprep.subr.mxu0 0.0
  %v1672 = vand.u32 %v1449, 4294901760
  %v1673 = vsub.f32 %v1449, %v1672
  %v1674 = vand.u32 %v1673, 4294901760
  %v1675 = vsub.f32 %v1673, %v1674
  %v1676 = vand.u32 %v1675, 4294901760
  %1677 = vmatpush1.msra.mxu0 %v1676
  %1678 = vmatprep.subr.mxu0 0.0
  %1679 = vmatpush2.msra.mxu0 0.0
  %1680 = vmatprep.subr.mxu0 0.0
  %1681 = vmatpush2.msra.mxu0 0.0
  %1682 = vmatprep.subr.mxu0 0.0
  %1683 = vmatpush2.msra.mxu0 0.0
  %1684 = vmatprep.subr.mxu0 0.0
  %1685 = vmatpush2.msra.mxu0 0.0
  %1686 = vmatprep.subr.mxu0 0.0
  %1687 = vmatpush2.msra.mxu0 0.0
  %1688 = vmatprep.subr.mxu0 0.0
  %1689 = vmatpush2.msra.mxu0 0.0
  %1690 = vmatprep.subr.mxu0 0.0
  %1691 = vmatpush2.msra.mxu0 0.0
  %1692 = vmatprep.subr.mxu0 0.0
  %1693 = vmatpush2.msra.mxu0 0.0
  %1694 = vmatprep.subr.mxu0 0.0
  %1695 = vmatpush2.msra.mxu0 0.0
  %1696 = vmatprep.subr.mxu0 0.0
  %1697 = vmatpush2.msra.mxu0 0.0
  %1698 = vmatprep.subr.mxu0 0.0
  %1699 = vmatpush2.msra.mxu0 0.0
  %1700 = vmatprep.subr.mxu0 0.0
  %1701 = vmatpush2.msra.mxu0 0.0
  %1702 = vmatprep.subr.mxu0 0.0
  %1703 = vmatpush2.msra.mxu0 0.0
  %1704 = vmatprep.subr.mxu0 0.0
  %1705 = vmatpush2.msra.mxu0 0.0
  %1706 = vmatprep.subr.mxu0 0.0
  %1707 = vmatpush2.msra.mxu0 0.0
  %1708 = vmatprep.subr.mxu0 0.0
  %1709 = vmatpush2.msra.mxu0 0.0
  %1710 = vmatprep.mubr.f32.mxu0 0.0
  %v1711 = vand.u32 %v1446, 4294901760
  %1712 = vmatmul.mubr.f32.gmra.mxu0 %v1711
  %v1713 = vpop.f32.mrf.mxu0
  %v1714 = vadd.f32 %v1553, %v1713
  %v1715 = vpop.f32.mrf.mxu0
  %1716 = vmatprep.mubr.f32.mxu0 0.0
  %v1717 = vand.u32 %v1447, 4294901760
  %1718 = vmatmul.mubr.f32.gmra.mxu0 %v1717
  %v1719 = vpop.f32.mrf.mxu0
  %v1720 = vadd.f32 %v1563, %v1719
  %v1721 = vpop.f32.mrf.mxu0
  %1722 = vdwg.mxu0
  %1723 = vmatprep.subr.mxu0 0.0
  %v1724 = vand.u32 %v1464, 4294901760
  %v1725 = vsub.f32 %v1464, %v1724
  %1726 = vmatpush1.msra.mxu0 %v1725
  %1727 = vmatprep.subr.mxu0 0.0
  %v1728 = vand.u32 %v1463, 4294901760
  %v1729 = vsub.f32 %v1463, %v1728
  %1730 = vmatpush1.msra.mxu0 %v1729
  %1731 = vmatprep.subr.mxu0 0.0
  %v1732 = vand.u32 %v1462, 4294901760
  %v1733 = vsub.f32 %v1462, %v1732
  %1734 = vmatpush1.msra.mxu0 %v1733
  %1735 = vmatprep.subr.mxu0 0.0
  %v1736 = vand.u32 %v1461, 4294901760
  %v1737 = vsub.f32 %v1461, %v1736
  %1738 = vmatpush1.msra.mxu0 %v1737
  %1739 = vmatprep.subr.mxu0 0.0
  %v1740 = vand.u32 %v1460, 4294901760
  %v1741 = vsub.f32 %v1460, %v1740
  %1742 = vmatpush1.msra.mxu0 %v1741
  %1743 = vmatprep.subr.mxu0 0.0
  %v1744 = vand.u32 %v1459, 4294901760
  %v1745 = vsub.f32 %v1459, %v1744
  %1746 = vmatpush1.msra.mxu0 %v1745
  %1747 = vmatprep.subr.mxu0 0.0
  %v1748 = vand.u32 %v1458, 4294901760
  %v1749 = vsub.f32 %v1458, %v1748
  %1750 = vmatpush1.msra.mxu0 %v1749
  %1751 = vmatprep.subr.mxu0 0.0
  %v1752 = vand.u32 %v1457, 4294901760
  %v1753 = vsub.f32 %v1457, %v1752
  %1754 = vmatpush1.msra.mxu0 %v1753
  %1755 = vmatprep.subr.mxu0 0.0
  %v1756 = vand.u32 %v1456, 4294901760
  %v1757 = vsub.f32 %v1456, %v1756
  %1758 = vmatpush1.msra.mxu0 %v1757
  %1759 = vmatprep.subr.mxu0 0.0
  %v1760 = vand.u32 %v1455, 4294901760
  %v1761 = vsub.f32 %v1455, %v1760
  %1762 = vmatpush1.msra.mxu0 %v1761
  %1763 = vmatprep.subr.mxu0 0.0
  %v1764 = vand.u32 %v1454, 4294901760
  %v1765 = vsub.f32 %v1454, %v1764
  %1766 = vmatpush1.msra.mxu0 %v1765
  %1767 = vmatprep.subr.mxu0 0.0
  %v1768 = vand.u32 %v1453, 4294901760
  %v1769 = vsub.f32 %v1453, %v1768
  %1770 = vmatpush1.msra.mxu0 %v1769
  %1771 = vmatprep.subr.mxu0 0.0
  %v1772 = vand.u32 %v1452, 4294901760
  %v1773 = vsub.f32 %v1452, %v1772
  %1774 = vmatpush1.msra.mxu0 %v1773
  %1775 = vmatprep.subr.mxu0 0.0
  %v1776 = vand.u32 %v1451, 4294901760
  %v1777 = vsub.f32 %v1451, %v1776
  %1778 = vmatpush1.msra.mxu0 %v1777
  %1779 = vmatprep.subr.mxu0 0.0
  %v1780 = vand.u32 %v1450, 4294901760
  %v1781 = vsub.f32 %v1450, %v1780
  %1782 = vmatpush1.msra.mxu0 %v1781
  %1783 = vmatprep.subr.mxu0 0.0
  %v1784 = vand.u32 %v1449, 4294901760
  %v1785 = vsub.f32 %v1449, %v1784
  %1786 = vmatpush1.msra.mxu0 %v1785
  %1787 = vmatprep.subr.mxu0 0.0
  %1788 = vmatpush2.msra.mxu0 0.0
  %1789 = vmatprep.subr.mxu0 0.0
  %1790 = vmatpush2.msra.mxu0 0.0
  %1791 = vmatprep.subr.mxu0 0.0
  %1792 = vmatpush2.msra.mxu0 0.0
  %1793 = vmatprep.subr.mxu0 0.0
  %1794 = vmatpush2.msra.mxu0 0.0
  %1795 = vmatprep.subr.mxu0 0.0
  %1796 = vmatpush2.msra.mxu0 0.0
  %1797 = vmatprep.subr.mxu0 0.0
  %1798 = vmatpush2.msra.mxu0 0.0
  %1799 = vmatprep.subr.mxu0 0.0
  %1800 = vmatpush2.msra.mxu0 0.0
  %1801 = vmatprep.subr.mxu0 0.0
  %1802 = vmatpush2.msra.mxu0 0.0
  %1803 = vmatprep.subr.mxu0 0.0
  %1804 = vmatpush2.msra.mxu0 0.0
  %1805 = vmatprep.subr.mxu0 0.0
  %1806 = vmatpush2.msra.mxu0 0.0
  %1807 = vmatprep.subr.mxu0 0.0
  %1808 = vmatpush2.msra.mxu0 0.0
  %1809 = vmatprep.subr.mxu0 0.0
  %1810 = vmatpush2.msra.mxu0 0.0
  %1811 = vmatprep.subr.mxu0 0.0
  %1812 = vmatpush2.msra.mxu0 0.0
  %1813 = vmatprep.subr.mxu0 0.0
  %1814 = vmatpush2.msra.mxu0 0.0
  %1815 = vmatprep.subr.mxu0 0.0
  %1816 = vmatpush2.msra.mxu0 0.0
  %1817 = vmatprep.subr.mxu0 0.0
  %1818 = vmatpush2.msra.mxu0 0.0
  %1819 = vmatprep.mubr.f32.mxu0 0.0
  %v1820 = vand.u32 %v1446, 4294901760
  %v1821 = vsub.f32 %v1446, %v1820
  %1822 = vmatmul.mubr.f32.gmra.mxu0 %v1821
  %v1823 = vpop.f32.mrf.mxu0
  %v1824 = vadd.f32 %v1714, %v1823
  %v1825 = vpop.f32.mrf.mxu0
  %1826 = vmatprep.mubr.f32.mxu0 0.0
  %v1827 = vand.u32 %v1447, 4294901760
  %v1828 = vsub.f32 %v1447, %v1827
  %1829 = vmatmul.mubr.f32.gmra.mxu0 %v1828
  %v1830 = vpop.f32.mrf.mxu0
  %v1831 = vadd.f32 %v1720, %v1830
  %v1832 = vpop.f32.mrf.mxu0
  %1833 = vdwg.mxu0
  %1834 = vmatprep.subr.mxu0 0.0
  %v1835 = vand.u32 %v1464, 4294901760
  %1836 = vmatpush1.msra.mxu0 %v1835
  %1837 = vmatprep.subr.mxu0 0.0
  %v1838 = vand.u32 %v1463, 4294901760
  %1839 = vmatpush1.msra.mxu0 %v1838
  %1840 = vmatprep.subr.mxu0 0.0
  %v1841 = vand.u32 %v1462, 4294901760
  %1842 = vmatpush1.msra.mxu0 %v1841
  %1843 = vmatprep.subr.mxu0 0.0
  %v1844 = vand.u32 %v1461, 4294901760
  %1845 = vmatpush1.msra.mxu0 %v1844
  %1846 = vmatprep.subr.mxu0 0.0
  %v1847 = vand.u32 %v1460, 4294901760
  %1848 = vmatpush1.msra.mxu0 %v1847
  %1849 = vmatprep.subr.mxu0 0.0
  %v1850 = vand.u32 %v1459, 4294901760
  %1851 = vmatpush1.msra.mxu0 %v1850
  %1852 = vmatprep.subr.mxu0 0.0
  %v1853 = vand.u32 %v1458, 4294901760
  %1854 = vmatpush1.msra.mxu0 %v1853
  %1855 = vmatprep.subr.mxu0 0.0
  %v1856 = vand.u32 %v1457, 4294901760
  %1857 = vmatpush1.msra.mxu0 %v1856
  %1858 = vmatprep.subr.mxu0 0.0
  %v1859 = vand.u32 %v1456, 4294901760
  %1860 = vmatpush1.msra.mxu0 %v1859
  %1861 = vmatprep.subr.mxu0 0.0
  %v1862 = vand.u32 %v1455, 4294901760
  %1863 = vmatpush1.msra.mxu0 %v1862
  %1864 = vmatprep.subr.mxu0 0.0
  %v1865 = vand.u32 %v1454, 4294901760
  %1866 = vmatpush1.msra.mxu0 %v1865
  %1867 = vmatprep.subr.mxu0 0.0
  %v1868 = vand.u32 %v1453, 4294901760
  %1869 = vmatpush1.msra.mxu0 %v1868
  %1870 = vmatprep.subr.mxu0 0.0
  %v1871 = vand.u32 %v1452, 4294901760
  %1872 = vmatpush1.msra.mxu0 %v1871
  %1873 = vmatprep.subr.mxu0 0.0
  %v1874 = vand.u32 %v1451, 4294901760
  %1875 = vmatpush1.msra.mxu0 %v1874
  %1876 = vmatprep.subr.mxu0 0.0
  %v1877 = vand.u32 %v1450, 4294901760
  %1878 = vmatpush1.msra.mxu0 %v1877
  %1879 = vmatprep.subr.mxu0 0.0
  %v1880 = vand.u32 %v1449, 4294901760
  %1881 = vmatpush1.msra.mxu0 %v1880
  %1882 = vmatprep.subr.mxu0 0.0
  %1883 = vmatpush2.msra.mxu0 0.0
  %1884 = vmatprep.subr.mxu0 0.0
  %1885 = vmatpush2.msra.mxu0 0.0
  %1886 = vmatprep.subr.mxu0 0.0
  %1887 = vmatpush2.msra.mxu0 0.0
  %1888 = vmatprep.subr.mxu0 0.0
  %1889 = vmatpush2.msra.mxu0 0.0
  %1890 = vmatprep.subr.mxu0 0.0
  %1891 = vmatpush2.msra.mxu0 0.0
  %1892 = vmatprep.subr.mxu0 0.0
  %1893 = vmatpush2.msra.mxu0 0.0
  %1894 = vmatprep.subr.mxu0 0.0
  %1895 = vmatpush2.msra.mxu0 0.0
  %1896 = vmatprep.subr.mxu0 0.0
  %1897 = vmatpush2.msra.mxu0 0.0
  %1898 = vmatprep.subr.mxu0 0.0
  %1899 = vmatpush2.msra.mxu0 0.0
  %1900 = vmatprep.subr.mxu0 0.0
  %1901 = vmatpush2.msra.mxu0 0.0
  %1902 = vmatprep.subr.mxu0 0.0
  %1903 = vmatpush2.msra.mxu0 0.0
  %1904 = vmatprep.subr.mxu0 0.0
  %1905 = vmatpush2.msra.mxu0 0.0
  %1906 = vmatprep.subr.mxu0 0.0
  %1907 = vmatpush2.msra.mxu0 0.0
  %1908 = vmatprep.subr.mxu0 0.0
  %1909 = vmatpush2.msra.mxu0 0.0
  %1910 = vmatprep.subr.mxu0 0.0
  %1911 = vmatpush2.msra.mxu0 0.0
  %1912 = vmatprep.subr.mxu0 0.0
  %1913 = vmatpush2.msra.mxu0 0.0
  %1914 = vmatprep.mubr.f32.mxu0 0.0
  %v1915 = vand.u32 %v1446, 4294901760
  %v1916 = vsub.f32 %v1446, %v1915
  %v1917 = vand.u32 %v1916, 4294901760
  %1918 = vmatmul.mubr.f32.gmra.mxu0 %v1917
  %v1919 = vpop.f32.mrf.mxu0
  %v1920 = vadd.f32 %v1824, %v1919
  %v1921 = vpop.f32.mrf.mxu0
  %1922 = vmatprep.mubr.f32.mxu0 0.0
  %v1923 = vand.u32 %v1447, 4294901760
  %v1924 = vsub.f32 %v1447, %v1923
  %v1925 = vand.u32 %v1924, 4294901760
  %1926 = vmatmul.mubr.f32.gmra.mxu0 %v1925
  %v1927 = vpop.f32.mrf.mxu0
  %v1928 = vadd.f32 %v1831, %v1927
  %v1929 = vpop.f32.mrf.mxu0
  %1930 = vdwg.mxu0
  %1931 = vmatprep.subr.mxu0 0.0
  %v1932 = vand.u32 %v1464, 4294901760
  %v1933 = vsub.f32 %v1464, %v1932
  %v1934 = vand.u32 %v1933, 4294901760
  %1935 = vmatpush1.msra.mxu0 %v1934
  %1936 = vmatprep.subr.mxu0 0.0
  %v1937 = vand.u32 %v1463, 4294901760
  %v1938 = vsub.f32 %v1463, %v1937
  %v1939 = vand.u32 %v1938, 4294901760
  %1940 = vmatpush1.msra.mxu0 %v1939
  %1941 = vmatprep.subr.mxu0 0.0
  %v1942 = vand.u32 %v1462, 4294901760
  %v1943 = vsub.f32 %v1462, %v1942
  %v1944 = vand.u32 %v1943, 4294901760
  %1945 = vmatpush1.msra.mxu0 %v1944
  %1946 = vmatprep.subr.mxu0 0.0
  %v1947 = vand.u32 %v1461, 4294901760
  %v1948 = vsub.f32 %v1461, %v1947
  %v1949 = vand.u32 %v1948, 4294901760
  %1950 = vmatpush1.msra.mxu0 %v1949
  %1951 = vmatprep.subr.mxu0 0.0
  %v1952 = vand.u32 %v1460, 4294901760
  %v1953 = vsub.f32 %v1460, %v1952
  %v1954 = vand.u32 %v1953, 4294901760
  %1955 = vmatpush1.msra.mxu0 %v1954
  %1956 = vmatprep.subr.mxu0 0.0
  %v1957 = vand.u32 %v1459, 4294901760
  %v1958 = vsub.f32 %v1459, %v1957
  %v1959 = vand.u32 %v1958, 4294901760
  %1960 = vmatpush1.msra.mxu0 %v1959
  %1961 = vmatprep.subr.mxu0 0.0
  %v1962 = vand.u32 %v1458, 4294901760
  %v1963 = vsub.f32 %v1458, %v1962
  %v1964 = vand.u32 %v1963, 4294901760
  %1965 = vmatpush1.msra.mxu0 %v1964
  %1966 = vmatprep.subr.mxu0 0.0
  %v1967 = vand.u32 %v1457, 4294901760
  %v1968 = vsub.f32 %v1457, %v1967
  %v1969 = vand.u32 %v1968, 4294901760
  %1970 = vmatpush1.msra.mxu0 %v1969
  %1971 = vmatprep.subr.mxu0 0.0
  %v1972 = vand.u32 %v1456, 4294901760
  %v1973 = vsub.f32 %v1456, %v1972
  %v1974 = vand.u32 %v1973, 4294901760
  %1975 = vmatpush1.msra.mxu0 %v1974
  %1976 = vmatprep.subr.mxu0 0.0
  %v1977 = vand.u32 %v1455, 4294901760
  %v1978 = vsub.f32 %v1455, %v1977
  %v1979 = vand.u32 %v1978, 4294901760
  %1980 = vmatpush1.msra.mxu0 %v1979
  %1981 = vmatprep.subr.mxu0 0.0
  %v1982 = vand.u32 %v1454, 4294901760
  %v1983 = vsub.f32 %v1454, %v1982
  %v1984 = vand.u32 %v1983, 4294901760
  %1985 = vmatpush1.msra.mxu0 %v1984
  %1986 = vmatprep.subr.mxu0 0.0
  %v1987 = vand.u32 %v1453, 4294901760
  %v1988 = vsub.f32 %v1453, %v1987
  %v1989 = vand.u32 %v1988, 4294901760
  %1990 = vmatpush1.msra.mxu0 %v1989
  %1991 = vmatprep.subr.mxu0 0.0
  %v1992 = vand.u32 %v1452, 4294901760
  %v1993 = vsub.f32 %v1452, %v1992
  %v1994 = vand.u32 %v1993, 4294901760
  %1995 = vmatpush1.msra.mxu0 %v1994
  %1996 = vmatprep.subr.mxu0 0.0
  %v1997 = vand.u32 %v1451, 4294901760
  %v1998 = vsub.f32 %v1451, %v1997
  %v1999 = vand.u32 %v1998, 4294901760
  %2000 = vmatpush1.msra.mxu0 %v1999
  %2001 = vmatprep.subr.mxu0 0.0
  %v2002 = vand.u32 %v1450, 4294901760
  %v2003 = vsub.f32 %v1450, %v2002
  %v2004 = vand.u32 %v2003, 4294901760
  %2005 = vmatpush1.msra.mxu0 %v2004
  %2006 = vmatprep.subr.mxu0 0.0
  %v2007 = vand.u32 %v1449, 4294901760
  %v2008 = vsub.f32 %v1449, %v2007
  %v2009 = vand.u32 %v2008, 4294901760
  %2010 = vmatpush1.msra.mxu0 %v2009
  %2011 = vmatprep.subr.mxu0 0.0
  %2012 = vmatpush2.msra.mxu0 0.0
  %2013 = vmatprep.subr.mxu0 0.0
  %2014 = vmatpush2.msra.mxu0 0.0
  %2015 = vmatprep.subr.mxu0 0.0
  %2016 = vmatpush2.msra.mxu0 0.0
  %2017 = vmatprep.subr.mxu0 0.0
  %2018 = vmatpush2.msra.mxu0 0.0
  %2019 = vmatprep.subr.mxu0 0.0
  %2020 = vmatpush2.msra.mxu0 0.0
  %2021 = vmatprep.subr.mxu0 0.0
  %2022 = vmatpush2.msra.mxu0 0.0
  %2023 = vmatprep.subr.mxu0 0.0
  %2024 = vmatpush2.msra.mxu0 0.0
  %2025 = vmatprep.subr.mxu0 0.0
  %2026 = vmatpush2.msra.mxu0 0.0
  %2027 = vmatprep.subr.mxu0 0.0
  %2028 = vmatpush2.msra.mxu0 0.0
  %2029 = vmatprep.subr.mxu0 0.0
  %2030 = vmatpush2.msra.mxu0 0.0
  %2031 = vmatprep.subr.mxu0 0.0
  %2032 = vmatpush2.msra.mxu0 0.0
  %2033 = vmatprep.subr.mxu0 0.0
  %2034 = vmatpush2.msra.mxu0 0.0
  %2035 = vmatprep.subr.mxu0 0.0
  %2036 = vmatpush2.msra.mxu0 0.0
  %2037 = vmatprep.subr.mxu0 0.0
  %2038 = vmatpush2.msra.mxu0 0.0
  %2039 = vmatprep.subr.mxu0 0.0
  %2040 = vmatpush2.msra.mxu0 0.0
  %2041 = vmatprep.subr.mxu0 0.0
  %2042 = vmatpush2.msra.mxu0 0.0
  %2043 = vmatprep.mubr.f32.mxu0 0.0
  %v2044 = vand.u32 %v1446, 4294901760
  %2045 = vmatmul.mubr.f32.gmra.mxu0 %v2044
  %v2046 = vpop.f32.mrf.mxu0
  %v2047 = vadd.f32 %v1920, %v2046
  %v2048 = vpop.f32.mrf.mxu0
  %2049 = vmatprep.mubr.f32.mxu0 0.0
  %v2050 = vand.u32 %v1447, 4294901760
  %2051 = vmatmul.mubr.f32.gmra.mxu0 %v2050
  %v2052 = vpop.f32.mrf.mxu0
  %v2053 = vadd.f32 %v1928, %v2052
  %v2054 = vpop.f32.mrf.mxu0
  %2055 = vdwg.mxu0
  %2056 = vmatprep.subr.mxu0 0.0
  %v2057 = vand.u32 %v1464, 4294901760
  %2058 = vmatpush1.msra.mxu0 %v2057
  %2059 = vmatprep.subr.mxu0 0.0
  %v2060 = vand.u32 %v1463, 4294901760
  %2061 = vmatpush1.msra.mxu0 %v2060
  %2062 = vmatprep.subr.mxu0 0.0
  %v2063 = vand.u32 %v1462, 4294901760
  %2064 = vmatpush1.msra.mxu0 %v2063
  %2065 = vmatprep.subr.mxu0 0.0
  %v2066 = vand.u32 %v1461, 4294901760
  %2067 = vmatpush1.msra.mxu0 %v2066
  %2068 = vmatprep.subr.mxu0 0.0
  %v2069 = vand.u32 %v1460, 4294901760
  %2070 = vmatpush1.msra.mxu0 %v2069
  %2071 = vmatprep.subr.mxu0 0.0
  %v2072 = vand.u32 %v1459, 4294901760
  %2073 = vmatpush1.msra.mxu0 %v2072
  %2074 = vmatprep.subr.mxu0 0.0
  %v2075 = vand.u32 %v1458, 4294901760
  %2076 = vmatpush1.msra.mxu0 %v2075
  %2077 = vmatprep.subr.mxu0 0.0
  %v2078 = vand.u32 %v1457, 4294901760
  %2079 = vmatpush1.msra.mxu0 %v2078
  %2080 = vmatprep.subr.mxu0 0.0
  %v2081 = vand.u32 %v1456, 4294901760
  %2082 = vmatpush1.msra.mxu0 %v2081
  %2083 = vmatprep.subr.mxu0 0.0
  %v2084 = vand.u32 %v1455, 4294901760
  %2085 = vmatpush1.msra.mxu0 %v2084
  %2086 = vmatprep.subr.mxu0 0.0
  %v2087 = vand.u32 %v1454, 4294901760
  %2088 = vmatpush1.msra.mxu0 %v2087
  %2089 = vmatprep.subr.mxu0 0.0
  %v2090 = vand.u32 %v1453, 4294901760
  %2091 = vmatpush1.msra.mxu0 %v2090
  %2092 = vmatprep.subr.mxu0 0.0
  %v2093 = vand.u32 %v1452, 4294901760
  %2094 = vmatpush1.msra.mxu0 %v2093
  %2095 = vmatprep.subr.mxu0 0.0
  %v2096 = vand.u32 %v1451, 4294901760
  %2097 = vmatpush1.msra.mxu0 %v2096
  %2098 = vmatprep.subr.mxu0 0.0
  %v2099 = vand.u32 %v1450, 4294901760
  %2100 = vmatpush1.msra.mxu0 %v2099
  %2101 = vmatprep.subr.mxu0 0.0
  %v2102 = vand.u32 %v1449, 4294901760
  %2103 = vmatpush1.msra.mxu0 %v2102
  %2104 = vmatprep.subr.mxu0 0.0
  %2105 = vmatpush2.msra.mxu0 0.0
  %2106 = vmatprep.subr.mxu0 0.0
  %2107 = vmatpush2.msra.mxu0 0.0
  %2108 = vmatprep.subr.mxu0 0.0
  %2109 = vmatpush2.msra.mxu0 0.0
  %2110 = vmatprep.subr.mxu0 0.0
  %2111 = vmatpush2.msra.mxu0 0.0
  %2112 = vmatprep.subr.mxu0 0.0
  %2113 = vmatpush2.msra.mxu0 0.0
  %2114 = vmatprep.subr.mxu0 0.0
  %2115 = vmatpush2.msra.mxu0 0.0
  %2116 = vmatprep.subr.mxu0 0.0
  %2117 = vmatpush2.msra.mxu0 0.0
  %2118 = vmatprep.subr.mxu0 0.0
  %2119 = vmatpush2.msra.mxu0 0.0
  %2120 = vmatprep.subr.mxu0 0.0
  %2121 = vmatpush2.msra.mxu0 0.0
  %2122 = vmatprep.subr.mxu0 0.0
  %2123 = vmatpush2.msra.mxu0 0.0
  %2124 = vmatprep.subr.mxu0 0.0
  %2125 = vmatpush2.msra.mxu0 0.0
  %2126 = vmatprep.subr.mxu0 0.0
  %2127 = vmatpush2.msra.mxu0 0.0
  %2128 = vmatprep.subr.mxu0 0.0
  %2129 = vmatpush2.msra.mxu0 0.0
  %2130 = vmatprep.subr.mxu0 0.0
  %2131 = vmatpush2.msra.mxu0 0.0
  %2132 = vmatprep.subr.mxu0 0.0
  %2133 = vmatpush2.msra.mxu0 0.0
  %2134 = vmatprep.subr.mxu0 0.0
  %2135 = vmatpush2.msra.mxu0 0.0
  %2136 = vmatprep.mubr.f32.mxu0 0.0
  %v2137 = vand.u32 %v1446, 4294901760
  %2138 = vmatmul.mubr.f32.gmra.mxu0 %v2137
  %v2139 = vpop.f32.mrf.mxu0
  %v2140 = vadd.f32 %v2047, %v2139
  %v2141 = vpop.f32.mrf.mxu0
  %2142 = vmatprep.mubr.f32.mxu0 0.0
  %v2143 = vand.u32 %v1447, 4294901760
  %2144 = vmatmul.mubr.f32.gmra.mxu0 %v2143
  %v2145 = vpop.f32.mrf.mxu0
  %v2146 = vadd.f32 %v2053, %v2145
  %v2147 = vpop.f32.mrf.mxu0
  %2148 = vdwg.mxu0
  %v2149 = vadd.f32 %v1437, %v2140
  %v2150 = vadd.f32 %v1443, %v2146
  %vm2151 = vcmask 130048
  %v2153 = vsel %vm2151, 1.0, 0
  %2155 = vmatprep.subr.mxu0 0.0
  %2156 = vmatpush1.msra.mxu0 0.0
  %2157 = vmatprep.subr.mxu0 0.0
  %2158 = vmatpush1.msra.mxu0 0.0
  %2159 = vmatprep.subr.mxu0 0.0
  %2160 = vmatpush1.msra.mxu0 0.0
  %2161 = vmatprep.subr.mxu0 0.0
  %2162 = vmatpush1.msra.mxu0 0.0
  %2163 = vmatprep.subr.mxu0 0.0
  %2164 = vmatpush1.msra.mxu0 0.0
  %2165 = vmatprep.subr.mxu0 0.0
  %2166 = vmatpush1.msra.mxu0 0.0
  %2167 = vmatprep.subr.mxu0 0.0
  %2168 = vmatpush1.msra.mxu0 0.0
  %2169 = vmatprep.subr.mxu0 0.0
  %2170 = vmatpush1.msra.mxu0 0.0
  %2171 = vmatprep.subr.mxu0 0.0
  %2172 = vmatpush1.msra.mxu0 0.0
  %2173 = vmatprep.subr.mxu0 0.0
  %2174 = vmatpush1.msra.mxu0 0.0
  %2175 = vmatprep.subr.mxu0 0.0
  %2176 = vmatpush1.msra.mxu0 0.0
  %2177 = vmatprep.subr.mxu0 0.0
  %2178 = vmatpush1.msra.mxu0 0.0
  %2179 = vmatprep.subr.mxu0 0.0
  %2180 = vmatpush1.msra.mxu0 0.0
  %2181 = vmatprep.subr.mxu0 0.0
  %2182 = vmatpush1.msra.mxu0 0.0
  %2183 = vmatprep.subr.mxu0 0.0
  %v2184 = vand.u32 %v2150, 4294901760
  %2185 = vmatpush1.msra.mxu0 %v2184
  %2186 = vmatprep.subr.mxu0 0.0
  %v2187 = vand.u32 %v2149, 4294901760
  %2188 = vmatpush1.msra.mxu0 %v2187
  %2189 = vmatprep.subr.mxu0 0.0
  %2190 = vmatpush2.msra.mxu0 0.0
  %2191 = vmatprep.subr.mxu0 0.0
  %2192 = vmatpush2.msra.mxu0 0.0
  %2193 = vmatprep.subr.mxu0 0.0
  %2194 = vmatpush2.msra.mxu0 0.0
  %2195 = vmatprep.subr.mxu0 0.0
  %2196 = vmatpush2.msra.mxu0 0.0
  %2197 = vmatprep.subr.mxu0 0.0
  %2198 = vmatpush2.msra.mxu0 0.0
  %2199 = vmatprep.subr.mxu0 0.0
  %2200 = vmatpush2.msra.mxu0 0.0
  %2201 = vmatprep.subr.mxu0 0.0
  %2202 = vmatpush2.msra.mxu0 0.0
  %2203 = vmatprep.subr.mxu0 0.0
  %2204 = vmatpush2.msra.mxu0 0.0
  %2205 = vmatprep.subr.mxu0 0.0
  %2206 = vmatpush2.msra.mxu0 0.0
  %2207 = vmatprep.subr.mxu0 0.0
  %2208 = vmatpush2.msra.mxu0 0.0
  %2209 = vmatprep.subr.mxu0 0.0
  %2210 = vmatpush2.msra.mxu0 0.0
  %2211 = vmatprep.subr.mxu0 0.0
  %2212 = vmatpush2.msra.mxu0 0.0
  %2213 = vmatprep.subr.mxu0 0.0
  %2214 = vmatpush2.msra.mxu0 0.0
  %2215 = vmatprep.subr.mxu0 0.0
  %2216 = vmatpush2.msra.mxu0 0.0
  %2217 = vmatprep.subr.mxu0 0.0
  %2218 = vmatpush2.msra.mxu0 0.0
  %2219 = vmatprep.subr.mxu0 0.0
  %2220 = vmatpush2.msra.mxu0 0.0
  %2221 = vmatprep.mubr.f32.mxu0 0.0
  %v2222 = vand.u32 %v2153, 4294901760
  %v2223 = vsub.f32 %v2153, %v2222
  %v2224 = vand.u32 %v2223, 4294901760
  %v2225 = vsub.f32 %v2223, %v2224
  %v2226 = vand.u32 %v2225, 4294901760
  %2227 = vmatmul.mubr.f32.gmra.mxu0 %v2226
  %v2228 = vpop.f32.mrf.mxu0
  %v2229 = vadd.f32 0.0, %v2228
  %v2230 = vpop.f32.mrf.mxu0
  %2231 = vdwg.mxu0
  %2232 = vmatprep.subr.mxu0 0.0
  %2233 = vmatpush1.msra.mxu0 0.0
  %2234 = vmatprep.subr.mxu0 0.0
  %2235 = vmatpush1.msra.mxu0 0.0
  %2236 = vmatprep.subr.mxu0 0.0
  %2237 = vmatpush1.msra.mxu0 0.0
  %2238 = vmatprep.subr.mxu0 0.0
  %2239 = vmatpush1.msra.mxu0 0.0
  %2240 = vmatprep.subr.mxu0 0.0
  %2241 = vmatpush1.msra.mxu0 0.0
  %2242 = vmatprep.subr.mxu0 0.0
  %2243 = vmatpush1.msra.mxu0 0.0
  %2244 = vmatprep.subr.mxu0 0.0
  %2245 = vmatpush1.msra.mxu0 0.0
  %2246 = vmatprep.subr.mxu0 0.0
  %2247 = vmatpush1.msra.mxu0 0.0
  %2248 = vmatprep.subr.mxu0 0.0
  %2249 = vmatpush1.msra.mxu0 0.0
  %2250 = vmatprep.subr.mxu0 0.0
  %2251 = vmatpush1.msra.mxu0 0.0
  %2252 = vmatprep.subr.mxu0 0.0
  %2253 = vmatpush1.msra.mxu0 0.0
  %2254 = vmatprep.subr.mxu0 0.0
  %2255 = vmatpush1.msra.mxu0 0.0
  %2256 = vmatprep.subr.mxu0 0.0
  %2257 = vmatpush1.msra.mxu0 0.0
  %2258 = vmatprep.subr.mxu0 0.0
  %2259 = vmatpush1.msra.mxu0 0.0
  %2260 = vmatprep.subr.mxu0 0.0
  %v2261 = vand.u32 %v2150, 4294901760
  %v2262 = vsub.f32 %v2150, %v2261
  %v2263 = vand.u32 %v2262, 4294901760
  %v2264 = vsub.f32 %v2262, %v2263
  %v2265 = vand.u32 %v2264, 4294901760
  %2266 = vmatpush1.msra.mxu0 %v2265
  %2267 = vmatprep.subr.mxu0 0.0
  %v2268 = vand.u32 %v2149, 4294901760
  %v2269 = vsub.f32 %v2149, %v2268
  %v2270 = vand.u32 %v2269, 4294901760
  %v2271 = vsub.f32 %v2269, %v2270
  %v2272 = vand.u32 %v2271, 4294901760
  %2273 = vmatpush1.msra.mxu0 %v2272
  %2274 = vmatprep.subr.mxu0 0.0
  %2275 = vmatpush2.msra.mxu0 0.0
  %2276 = vmatprep.subr.mxu0 0.0
  %2277 = vmatpush2.msra.mxu0 0.0
  %2278 = vmatprep.subr.mxu0 0.0
  %2279 = vmatpush2.msra.mxu0 0.0
  %2280 = vmatprep.subr.mxu0 0.0
  %2281 = vmatpush2.msra.mxu0 0.0
  %2282 = vmatprep.subr.mxu0 0.0
  %2283 = vmatpush2.msra.mxu0 0.0
  %2284 = vmatprep.subr.mxu0 0.0
  %2285 = vmatpush2.msra.mxu0 0.0
  %2286 = vmatprep.subr.mxu0 0.0
  %2287 = vmatpush2.msra.mxu0 0.0
  %2288 = vmatprep.subr.mxu0 0.0
  %2289 = vmatpush2.msra.mxu0 0.0
  %2290 = vmatprep.subr.mxu0 0.0
  %2291 = vmatpush2.msra.mxu0 0.0
  %2292 = vmatprep.subr.mxu0 0.0
  %2293 = vmatpush2.msra.mxu0 0.0
  %2294 = vmatprep.subr.mxu0 0.0
  %2295 = vmatpush2.msra.mxu0 0.0
  %2296 = vmatprep.subr.mxu0 0.0
  %2297 = vmatpush2.msra.mxu0 0.0
  %2298 = vmatprep.subr.mxu0 0.0
  %2299 = vmatpush2.msra.mxu0 0.0
  %2300 = vmatprep.subr.mxu0 0.0
  %2301 = vmatpush2.msra.mxu0 0.0
  %2302 = vmatprep.subr.mxu0 0.0
  %2303 = vmatpush2.msra.mxu0 0.0
  %2304 = vmatprep.subr.mxu0 0.0
  %2305 = vmatpush2.msra.mxu0 0.0
  %2306 = vmatprep.mubr.f32.mxu0 0.0
  %v2307 = vand.u32 %v2153, 4294901760
  %2308 = vmatmul.mubr.f32.gmra.mxu0 %v2307
  %v2309 = vpop.f32.mrf.mxu0
  %v2310 = vadd.f32 %v2229, %v2309
  %v2311 = vpop.f32.mrf.mxu0
  %2312 = vdwg.mxu0
  %2313 = vmatprep.subr.mxu0 0.0
  %2314 = vmatpush1.msra.mxu0 0.0
  %2315 = vmatprep.subr.mxu0 0.0
  %2316 = vmatpush1.msra.mxu0 0.0
  %2317 = vmatprep.subr.mxu0 0.0
  %2318 = vmatpush1.msra.mxu0 0.0
  %2319 = vmatprep.subr.mxu0 0.0
  %2320 = vmatpush1.msra.mxu0 0.0
  %2321 = vmatprep.subr.mxu0 0.0
  %2322 = vmatpush1.msra.mxu0 0.0
  %2323 = vmatprep.subr.mxu0 0.0
  %2324 = vmatpush1.msra.mxu0 0.0
  %2325 = vmatprep.subr.mxu0 0.0
  %2326 = vmatpush1.msra.mxu0 0.0
  %2327 = vmatprep.subr.mxu0 0.0
  %2328 = vmatpush1.msra.mxu0 0.0
  %2329 = vmatprep.subr.mxu0 0.0
  %2330 = vmatpush1.msra.mxu0 0.0
  %2331 = vmatprep.subr.mxu0 0.0
  %2332 = vmatpush1.msra.mxu0 0.0
  %2333 = vmatprep.subr.mxu0 0.0
  %2334 = vmatpush1.msra.mxu0 0.0
  %2335 = vmatprep.subr.mxu0 0.0
  %2336 = vmatpush1.msra.mxu0 0.0
  %2337 = vmatprep.subr.mxu0 0.0
  %2338 = vmatpush1.msra.mxu0 0.0
  %2339 = vmatprep.subr.mxu0 0.0
  %2340 = vmatpush1.msra.mxu0 0.0
  %2341 = vmatprep.subr.mxu0 0.0
  %v2342 = vand.u32 %v2150, 4294901760
  %v2343 = vsub.f32 %v2150, %v2342
  %2344 = vmatpush1.msra.mxu0 %v2343
  %2345 = vmatprep.subr.mxu0 0.0
  %v2346 = vand.u32 %v2149, 4294901760
  %v2347 = vsub.f32 %v2149, %v2346
  %2348 = vmatpush1.msra.mxu0 %v2347
  %2349 = vmatprep.subr.mxu0 0.0
  %2350 = vmatpush2.msra.mxu0 0.0
  %2351 = vmatprep.subr.mxu0 0.0
  %2352 = vmatpush2.msra.mxu0 0.0
  %2353 = vmatprep.subr.mxu0 0.0
  %2354 = vmatpush2.msra.mxu0 0.0
  %2355 = vmatprep.subr.mxu0 0.0
  %2356 = vmatpush2.msra.mxu0 0.0
  %2357 = vmatprep.subr.mxu0 0.0
  %2358 = vmatpush2.msra.mxu0 0.0
  %2359 = vmatprep.subr.mxu0 0.0
  %2360 = vmatpush2.msra.mxu0 0.0
  %2361 = vmatprep.subr.mxu0 0.0
  %2362 = vmatpush2.msra.mxu0 0.0
  %2363 = vmatprep.subr.mxu0 0.0
  %2364 = vmatpush2.msra.mxu0 0.0
  %2365 = vmatprep.subr.mxu0 0.0
  %2366 = vmatpush2.msra.mxu0 0.0
  %2367 = vmatprep.subr.mxu0 0.0
  %2368 = vmatpush2.msra.mxu0 0.0
  %2369 = vmatprep.subr.mxu0 0.0
  %2370 = vmatpush2.msra.mxu0 0.0
  %2371 = vmatprep.subr.mxu0 0.0
  %2372 = vmatpush2.msra.mxu0 0.0
  %2373 = vmatprep.subr.mxu0 0.0
  %2374 = vmatpush2.msra.mxu0 0.0
  %2375 = vmatprep.subr.mxu0 0.0
  %2376 = vmatpush2.msra.mxu0 0.0
  %2377 = vmatprep.subr.mxu0 0.0
  %2378 = vmatpush2.msra.mxu0 0.0
  %2379 = vmatprep.subr.mxu0 0.0
  %2380 = vmatpush2.msra.mxu0 0.0
  %2381 = vmatprep.mubr.f32.mxu0 0.0
  %v2382 = vand.u32 %v2153, 4294901760
  %v2383 = vsub.f32 %v2153, %v2382
  %2384 = vmatmul.mubr.f32.gmra.mxu0 %v2383
  %v2385 = vpop.f32.mrf.mxu0
  %v2386 = vadd.f32 %v2310, %v2385
  %v2387 = vpop.f32.mrf.mxu0
  %2388 = vdwg.mxu0
  %2389 = vmatprep.subr.mxu0 0.0
  %2390 = vmatpush1.msra.mxu0 0.0
  %2391 = vmatprep.subr.mxu0 0.0
  %2392 = vmatpush1.msra.mxu0 0.0
  %2393 = vmatprep.subr.mxu0 0.0
  %2394 = vmatpush1.msra.mxu0 0.0
  %2395 = vmatprep.subr.mxu0 0.0
  %2396 = vmatpush1.msra.mxu0 0.0
  %2397 = vmatprep.subr.mxu0 0.0
  %2398 = vmatpush1.msra.mxu0 0.0
  %2399 = vmatprep.subr.mxu0 0.0
  %2400 = vmatpush1.msra.mxu0 0.0
  %2401 = vmatprep.subr.mxu0 0.0
  %2402 = vmatpush1.msra.mxu0 0.0
  %2403 = vmatprep.subr.mxu0 0.0
  %2404 = vmatpush1.msra.mxu0 0.0
  %2405 = vmatprep.subr.mxu0 0.0
  %2406 = vmatpush1.msra.mxu0 0.0
  %2407 = vmatprep.subr.mxu0 0.0
  %2408 = vmatpush1.msra.mxu0 0.0
  %2409 = vmatprep.subr.mxu0 0.0
  %2410 = vmatpush1.msra.mxu0 0.0
  %2411 = vmatprep.subr.mxu0 0.0
  %2412 = vmatpush1.msra.mxu0 0.0
  %2413 = vmatprep.subr.mxu0 0.0
  %2414 = vmatpush1.msra.mxu0 0.0
  %2415 = vmatprep.subr.mxu0 0.0
  %2416 = vmatpush1.msra.mxu0 0.0
  %2417 = vmatprep.subr.mxu0 0.0
  %v2418 = vand.u32 %v2150, 4294901760
  %2419 = vmatpush1.msra.mxu0 %v2418
  %2420 = vmatprep.subr.mxu0 0.0
  %v2421 = vand.u32 %v2149, 4294901760
  %2422 = vmatpush1.msra.mxu0 %v2421
  %2423 = vmatprep.subr.mxu0 0.0
  %2424 = vmatpush2.msra.mxu0 0.0
  %2425 = vmatprep.subr.mxu0 0.0
  %2426 = vmatpush2.msra.mxu0 0.0
  %2427 = vmatprep.subr.mxu0 0.0
  %2428 = vmatpush2.msra.mxu0 0.0
  %2429 = vmatprep.subr.mxu0 0.0
  %2430 = vmatpush2.msra.mxu0 0.0
  %2431 = vmatprep.subr.mxu0 0.0
  %2432 = vmatpush2.msra.mxu0 0.0
  %2433 = vmatprep.subr.mxu0 0.0
  %2434 = vmatpush2.msra.mxu0 0.0
  %2435 = vmatprep.subr.mxu0 0.0
  %2436 = vmatpush2.msra.mxu0 0.0
  %2437 = vmatprep.subr.mxu0 0.0
  %2438 = vmatpush2.msra.mxu0 0.0
  %2439 = vmatprep.subr.mxu0 0.0
  %2440 = vmatpush2.msra.mxu0 0.0
  %2441 = vmatprep.subr.mxu0 0.0
  %2442 = vmatpush2.msra.mxu0 0.0
  %2443 = vmatprep.subr.mxu0 0.0
  %2444 = vmatpush2.msra.mxu0 0.0
  %2445 = vmatprep.subr.mxu0 0.0
  %2446 = vmatpush2.msra.mxu0 0.0
  %2447 = vmatprep.subr.mxu0 0.0
  %2448 = vmatpush2.msra.mxu0 0.0
  %2449 = vmatprep.subr.mxu0 0.0
  %2450 = vmatpush2.msra.mxu0 0.0
  %2451 = vmatprep.subr.mxu0 0.0
  %2452 = vmatpush2.msra.mxu0 0.0
  %2453 = vmatprep.subr.mxu0 0.0
  %2454 = vmatpush2.msra.mxu0 0.0
  %2455 = vmatprep.mubr.f32.mxu0 0.0
  %v2456 = vand.u32 %v2153, 4294901760
  %v2457 = vsub.f32 %v2153, %v2456
  %v2458 = vand.u32 %v2457, 4294901760
  %2459 = vmatmul.mubr.f32.gmra.mxu0 %v2458
  %v2460 = vpop.f32.mrf.mxu0
  %v2461 = vadd.f32 %v2386, %v2460
  %v2462 = vpop.f32.mrf.mxu0
  %2463 = vdwg.mxu0
  %2464 = vmatprep.subr.mxu0 0.0
  %2465 = vmatpush1.msra.mxu0 0.0
  %2466 = vmatprep.subr.mxu0 0.0
  %2467 = vmatpush1.msra.mxu0 0.0
  %2468 = vmatprep.subr.mxu0 0.0
  %2469 = vmatpush1.msra.mxu0 0.0
  %2470 = vmatprep.subr.mxu0 0.0
  %2471 = vmatpush1.msra.mxu0 0.0
  %2472 = vmatprep.subr.mxu0 0.0
  %2473 = vmatpush1.msra.mxu0 0.0
  %2474 = vmatprep.subr.mxu0 0.0
  %2475 = vmatpush1.msra.mxu0 0.0
  %2476 = vmatprep.subr.mxu0 0.0
  %2477 = vmatpush1.msra.mxu0 0.0
  %2478 = vmatprep.subr.mxu0 0.0
  %2479 = vmatpush1.msra.mxu0 0.0
  %2480 = vmatprep.subr.mxu0 0.0
  %2481 = vmatpush1.msra.mxu0 0.0
  %2482 = vmatprep.subr.mxu0 0.0
  %2483 = vmatpush1.msra.mxu0 0.0
  %2484 = vmatprep.subr.mxu0 0.0
  %2485 = vmatpush1.msra.mxu0 0.0
  %2486 = vmatprep.subr.mxu0 0.0
  %2487 = vmatpush1.msra.mxu0 0.0
  %2488 = vmatprep.subr.mxu0 0.0
  %2489 = vmatpush1.msra.mxu0 0.0
  %2490 = vmatprep.subr.mxu0 0.0
  %2491 = vmatpush1.msra.mxu0 0.0
  %2492 = vmatprep.subr.mxu0 0.0
  %v2493 = vand.u32 %v2150, 4294901760
  %v2494 = vsub.f32 %v2150, %v2493
  %v2495 = vand.u32 %v2494, 4294901760
  %2496 = vmatpush1.msra.mxu0 %v2495
  %2497 = vmatprep.subr.mxu0 0.0
  %v2498 = vand.u32 %v2149, 4294901760
  %v2499 = vsub.f32 %v2149, %v2498
  %v2500 = vand.u32 %v2499, 4294901760
  %2501 = vmatpush1.msra.mxu0 %v2500
  %2502 = vmatprep.subr.mxu0 0.0
  %2503 = vmatpush2.msra.mxu0 0.0
  %2504 = vmatprep.subr.mxu0 0.0
  %2505 = vmatpush2.msra.mxu0 0.0
  %2506 = vmatprep.subr.mxu0 0.0
  %2507 = vmatpush2.msra.mxu0 0.0
  %2508 = vmatprep.subr.mxu0 0.0
  %2509 = vmatpush2.msra.mxu0 0.0
  %2510 = vmatprep.subr.mxu0 0.0
  %2511 = vmatpush2.msra.mxu0 0.0
  %2512 = vmatprep.subr.mxu0 0.0
  %2513 = vmatpush2.msra.mxu0 0.0
  %2514 = vmatprep.subr.mxu0 0.0
  %2515 = vmatpush2.msra.mxu0 0.0
  %2516 = vmatprep.subr.mxu0 0.0
  %2517 = vmatpush2.msra.mxu0 0.0
  %2518 = vmatprep.subr.mxu0 0.0
  %2519 = vmatpush2.msra.mxu0 0.0
  %2520 = vmatprep.subr.mxu0 0.0
  %2521 = vmatpush2.msra.mxu0 0.0
  %2522 = vmatprep.subr.mxu0 0.0
  %2523 = vmatpush2.msra.mxu0 0.0
  %2524 = vmatprep.subr.mxu0 0.0
  %2525 = vmatpush2.msra.mxu0 0.0
  %2526 = vmatprep.subr.mxu0 0.0
  %2527 = vmatpush2.msra.mxu0 0.0
  %2528 = vmatprep.subr.mxu0 0.0
  %2529 = vmatpush2.msra.mxu0 0.0
  %2530 = vmatprep.subr.mxu0 0.0
  %2531 = vmatpush2.msra.mxu0 0.0
  %2532 = vmatprep.subr.mxu0 0.0
  %2533 = vmatpush2.msra.mxu0 0.0
  %2534 = vmatprep.mubr.f32.mxu0 0.0
  %v2535 = vand.u32 %v2153, 4294901760
  %2536 = vmatmul.mubr.f32.gmra.mxu0 %v2535
  %v2537 = vpop.f32.mrf.mxu0
  %v2538 = vadd.f32 %v2461, %v2537
  %v2539 = vpop.f32.mrf.mxu0
  %2540 = vdwg.mxu0
  %2541 = vmatprep.subr.mxu0 0.0
  %2542 = vmatpush1.msra.mxu0 0.0
  %2543 = vmatprep.subr.mxu0 0.0
  %2544 = vmatpush1.msra.mxu0 0.0
  %2545 = vmatprep.subr.mxu0 0.0
  %2546 = vmatpush1.msra.mxu0 0.0
  %2547 = vmatprep.subr.mxu0 0.0
  %2548 = vmatpush1.msra.mxu0 0.0
  %2549 = vmatprep.subr.mxu0 0.0
  %2550 = vmatpush1.msra.mxu0 0.0
  %2551 = vmatprep.subr.mxu0 0.0
  %2552 = vmatpush1.msra.mxu0 0.0
  %2553 = vmatprep.subr.mxu0 0.0
  %2554 = vmatpush1.msra.mxu0 0.0
  %2555 = vmatprep.subr.mxu0 0.0
  %2556 = vmatpush1.msra.mxu0 0.0
  %2557 = vmatprep.subr.mxu0 0.0
  %2558 = vmatpush1.msra.mxu0 0.0
  %2559 = vmatprep.subr.mxu0 0.0
  %2560 = vmatpush1.msra.mxu0 0.0
  %2561 = vmatprep.subr.mxu0 0.0
  %2562 = vmatpush1.msra.mxu0 0.0
  %2563 = vmatprep.subr.mxu0 0.0
  %2564 = vmatpush1.msra.mxu0 0.0
  %2565 = vmatprep.subr.mxu0 0.0
  %2566 = vmatpush1.msra.mxu0 0.0
  %2567 = vmatprep.subr.mxu0 0.0
  %2568 = vmatpush1.msra.mxu0 0.0
  %2569 = vmatprep.subr.mxu0 0.0
  %v2570 = vand.u32 %v2150, 4294901760
  %2571 = vmatpush1.msra.mxu0 %v2570
  %2572 = vmatprep.subr.mxu0 0.0
  %v2573 = vand.u32 %v2149, 4294901760
  %2574 = vmatpush1.msra.mxu0 %v2573
  %2575 = vmatprep.subr.mxu0 0.0
  %2576 = vmatpush2.msra.mxu0 0.0
  %2577 = vmatprep.subr.mxu0 0.0
  %2578 = vmatpush2.msra.mxu0 0.0
  %2579 = vmatprep.subr.mxu0 0.0
  %2580 = vmatpush2.msra.mxu0 0.0
  %2581 = vmatprep.subr.mxu0 0.0
  %2582 = vmatpush2.msra.mxu0 0.0
  %2583 = vmatprep.subr.mxu0 0.0
  %2584 = vmatpush2.msra.mxu0 0.0
  %2585 = vmatprep.subr.mxu0 0.0
  %2586 = vmatpush2.msra.mxu0 0.0
  %2587 = vmatprep.subr.mxu0 0.0
  %2588 = vmatpush2.msra.mxu0 0.0
  %2589 = vmatprep.subr.mxu0 0.0
  %2590 = vmatpush2.msra.mxu0 0.0
  %2591 = vmatprep.subr.mxu0 0.0
  %2592 = vmatpush2.msra.mxu0 0.0
  %2593 = vmatprep.subr.mxu0 0.0
  %2594 = vmatpush2.msra.mxu0 0.0
  %2595 = vmatprep.subr.mxu0 0.0
  %2596 = vmatpush2.msra.mxu0 0.0
  %2597 = vmatprep.subr.mxu0 0.0
  %2598 = vmatpush2.msra.mxu0 0.0
  %2599 = vmatprep.subr.mxu0 0.0
  %2600 = vmatpush2.msra.mxu0 0.0
  %2601 = vmatprep.subr.mxu0 0.0
  %2602 = vmatpush2.msra.mxu0 0.0
  %2603 = vmatprep.subr.mxu0 0.0
  %2604 = vmatpush2.msra.mxu0 0.0
  %2605 = vmatprep.subr.mxu0 0.0
  %2606 = vmatpush2.msra.mxu0 0.0
  %2607 = vmatprep.mubr.f32.mxu0 0.0
  %v2608 = vand.u32 %v2153, 4294901760
  %2609 = vmatmul.mubr.f32.gmra.mxu0 %v2608
  %v2610 = vpop.f32.mrf.mxu0
  %v2611 = vadd.f32 %v2538, %v2610
  %v2612 = vpop.f32.mrf.mxu0
  %2613 = vdwg.mxu0
  %2614 = vmatprep.subr.mxu0 0.0
  %v2615 = vand.u32 %v32, 4294901760
  %2616 = vmatpush1.msra.mxu0 %v2615
  %2617 = vmatprep.subr.mxu0 0.0
  %v2618 = vand.u32 %v31, 4294901760
  %2619 = vmatpush1.msra.mxu0 %v2618
  %2620 = vmatprep.subr.mxu0 0.0
  %v2621 = vand.u32 %v30, 4294901760
  %2622 = vmatpush1.msra.mxu0 %v2621
  %2623 = vmatprep.subr.mxu0 0.0
  %v2624 = vand.u32 %v29, 4294901760
  %2625 = vmatpush1.msra.mxu0 %v2624
  %2626 = vmatprep.subr.mxu0 0.0
  %v2627 = vand.u32 %v28, 4294901760
  %2628 = vmatpush1.msra.mxu0 %v2627
  %2629 = vmatprep.subr.mxu0 0.0
  %v2630 = vand.u32 %v27, 4294901760
  %2631 = vmatpush1.msra.mxu0 %v2630
  %2632 = vmatprep.subr.mxu0 0.0
  %v2633 = vand.u32 %v26, 4294901760
  %2634 = vmatpush1.msra.mxu0 %v2633
  %2635 = vmatprep.subr.mxu0 0.0
  %v2636 = vand.u32 %v25, 4294901760
  %2637 = vmatpush1.msra.mxu0 %v2636
  %2638 = vmatprep.subr.mxu0 0.0
  %v2639 = vand.u32 %v24, 4294901760
  %2640 = vmatpush1.msra.mxu0 %v2639
  %2641 = vmatprep.subr.mxu0 0.0
  %v2642 = vand.u32 %v23, 4294901760
  %2643 = vmatpush1.msra.mxu0 %v2642
  %2644 = vmatprep.subr.mxu0 0.0
  %v2645 = vand.u32 %v22, 4294901760
  %2646 = vmatpush1.msra.mxu0 %v2645
  %2647 = vmatprep.subr.mxu0 0.0
  %v2648 = vand.u32 %v21, 4294901760
  %2649 = vmatpush1.msra.mxu0 %v2648
  %2650 = vmatprep.subr.mxu0 0.0
  %v2651 = vand.u32 %v20, 4294901760
  %2652 = vmatpush1.msra.mxu0 %v2651
  %2653 = vmatprep.subr.mxu0 0.0
  %v2654 = vand.u32 %v19, 4294901760
  %2655 = vmatpush1.msra.mxu0 %v2654
  %2656 = vmatprep.subr.mxu0 0.0
  %v2657 = vand.u32 %v18, 4294901760
  %2658 = vmatpush1.msra.mxu0 %v2657
  %2659 = vmatprep.subr.mxu0 0.0
  %v2660 = vand.u32 %v17, 4294901760
  %2661 = vmatpush1.msra.mxu0 %v2660
  %2662 = vmatprep.subr.mxu0 0.0
  %2663 = vmatpush2.msra.mxu0 0.0
  %2664 = vmatprep.subr.mxu0 0.0
  %2665 = vmatpush2.msra.mxu0 0.0
  %2666 = vmatprep.subr.mxu0 0.0
  %2667 = vmatpush2.msra.mxu0 0.0
  %2668 = vmatprep.subr.mxu0 0.0
  %2669 = vmatpush2.msra.mxu0 0.0
  %2670 = vmatprep.subr.mxu0 0.0
  %2671 = vmatpush2.msra.mxu0 0.0
  %2672 = vmatprep.subr.mxu0 0.0
  %2673 = vmatpush2.msra.mxu0 0.0
  %2674 = vmatprep.subr.mxu0 0.0
  %2675 = vmatpush2.msra.mxu0 0.0
  %2676 = vmatprep.subr.mxu0 0.0
  %2677 = vmatpush2.msra.mxu0 0.0
  %2678 = vmatprep.subr.mxu0 0.0
  %2679 = vmatpush2.msra.mxu0 0.0
  %2680 = vmatprep.subr.mxu0 0.0
  %2681 = vmatpush2.msra.mxu0 0.0
  %2682 = vmatprep.subr.mxu0 0.0
  %2683 = vmatpush2.msra.mxu0 0.0
  %2684 = vmatprep.subr.mxu0 0.0
  %2685 = vmatpush2.msra.mxu0 0.0
  %2686 = vmatprep.subr.mxu0 0.0
  %2687 = vmatpush2.msra.mxu0 0.0
  %2688 = vmatprep.subr.mxu0 0.0
  %2689 = vmatpush2.msra.mxu0 0.0
  %2690 = vmatprep.subr.mxu0 0.0
  %2691 = vmatpush2.msra.mxu0 0.0
  %2692 = vmatprep.subr.mxu0 0.0
  %2693 = vmatpush2.msra.mxu0 0.0
  %2694 = vmatprep.mubr.f32.mxu0 0.0
  %v2695 = vand.u32 %v2611, 4294901760
  %v2696 = vsub.f32 %v2611, %v2695
  %v2697 = vand.u32 %v2696, 4294901760
  %v2698 = vsub.f32 %v2696, %v2697
  %v2699 = vand.u32 %v2698, 4294901760
  %2700 = vmatmul.mubr.f32.gmra.mxu0 %v2699
  %v2701 = vpop.f32.mrf.mxu0
  %v2702 = vadd.f32 0.0, %v2701
  %v2703 = vpop.f32.mrf.mxu0
  %2704 = vdwg.mxu0
  %2705 = vmatprep.subr.mxu0 0.0
  %v2706 = vand.u32 %v32, 4294901760
  %v2707 = vsub.f32 %v32, %v2706
  %v2708 = vand.u32 %v2707, 4294901760
  %v2709 = vsub.f32 %v2707, %v2708
  %v2710 = vand.u32 %v2709, 4294901760
  %2711 = vmatpush1.msra.mxu0 %v2710
  %2712 = vmatprep.subr.mxu0 0.0
  %v2713 = vand.u32 %v31, 4294901760
  %v2714 = vsub.f32 %v31, %v2713
  %v2715 = vand.u32 %v2714, 4294901760
  %v2716 = vsub.f32 %v2714, %v2715
  %v2717 = vand.u32 %v2716, 4294901760
  %2718 = vmatpush1.msra.mxu0 %v2717
  %2719 = vmatprep.subr.mxu0 0.0
  %v2720 = vand.u32 %v30, 4294901760
  %v2721 = vsub.f32 %v30, %v2720
  %v2722 = vand.u32 %v2721, 4294901760
  %v2723 = vsub.f32 %v2721, %v2722
  %v2724 = vand.u32 %v2723, 4294901760
  %2725 = vmatpush1.msra.mxu0 %v2724
  %2726 = vmatprep.subr.mxu0 0.0
  %v2727 = vand.u32 %v29, 4294901760
  %v2728 = vsub.f32 %v29, %v2727
  %v2729 = vand.u32 %v2728, 4294901760
  %v2730 = vsub.f32 %v2728, %v2729
  %v2731 = vand.u32 %v2730, 4294901760
  %2732 = vmatpush1.msra.mxu0 %v2731
  %2733 = vmatprep.subr.mxu0 0.0
  %v2734 = vand.u32 %v28, 4294901760
  %v2735 = vsub.f32 %v28, %v2734
  %v2736 = vand.u32 %v2735, 4294901760
  %v2737 = vsub.f32 %v2735, %v2736
  %v2738 = vand.u32 %v2737, 4294901760
  %2739 = vmatpush1.msra.mxu0 %v2738
  %2740 = vmatprep.subr.mxu0 0.0
  %v2741 = vand.u32 %v27, 4294901760
  %v2742 = vsub.f32 %v27, %v2741
  %v2743 = vand.u32 %v2742, 4294901760
  %v2744 = vsub.f32 %v2742, %v2743
  %v2745 = vand.u32 %v2744, 4294901760
  %2746 = vmatpush1.msra.mxu0 %v2745
  %2747 = vmatprep.subr.mxu0 0.0
  %v2748 = vand.u32 %v26, 4294901760
  %v2749 = vsub.f32 %v26, %v2748
  %v2750 = vand.u32 %v2749, 4294901760
  %v2751 = vsub.f32 %v2749, %v2750
  %v2752 = vand.u32 %v2751, 4294901760
  %2753 = vmatpush1.msra.mxu0 %v2752
  %2754 = vmatprep.subr.mxu0 0.0
  %v2755 = vand.u32 %v25, 4294901760
  %v2756 = vsub.f32 %v25, %v2755
  %v2757 = vand.u32 %v2756, 4294901760
  %v2758 = vsub.f32 %v2756, %v2757
  %v2759 = vand.u32 %v2758, 4294901760
  %2760 = vmatpush1.msra.mxu0 %v2759
  %2761 = vmatprep.subr.mxu0 0.0
  %v2762 = vand.u32 %v24, 4294901760
  %v2763 = vsub.f32 %v24, %v2762
  %v2764 = vand.u32 %v2763, 4294901760
  %v2765 = vsub.f32 %v2763, %v2764
  %v2766 = vand.u32 %v2765, 4294901760
  %2767 = vmatpush1.msra.mxu0 %v2766
  %2768 = vmatprep.subr.mxu0 0.0
  %v2769 = vand.u32 %v23, 4294901760
  %v2770 = vsub.f32 %v23, %v2769
  %v2771 = vand.u32 %v2770, 4294901760
  %v2772 = vsub.f32 %v2770, %v2771
  %v2773 = vand.u32 %v2772, 4294901760
  %2774 = vmatpush1.msra.mxu0 %v2773
  %2775 = vmatprep.subr.mxu0 0.0
  %v2776 = vand.u32 %v22, 4294901760
  %v2777 = vsub.f32 %v22, %v2776
  %v2778 = vand.u32 %v2777, 4294901760
  %v2779 = vsub.f32 %v2777, %v2778
  %v2780 = vand.u32 %v2779, 4294901760
  %2781 = vmatpush1.msra.mxu0 %v2780
  %2782 = vmatprep.subr.mxu0 0.0
  %v2783 = vand.u32 %v21, 4294901760
  %v2784 = vsub.f32 %v21, %v2783
  %v2785 = vand.u32 %v2784, 4294901760
  %v2786 = vsub.f32 %v2784, %v2785
  %v2787 = vand.u32 %v2786, 4294901760
  %2788 = vmatpush1.msra.mxu0 %v2787
  %2789 = vmatprep.subr.mxu0 0.0
  %v2790 = vand.u32 %v20, 4294901760
  %v2791 = vsub.f32 %v20, %v2790
  %v2792 = vand.u32 %v2791, 4294901760
  %v2793 = vsub.f32 %v2791, %v2792
  %v2794 = vand.u32 %v2793, 4294901760
  %2795 = vmatpush1.msra.mxu0 %v2794
  %2796 = vmatprep.subr.mxu0 0.0
  %v2797 = vand.u32 %v19, 4294901760
  %v2798 = vsub.f32 %v19, %v2797
  %v2799 = vand.u32 %v2798, 4294901760
  %v2800 = vsub.f32 %v2798, %v2799
  %v2801 = vand.u32 %v2800, 4294901760
  %2802 = vmatpush1.msra.mxu0 %v2801
  %2803 = vmatprep.subr.mxu0 0.0
  %v2804 = vand.u32 %v18, 4294901760
  %v2805 = vsub.f32 %v18, %v2804
  %v2806 = vand.u32 %v2805, 4294901760
  %v2807 = vsub.f32 %v2805, %v2806
  %v2808 = vand.u32 %v2807, 4294901760
  %2809 = vmatpush1.msra.mxu0 %v2808
  %2810 = vmatprep.subr.mxu0 0.0
  %v2811 = vand.u32 %v17, 4294901760
  %v2812 = vsub.f32 %v17, %v2811
  %v2813 = vand.u32 %v2812, 4294901760
  %v2814 = vsub.f32 %v2812, %v2813
  %v2815 = vand.u32 %v2814, 4294901760
  %2816 = vmatpush1.msra.mxu0 %v2815
  %2817 = vmatprep.subr.mxu0 0.0
  %2818 = vmatpush2.msra.mxu0 0.0
  %2819 = vmatprep.subr.mxu0 0.0
  %2820 = vmatpush2.msra.mxu0 0.0
  %2821 = vmatprep.subr.mxu0 0.0
  %2822 = vmatpush2.msra.mxu0 0.0
  %2823 = vmatprep.subr.mxu0 0.0
  %2824 = vmatpush2.msra.mxu0 0.0
  %2825 = vmatprep.subr.mxu0 0.0
  %2826 = vmatpush2.msra.mxu0 0.0
  %2827 = vmatprep.subr.mxu0 0.0
  %2828 = vmatpush2.msra.mxu0 0.0
  %2829 = vmatprep.subr.mxu0 0.0
  %2830 = vmatpush2.msra.mxu0 0.0
  %2831 = vmatprep.subr.mxu0 0.0
  %2832 = vmatpush2.msra.mxu0 0.0
  %2833 = vmatprep.subr.mxu0 0.0
  %2834 = vmatpush2.msra.mxu0 0.0
  %2835 = vmatprep.subr.mxu0 0.0
  %2836 = vmatpush2.msra.mxu0 0.0
  %2837 = vmatprep.subr.mxu0 0.0
  %2838 = vmatpush2.msra.mxu0 0.0
  %2839 = vmatprep.subr.mxu0 0.0
  %2840 = vmatpush2.msra.mxu0 0.0
  %2841 = vmatprep.subr.mxu0 0.0
  %2842 = vmatpush2.msra.mxu0 0.0
  %2843 = vmatprep.subr.mxu0 0.0
  %2844 = vmatpush2.msra.mxu0 0.0
  %2845 = vmatprep.subr.mxu0 0.0
  %2846 = vmatpush2.msra.mxu0 0.0
  %2847 = vmatprep.subr.mxu0 0.0
  %2848 = vmatpush2.msra.mxu0 0.0
  %2849 = vmatprep.mubr.f32.mxu0 0.0
  %v2850 = vand.u32 %v2611, 4294901760
  %2851 = vmatmul.mubr.f32.gmra.mxu0 %v2850
  %v2852 = vpop.f32.mrf.mxu0
  %v2853 = vadd.f32 %v2702, %v2852
  %v2854 = vpop.f32.mrf.mxu0
  %2855 = vdwg.mxu0
  %2856 = vmatprep.subr.mxu0 0.0
  %v2857 = vand.u32 %v32, 4294901760
  %v2858 = vsub.f32 %v32, %v2857
  %2859 = vmatpush1.msra.mxu0 %v2858
  %2860 = vmatprep.subr.mxu0 0.0
  %v2861 = vand.u32 %v31, 4294901760
  %v2862 = vsub.f32 %v31, %v2861
  %2863 = vmatpush1.msra.mxu0 %v2862
  %2864 = vmatprep.subr.mxu0 0.0
  %v2865 = vand.u32 %v30, 4294901760
  %v2866 = vsub.f32 %v30, %v2865
  %2867 = vmatpush1.msra.mxu0 %v2866
  %2868 = vmatprep.subr.mxu0 0.0
  %v2869 = vand.u32 %v29, 4294901760
  %v2870 = vsub.f32 %v29, %v2869
  %2871 = vmatpush1.msra.mxu0 %v2870
  %2872 = vmatprep.subr.mxu0 0.0
  %v2873 = vand.u32 %v28, 4294901760
  %v2874 = vsub.f32 %v28, %v2873
  %2875 = vmatpush1.msra.mxu0 %v2874
  %2876 = vmatprep.subr.mxu0 0.0
  %v2877 = vand.u32 %v27, 4294901760
  %v2878 = vsub.f32 %v27, %v2877
  %2879 = vmatpush1.msra.mxu0 %v2878
  %2880 = vmatprep.subr.mxu0 0.0
  %v2881 = vand.u32 %v26, 4294901760
  %v2882 = vsub.f32 %v26, %v2881
  %2883 = vmatpush1.msra.mxu0 %v2882
  %2884 = vmatprep.subr.mxu0 0.0
  %v2885 = vand.u32 %v25, 4294901760
  %v2886 = vsub.f32 %v25, %v2885
  %2887 = vmatpush1.msra.mxu0 %v2886
  %2888 = vmatprep.subr.mxu0 0.0
  %v2889 = vand.u32 %v24, 4294901760
  %v2890 = vsub.f32 %v24, %v2889
  %2891 = vmatpush1.msra.mxu0 %v2890
  %2892 = vmatprep.subr.mxu0 0.0
  %v2893 = vand.u32 %v23, 4294901760
  %v2894 = vsub.f32 %v23, %v2893
  %2895 = vmatpush1.msra.mxu0 %v2894
  %2896 = vmatprep.subr.mxu0 0.0
  %v2897 = vand.u32 %v22, 4294901760
  %v2898 = vsub.f32 %v22, %v2897
  %2899 = vmatpush1.msra.mxu0 %v2898
  %2900 = vmatprep.subr.mxu0 0.0
  %v2901 = vand.u32 %v21, 4294901760
  %v2902 = vsub.f32 %v21, %v2901
  %2903 = vmatpush1.msra.mxu0 %v2902
  %2904 = vmatprep.subr.mxu0 0.0
  %v2905 = vand.u32 %v20, 4294901760
  %v2906 = vsub.f32 %v20, %v2905
  %2907 = vmatpush1.msra.mxu0 %v2906
  %2908 = vmatprep.subr.mxu0 0.0
  %v2909 = vand.u32 %v19, 4294901760
  %v2910 = vsub.f32 %v19, %v2909
  %2911 = vmatpush1.msra.mxu0 %v2910
  %2912 = vmatprep.subr.mxu0 0.0
  %v2913 = vand.u32 %v18, 4294901760
  %v2914 = vsub.f32 %v18, %v2913
  %2915 = vmatpush1.msra.mxu0 %v2914
  %2916 = vmatprep.subr.mxu0 0.0
  %v2917 = vand.u32 %v17, 4294901760
  %v2918 = vsub.f32 %v17, %v2917
  %2919 = vmatpush1.msra.mxu0 %v2918
  %2920 = vmatprep.subr.mxu0 0.0
  %2921 = vmatpush2.msra.mxu0 0.0
  %2922 = vmatprep.subr.mxu0 0.0
  %2923 = vmatpush2.msra.mxu0 0.0
  %2924 = vmatprep.subr.mxu0 0.0
  %2925 = vmatpush2.msra.mxu0 0.0
  %2926 = vmatprep.subr.mxu0 0.0
  %2927 = vmatpush2.msra.mxu0 0.0
  %2928 = vmatprep.subr.mxu0 0.0
  %2929 = vmatpush2.msra.mxu0 0.0
  %2930 = vmatprep.subr.mxu0 0.0
  %2931 = vmatpush2.msra.mxu0 0.0
  %2932 = vmatprep.subr.mxu0 0.0
  %2933 = vmatpush2.msra.mxu0 0.0
  %2934 = vmatprep.subr.mxu0 0.0
  %2935 = vmatpush2.msra.mxu0 0.0
  %2936 = vmatprep.subr.mxu0 0.0
  %2937 = vmatpush2.msra.mxu0 0.0
  %2938 = vmatprep.subr.mxu0 0.0
  %2939 = vmatpush2.msra.mxu0 0.0
  %2940 = vmatprep.subr.mxu0 0.0
  %2941 = vmatpush2.msra.mxu0 0.0
  %2942 = vmatprep.subr.mxu0 0.0
  %2943 = vmatpush2.msra.mxu0 0.0
  %2944 = vmatprep.subr.mxu0 0.0
  %2945 = vmatpush2.msra.mxu0 0.0
  %2946 = vmatprep.subr.mxu0 0.0
  %2947 = vmatpush2.msra.mxu0 0.0
  %2948 = vmatprep.subr.mxu0 0.0
  %2949 = vmatpush2.msra.mxu0 0.0
  %2950 = vmatprep.subr.mxu0 0.0
  %2951 = vmatpush2.msra.mxu0 0.0
  %2952 = vmatprep.mubr.f32.mxu0 0.0
  %v2953 = vand.u32 %v2611, 4294901760
  %v2954 = vsub.f32 %v2611, %v2953
  %2955 = vmatmul.mubr.f32.gmra.mxu0 %v2954
  %v2956 = vpop.f32.mrf.mxu0
  %v2957 = vadd.f32 %v2853, %v2956
  %v2958 = vpop.f32.mrf.mxu0
  %2959 = vdwg.mxu0
  %2960 = vmatprep.subr.mxu0 0.0
  %v2961 = vand.u32 %v32, 4294901760
  %2962 = vmatpush1.msra.mxu0 %v2961
  %2963 = vmatprep.subr.mxu0 0.0
  %v2964 = vand.u32 %v31, 4294901760
  %2965 = vmatpush1.msra.mxu0 %v2964
  %2966 = vmatprep.subr.mxu0 0.0
  %v2967 = vand.u32 %v30, 4294901760
  %2968 = vmatpush1.msra.mxu0 %v2967
  %2969 = vmatprep.subr.mxu0 0.0
  %v2970 = vand.u32 %v29, 4294901760
  %2971 = vmatpush1.msra.mxu0 %v2970
  %2972 = vmatprep.subr.mxu0 0.0
  %v2973 = vand.u32 %v28, 4294901760
  %2974 = vmatpush1.msra.mxu0 %v2973
  %2975 = vmatprep.subr.mxu0 0.0
  %v2976 = vand.u32 %v27, 4294901760
  %2977 = vmatpush1.msra.mxu0 %v2976
  %2978 = vmatprep.subr.mxu0 0.0
  %v2979 = vand.u32 %v26, 4294901760
  %2980 = vmatpush1.msra.mxu0 %v2979
  %2981 = vmatprep.subr.mxu0 0.0
  %v2982 = vand.u32 %v25, 4294901760
  %2983 = vmatpush1.msra.mxu0 %v2982
  %2984 = vmatprep.subr.mxu0 0.0
  %v2985 = vand.u32 %v24, 4294901760
  %2986 = vmatpush1.msra.mxu0 %v2985
  %2987 = vmatprep.subr.mxu0 0.0
  %v2988 = vand.u32 %v23, 4294901760
  %2989 = vmatpush1.msra.mxu0 %v2988
  %2990 = vmatprep.subr.mxu0 0.0
  %v2991 = vand.u32 %v22, 4294901760
  %2992 = vmatpush1.msra.mxu0 %v2991
  %2993 = vmatprep.subr.mxu0 0.0
  %v2994 = vand.u32 %v21, 4294901760
  %2995 = vmatpush1.msra.mxu0 %v2994
  %2996 = vmatprep.subr.mxu0 0.0
  %v2997 = vand.u32 %v20, 4294901760
  %2998 = vmatpush1.msra.mxu0 %v2997
  %2999 = vmatprep.subr.mxu0 0.0
  %v3000 = vand.u32 %v19, 4294901760
  %3001 = vmatpush1.msra.mxu0 %v3000
  %3002 = vmatprep.subr.mxu0 0.0
  %v3003 = vand.u32 %v18, 4294901760
  %3004 = vmatpush1.msra.mxu0 %v3003
  %3005 = vmatprep.subr.mxu0 0.0
  %v3006 = vand.u32 %v17, 4294901760
  %3007 = vmatpush1.msra.mxu0 %v3006
  %3008 = vmatprep.subr.mxu0 0.0
  %3009 = vmatpush2.msra.mxu0 0.0
  %3010 = vmatprep.subr.mxu0 0.0
  %3011 = vmatpush2.msra.mxu0 0.0
  %3012 = vmatprep.subr.mxu0 0.0
  %3013 = vmatpush2.msra.mxu0 0.0
  %3014 = vmatprep.subr.mxu0 0.0
  %3015 = vmatpush2.msra.mxu0 0.0
  %3016 = vmatprep.subr.mxu0 0.0
  %3017 = vmatpush2.msra.mxu0 0.0
  %3018 = vmatprep.subr.mxu0 0.0
  %3019 = vmatpush2.msra.mxu0 0.0
  %3020 = vmatprep.subr.mxu0 0.0
  %3021 = vmatpush2.msra.mxu0 0.0
  %3022 = vmatprep.subr.mxu0 0.0
  %3023 = vmatpush2.msra.mxu0 0.0
  %3024 = vmatprep.subr.mxu0 0.0
  %3025 = vmatpush2.msra.mxu0 0.0
  %3026 = vmatprep.subr.mxu0 0.0
  %3027 = vmatpush2.msra.mxu0 0.0
  %3028 = vmatprep.subr.mxu0 0.0
  %3029 = vmatpush2.msra.mxu0 0.0
  %3030 = vmatprep.subr.mxu0 0.0
  %3031 = vmatpush2.msra.mxu0 0.0
  %3032 = vmatprep.subr.mxu0 0.0
  %3033 = vmatpush2.msra.mxu0 0.0
  %3034 = vmatprep.subr.mxu0 0.0
  %3035 = vmatpush2.msra.mxu0 0.0
  %3036 = vmatprep.subr.mxu0 0.0
  %3037 = vmatpush2.msra.mxu0 0.0
  %3038 = vmatprep.subr.mxu0 0.0
  %3039 = vmatpush2.msra.mxu0 0.0
  %3040 = vmatprep.mubr.f32.mxu0 0.0
  %v3041 = vand.u32 %v2611, 4294901760
  %v3042 = vsub.f32 %v2611, %v3041
  %v3043 = vand.u32 %v3042, 4294901760
  %3044 = vmatmul.mubr.f32.gmra.mxu0 %v3043
  %v3045 = vpop.f32.mrf.mxu0
  %v3046 = vadd.f32 %v2957, %v3045
  %v3047 = vpop.f32.mrf.mxu0
  %3048 = vdwg.mxu0
  %3049 = vmatprep.subr.mxu0 0.0
  %v3050 = vand.u32 %v32, 4294901760
  %v3051 = vsub.f32 %v32, %v3050
  %v3052 = vand.u32 %v3051, 4294901760
  %3053 = vmatpush1.msra.mxu0 %v3052
  %3054 = vmatprep.subr.mxu0 0.0
  %v3055 = vand.u32 %v31, 4294901760
  %v3056 = vsub.f32 %v31, %v3055
  %v3057 = vand.u32 %v3056, 4294901760
  %3058 = vmatpush1.msra.mxu0 %v3057
  %3059 = vmatprep.subr.mxu0 0.0
  %v3060 = vand.u32 %v30, 4294901760
  %v3061 = vsub.f32 %v30, %v3060
  %v3062 = vand.u32 %v3061, 4294901760
  %3063 = vmatpush1.msra.mxu0 %v3062
  %3064 = vmatprep.subr.mxu0 0.0
  %v3065 = vand.u32 %v29, 4294901760
  %v3066 = vsub.f32 %v29, %v3065
  %v3067 = vand.u32 %v3066, 4294901760
  %3068 = vmatpush1.msra.mxu0 %v3067
  %3069 = vmatprep.subr.mxu0 0.0
  %v3070 = vand.u32 %v28, 4294901760
  %v3071 = vsub.f32 %v28, %v3070
  %v3072 = vand.u32 %v3071, 4294901760
  %3073 = vmatpush1.msra.mxu0 %v3072
  %3074 = vmatprep.subr.mxu0 0.0
  %v3075 = vand.u32 %v27, 4294901760
  %v3076 = vsub.f32 %v27, %v3075
  %v3077 = vand.u32 %v3076, 4294901760
  %3078 = vmatpush1.msra.mxu0 %v3077
  %3079 = vmatprep.subr.mxu0 0.0
  %v3080 = vand.u32 %v26, 4294901760
  %v3081 = vsub.f32 %v26, %v3080
  %v3082 = vand.u32 %v3081, 4294901760
  %3083 = vmatpush1.msra.mxu0 %v3082
  %3084 = vmatprep.subr.mxu0 0.0
  %v3085 = vand.u32 %v25, 4294901760
  %v3086 = vsub.f32 %v25, %v3085
  %v3087 = vand.u32 %v3086, 4294901760
  %3088 = vmatpush1.msra.mxu0 %v3087
  %3089 = vmatprep.subr.mxu0 0.0
  %v3090 = vand.u32 %v24, 4294901760
  %v3091 = vsub.f32 %v24, %v3090
  %v3092 = vand.u32 %v3091, 4294901760
  %3093 = vmatpush1.msra.mxu0 %v3092
  %3094 = vmatprep.subr.mxu0 0.0
  %v3095 = vand.u32 %v23, 4294901760
  %v3096 = vsub.f32 %v23, %v3095
  %v3097 = vand.u32 %v3096, 4294901760
  %3098 = vmatpush1.msra.mxu0 %v3097
  %3099 = vmatprep.subr.mxu0 0.0
  %v3100 = vand.u32 %v22, 4294901760
  %v3101 = vsub.f32 %v22, %v3100
  %v3102 = vand.u32 %v3101, 4294901760
  %3103 = vmatpush1.msra.mxu0 %v3102
  %3104 = vmatprep.subr.mxu0 0.0
  %v3105 = vand.u32 %v21, 4294901760
  %v3106 = vsub.f32 %v21, %v3105
  %v3107 = vand.u32 %v3106, 4294901760
  %3108 = vmatpush1.msra.mxu0 %v3107
  %3109 = vmatprep.subr.mxu0 0.0
  %v3110 = vand.u32 %v20, 4294901760
  %v3111 = vsub.f32 %v20, %v3110
  %v3112 = vand.u32 %v3111, 4294901760
  %3113 = vmatpush1.msra.mxu0 %v3112
  %3114 = vmatprep.subr.mxu0 0.0
  %v3115 = vand.u32 %v19, 4294901760
  %v3116 = vsub.f32 %v19, %v3115
  %v3117 = vand.u32 %v3116, 4294901760
  %3118 = vmatpush1.msra.mxu0 %v3117
  %3119 = vmatprep.subr.mxu0 0.0
  %v3120 = vand.u32 %v18, 4294901760
  %v3121 = vsub.f32 %v18, %v3120
  %v3122 = vand.u32 %v3121, 4294901760
  %3123 = vmatpush1.msra.mxu0 %v3122
  %3124 = vmatprep.subr.mxu0 0.0
  %v3125 = vand.u32 %v17, 4294901760
  %v3126 = vsub.f32 %v17, %v3125
  %v3127 = vand.u32 %v3126, 4294901760
  %3128 = vmatpush1.msra.mxu0 %v3127
  %3129 = vmatprep.subr.mxu0 0.0
  %3130 = vmatpush2.msra.mxu0 0.0
  %3131 = vmatprep.subr.mxu0 0.0
  %3132 = vmatpush2.msra.mxu0 0.0
  %3133 = vmatprep.subr.mxu0 0.0
  %3134 = vmatpush2.msra.mxu0 0.0
  %3135 = vmatprep.subr.mxu0 0.0
  %3136 = vmatpush2.msra.mxu0 0.0
  %3137 = vmatprep.subr.mxu0 0.0
  %3138 = vmatpush2.msra.mxu0 0.0
  %3139 = vmatprep.subr.mxu0 0.0
  %3140 = vmatpush2.msra.mxu0 0.0
  %3141 = vmatprep.subr.mxu0 0.0
  %3142 = vmatpush2.msra.mxu0 0.0
  %3143 = vmatprep.subr.mxu0 0.0
  %3144 = vmatpush2.msra.mxu0 0.0
  %3145 = vmatprep.subr.mxu0 0.0
  %3146 = vmatpush2.msra.mxu0 0.0
  %3147 = vmatprep.subr.mxu0 0.0
  %3148 = vmatpush2.msra.mxu0 0.0
  %3149 = vmatprep.subr.mxu0 0.0
  %3150 = vmatpush2.msra.mxu0 0.0
  %3151 = vmatprep.subr.mxu0 0.0
  %3152 = vmatpush2.msra.mxu0 0.0
  %3153 = vmatprep.subr.mxu0 0.0
  %3154 = vmatpush2.msra.mxu0 0.0
  %3155 = vmatprep.subr.mxu0 0.0
  %3156 = vmatpush2.msra.mxu0 0.0
  %3157 = vmatprep.subr.mxu0 0.0
  %3158 = vmatpush2.msra.mxu0 0.0
  %3159 = vmatprep.subr.mxu0 0.0
  %3160 = vmatpush2.msra.mxu0 0.0
  %3161 = vmatprep.mubr.f32.mxu0 0.0
  %v3162 = vand.u32 %v2611, 4294901760
  %3163 = vmatmul.mubr.f32.gmra.mxu0 %v3162
  %v3164 = vpop.f32.mrf.mxu0
  %v3165 = vadd.f32 %v3046, %v3164
  %v3166 = vpop.f32.mrf.mxu0
  %3167 = vdwg.mxu0
  %3168 = vmatprep.subr.mxu0 0.0
  %v3169 = vand.u32 %v32, 4294901760
  %3170 = vmatpush1.msra.mxu0 %v3169
  %3171 = vmatprep.subr.mxu0 0.0
  %v3172 = vand.u32 %v31, 4294901760
  %3173 = vmatpush1.msra.mxu0 %v3172
  %3174 = vmatprep.subr.mxu0 0.0
  %v3175 = vand.u32 %v30, 4294901760
  %3176 = vmatpush1.msra.mxu0 %v3175
  %3177 = vmatprep.subr.mxu0 0.0
  %v3178 = vand.u32 %v29, 4294901760
  %3179 = vmatpush1.msra.mxu0 %v3178
  %3180 = vmatprep.subr.mxu0 0.0
  %v3181 = vand.u32 %v28, 4294901760
  %3182 = vmatpush1.msra.mxu0 %v3181
  %3183 = vmatprep.subr.mxu0 0.0
  %v3184 = vand.u32 %v27, 4294901760
  %3185 = vmatpush1.msra.mxu0 %v3184
  %3186 = vmatprep.subr.mxu0 0.0
  %v3187 = vand.u32 %v26, 4294901760
  %3188 = vmatpush1.msra.mxu0 %v3187
  %3189 = vmatprep.subr.mxu0 0.0
  %v3190 = vand.u32 %v25, 4294901760
  %3191 = vmatpush1.msra.mxu0 %v3190
  %3192 = vmatprep.subr.mxu0 0.0
  %v3193 = vand.u32 %v24, 4294901760
  %3194 = vmatpush1.msra.mxu0 %v3193
  %3195 = vmatprep.subr.mxu0 0.0
  %v3196 = vand.u32 %v23, 4294901760
  %3197 = vmatpush1.msra.mxu0 %v3196
  %3198 = vmatprep.subr.mxu0 0.0
  %v3199 = vand.u32 %v22, 4294901760
  %3200 = vmatpush1.msra.mxu0 %v3199
  %3201 = vmatprep.subr.mxu0 0.0
  %v3202 = vand.u32 %v21, 4294901760
  %3203 = vmatpush1.msra.mxu0 %v3202
  %3204 = vmatprep.subr.mxu0 0.0
  %v3205 = vand.u32 %v20, 4294901760
  %3206 = vmatpush1.msra.mxu0 %v3205
  %3207 = vmatprep.subr.mxu0 0.0
  %v3208 = vand.u32 %v19, 4294901760
  %3209 = vmatpush1.msra.mxu0 %v3208
  %3210 = vmatprep.subr.mxu0 0.0
  %v3211 = vand.u32 %v18, 4294901760
  %3212 = vmatpush1.msra.mxu0 %v3211
  %3213 = vmatprep.subr.mxu0 0.0
  %v3214 = vand.u32 %v17, 4294901760
  %3215 = vmatpush1.msra.mxu0 %v3214
  %3216 = vmatprep.subr.mxu0 0.0
  %3217 = vmatpush2.msra.mxu0 0.0
  %3218 = vmatprep.subr.mxu0 0.0
  %3219 = vmatpush2.msra.mxu0 0.0
  %3220 = vmatprep.subr.mxu0 0.0
  %3221 = vmatpush2.msra.mxu0 0.0
  %3222 = vmatprep.subr.mxu0 0.0
  %3223 = vmatpush2.msra.mxu0 0.0
  %3224 = vmatprep.subr.mxu0 0.0
  %3225 = vmatpush2.msra.mxu0 0.0
  %3226 = vmatprep.subr.mxu0 0.0
  %3227 = vmatpush2.msra.mxu0 0.0
  %3228 = vmatprep.subr.mxu0 0.0
  %3229 = vmatpush2.msra.mxu0 0.0
  %3230 = vmatprep.subr.mxu0 0.0
  %3231 = vmatpush2.msra.mxu0 0.0
  %3232 = vmatprep.subr.mxu0 0.0
  %3233 = vmatpush2.msra.mxu0 0.0
  %3234 = vmatprep.subr.mxu0 0.0
  %3235 = vmatpush2.msra.mxu0 0.0
  %3236 = vmatprep.subr.mxu0 0.0
  %3237 = vmatpush2.msra.mxu0 0.0
  %3238 = vmatprep.subr.mxu0 0.0
  %3239 = vmatpush2.msra.mxu0 0.0
  %3240 = vmatprep.subr.mxu0 0.0
  %3241 = vmatpush2.msra.mxu0 0.0
  %3242 = vmatprep.subr.mxu0 0.0
  %3243 = vmatpush2.msra.mxu0 0.0
  %3244 = vmatprep.subr.mxu0 0.0
  %3245 = vmatpush2.msra.mxu0 0.0
  %3246 = vmatprep.subr.mxu0 0.0
  %3247 = vmatpush2.msra.mxu0 0.0
  %3248 = vmatprep.mubr.f32.mxu0 0.0
  %v3249 = vand.u32 %v2611, 4294901760
  %3250 = vmatmul.mubr.f32.gmra.mxu0 %v3249
  %v3251 = vpop.f32.mrf.mxu0
  %v3252 = vadd.f32 %v3165, %v3251
  %v3253 = vpop.f32.mrf.mxu0
  %3254 = vdwg.mxu0
  %v3255 = vmul.f32 %v3252, 0.001953125
  %v3256 = vlaneseq
  %v3257 = vshrl.u32 %v3256, 7
  %v3258 = vsub.s32 0, %v3257
  %v3259 = vrot.slane %v3255, %v3258
  %v3260 = vsub.f32 %v2149, %v3259
  %v3261 = vsub.f32 %v2150, %v3259
  %v3262 = vmul.f32 %v3260, %v3260
  %v3263 = vmul.f32 %v3261, %v3261
  %3264 = vmatprep.subr.mxu0 0.0
  %3265 = vmatpush1.msra.mxu0 0.0
  %3266 = vmatprep.subr.mxu0 0.0
  %3267 = vmatpush1.msra.mxu0 0.0
  %3268 = vmatprep.subr.mxu0 0.0
  %3269 = vmatpush1.msra.mxu0 0.0
  %3270 = vmatprep.subr.mxu0 0.0
  %3271 = vmatpush1.msra.mxu0 0.0
  %3272 = vmatprep.subr.mxu0 0.0
  %3273 = vmatpush1.msra.mxu0 0.0
  %3274 = vmatprep.subr.mxu0 0.0
  %3275 = vmatpush1.msra.mxu0 0.0
  %3276 = vmatprep.subr.mxu0 0.0
  %3277 = vmatpush1.msra.mxu0 0.0
  %3278 = vmatprep.subr.mxu0 0.0
  %3279 = vmatpush1.msra.mxu0 0.0
  %3280 = vmatprep.subr.mxu0 0.0
  %3281 = vmatpush1.msra.mxu0 0.0
  %3282 = vmatprep.subr.mxu0 0.0
  %3283 = vmatpush1.msra.mxu0 0.0
  %3284 = vmatprep.subr.mxu0 0.0
  %3285 = vmatpush1.msra.mxu0 0.0
  %3286 = vmatprep.subr.mxu0 0.0
  %3287 = vmatpush1.msra.mxu0 0.0
  %3288 = vmatprep.subr.mxu0 0.0
  %3289 = vmatpush1.msra.mxu0 0.0
  %3290 = vmatprep.subr.mxu0 0.0
  %3291 = vmatpush1.msra.mxu0 0.0
  %3292 = vmatprep.subr.mxu0 0.0
  %v3293 = vand.u32 %v3263, 4294901760
  %3294 = vmatpush1.msra.mxu0 %v3293
  %3295 = vmatprep.subr.mxu0 0.0
  %v3296 = vand.u32 %v3262, 4294901760
  %3297 = vmatpush1.msra.mxu0 %v3296
  %3298 = vmatprep.subr.mxu0 0.0
  %3299 = vmatpush2.msra.mxu0 0.0
  %3300 = vmatprep.subr.mxu0 0.0
  %3301 = vmatpush2.msra.mxu0 0.0
  %3302 = vmatprep.subr.mxu0 0.0
  %3303 = vmatpush2.msra.mxu0 0.0
  %3304 = vmatprep.subr.mxu0 0.0
  %3305 = vmatpush2.msra.mxu0 0.0
  %3306 = vmatprep.subr.mxu0 0.0
  %3307 = vmatpush2.msra.mxu0 0.0
  %3308 = vmatprep.subr.mxu0 0.0
  %3309 = vmatpush2.msra.mxu0 0.0
  %3310 = vmatprep.subr.mxu0 0.0
  %3311 = vmatpush2.msra.mxu0 0.0
  %3312 = vmatprep.subr.mxu0 0.0
  %3313 = vmatpush2.msra.mxu0 0.0
  %3314 = vmatprep.subr.mxu0 0.0
  %3315 = vmatpush2.msra.mxu0 0.0
  %3316 = vmatprep.subr.mxu0 0.0
  %3317 = vmatpush2.msra.mxu0 0.0
  %3318 = vmatprep.subr.mxu0 0.0
  %3319 = vmatpush2.msra.mxu0 0.0
  %3320 = vmatprep.subr.mxu0 0.0
  %3321 = vmatpush2.msra.mxu0 0.0
  %3322 = vmatprep.subr.mxu0 0.0
  %3323 = vmatpush2.msra.mxu0 0.0
  %3324 = vmatprep.subr.mxu0 0.0
  %3325 = vmatpush2.msra.mxu0 0.0
  %3326 = vmatprep.subr.mxu0 0.0
  %3327 = vmatpush2.msra.mxu0 0.0
  %3328 = vmatprep.subr.mxu0 0.0
  %3329 = vmatpush2.msra.mxu0 0.0
  %3330 = vmatprep.mubr.f32.mxu0 0.0
  %v3331 = vand.u32 %v2153, 4294901760
  %v3332 = vsub.f32 %v2153, %v3331
  %v3333 = vand.u32 %v3332, 4294901760
  %v3334 = vsub.f32 %v3332, %v3333
  %v3335 = vand.u32 %v3334, 4294901760
  %3336 = vmatmul.mubr.f32.gmra.mxu0 %v3335
  %v3337 = vpop.f32.mrf.mxu0
  %v3338 = vadd.f32 0.0, %v3337
  %v3339 = vpop.f32.mrf.mxu0
  %3340 = vdwg.mxu0
  %3341 = vmatprep.subr.mxu0 0.0
  %3342 = vmatpush1.msra.mxu0 0.0
  %3343 = vmatprep.subr.mxu0 0.0
  %3344 = vmatpush1.msra.mxu0 0.0
  %3345 = vmatprep.subr.mxu0 0.0
  %3346 = vmatpush1.msra.mxu0 0.0
  %3347 = vmatprep.subr.mxu0 0.0
  %3348 = vmatpush1.msra.mxu0 0.0
  %3349 = vmatprep.subr.mxu0 0.0
  %3350 = vmatpush1.msra.mxu0 0.0
  %3351 = vmatprep.subr.mxu0 0.0
  %3352 = vmatpush1.msra.mxu0 0.0
  %3353 = vmatprep.subr.mxu0 0.0
  %3354 = vmatpush1.msra.mxu0 0.0
  %3355 = vmatprep.subr.mxu0 0.0
  %3356 = vmatpush1.msra.mxu0 0.0
  %3357 = vmatprep.subr.mxu0 0.0
  %3358 = vmatpush1.msra.mxu0 0.0
  %3359 = vmatprep.subr.mxu0 0.0
  %3360 = vmatpush1.msra.mxu0 0.0
  %3361 = vmatprep.subr.mxu0 0.0
  %3362 = vmatpush1.msra.mxu0 0.0
  %3363 = vmatprep.subr.mxu0 0.0
  %3364 = vmatpush1.msra.mxu0 0.0
  %3365 = vmatprep.subr.mxu0 0.0
  %3366 = vmatpush1.msra.mxu0 0.0
  %3367 = vmatprep.subr.mxu0 0.0
  %3368 = vmatpush1.msra.mxu0 0.0
  %3369 = vmatprep.subr.mxu0 0.0
  %v3370 = vand.u32 %v3263, 4294901760
  %v3371 = vsub.f32 %v3263, %v3370
  %v3372 = vand.u32 %v3371, 4294901760
  %v3373 = vsub.f32 %v3371, %v3372
  %v3374 = vand.u32 %v3373, 4294901760
  %3375 = vmatpush1.msra.mxu0 %v3374
  %3376 = vmatprep.subr.mxu0 0.0
  %v3377 = vand.u32 %v3262, 4294901760
  %v3378 = vsub.f32 %v3262, %v3377
  %v3379 = vand.u32 %v3378, 4294901760
  %v3380 = vsub.f32 %v3378, %v3379
  %v3381 = vand.u32 %v3380, 4294901760
  %3382 = vmatpush1.msra.mxu0 %v3381
  %3383 = vmatprep.subr.mxu0 0.0
  %3384 = vmatpush2.msra.mxu0 0.0
  %3385 = vmatprep.subr.mxu0 0.0
  %3386 = vmatpush2.msra.mxu0 0.0
  %3387 = vmatprep.subr.mxu0 0.0
  %3388 = vmatpush2.msra.mxu0 0.0
  %3389 = vmatprep.subr.mxu0 0.0
  %3390 = vmatpush2.msra.mxu0 0.0
  %3391 = vmatprep.subr.mxu0 0.0
  %3392 = vmatpush2.msra.mxu0 0.0
  %3393 = vmatprep.subr.mxu0 0.0
  %3394 = vmatpush2.msra.mxu0 0.0
  %3395 = vmatprep.subr.mxu0 0.0
  %3396 = vmatpush2.msra.mxu0 0.0
  %3397 = vmatprep.subr.mxu0 0.0
  %3398 = vmatpush2.msra.mxu0 0.0
  %3399 = vmatprep.subr.mxu0 0.0
  %3400 = vmatpush2.msra.mxu0 0.0
  %3401 = vmatprep.subr.mxu0 0.0
  %3402 = vmatpush2.msra.mxu0 0.0
  %3403 = vmatprep.subr.mxu0 0.0
  %3404 = vmatpush2.msra.mxu0 0.0
  %3405 = vmatprep.subr.mxu0 0.0
  %3406 = vmatpush2.msra.mxu0 0.0
  %3407 = vmatprep.subr.mxu0 0.0
  %3408 = vmatpush2.msra.mxu0 0.0
  %3409 = vmatprep.subr.mxu0 0.0
  %3410 = vmatpush2.msra.mxu0 0.0
  %3411 = vmatprep.subr.mxu0 0.0
  %3412 = vmatpush2.msra.mxu0 0.0
  %3413 = vmatprep.subr.mxu0 0.0
  %3414 = vmatpush2.msra.mxu0 0.0
  %3415 = vmatprep.mubr.f32.mxu0 0.0
  %v3416 = vand.u32 %v2153, 4294901760
  %3417 = vmatmul.mubr.f32.gmra.mxu0 %v3416
  %v3418 = vpop.f32.mrf.mxu0
  %v3419 = vadd.f32 %v3338, %v3418
  %v3420 = vpop.f32.mrf.mxu0
  %3421 = vdwg.mxu0
  %3422 = vmatprep.subr.mxu0 0.0
  %3423 = vmatpush1.msra.mxu0 0.0
  %3424 = vmatprep.subr.mxu0 0.0
  %3425 = vmatpush1.msra.mxu0 0.0
  %3426 = vmatprep.subr.mxu0 0.0
  %3427 = vmatpush1.msra.mxu0 0.0
  %3428 = vmatprep.subr.mxu0 0.0
  %3429 = vmatpush1.msra.mxu0 0.0
  %3430 = vmatprep.subr.mxu0 0.0
  %3431 = vmatpush1.msra.mxu0 0.0
  %3432 = vmatprep.subr.mxu0 0.0
  %3433 = vmatpush1.msra.mxu0 0.0
  %3434 = vmatprep.subr.mxu0 0.0
  %3435 = vmatpush1.msra.mxu0 0.0
  %3436 = vmatprep.subr.mxu0 0.0
  %3437 = vmatpush1.msra.mxu0 0.0
  %3438 = vmatprep.subr.mxu0 0.0
  %3439 = vmatpush1.msra.mxu0 0.0
  %3440 = vmatprep.subr.mxu0 0.0
  %3441 = vmatpush1.msra.mxu0 0.0
  %3442 = vmatprep.subr.mxu0 0.0
  %3443 = vmatpush1.msra.mxu0 0.0
  %3444 = vmatprep.subr.mxu0 0.0
  %3445 = vmatpush1.msra.mxu0 0.0
  %3446 = vmatprep.subr.mxu0 0.0
  %3447 = vmatpush1.msra.mxu0 0.0
  %3448 = vmatprep.subr.mxu0 0.0
  %3449 = vmatpush1.msra.mxu0 0.0
  %3450 = vmatprep.subr.mxu0 0.0
  %v3451 = vand.u32 %v3263, 4294901760
  %v3452 = vsub.f32 %v3263, %v3451
  %3453 = vmatpush1.msra.mxu0 %v3452
  %3454 = vmatprep.subr.mxu0 0.0
  %v3455 = vand.u32 %v3262, 4294901760
  %v3456 = vsub.f32 %v3262, %v3455
  %3457 = vmatpush1.msra.mxu0 %v3456
  %3458 = vmatprep.subr.mxu0 0.0
  %3459 = vmatpush2.msra.mxu0 0.0
  %3460 = vmatprep.subr.mxu0 0.0
  %3461 = vmatpush2.msra.mxu0 0.0
  %3462 = vmatprep.subr.mxu0 0.0
  %3463 = vmatpush2.msra.mxu0 0.0
  %3464 = vmatprep.subr.mxu0 0.0
  %3465 = vmatpush2.msra.mxu0 0.0
  %3466 = vmatprep.subr.mxu0 0.0
  %3467 = vmatpush2.msra.mxu0 0.0
  %3468 = vmatprep.subr.mxu0 0.0
  %3469 = vmatpush2.msra.mxu0 0.0
  %3470 = vmatprep.subr.mxu0 0.0
  %3471 = vmatpush2.msra.mxu0 0.0
  %3472 = vmatprep.subr.mxu0 0.0
  %3473 = vmatpush2.msra.mxu0 0.0
  %3474 = vmatprep.subr.mxu0 0.0
  %3475 = vmatpush2.msra.mxu0 0.0
  %3476 = vmatprep.subr.mxu0 0.0
  %3477 = vmatpush2.msra.mxu0 0.0
  %3478 = vmatprep.subr.mxu0 0.0
  %3479 = vmatpush2.msra.mxu0 0.0
  %3480 = vmatprep.subr.mxu0 0.0
  %3481 = vmatpush2.msra.mxu0 0.0
  %3482 = vmatprep.subr.mxu0 0.0
  %3483 = vmatpush2.msra.mxu0 0.0
  %3484 = vmatprep.subr.mxu0 0.0
  %3485 = vmatpush2.msra.mxu0 0.0
  %3486 = vmatprep.subr.mxu0 0.0
  %3487 = vmatpush2.msra.mxu0 0.0
  %3488 = vmatprep.subr.mxu0 0.0
  %3489 = vmatpush2.msra.mxu0 0.0
  %3490 = vmatprep.mubr.f32.mxu0 0.0
  %v3491 = vand.u32 %v2153, 4294901760
  %v3492 = vsub.f32 %v2153, %v3491
  %3493 = vmatmul.mubr.f32.gmra.mxu0 %v3492
  %v3494 = vpop.f32.mrf.mxu0
  %v3495 = vadd.f32 %v3419, %v3494
  %v3496 = vpop.f32.mrf.mxu0
  %3497 = vdwg.mxu0
  %3498 = vmatprep.subr.mxu0 0.0
  %3499 = vmatpush1.msra.mxu0 0.0
  %3500 = vmatprep.subr.mxu0 0.0
  %3501 = vmatpush1.msra.mxu0 0.0
  %3502 = vmatprep.subr.mxu0 0.0
  %3503 = vmatpush1.msra.mxu0 0.0
  %3504 = vmatprep.subr.mxu0 0.0
  %3505 = vmatpush1.msra.mxu0 0.0
  %3506 = vmatprep.subr.mxu0 0.0
  %3507 = vmatpush1.msra.mxu0 0.0
  %3508 = vmatprep.subr.mxu0 0.0
  %3509 = vmatpush1.msra.mxu0 0.0
  %3510 = vmatprep.subr.mxu0 0.0
  %3511 = vmatpush1.msra.mxu0 0.0
  %3512 = vmatprep.subr.mxu0 0.0
  %3513 = vmatpush1.msra.mxu0 0.0
  %3514 = vmatprep.subr.mxu0 0.0
  %3515 = vmatpush1.msra.mxu0 0.0
  %3516 = vmatprep.subr.mxu0 0.0
  %3517 = vmatpush1.msra.mxu0 0.0
  %3518 = vmatprep.subr.mxu0 0.0
  %3519 = vmatpush1.msra.mxu0 0.0
  %3520 = vmatprep.subr.mxu0 0.0
  %3521 = vmatpush1.msra.mxu0 0.0
  %3522 = vmatprep.subr.mxu0 0.0
  %3523 = vmatpush1.msra.mxu0 0.0
  %3524 = vmatprep.subr.mxu0 0.0
  %3525 = vmatpush1.msra.mxu0 0.0
  %3526 = vmatprep.subr.mxu0 0.0
  %v3527 = vand.u32 %v3263, 4294901760
  %3528 = vmatpush1.msra.mxu0 %v3527
  %3529 = vmatprep.subr.mxu0 0.0
  %v3530 = vand.u32 %v3262, 4294901760
  %3531 = vmatpush1.msra.mxu0 %v3530
  %3532 = vmatprep.subr.mxu0 0.0
  %3533 = vmatpush2.msra.mxu0 0.0
  %3534 = vmatprep.subr.mxu0 0.0
  %3535 = vmatpush2.msra.mxu0 0.0
  %3536 = vmatprep.subr.mxu0 0.0
  %3537 = vmatpush2.msra.mxu0 0.0
  %3538 = vmatprep.subr.mxu0 0.0
  %3539 = vmatpush2.msra.mxu0 0.0
  %3540 = vmatprep.subr.mxu0 0.0
  %3541 = vmatpush2.msra.mxu0 0.0
  %3542 = vmatprep.subr.mxu0 0.0
  %3543 = vmatpush2.msra.mxu0 0.0
  %3544 = vmatprep.subr.mxu0 0.0
  %3545 = vmatpush2.msra.mxu0 0.0
  %3546 = vmatprep.subr.mxu0 0.0
  %3547 = vmatpush2.msra.mxu0 0.0
  %3548 = vmatprep.subr.mxu0 0.0
  %3549 = vmatpush2.msra.mxu0 0.0
  %3550 = vmatprep.subr.mxu0 0.0
  %3551 = vmatpush2.msra.mxu0 0.0
  %3552 = vmatprep.subr.mxu0 0.0
  %3553 = vmatpush2.msra.mxu0 0.0
  %3554 = vmatprep.subr.mxu0 0.0
  %3555 = vmatpush2.msra.mxu0 0.0
  %3556 = vmatprep.subr.mxu0 0.0
  %3557 = vmatpush2.msra.mxu0 0.0
  %3558 = vmatprep.subr.mxu0 0.0
  %3559 = vmatpush2.msra.mxu0 0.0
  %3560 = vmatprep.subr.mxu0 0.0
  %3561 = vmatpush2.msra.mxu0 0.0
  %3562 = vmatprep.subr.mxu0 0.0
  %3563 = vmatpush2.msra.mxu0 0.0
  %3564 = vmatprep.mubr.f32.mxu0 0.0
  %v3565 = vand.u32 %v2153, 4294901760
  %v3566 = vsub.f32 %v2153, %v3565
  %v3567 = vand.u32 %v3566, 4294901760
  %3568 = vmatmul.mubr.f32.gmra.mxu0 %v3567
  %v3569 = vpop.f32.mrf.mxu0
  %v3570 = vadd.f32 %v3495, %v3569
  %v3571 = vpop.f32.mrf.mxu0
  %3572 = vdwg.mxu0
  %3573 = vmatprep.subr.mxu0 0.0
  %3574 = vmatpush1.msra.mxu0 0.0
  %3575 = vmatprep.subr.mxu0 0.0
  %3576 = vmatpush1.msra.mxu0 0.0
  %3577 = vmatprep.subr.mxu0 0.0
  %3578 = vmatpush1.msra.mxu0 0.0
  %3579 = vmatprep.subr.mxu0 0.0
  %3580 = vmatpush1.msra.mxu0 0.0
  %3581 = vmatprep.subr.mxu0 0.0
  %3582 = vmatpush1.msra.mxu0 0.0
  %3583 = vmatprep.subr.mxu0 0.0
  %3584 = vmatpush1.msra.mxu0 0.0
  %3585 = vmatprep.subr.mxu0 0.0
  %3586 = vmatpush1.msra.mxu0 0.0
  %3587 = vmatprep.subr.mxu0 0.0
  %3588 = vmatpush1.msra.mxu0 0.0
  %3589 = vmatprep.subr.mxu0 0.0
  %3590 = vmatpush1.msra.mxu0 0.0
  %3591 = vmatprep.subr.mxu0 0.0
  %3592 = vmatpush1.msra.mxu0 0.0
  %3593 = vmatprep.subr.mxu0 0.0
  %3594 = vmatpush1.msra.mxu0 0.0
  %3595 = vmatprep.subr.mxu0 0.0
  %3596 = vmatpush1.msra.mxu0 0.0
  %3597 = vmatprep.subr.mxu0 0.0
  %3598 = vmatpush1.msra.mxu0 0.0
  %3599 = vmatprep.subr.mxu0 0.0
  %3600 = vmatpush1.msra.mxu0 0.0
  %3601 = vmatprep.subr.mxu0 0.0
  %v3602 = vand.u32 %v3263, 4294901760
  %v3603 = vsub.f32 %v3263, %v3602
  %v3604 = vand.u32 %v3603, 4294901760
  %3605 = vmatpush1.msra.mxu0 %v3604
  %3606 = vmatprep.subr.mxu0 0.0
  %v3607 = vand.u32 %v3262, 4294901760
  %v3608 = vsub.f32 %v3262, %v3607
  %v3609 = vand.u32 %v3608, 4294901760
  %3610 = vmatpush1.msra.mxu0 %v3609
  %3611 = vmatprep.subr.mxu0 0.0
  %3612 = vmatpush2.msra.mxu0 0.0
  %3613 = vmatprep.subr.mxu0 0.0
  %3614 = vmatpush2.msra.mxu0 0.0
  %3615 = vmatprep.subr.mxu0 0.0
  %3616 = vmatpush2.msra.mxu0 0.0
  %3617 = vmatprep.subr.mxu0 0.0
  %3618 = vmatpush2.msra.mxu0 0.0
  %3619 = vmatprep.subr.mxu0 0.0
  %3620 = vmatpush2.msra.mxu0 0.0
  %3621 = vmatprep.subr.mxu0 0.0
  %3622 = vmatpush2.msra.mxu0 0.0
  %3623 = vmatprep.subr.mxu0 0.0
  %3624 = vmatpush2.msra.mxu0 0.0
  %3625 = vmatprep.subr.mxu0 0.0
  %3626 = vmatpush2.msra.mxu0 0.0
  %3627 = vmatprep.subr.mxu0 0.0
  %3628 = vmatpush2.msra.mxu0 0.0
  %3629 = vmatprep.subr.mxu0 0.0
  %3630 = vmatpush2.msra.mxu0 0.0
  %3631 = vmatprep.subr.mxu0 0.0
  %3632 = vmatpush2.msra.mxu0 0.0
  %3633 = vmatprep.subr.mxu0 0.0
  %3634 = vmatpush2.msra.mxu0 0.0
  %3635 = vmatprep.subr.mxu0 0.0
  %3636 = vmatpush2.msra.mxu0 0.0
  %3637 = vmatprep.subr.mxu0 0.0
  %3638 = vmatpush2.msra.mxu0 0.0
  %3639 = vmatprep.subr.mxu0 0.0
  %3640 = vmatpush2.msra.mxu0 0.0
  %3641 = vmatprep.subr.mxu0 0.0
  %3642 = vmatpush2.msra.mxu0 0.0
  %3643 = vmatprep.mubr.f32.mxu0 0.0
  %v3644 = vand.u32 %v2153, 4294901760
  %3645 = vmatmul.mubr.f32.gmra.mxu0 %v3644
  %v3646 = vpop.f32.mrf.mxu0
  %v3647 = vadd.f32 %v3570, %v3646
  %v3648 = vpop.f32.mrf.mxu0
  %3649 = vdwg.mxu0
  %3650 = vmatprep.subr.mxu0 0.0
  %3651 = vmatpush1.msra.mxu0 0.0
  %3652 = vmatprep.subr.mxu0 0.0
  %3653 = vmatpush1.msra.mxu0 0.0
  %3654 = vmatprep.subr.mxu0 0.0
  %3655 = vmatpush1.msra.mxu0 0.0
  %3656 = vmatprep.subr.mxu0 0.0
  %3657 = vmatpush1.msra.mxu0 0.0
  %3658 = vmatprep.subr.mxu0 0.0
  %3659 = vmatpush1.msra.mxu0 0.0
  %3660 = vmatprep.subr.mxu0 0.0
  %3661 = vmatpush1.msra.mxu0 0.0
  %3662 = vmatprep.subr.mxu0 0.0
  %3663 = vmatpush1.msra.mxu0 0.0
  %3664 = vmatprep.subr.mxu0 0.0
  %3665 = vmatpush1.msra.mxu0 0.0
  %3666 = vmatprep.subr.mxu0 0.0
  %3667 = vmatpush1.msra.mxu0 0.0
  %3668 = vmatprep.subr.mxu0 0.0
  %3669 = vmatpush1.msra.mxu0 0.0
  %3670 = vmatprep.subr.mxu0 0.0
  %3671 = vmatpush1.msra.mxu0 0.0
  %3672 = vmatprep.subr.mxu0 0.0
  %3673 = vmatpush1.msra.mxu0 0.0
  %3674 = vmatprep.subr.mxu0 0.0
  %3675 = vmatpush1.msra.mxu0 0.0
  %3676 = vmatprep.subr.mxu0 0.0
  %3677 = vmatpush1.msra.mxu0 0.0
  %3678 = vmatprep.subr.mxu0 0.0
  %v3679 = vand.u32 %v3263, 4294901760
  %3680 = vmatpush1.msra.mxu0 %v3679
  %3681 = vmatprep.subr.mxu0 0.0
  %v3682 = vand.u32 %v3262, 4294901760
  %3683 = vmatpush1.msra.mxu0 %v3682
  %3684 = vmatprep.subr.mxu0 0.0
  %3685 = vmatpush2.msra.mxu0 0.0
  %3686 = vmatprep.subr.mxu0 0.0
  %3687 = vmatpush2.msra.mxu0 0.0
  %3688 = vmatprep.subr.mxu0 0.0
  %3689 = vmatpush2.msra.mxu0 0.0
  %3690 = vmatprep.subr.mxu0 0.0
  %3691 = vmatpush2.msra.mxu0 0.0
  %3692 = vmatprep.subr.mxu0 0.0
  %3693 = vmatpush2.msra.mxu0 0.0
  %3694 = vmatprep.subr.mxu0 0.0
  %3695 = vmatpush2.msra.mxu0 0.0
  %3696 = vmatprep.subr.mxu0 0.0
  %3697 = vmatpush2.msra.mxu0 0.0
  %3698 = vmatprep.subr.mxu0 0.0
  %3699 = vmatpush2.msra.mxu0 0.0
  %3700 = vmatprep.subr.mxu0 0.0
  %3701 = vmatpush2.msra.mxu0 0.0
  %3702 = vmatprep.subr.mxu0 0.0
  %3703 = vmatpush2.msra.mxu0 0.0
  %3704 = vmatprep.subr.mxu0 0.0
  %3705 = vmatpush2.msra.mxu0 0.0
  %3706 = vmatprep.subr.mxu0 0.0
  %3707 = vmatpush2.msra.mxu0 0.0
  %3708 = vmatprep.subr.mxu0 0.0
  %3709 = vmatpush2.msra.mxu0 0.0
  %3710 = vmatprep.subr.mxu0 0.0
  %3711 = vmatpush2.msra.mxu0 0.0
  %3712 = vmatprep.subr.mxu0 0.0
  %3713 = vmatpush2.msra.mxu0 0.0
  %3714 = vmatprep.subr.mxu0 0.0
  %3715 = vmatpush2.msra.mxu0 0.0
  %3716 = vmatprep.mubr.f32.mxu0 0.0
  %v3717 = vand.u32 %v2153, 4294901760
  %3718 = vmatmul.mubr.f32.gmra.mxu0 %v3717
  %v3719 = vpop.f32.mrf.mxu0
  %v3720 = vadd.f32 %v3647, %v3719
  %v3721 = vpop.f32.mrf.mxu0
  %3722 = vdwg.mxu0
  %3723 = vmatprep.subr.mxu0 0.0
  %v3724 = vand.u32 %v32, 4294901760
  %3725 = vmatpush1.msra.mxu0 %v3724
  %3726 = vmatprep.subr.mxu0 0.0
  %v3727 = vand.u32 %v31, 4294901760
  %3728 = vmatpush1.msra.mxu0 %v3727
  %3729 = vmatprep.subr.mxu0 0.0
  %v3730 = vand.u32 %v30, 4294901760
  %3731 = vmatpush1.msra.mxu0 %v3730
  %3732 = vmatprep.subr.mxu0 0.0
  %v3733 = vand.u32 %v29, 4294901760
  %3734 = vmatpush1.msra.mxu0 %v3733
  %3735 = vmatprep.subr.mxu0 0.0
  %v3736 = vand.u32 %v28, 4294901760
  %3737 = vmatpush1.msra.mxu0 %v3736
  %3738 = vmatprep.subr.mxu0 0.0
  %v3739 = vand.u32 %v27, 4294901760
  %3740 = vmatpush1.msra.mxu0 %v3739
  %3741 = vmatprep.subr.mxu0 0.0
  %v3742 = vand.u32 %v26, 4294901760
  %3743 = vmatpush1.msra.mxu0 %v3742
  %3744 = vmatprep.subr.mxu0 0.0
  %v3745 = vand.u32 %v25, 4294901760
  %3746 = vmatpush1.msra.mxu0 %v3745
  %3747 = vmatprep.subr.mxu0 0.0
  %v3748 = vand.u32 %v24, 4294901760
  %3749 = vmatpush1.msra.mxu0 %v3748
  %3750 = vmatprep.subr.mxu0 0.0
  %v3751 = vand.u32 %v23, 4294901760
  %3752 = vmatpush1.msra.mxu0 %v3751
  %3753 = vmatprep.subr.mxu0 0.0
  %v3754 = vand.u32 %v22, 4294901760
  %3755 = vmatpush1.msra.mxu0 %v3754
  %3756 = vmatprep.subr.mxu0 0.0
  %v3757 = vand.u32 %v21, 4294901760
  %3758 = vmatpush1.msra.mxu0 %v3757
  %3759 = vmatprep.subr.mxu0 0.0
  %v3760 = vand.u32 %v20, 4294901760
  %3761 = vmatpush1.msra.mxu0 %v3760
  %3762 = vmatprep.subr.mxu0 0.0
  %v3763 = vand.u32 %v19, 4294901760
  %3764 = vmatpush1.msra.mxu0 %v3763
  %3765 = vmatprep.subr.mxu0 0.0
  %v3766 = vand.u32 %v18, 4294901760
  %3767 = vmatpush1.msra.mxu0 %v3766
  %3768 = vmatprep.subr.mxu0 0.0
  %v3769 = vand.u32 %v17, 4294901760
  %3770 = vmatpush1.msra.mxu0 %v3769
  %3771 = vmatprep.subr.mxu0 0.0
  %3772 = vmatpush2.msra.mxu0 0.0
  %3773 = vmatprep.subr.mxu0 0.0
  %3774 = vmatpush2.msra.mxu0 0.0
  %3775 = vmatprep.subr.mxu0 0.0
  %3776 = vmatpush2.msra.mxu0 0.0
  %3777 = vmatprep.subr.mxu0 0.0
  %3778 = vmatpush2.msra.mxu0 0.0
  %3779 = vmatprep.subr.mxu0 0.0
  %3780 = vmatpush2.msra.mxu0 0.0
  %3781 = vmatprep.subr.mxu0 0.0
  %3782 = vmatpush2.msra.mxu0 0.0
  %3783 = vmatprep.subr.mxu0 0.0
  %3784 = vmatpush2.msra.mxu0 0.0
  %3785 = vmatprep.subr.mxu0 0.0
  %3786 = vmatpush2.msra.mxu0 0.0
  %3787 = vmatprep.subr.mxu0 0.0
  %3788 = vmatpush2.msra.mxu0 0.0
  %3789 = vmatprep.subr.mxu0 0.0
  %3790 = vmatpush2.msra.mxu0 0.0
  %3791 = vmatprep.subr.mxu0 0.0
  %3792 = vmatpush2.msra.mxu0 0.0
  %3793 = vmatprep.subr.mxu0 0.0
  %3794 = vmatpush2.msra.mxu0 0.0
  %3795 = vmatprep.subr.mxu0 0.0
  %3796 = vmatpush2.msra.mxu0 0.0
  %3797 = vmatprep.subr.mxu0 0.0
  %3798 = vmatpush2.msra.mxu0 0.0
  %3799 = vmatprep.subr.mxu0 0.0
  %3800 = vmatpush2.msra.mxu0 0.0
  %3801 = vmatprep.subr.mxu0 0.0
  %3802 = vmatpush2.msra.mxu0 0.0
  %3803 = vmatprep.mubr.f32.mxu0 0.0
  %v3804 = vand.u32 %v3720, 4294901760
  %v3805 = vsub.f32 %v3720, %v3804
  %v3806 = vand.u32 %v3805, 4294901760
  %v3807 = vsub.f32 %v3805, %v3806
  %v3808 = vand.u32 %v3807, 4294901760
  %3809 = vmatmul.mubr.f32.gmra.mxu0 %v3808
  %v3810 = vpop.f32.mrf.mxu0
  %v3811 = vadd.f32 0.0, %v3810
  %v3812 = vpop.f32.mrf.mxu0
  %3813 = vdwg.mxu0
  %3814 = vmatprep.subr.mxu0 0.0
  %v3815 = vand.u32 %v32, 4294901760
  %v3816 = vsub.f32 %v32, %v3815
  %v3817 = vand.u32 %v3816, 4294901760
  %v3818 = vsub.f32 %v3816, %v3817
  %v3819 = vand.u32 %v3818, 4294901760
  %3820 = vmatpush1.msra.mxu0 %v3819
  %3821 = vmatprep.subr.mxu0 0.0
  %v3822 = vand.u32 %v31, 4294901760
  %v3823 = vsub.f32 %v31, %v3822
  %v3824 = vand.u32 %v3823, 4294901760
  %v3825 = vsub.f32 %v3823, %v3824
  %v3826 = vand.u32 %v3825, 4294901760
  %3827 = vmatpush1.msra.mxu0 %v3826
  %3828 = vmatprep.subr.mxu0 0.0
  %v3829 = vand.u32 %v30, 4294901760
  %v3830 = vsub.f32 %v30, %v3829
  %v3831 = vand.u32 %v3830, 4294901760
  %v3832 = vsub.f32 %v3830, %v3831
  %v3833 = vand.u32 %v3832, 4294901760
  %3834 = vmatpush1.msra.mxu0 %v3833
  %3835 = vmatprep.subr.mxu0 0.0
  %v3836 = vand.u32 %v29, 4294901760
  %v3837 = vsub.f32 %v29, %v3836
  %v3838 = vand.u32 %v3837, 4294901760
  %v3839 = vsub.f32 %v3837, %v3838
  %v3840 = vand.u32 %v3839, 4294901760
  %3841 = vmatpush1.msra.mxu0 %v3840
  %3842 = vmatprep.subr.mxu0 0.0
  %v3843 = vand.u32 %v28, 4294901760
  %v3844 = vsub.f32 %v28, %v3843
  %v3845 = vand.u32 %v3844, 4294901760
  %v3846 = vsub.f32 %v3844, %v3845
  %v3847 = vand.u32 %v3846, 4294901760
  %3848 = vmatpush1.msra.mxu0 %v3847
  %3849 = vmatprep.subr.mxu0 0.0
  %v3850 = vand.u32 %v27, 4294901760
  %v3851 = vsub.f32 %v27, %v3850
  %v3852 = vand.u32 %v3851, 4294901760
  %v3853 = vsub.f32 %v3851, %v3852
  %v3854 = vand.u32 %v3853, 4294901760
  %3855 = vmatpush1.msra.mxu0 %v3854
  %3856 = vmatprep.subr.mxu0 0.0
  %v3857 = vand.u32 %v26, 4294901760
  %v3858 = vsub.f32 %v26, %v3857
  %v3859 = vand.u32 %v3858, 4294901760
  %v3860 = vsub.f32 %v3858, %v3859
  %v3861 = vand.u32 %v3860, 4294901760
  %3862 = vmatpush1.msra.mxu0 %v3861
  %3863 = vmatprep.subr.mxu0 0.0
  %v3864 = vand.u32 %v25, 4294901760
  %v3865 = vsub.f32 %v25, %v3864
  %v3866 = vand.u32 %v3865, 4294901760
  %v3867 = vsub.f32 %v3865, %v3866
  %v3868 = vand.u32 %v3867, 4294901760
  %3869 = vmatpush1.msra.mxu0 %v3868
  %3870 = vmatprep.subr.mxu0 0.0
  %v3871 = vand.u32 %v24, 4294901760
  %v3872 = vsub.f32 %v24, %v3871
  %v3873 = vand.u32 %v3872, 4294901760
  %v3874 = vsub.f32 %v3872, %v3873
  %v3875 = vand.u32 %v3874, 4294901760
  %3876 = vmatpush1.msra.mxu0 %v3875
  %3877 = vmatprep.subr.mxu0 0.0
  %v3878 = vand.u32 %v23, 4294901760
  %v3879 = vsub.f32 %v23, %v3878
  %v3880 = vand.u32 %v3879, 4294901760
  %v3881 = vsub.f32 %v3879, %v3880
  %v3882 = vand.u32 %v3881, 4294901760
  %3883 = vmatpush1.msra.mxu0 %v3882
  %3884 = vmatprep.subr.mxu0 0.0
  %v3885 = vand.u32 %v22, 4294901760
  %v3886 = vsub.f32 %v22, %v3885
  %v3887 = vand.u32 %v3886, 4294901760
  %v3888 = vsub.f32 %v3886, %v3887
  %v3889 = vand.u32 %v3888, 4294901760
  %3890 = vmatpush1.msra.mxu0 %v3889
  %3891 = vmatprep.subr.mxu0 0.0
  %v3892 = vand.u32 %v21, 4294901760
  %v3893 = vsub.f32 %v21, %v3892
  %v3894 = vand.u32 %v3893, 4294901760
  %v3895 = vsub.f32 %v3893, %v3894
  %v3896 = vand.u32 %v3895, 4294901760
  %3897 = vmatpush1.msra.mxu0 %v3896
  %3898 = vmatprep.subr.mxu0 0.0
  %v3899 = vand.u32 %v20, 4294901760
  %v3900 = vsub.f32 %v20, %v3899
  %v3901 = vand.u32 %v3900, 4294901760
  %v3902 = vsub.f32 %v3900, %v3901
  %v3903 = vand.u32 %v3902, 4294901760
  %3904 = vmatpush1.msra.mxu0 %v3903
  %3905 = vmatprep.subr.mxu0 0.0
  %v3906 = vand.u32 %v19, 4294901760
  %v3907 = vsub.f32 %v19, %v3906
  %v3908 = vand.u32 %v3907, 4294901760
  %v3909 = vsub.f32 %v3907, %v3908
  %v3910 = vand.u32 %v3909, 4294901760
  %3911 = vmatpush1.msra.mxu0 %v3910
  %3912 = vmatprep.subr.mxu0 0.0
  %v3913 = vand.u32 %v18, 4294901760
  %v3914 = vsub.f32 %v18, %v3913
  %v3915 = vand.u32 %v3914, 4294901760
  %v3916 = vsub.f32 %v3914, %v3915
  %v3917 = vand.u32 %v3916, 4294901760
  %3918 = vmatpush1.msra.mxu0 %v3917
  %3919 = vmatprep.subr.mxu0 0.0
  %v3920 = vand.u32 %v17, 4294901760
  %v3921 = vsub.f32 %v17, %v3920
  %v3922 = vand.u32 %v3921, 4294901760
  %v3923 = vsub.f32 %v3921, %v3922
  %v3924 = vand.u32 %v3923, 4294901760
  %3925 = vmatpush1.msra.mxu0 %v3924
  %3926 = vmatprep.subr.mxu0 0.0
  %3927 = vmatpush2.msra.mxu0 0.0
  %3928 = vmatprep.subr.mxu0 0.0
  %3929 = vmatpush2.msra.mxu0 0.0
  %3930 = vmatprep.subr.mxu0 0.0
  %3931 = vmatpush2.msra.mxu0 0.0
  %3932 = vmatprep.subr.mxu0 0.0
  %3933 = vmatpush2.msra.mxu0 0.0
  %3934 = vmatprep.subr.mxu0 0.0
  %3935 = vmatpush2.msra.mxu0 0.0
  %3936 = vmatprep.subr.mxu0 0.0
  %3937 = vmatpush2.msra.mxu0 0.0
  %3938 = vmatprep.subr.mxu0 0.0
  %3939 = vmatpush2.msra.mxu0 0.0
  %3940 = vmatprep.subr.mxu0 0.0
  %3941 = vmatpush2.msra.mxu0 0.0
  %3942 = vmatprep.subr.mxu0 0.0
  %3943 = vmatpush2.msra.mxu0 0.0
  %3944 = vmatprep.subr.mxu0 0.0
  %3945 = vmatpush2.msra.mxu0 0.0
  %3946 = vmatprep.subr.mxu0 0.0
  %3947 = vmatpush2.msra.mxu0 0.0
  %3948 = vmatprep.subr.mxu0 0.0
  %3949 = vmatpush2.msra.mxu0 0.0
  %3950 = vmatprep.subr.mxu0 0.0
  %3951 = vmatpush2.msra.mxu0 0.0
  %3952 = vmatprep.subr.mxu0 0.0
  %3953 = vmatpush2.msra.mxu0 0.0
  %3954 = vmatprep.subr.mxu0 0.0
  %3955 = vmatpush2.msra.mxu0 0.0
  %3956 = vmatprep.subr.mxu0 0.0
  %3957 = vmatpush2.msra.mxu0 0.0
  %3958 = vmatprep.mubr.f32.mxu0 0.0
  %v3959 = vand.u32 %v3720, 4294901760
  %3960 = vmatmul.mubr.f32.gmra.mxu0 %v3959
  %v3961 = vpop.f32.mrf.mxu0
  %v3962 = vadd.f32 %v3811, %v3961
  %v3963 = vpop.f32.mrf.mxu0
  %3964 = vdwg.mxu0
  %3965 = vmatprep.subr.mxu0 0.0
  %v3966 = vand.u32 %v32, 4294901760
  %v3967 = vsub.f32 %v32, %v3966
  %3968 = vmatpush1.msra.mxu0 %v3967
  %3969 = vmatprep.subr.mxu0 0.0
  %v3970 = vand.u32 %v31, 4294901760
  %v3971 = vsub.f32 %v31, %v3970
  %3972 = vmatpush1.msra.mxu0 %v3971
  %3973 = vmatprep.subr.mxu0 0.0
  %v3974 = vand.u32 %v30, 4294901760
  %v3975 = vsub.f32 %v30, %v3974
  %3976 = vmatpush1.msra.mxu0 %v3975
  %3977 = vmatprep.subr.mxu0 0.0
  %v3978 = vand.u32 %v29, 4294901760
  %v3979 = vsub.f32 %v29, %v3978
  %3980 = vmatpush1.msra.mxu0 %v3979
  %3981 = vmatprep.subr.mxu0 0.0
  %v3982 = vand.u32 %v28, 4294901760
  %v3983 = vsub.f32 %v28, %v3982
  %3984 = vmatpush1.msra.mxu0 %v3983
  %3985 = vmatprep.subr.mxu0 0.0
  %v3986 = vand.u32 %v27, 4294901760
  %v3987 = vsub.f32 %v27, %v3986
  %3988 = vmatpush1.msra.mxu0 %v3987
  %3989 = vmatprep.subr.mxu0 0.0
  %v3990 = vand.u32 %v26, 4294901760
  %v3991 = vsub.f32 %v26, %v3990
  %3992 = vmatpush1.msra.mxu0 %v3991
  %3993 = vmatprep.subr.mxu0 0.0
  %v3994 = vand.u32 %v25, 4294901760
  %v3995 = vsub.f32 %v25, %v3994
  %3996 = vmatpush1.msra.mxu0 %v3995
  %3997 = vmatprep.subr.mxu0 0.0
  %v3998 = vand.u32 %v24, 4294901760
  %v3999 = vsub.f32 %v24, %v3998
  %4000 = vmatpush1.msra.mxu0 %v3999
  %4001 = vmatprep.subr.mxu0 0.0
  %v4002 = vand.u32 %v23, 4294901760
  %v4003 = vsub.f32 %v23, %v4002
  %4004 = vmatpush1.msra.mxu0 %v4003
  %4005 = vmatprep.subr.mxu0 0.0
  %v4006 = vand.u32 %v22, 4294901760
  %v4007 = vsub.f32 %v22, %v4006
  %4008 = vmatpush1.msra.mxu0 %v4007
  %4009 = vmatprep.subr.mxu0 0.0
  %v4010 = vand.u32 %v21, 4294901760
  %v4011 = vsub.f32 %v21, %v4010
  %4012 = vmatpush1.msra.mxu0 %v4011
  %4013 = vmatprep.subr.mxu0 0.0
  %v4014 = vand.u32 %v20, 4294901760
  %v4015 = vsub.f32 %v20, %v4014
  %4016 = vmatpush1.msra.mxu0 %v4015
  %4017 = vmatprep.subr.mxu0 0.0
  %v4018 = vand.u32 %v19, 4294901760
  %v4019 = vsub.f32 %v19, %v4018
  %4020 = vmatpush1.msra.mxu0 %v4019
  %4021 = vmatprep.subr.mxu0 0.0
  %v4022 = vand.u32 %v18, 4294901760
  %v4023 = vsub.f32 %v18, %v4022
  %4024 = vmatpush1.msra.mxu0 %v4023
  %4025 = vmatprep.subr.mxu0 0.0
  %v4026 = vand.u32 %v17, 4294901760
  %v4027 = vsub.f32 %v17, %v4026
  %4028 = vmatpush1.msra.mxu0 %v4027
  %4029 = vmatprep.subr.mxu0 0.0
  %4030 = vmatpush2.msra.mxu0 0.0
  %4031 = vmatprep.subr.mxu0 0.0
  %4032 = vmatpush2.msra.mxu0 0.0
  %4033 = vmatprep.subr.mxu0 0.0
  %4034 = vmatpush2.msra.mxu0 0.0
  %4035 = vmatprep.subr.mxu0 0.0
  %4036 = vmatpush2.msra.mxu0 0.0
  %4037 = vmatprep.subr.mxu0 0.0
  %4038 = vmatpush2.msra.mxu0 0.0
  %4039 = vmatprep.subr.mxu0 0.0
  %4040 = vmatpush2.msra.mxu0 0.0
  %4041 = vmatprep.subr.mxu0 0.0
  %4042 = vmatpush2.msra.mxu0 0.0
  %4043 = vmatprep.subr.mxu0 0.0
  %4044 = vmatpush2.msra.mxu0 0.0
  %4045 = vmatprep.subr.mxu0 0.0
  %4046 = vmatpush2.msra.mxu0 0.0
  %4047 = vmatprep.subr.mxu0 0.0
  %4048 = vmatpush2.msra.mxu0 0.0
  %4049 = vmatprep.subr.mxu0 0.0
  %4050 = vmatpush2.msra.mxu0 0.0
  %4051 = vmatprep.subr.mxu0 0.0
  %4052 = vmatpush2.msra.mxu0 0.0
  %4053 = vmatprep.subr.mxu0 0.0
  %4054 = vmatpush2.msra.mxu0 0.0
  %4055 = vmatprep.subr.mxu0 0.0
  %4056 = vmatpush2.msra.mxu0 0.0
  %4057 = vmatprep.subr.mxu0 0.0
  %4058 = vmatpush2.msra.mxu0 0.0
  %4059 = vmatprep.subr.mxu0 0.0
  %4060 = vmatpush2.msra.mxu0 0.0
  %4061 = vmatprep.mubr.f32.mxu0 0.0
  %v4062 = vand.u32 %v3720, 4294901760
  %v4063 = vsub.f32 %v3720, %v4062
  %4064 = vmatmul.mubr.f32.gmra.mxu0 %v4063
  %v4065 = vpop.f32.mrf.mxu0
  %v4066 = vadd.f32 %v3962, %v4065
  %v4067 = vpop.f32.mrf.mxu0
  %4068 = vdwg.mxu0
  %4069 = vmatprep.subr.mxu0 0.0
  %v4070 = vand.u32 %v32, 4294901760
  %4071 = vmatpush1.msra.mxu0 %v4070
  %4072 = vmatprep.subr.mxu0 0.0
  %v4073 = vand.u32 %v31, 4294901760
  %4074 = vmatpush1.msra.mxu0 %v4073
  %4075 = vmatprep.subr.mxu0 0.0
  %v4076 = vand.u32 %v30, 4294901760
  %4077 = vmatpush1.msra.mxu0 %v4076
  %4078 = vmatprep.subr.mxu0 0.0
  %v4079 = vand.u32 %v29, 4294901760
  %4080 = vmatpush1.msra.mxu0 %v4079
  %4081 = vmatprep.subr.mxu0 0.0
  %v4082 = vand.u32 %v28, 4294901760
  %4083 = vmatpush1.msra.mxu0 %v4082
  %4084 = vmatprep.subr.mxu0 0.0
  %v4085 = vand.u32 %v27, 4294901760
  %4086 = vmatpush1.msra.mxu0 %v4085
  %4087 = vmatprep.subr.mxu0 0.0
  %v4088 = vand.u32 %v26, 4294901760
  %4089 = vmatpush1.msra.mxu0 %v4088
  %4090 = vmatprep.subr.mxu0 0.0
  %v4091 = vand.u32 %v25, 4294901760
  %4092 = vmatpush1.msra.mxu0 %v4091
  %4093 = vmatprep.subr.mxu0 0.0
  %v4094 = vand.u32 %v24, 4294901760
  %4095 = vmatpush1.msra.mxu0 %v4094
  %4096 = vmatprep.subr.mxu0 0.0
  %v4097 = vand.u32 %v23, 4294901760
  %4098 = vmatpush1.msra.mxu0 %v4097
  %4099 = vmatprep.subr.mxu0 0.0
  %v4100 = vand.u32 %v22, 4294901760
  %4101 = vmatpush1.msra.mxu0 %v4100
  %4102 = vmatprep.subr.mxu0 0.0
  %v4103 = vand.u32 %v21, 4294901760
  %4104 = vmatpush1.msra.mxu0 %v4103
  %4105 = vmatprep.subr.mxu0 0.0
  %v4106 = vand.u32 %v20, 4294901760
  %4107 = vmatpush1.msra.mxu0 %v4106
  %4108 = vmatprep.subr.mxu0 0.0
  %v4109 = vand.u32 %v19, 4294901760
  %4110 = vmatpush1.msra.mxu0 %v4109
  %4111 = vmatprep.subr.mxu0 0.0
  %v4112 = vand.u32 %v18, 4294901760
  %4113 = vmatpush1.msra.mxu0 %v4112
  %4114 = vmatprep.subr.mxu0 0.0
  %v4115 = vand.u32 %v17, 4294901760
  %4116 = vmatpush1.msra.mxu0 %v4115
  %4117 = vmatprep.subr.mxu0 0.0
  %4118 = vmatpush2.msra.mxu0 0.0
  %4119 = vmatprep.subr.mxu0 0.0
  %4120 = vmatpush2.msra.mxu0 0.0
  %4121 = vmatprep.subr.mxu0 0.0
  %4122 = vmatpush2.msra.mxu0 0.0
  %4123 = vmatprep.subr.mxu0 0.0
  %4124 = vmatpush2.msra.mxu0 0.0
  %4125 = vmatprep.subr.mxu0 0.0
  %4126 = vmatpush2.msra.mxu0 0.0
  %4127 = vmatprep.subr.mxu0 0.0
  %4128 = vmatpush2.msra.mxu0 0.0
  %4129 = vmatprep.subr.mxu0 0.0
  %4130 = vmatpush2.msra.mxu0 0.0
  %4131 = vmatprep.subr.mxu0 0.0
  %4132 = vmatpush2.msra.mxu0 0.0
  %4133 = vmatprep.subr.mxu0 0.0
  %4134 = vmatpush2.msra.mxu0 0.0
  %4135 = vmatprep.subr.mxu0 0.0
  %4136 = vmatpush2.msra.mxu0 0.0
  %4137 = vmatprep.subr.mxu0 0.0
  %4138 = vmatpush2.msra.mxu0 0.0
  %4139 = vmatprep.subr.mxu0 0.0
  %4140 = vmatpush2.msra.mxu0 0.0
  %4141 = vmatprep.subr.mxu0 0.0
  %4142 = vmatpush2.msra.mxu0 0.0
  %4143 = vmatprep.subr.mxu0 0.0
  %4144 = vmatpush2.msra.mxu0 0.0
  %4145 = vmatprep.subr.mxu0 0.0
  %4146 = vmatpush2.msra.mxu0 0.0
  %4147 = vmatprep.subr.mxu0 0.0
  %4148 = vmatpush2.msra.mxu0 0.0
  %4149 = vmatprep.mubr.f32.mxu0 0.0
  %v4150 = vand.u32 %v3720, 4294901760
  %v4151 = vsub.f32 %v3720, %v4150
  %v4152 = vand.u32 %v4151, 4294901760
  %4153 = vmatmul.mubr.f32.gmra.mxu0 %v4152
  %v4154 = vpop.f32.mrf.mxu0
  %v4155 = vadd.f32 %v4066, %v4154
  %v4156 = vpop.f32.mrf.mxu0
  %4157 = vdwg.mxu0
  %4158 = vmatprep.subr.mxu0 0.0
  %v4159 = vand.u32 %v32, 4294901760
  %v4160 = vsub.f32 %v32, %v4159
  %v4161 = vand.u32 %v4160, 4294901760
  %4162 = vmatpush1.msra.mxu0 %v4161
  %4163 = vmatprep.subr.mxu0 0.0
  %v4164 = vand.u32 %v31, 4294901760
  %v4165 = vsub.f32 %v31, %v4164
  %v4166 = vand.u32 %v4165, 4294901760
  %4167 = vmatpush1.msra.mxu0 %v4166
  %4168 = vmatprep.subr.mxu0 0.0
  %v4169 = vand.u32 %v30, 4294901760
  %v4170 = vsub.f32 %v30, %v4169
  %v4171 = vand.u32 %v4170, 4294901760
  %4172 = vmatpush1.msra.mxu0 %v4171
  %4173 = vmatprep.subr.mxu0 0.0
  %v4174 = vand.u32 %v29, 4294901760
  %v4175 = vsub.f32 %v29, %v4174
  %v4176 = vand.u32 %v4175, 4294901760
  %4177 = vmatpush1.msra.mxu0 %v4176
  %4178 = vmatprep.subr.mxu0 0.0
  %v4179 = vand.u32 %v28, 4294901760
  %v4180 = vsub.f32 %v28, %v4179
  %v4181 = vand.u32 %v4180, 4294901760
  %4182 = vmatpush1.msra.mxu0 %v4181
  %4183 = vmatprep.subr.mxu0 0.0
  %v4184 = vand.u32 %v27, 4294901760
  %v4185 = vsub.f32 %v27, %v4184
  %v4186 = vand.u32 %v4185, 4294901760
  %4187 = vmatpush1.msra.mxu0 %v4186
  %4188 = vmatprep.subr.mxu0 0.0
  %v4189 = vand.u32 %v26, 4294901760
  %v4190 = vsub.f32 %v26, %v4189
  %v4191 = vand.u32 %v4190, 4294901760
  %4192 = vmatpush1.msra.mxu0 %v4191
  %4193 = vmatprep.subr.mxu0 0.0
  %v4194 = vand.u32 %v25, 4294901760
  %v4195 = vsub.f32 %v25, %v4194
  %v4196 = vand.u32 %v4195, 4294901760
  %4197 = vmatpush1.msra.mxu0 %v4196
  %4198 = vmatprep.subr.mxu0 0.0
  %v4199 = vand.u32 %v24, 4294901760
  %v4200 = vsub.f32 %v24, %v4199
  %v4201 = vand.u32 %v4200, 4294901760
  %4202 = vmatpush1.msra.mxu0 %v4201
  %4203 = vmatprep.subr.mxu0 0.0
  %v4204 = vand.u32 %v23, 4294901760
  %v4205 = vsub.f32 %v23, %v4204
  %v4206 = vand.u32 %v4205, 4294901760
  %4207 = vmatpush1.msra.mxu0 %v4206
  %4208 = vmatprep.subr.mxu0 0.0
  %v4209 = vand.u32 %v22, 4294901760
  %v4210 = vsub.f32 %v22, %v4209
  %v4211 = vand.u32 %v4210, 4294901760
  %4212 = vmatpush1.msra.mxu0 %v4211
  %4213 = vmatprep.subr.mxu0 0.0
  %v4214 = vand.u32 %v21, 4294901760
  %v4215 = vsub.f32 %v21, %v4214
  %v4216 = vand.u32 %v4215, 4294901760
  %4217 = vmatpush1.msra.mxu0 %v4216
  %4218 = vmatprep.subr.mxu0 0.0
  %v4219 = vand.u32 %v20, 4294901760
  %v4220 = vsub.f32 %v20, %v4219
  %v4221 = vand.u32 %v4220, 4294901760
  %4222 = vmatpush1.msra.mxu0 %v4221
  %4223 = vmatprep.subr.mxu0 0.0
  %v4224 = vand.u32 %v19, 4294901760
  %v4225 = vsub.f32 %v19, %v4224
  %v4226 = vand.u32 %v4225, 4294901760
  %4227 = vmatpush1.msra.mxu0 %v4226
  %4228 = vmatprep.subr.mxu0 0.0
  %v4229 = vand.u32 %v18, 4294901760
  %v4230 = vsub.f32 %v18, %v4229
  %v4231 = vand.u32 %v4230, 4294901760
  %4232 = vmatpush1.msra.mxu0 %v4231
  %4233 = vmatprep.subr.mxu0 0.0
  %v4234 = vand.u32 %v17, 4294901760
  %v4235 = vsub.f32 %v17, %v4234
  %v4236 = vand.u32 %v4235, 4294901760
  %4237 = vmatpush1.msra.mxu0 %v4236
  %4238 = vmatprep.subr.mxu0 0.0
  %4239 = vmatpush2.msra.mxu0 0.0
  %4240 = vmatprep.subr.mxu0 0.0
  %4241 = vmatpush2.msra.mxu0 0.0
  %4242 = vmatprep.subr.mxu0 0.0
  %4243 = vmatpush2.msra.mxu0 0.0
  %4244 = vmatprep.subr.mxu0 0.0
  %4245 = vmatpush2.msra.mxu0 0.0
  %4246 = vmatprep.subr.mxu0 0.0
  %4247 = vmatpush2.msra.mxu0 0.0
  %4248 = vmatprep.subr.mxu0 0.0
  %4249 = vmatpush2.msra.mxu0 0.0
  %4250 = vmatprep.subr.mxu0 0.0
  %4251 = vmatpush2.msra.mxu0 0.0
  %4252 = vmatprep.subr.mxu0 0.0
  %4253 = vmatpush2.msra.mxu0 0.0
  %4254 = vmatprep.subr.mxu0 0.0
  %4255 = vmatpush2.msra.mxu0 0.0
  %4256 = vmatprep.subr.mxu0 0.0
  %4257 = vmatpush2.msra.mxu0 0.0
  %4258 = vmatprep.subr.mxu0 0.0
  %4259 = vmatpush2.msra.mxu0 0.0
  %4260 = vmatprep.subr.mxu0 0.0
  %4261 = vmatpush2.msra.mxu0 0.0
  %4262 = vmatprep.subr.mxu0 0.0
  %4263 = vmatpush2.msra.mxu0 0.0
  %4264 = vmatprep.subr.mxu0 0.0
  %4265 = vmatpush2.msra.mxu0 0.0
  %4266 = vmatprep.subr.mxu0 0.0
  %4267 = vmatpush2.msra.mxu0 0.0
  %4268 = vmatprep.subr.mxu0 0.0
  %4269 = vmatpush2.msra.mxu0 0.0
  %4270 = vmatprep.mubr.f32.mxu0 0.0
  %v4271 = vand.u32 %v3720, 4294901760
  %4272 = vmatmul.mubr.f32.gmra.mxu0 %v4271
  %v4273 = vpop.f32.mrf.mxu0
  %v4274 = vadd.f32 %v4155, %v4273
  %v4275 = vpop.f32.mrf.mxu0
  %4276 = vdwg.mxu0
  %4277 = vmatprep.subr.mxu0 0.0
  %v4278 = vand.u32 %v32, 4294901760
  %4279 = vmatpush1.msra.mxu0 %v4278
  %4280 = vmatprep.subr.mxu0 0.0
  %v4281 = vand.u32 %v31, 4294901760
  %4282 = vmatpush1.msra.mxu0 %v4281
  %4283 = vmatprep.subr.mxu0 0.0
  %v4284 = vand.u32 %v30, 4294901760
  %4285 = vmatpush1.msra.mxu0 %v4284
  %4286 = vmatprep.subr.mxu0 0.0
  %v4287 = vand.u32 %v29, 4294901760
  %4288 = vmatpush1.msra.mxu0 %v4287
  %4289 = vmatprep.subr.mxu0 0.0
  %v4290 = vand.u32 %v28, 4294901760
  %4291 = vmatpush1.msra.mxu0 %v4290
  %4292 = vmatprep.subr.mxu0 0.0
  %v4293 = vand.u32 %v27, 4294901760
  %4294 = vmatpush1.msra.mxu0 %v4293
  %4295 = vmatprep.subr.mxu0 0.0
  %v4296 = vand.u32 %v26, 4294901760
  %4297 = vmatpush1.msra.mxu0 %v4296
  %4298 = vmatprep.subr.mxu0 0.0
  %v4299 = vand.u32 %v25, 4294901760
  %4300 = vmatpush1.msra.mxu0 %v4299
  %4301 = vmatprep.subr.mxu0 0.0
  %v4302 = vand.u32 %v24, 4294901760
  %4303 = vmatpush1.msra.mxu0 %v4302
  %4304 = vmatprep.subr.mxu0 0.0
  %v4305 = vand.u32 %v23, 4294901760
  %4306 = vmatpush1.msra.mxu0 %v4305
  %4307 = vmatprep.subr.mxu0 0.0
  %v4308 = vand.u32 %v22, 4294901760
  %4309 = vmatpush1.msra.mxu0 %v4308
  %4310 = vmatprep.subr.mxu0 0.0
  %v4311 = vand.u32 %v21, 4294901760
  %4312 = vmatpush1.msra.mxu0 %v4311
  %4313 = vmatprep.subr.mxu0 0.0
  %v4314 = vand.u32 %v20, 4294901760
  %4315 = vmatpush1.msra.mxu0 %v4314
  %4316 = vmatprep.subr.mxu0 0.0
  %v4317 = vand.u32 %v19, 4294901760
  %4318 = vmatpush1.msra.mxu0 %v4317
  %4319 = vmatprep.subr.mxu0 0.0
  %v4320 = vand.u32 %v18, 4294901760
  %4321 = vmatpush1.msra.mxu0 %v4320
  %4322 = vmatprep.subr.mxu0 0.0
  %v4323 = vand.u32 %v17, 4294901760
  %4324 = vmatpush1.msra.mxu0 %v4323
  %4325 = vmatprep.subr.mxu0 0.0
  %4326 = vmatpush2.msra.mxu0 0.0
  %4327 = vmatprep.subr.mxu0 0.0
  %4328 = vmatpush2.msra.mxu0 0.0
  %4329 = vmatprep.subr.mxu0 0.0
  %4330 = vmatpush2.msra.mxu0 0.0
  %4331 = vmatprep.subr.mxu0 0.0
  %4332 = vmatpush2.msra.mxu0 0.0
  %4333 = vmatprep.subr.mxu0 0.0
  %4334 = vmatpush2.msra.mxu0 0.0
  %4335 = vmatprep.subr.mxu0 0.0
  %4336 = vmatpush2.msra.mxu0 0.0
  %4337 = vmatprep.subr.mxu0 0.0
  %4338 = vmatpush2.msra.mxu0 0.0
  %4339 = vmatprep.subr.mxu0 0.0
  %4340 = vmatpush2.msra.mxu0 0.0
  %4341 = vmatprep.subr.mxu0 0.0
  %4342 = vmatpush2.msra.mxu0 0.0
  %4343 = vmatprep.subr.mxu0 0.0
  %4344 = vmatpush2.msra.mxu0 0.0
  %4345 = vmatprep.subr.mxu0 0.0
  %4346 = vmatpush2.msra.mxu0 0.0
  %4347 = vmatprep.subr.mxu0 0.0
  %4348 = vmatpush2.msra.mxu0 0.0
  %4349 = vmatprep.subr.mxu0 0.0
  %4350 = vmatpush2.msra.mxu0 0.0
  %4351 = vmatprep.subr.mxu0 0.0
  %4352 = vmatpush2.msra.mxu0 0.0
  %4353 = vmatprep.subr.mxu0 0.0
  %4354 = vmatpush2.msra.mxu0 0.0
  %4355 = vmatprep.subr.mxu0 0.0
  %4356 = vmatpush2.msra.mxu0 0.0
  %4357 = vmatprep.mubr.f32.mxu0 0.0
  %v4358 = vand.u32 %v3720, 4294901760
  %4359 = vmatmul.mubr.f32.gmra.mxu0 %v4358
  %v4360 = vpop.f32.mrf.mxu0
  %v4361 = vadd.f32 %v4274, %v4360
  %v4362 = vpop.f32.mrf.mxu0
  %4363 = vdwg.mxu0
  %v4364 = vmul.f32 %v4361, 0.001953125
  %v4365 = vadd.f32 %v4364, 1e-05
  %v4366 = vrsqrt.pop %v4365
  %v4367 = vlaneseq
  %v4368 = vshrl.u32 %v4367, 7
  %v4369 = vsub.s32 0, %v4368
  %v4370 = vrot.slane %v4366, %v4369
  %v4371 = vmul.f32 %v3260, %v4370
  %v4372 = vmul.f32 %v3261, %v4370
  %v4373 = vmax.f32 %v4371, 0.0
  %v4374 = vmax.f32 %v4372, 0.0
  %4375 = vst [vmem:[#allocation2 + $0x1] sm:$0xff] %v4373
  %4376 = vst [vmem:[#allocation2 + $0x11] sm:$0xff] %v4374
  %v4377 = vld [vmem:[#allocation2] sm:$0xff]
  %v4378 = vld [vmem:[#allocation2 + $0x10] sm:$0xff]
  %v4379 = vld [vmem:[%s2] sm:$0xff]
  %v4380 = vld [vmem:[%s2 + $0x8] sm:$0xff]
  %v4381 = vld [vmem:[%s2 + $0x10] sm:$0xff]
  %v4382 = vld [vmem:[%s2 + $0x18] sm:$0xff]
  %v4383 = vld [vmem:[%s2 + $0x20] sm:$0xff]
  %v4384 = vld [vmem:[%s2 + $0x28] sm:$0xff]
  %v4385 = vld [vmem:[%s2 + $0x30] sm:$0xff]
  %v4386 = vld [vmem:[%s2 + $0x38] sm:$0xff]
  %v4387 = vld [vmem:[%s2 + $0x40] sm:$0xff]
  %v4388 = vld [vmem:[%s2 + $0x48] sm:$0xff]
  %v4389 = vld [vmem:[%s2 + $0x50] sm:$0xff]
  %v4390 = vld [vmem:[%s2 + $0x58] sm:$0xff]
  %v4391 = vld [vmem:[%s2 + $0x60] sm:$0xff]
  %v4392 = vld [vmem:[%s2 + $0x68] sm:$0xff]
  %v4393 = vld [vmem:[%s2 + $0x70] sm:$0xff]
  %v4394 = vld [vmem:[%s2 + $0x78] sm:$0xff]
  %v4395 = vld [vmem:[#allocation2 + $0x1] sm:$0xff]
  %v4396 = vld [vmem:[#allocation2 + $0x11] sm:$0xff]
  %s4397 = scalar_lea.vmem %s2, 128
  %v4398 = vld [vmem:[%s4397] sm:$0xff]
  %v4399 = vld [vmem:[%s4397 + $0x8] sm:$0xff]
  %v4400 = vld [vmem:[%s4397 + $0x10] sm:$0xff]
  %v4401 = vld [vmem:[%s4397 + $0x18] sm:$0xff]
  %v4402 = vld [vmem:[%s4397 + $0x20] sm:$0xff]
  %v4403 = vld [vmem:[%s4397 + $0x28] sm:$0xff]
  %v4404 = vld [vmem:[%s4397 + $0x30] sm:$0xff]
  %v4405 = vld [vmem:[%s4397 + $0x38] sm:$0xff]
  %v4406 = vld [vmem:[%s4397 + $0x40] sm:$0xff]
  %v4407 = vld [vmem:[%s4397 + $0x48] sm:$0xff]
  %v4408 = vld [vmem:[%s4397 + $0x50] sm:$0xff]
  %v4409 = vld [vmem:[%s4397 + $0x58] sm:$0xff]
  %v4410 = vld [vmem:[%s4397 + $0x60] sm:$0xff]
  %v4411 = vld [vmem:[%s4397 + $0x68] sm:$0xff]
  %v4412 = vld [vmem:[%s4397 + $0x70] sm:$0xff]
  %v4413 = vld [vmem:[%s4397 + $0x78] sm:$0xff]
  %4414 = vmatprep.subr.mxu0 0.0
  %v4415 = vand.u32 %v4413, 4294901760
  %4416 = vmatpush1.msra.mxu0 %v4415
  %4417 = vmatprep.subr.mxu0 0.0
  %v4418 = vand.u32 %v4412, 4294901760
  %4419 = vmatpush1.msra.mxu0 %v4418
  %4420 = vmatprep.subr.mxu0 0.0
  %v4421 = vand.u32 %v4411, 4294901760
  %4422 = vmatpush1.msra.mxu0 %v4421
  %4423 = vmatprep.subr.mxu0 0.0
  %v4424 = vand.u32 %v4410, 4294901760
  %4425 = vmatpush1.msra.mxu0 %v4424
  %4426 = vmatprep.subr.mxu0 0.0
  %v4427 = vand.u32 %v4409, 4294901760
  %4428 = vmatpush1.msra.mxu0 %v4427
  %4429 = vmatprep.subr.mxu0 0.0
  %v4430 = vand.u32 %v4408, 4294901760
  %4431 = vmatpush1.msra.mxu0 %v4430
  %4432 = vmatprep.subr.mxu0 0.0
  %v4433 = vand.u32 %v4407, 4294901760
  %4434 = vmatpush1.msra.mxu0 %v4433
  %4435 = vmatprep.subr.mxu0 0.0
  %v4436 = vand.u32 %v4406, 4294901760
  %4437 = vmatpush1.msra.mxu0 %v4436
  %4438 = vmatprep.subr.mxu0 0.0
  %v4439 = vand.u32 %v4405, 4294901760
  %4440 = vmatpush1.msra.mxu0 %v4439
  %4441 = vmatprep.subr.mxu0 0.0
  %v4442 = vand.u32 %v4404, 4294901760
  %4443 = vmatpush1.msra.mxu0 %v4442
  %4444 = vmatprep.subr.mxu0 0.0
  %v4445 = vand.u32 %v4403, 4294901760
  %4446 = vmatpush1.msra.mxu0 %v4445
  %4447 = vmatprep.subr.mxu0 0.0
  %v4448 = vand.u32 %v4402, 4294901760
  %4449 = vmatpush1.msra.mxu0 %v4448
  %4450 = vmatprep.subr.mxu0 0.0
  %v4451 = vand.u32 %v4401, 4294901760
  %4452 = vmatpush1.msra.mxu0 %v4451
  %4453 = vmatprep.subr.mxu0 0.0
  %v4454 = vand.u32 %v4400, 4294901760
  %4455 = vmatpush1.msra.mxu0 %v4454
  %4456 = vmatprep.subr.mxu0 0.0
  %v4457 = vand.u32 %v4399, 4294901760
  %4458 = vmatpush1.msra.mxu0 %v4457
  %4459 = vmatprep.subr.mxu0 0.0
  %v4460 = vand.u32 %v4398, 4294901760
  %4461 = vmatpush1.msra.mxu0 %v4460
  %4462 = vmatprep.subr.mxu0 0.0
  %4463 = vmatpush2.msra.mxu0 0.0
  %4464 = vmatprep.subr.mxu0 0.0
  %4465 = vmatpush2.msra.mxu0 0.0
  %4466 = vmatprep.subr.mxu0 0.0
  %4467 = vmatpush2.msra.mxu0 0.0
  %4468 = vmatprep.subr.mxu0 0.0
  %4469 = vmatpush2.msra.mxu0 0.0
  %4470 = vmatprep.subr.mxu0 0.0
  %4471 = vmatpush2.msra.mxu0 0.0
  %4472 = vmatprep.subr.mxu0 0.0
  %4473 = vmatpush2.msra.mxu0 0.0
  %4474 = vmatprep.subr.mxu0 0.0
  %4475 = vmatpush2.msra.mxu0 0.0
  %4476 = vmatprep.subr.mxu0 0.0
  %4477 = vmatpush2.msra.mxu0 0.0
  %4478 = vmatprep.subr.mxu0 0.0
  %4479 = vmatpush2.msra.mxu0 0.0
  %4480 = vmatprep.subr.mxu0 0.0
  %4481 = vmatpush2.msra.mxu0 0.0
  %4482 = vmatprep.subr.mxu0 0.0
  %4483 = vmatpush2.msra.mxu0 0.0
  %4484 = vmatprep.subr.mxu0 0.0
  %4485 = vmatpush2.msra.mxu0 0.0
  %4486 = vmatprep.subr.mxu0 0.0
  %4487 = vmatpush2.msra.mxu0 0.0
  %4488 = vmatprep.subr.mxu0 0.0
  %4489 = vmatpush2.msra.mxu0 0.0
  %4490 = vmatprep.subr.mxu0 0.0
  %4491 = vmatpush2.msra.mxu0 0.0
  %4492 = vmatprep.subr.mxu0 0.0
  %4493 = vmatpush2.msra.mxu0 0.0
  %4494 = vmatprep.mubr.f32.mxu0 0.0
  %v4495 = vand.u32 %v4395, 4294901760
  %v4496 = vsub.f32 %v4395, %v4495
  %v4497 = vand.u32 %v4496, 4294901760
  %v4498 = vsub.f32 %v4496, %v4497
  %v4499 = vand.u32 %v4498, 4294901760
  %4500 = vmatmul.mubr.f32.gmra.mxu0 %v4499
  %v4501 = vpop.f32.mrf.mxu0
  %v4502 = vadd.f32 0.0, %v4501
  %v4503 = vpop.f32.mrf.mxu0
  %4504 = vmatprep.mubr.f32.mxu0 0.0
  %v4505 = vand.u32 %v4396, 4294901760
  %v4506 = vsub.f32 %v4396, %v4505
  %v4507 = vand.u32 %v4506, 4294901760
  %v4508 = vsub.f32 %v4506, %v4507
  %v4509 = vand.u32 %v4508, 4294901760
  %4510 = vmatmul.mubr.f32.gmra.mxu0 %v4509
  %v4511 = vpop.f32.mrf.mxu0
  %v4512 = vadd.f32 0.0, %v4511
  %v4513 = vpop.f32.mrf.mxu0
  %4514 = vdwg.mxu0
  %4515 = vmatprep.subr.mxu0 0.0
  %v4516 = vand.u32 %v4413, 4294901760
  %v4517 = vsub.f32 %v4413, %v4516
  %v4518 = vand.u32 %v4517, 4294901760
  %v4519 = vsub.f32 %v4517, %v4518
  %v4520 = vand.u32 %v4519, 4294901760
  %4521 = vmatpush1.msra.mxu0 %v4520
  %4522 = vmatprep.subr.mxu0 0.0
  %v4523 = vand.u32 %v4412, 4294901760
  %v4524 = vsub.f32 %v4412, %v4523
  %v4525 = vand.u32 %v4524, 4294901760
  %v4526 = vsub.f32 %v4524, %v4525
  %v4527 = vand.u32 %v4526, 4294901760
  %4528 = vmatpush1.msra.mxu0 %v4527
  %4529 = vmatprep.subr.mxu0 0.0
  %v4530 = vand.u32 %v4411, 4294901760
  %v4531 = vsub.f32 %v4411, %v4530
  %v4532 = vand.u32 %v4531, 4294901760
  %v4533 = vsub.f32 %v4531, %v4532
  %v4534 = vand.u32 %v4533, 4294901760
  %4535 = vmatpush1.msra.mxu0 %v4534
  %4536 = vmatprep.subr.mxu0 0.0
  %v4537 = vand.u32 %v4410, 4294901760
  %v4538 = vsub.f32 %v4410, %v4537
  %v4539 = vand.u32 %v4538, 4294901760
  %v4540 = vsub.f32 %v4538, %v4539
  %v4541 = vand.u32 %v4540, 4294901760
  %4542 = vmatpush1.msra.mxu0 %v4541
  %4543 = vmatprep.subr.mxu0 0.0
  %v4544 = vand.u32 %v4409, 4294901760
  %v4545 = vsub.f32 %v4409, %v4544
  %v4546 = vand.u32 %v4545, 4294901760
  %v4547 = vsub.f32 %v4545, %v4546
  %v4548 = vand.u32 %v4547, 4294901760
  %4549 = vmatpush1.msra.mxu0 %v4548
  %4550 = vmatprep.subr.mxu0 0.0
  %v4551 = vand.u32 %v4408, 4294901760
  %v4552 = vsub.f32 %v4408, %v4551
  %v4553 = vand.u32 %v4552, 4294901760
  %v4554 = vsub.f32 %v4552, %v4553
  %v4555 = vand.u32 %v4554, 4294901760
  %4556 = vmatpush1.msra.mxu0 %v4555
  %4557 = vmatprep.subr.mxu0 0.0
  %v4558 = vand.u32 %v4407, 4294901760
  %v4559 = vsub.f32 %v4407, %v4558
  %v4560 = vand.u32 %v4559, 4294901760
  %v4561 = vsub.f32 %v4559, %v4560
  %v4562 = vand.u32 %v4561, 4294901760
  %4563 = vmatpush1.msra.mxu0 %v4562
  %4564 = vmatprep.subr.mxu0 0.0
  %v4565 = vand.u32 %v4406, 4294901760
  %v4566 = vsub.f32 %v4406, %v4565
  %v4567 = vand.u32 %v4566, 4294901760
  %v4568 = vsub.f32 %v4566, %v4567
  %v4569 = vand.u32 %v4568, 4294901760
  %4570 = vmatpush1.msra.mxu0 %v4569
  %4571 = vmatprep.subr.mxu0 0.0
  %v4572 = vand.u32 %v4405, 4294901760
  %v4573 = vsub.f32 %v4405, %v4572
  %v4574 = vand.u32 %v4573, 4294901760
  %v4575 = vsub.f32 %v4573, %v4574
  %v4576 = vand.u32 %v4575, 4294901760
  %4577 = vmatpush1.msra.mxu0 %v4576
  %4578 = vmatprep.subr.mxu0 0.0
  %v4579 = vand.u32 %v4404, 4294901760
  %v4580 = vsub.f32 %v4404, %v4579
  %v4581 = vand.u32 %v4580, 4294901760
  %v4582 = vsub.f32 %v4580, %v4581
  %v4583 = vand.u32 %v4582, 4294901760
  %4584 = vmatpush1.msra.mxu0 %v4583
  %4585 = vmatprep.subr.mxu0 0.0
  %v4586 = vand.u32 %v4403, 4294901760
  %v4587 = vsub.f32 %v4403, %v4586
  %v4588 = vand.u32 %v4587, 4294901760
  %v4589 = vsub.f32 %v4587, %v4588
  %v4590 = vand.u32 %v4589, 4294901760
  %4591 = vmatpush1.msra.mxu0 %v4590
  %4592 = vmatprep.subr.mxu0 0.0
  %v4593 = vand.u32 %v4402, 4294901760
  %v4594 = vsub.f32 %v4402, %v4593
  %v4595 = vand.u32 %v4594, 4294901760
  %v4596 = vsub.f32 %v4594, %v4595
  %v4597 = vand.u32 %v4596, 4294901760
  %4598 = vmatpush1.msra.mxu0 %v4597
  %4599 = vmatprep.subr.mxu0 0.0
  %v4600 = vand.u32 %v4401, 4294901760
  %v4601 = vsub.f32 %v4401, %v4600
  %v4602 = vand.u32 %v4601, 4294901760
  %v4603 = vsub.f32 %v4601, %v4602
  %v4604 = vand.u32 %v4603, 4294901760
  %4605 = vmatpush1.msra.mxu0 %v4604
  %4606 = vmatprep.subr.mxu0 0.0
  %v4607 = vand.u32 %v4400, 4294901760
  %v4608 = vsub.f32 %v4400, %v4607
  %v4609 = vand.u32 %v4608, 4294901760
  %v4610 = vsub.f32 %v4608, %v4609
  %v4611 = vand.u32 %v4610, 4294901760
  %4612 = vmatpush1.msra.mxu0 %v4611
  %4613 = vmatprep.subr.mxu0 0.0
  %v4614 = vand.u32 %v4399, 4294901760
  %v4615 = vsub.f32 %v4399, %v4614
  %v4616 = vand.u32 %v4615, 4294901760
  %v4617 = vsub.f32 %v4615, %v4616
  %v4618 = vand.u32 %v4617, 4294901760
  %4619 = vmatpush1.msra.mxu0 %v4618
  %4620 = vmatprep.subr.mxu0 0.0
  %v4621 = vand.u32 %v4398, 4294901760
  %v4622 = vsub.f32 %v4398, %v4621
  %v4623 = vand.u32 %v4622, 4294901760
  %v4624 = vsub.f32 %v4622, %v4623
  %v4625 = vand.u32 %v4624, 4294901760
  %4626 = vmatpush1.msra.mxu0 %v4625
  %4627 = vmatprep.subr.mxu0 0.0
  %4628 = vmatpush2.msra.mxu0 0.0
  %4629 = vmatprep.subr.mxu0 0.0
  %4630 = vmatpush2.msra.mxu0 0.0
  %4631 = vmatprep.subr.mxu0 0.0
  %4632 = vmatpush2.msra.mxu0 0.0
  %4633 = vmatprep.subr.mxu0 0.0
  %4634 = vmatpush2.msra.mxu0 0.0
  %4635 = vmatprep.subr.mxu0 0.0
  %4636 = vmatpush2.msra.mxu0 0.0
  %4637 = vmatprep.subr.mxu0 0.0
  %4638 = vmatpush2.msra.mxu0 0.0
  %4639 = vmatprep.subr.mxu0 0.0
  %4640 = vmatpush2.msra.mxu0 0.0
  %4641 = vmatprep.subr.mxu0 0.0
  %4642 = vmatpush2.msra.mxu0 0.0
  %4643 = vmatprep.subr.mxu0 0.0
  %4644 = vmatpush2.msra.mxu0 0.0
  %4645 = vmatprep.subr.mxu0 0.0
  %4646 = vmatpush2.msra.mxu0 0.0
  %4647 = vmatprep.subr.mxu0 0.0
  %4648 = vmatpush2.msra.mxu0 0.0
  %4649 = vmatprep.subr.mxu0 0.0
  %4650 = vmatpush2.msra.mxu0 0.0
  %4651 = vmatprep.subr.mxu0 0.0
  %4652 = vmatpush2.msra.mxu0 0.0
  %4653 = vmatprep.subr.mxu0 0.0
  %4654 = vmatpush2.msra.mxu0 0.0
  %4655 = vmatprep.subr.mxu0 0.0
  %4656 = vmatpush2.msra.mxu0 0.0
  %4657 = vmatprep.subr.mxu0 0.0
  %4658 = vmatpush2.msra.mxu0 0.0
  %4659 = vmatprep.mubr.f32.mxu0 0.0
  %v4660 = vand.u32 %v4395, 4294901760
  %4661 = vmatmul.mubr.f32.gmra.mxu0 %v4660
  %v4662 = vpop.f32.mrf.mxu0
  %v4663 = vadd.f32 %v4502, %v4662
  %v4664 = vpop.f32.mrf.mxu0
  %4665 = vmatprep.mubr.f32.mxu0 0.0
  %v4666 = vand.u32 %v4396, 4294901760
  %4667 = vmatmul.mubr.f32.gmra.mxu0 %v4666
  %v4668 = vpop.f32.mrf.mxu0
  %v4669 = vadd.f32 %v4512, %v4668
  %v4670 = vpop.f32.mrf.mxu0
  %4671 = vdwg.mxu0
  %4672 = vmatprep.subr.mxu0 0.0
  %v4673 = vand.u32 %v4413, 4294901760
  %v4674 = vsub.f32 %v4413, %v4673
  %4675 = vmatpush1.msra.mxu0 %v4674
  %4676 = vmatprep.subr.mxu0 0.0
  %v4677 = vand.u32 %v4412, 4294901760
  %v4678 = vsub.f32 %v4412, %v4677
  %4679 = vmatpush1.msra.mxu0 %v4678
  %4680 = vmatprep.subr.mxu0 0.0
  %v4681 = vand.u32 %v4411, 4294901760
  %v4682 = vsub.f32 %v4411, %v4681
  %4683 = vmatpush1.msra.mxu0 %v4682
  %4684 = vmatprep.subr.mxu0 0.0
  %v4685 = vand.u32 %v4410, 4294901760
  %v4686 = vsub.f32 %v4410, %v4685
  %4687 = vmatpush1.msra.mxu0 %v4686
  %4688 = vmatprep.subr.mxu0 0.0
  %v4689 = vand.u32 %v4409, 4294901760
  %v4690 = vsub.f32 %v4409, %v4689
  %4691 = vmatpush1.msra.mxu0 %v4690
  %4692 = vmatprep.subr.mxu0 0.0
  %v4693 = vand.u32 %v4408, 4294901760
  %v4694 = vsub.f32 %v4408, %v4693
  %4695 = vmatpush1.msra.mxu0 %v4694
  %4696 = vmatprep.subr.mxu0 0.0
  %v4697 = vand.u32 %v4407, 4294901760
  %v4698 = vsub.f32 %v4407, %v4697
  %4699 = vmatpush1.msra.mxu0 %v4698
  %4700 = vmatprep.subr.mxu0 0.0
  %v4701 = vand.u32 %v4406, 4294901760
  %v4702 = vsub.f32 %v4406, %v4701
  %4703 = vmatpush1.msra.mxu0 %v4702
  %4704 = vmatprep.subr.mxu0 0.0
  %v4705 = vand.u32 %v4405, 4294901760
  %v4706 = vsub.f32 %v4405, %v4705
  %4707 = vmatpush1.msra.mxu0 %v4706
  %4708 = vmatprep.subr.mxu0 0.0
  %v4709 = vand.u32 %v4404, 4294901760
  %v4710 = vsub.f32 %v4404, %v4709
  %4711 = vmatpush1.msra.mxu0 %v4710
  %4712 = vmatprep.subr.mxu0 0.0
  %v4713 = vand.u32 %v4403, 4294901760
  %v4714 = vsub.f32 %v4403, %v4713
  %4715 = vmatpush1.msra.mxu0 %v4714
  %4716 = vmatprep.subr.mxu0 0.0
  %v4717 = vand.u32 %v4402, 4294901760
  %v4718 = vsub.f32 %v4402, %v4717
  %4719 = vmatpush1.msra.mxu0 %v4718
  %4720 = vmatprep.subr.mxu0 0.0
  %v4721 = vand.u32 %v4401, 4294901760
  %v4722 = vsub.f32 %v4401, %v4721
  %4723 = vmatpush1.msra.mxu0 %v4722
  %4724 = vmatprep.subr.mxu0 0.0
  %v4725 = vand.u32 %v4400, 4294901760
  %v4726 = vsub.f32 %v4400, %v4725
  %4727 = vmatpush1.msra.mxu0 %v4726
  %4728 = vmatprep.subr.mxu0 0.0
  %v4729 = vand.u32 %v4399, 4294901760
  %v4730 = vsub.f32 %v4399, %v4729
  %4731 = vmatpush1.msra.mxu0 %v4730
  %4732 = vmatprep.subr.mxu0 0.0
  %v4733 = vand.u32 %v4398, 4294901760
  %v4734 = vsub.f32 %v4398, %v4733
  %4735 = vmatpush1.msra.mxu0 %v4734
  %4736 = vmatprep.subr.mxu0 0.0
  %4737 = vmatpush2.msra.mxu0 0.0
  %4738 = vmatprep.subr.mxu0 0.0
  %4739 = vmatpush2.msra.mxu0 0.0
  %4740 = vmatprep.subr.mxu0 0.0
  %4741 = vmatpush2.msra.mxu0 0.0
  %4742 = vmatprep.subr.mxu0 0.0
  %4743 = vmatpush2.msra.mxu0 0.0
  %4744 = vmatprep.subr.mxu0 0.0
  %4745 = vmatpush2.msra.mxu0 0.0
  %4746 = vmatprep.subr.mxu0 0.0
  %4747 = vmatpush2.msra.mxu0 0.0
  %4748 = vmatprep.subr.mxu0 0.0
  %4749 = vmatpush2.msra.mxu0 0.0
  %4750 = vmatprep.subr.mxu0 0.0
  %4751 = vmatpush2.msra.mxu0 0.0
  %4752 = vmatprep.subr.mxu0 0.0
  %4753 = vmatpush2.msra.mxu0 0.0
  %4754 = vmatprep.subr.mxu0 0.0
  %4755 = vmatpush2.msra.mxu0 0.0
  %4756 = vmatprep.subr.mxu0 0.0
  %4757 = vmatpush2.msra.mxu0 0.0
  %4758 = vmatprep.subr.mxu0 0.0
  %4759 = vmatpush2.msra.mxu0 0.0
  %4760 = vmatprep.subr.mxu0 0.0
  %4761 = vmatpush2.msra.mxu0 0.0
  %4762 = vmatprep.subr.mxu0 0.0
  %4763 = vmatpush2.msra.mxu0 0.0
  %4764 = vmatprep.subr.mxu0 0.0
  %4765 = vmatpush2.msra.mxu0 0.0
  %4766 = vmatprep.subr.mxu0 0.0
  %4767 = vmatpush2.msra.mxu0 0.0
  %4768 = vmatprep.mubr.f32.mxu0 0.0
  %v4769 = vand.u32 %v4395, 4294901760
  %v4770 = vsub.f32 %v4395, %v4769
  %4771 = vmatmul.mubr.f32.gmra.mxu0 %v4770
  %v4772 = vpop.f32.mrf.mxu0
  %v4773 = vadd.f32 %v4663, %v4772
  %v4774 = vpop.f32.mrf.mxu0
  %4775 = vmatprep.mubr.f32.mxu0 0.0
  %v4776 = vand.u32 %v4396, 4294901760
  %v4777 = vsub.f32 %v4396, %v4776
  %4778 = vmatmul.mubr.f32.gmra.mxu0 %v4777
  %v4779 = vpop.f32.mrf.mxu0
  %v4780 = vadd.f32 %v4669, %v4779
  %v4781 = vpop.f32.mrf.mxu0
  %4782 = vdwg.mxu0
  %4783 = vmatprep.subr.mxu0 0.0
  %v4784 = vand.u32 %v4413, 4294901760
  %4785 = vmatpush1.msra.mxu0 %v4784
  %4786 = vmatprep.subr.mxu0 0.0
  %v4787 = vand.u32 %v4412, 4294901760
  %4788 = vmatpush1.msra.mxu0 %v4787
  %4789 = vmatprep.subr.mxu0 0.0
  %v4790 = vand.u32 %v4411, 4294901760
  %4791 = vmatpush1.msra.mxu0 %v4790
  %4792 = vmatprep.subr.mxu0 0.0
  %v4793 = vand.u32 %v4410, 4294901760
  %4794 = vmatpush1.msra.mxu0 %v4793
  %4795 = vmatprep.subr.mxu0 0.0
  %v4796 = vand.u32 %v4409, 4294901760
  %4797 = vmatpush1.msra.mxu0 %v4796
  %4798 = vmatprep.subr.mxu0 0.0
  %v4799 = vand.u32 %v4408, 4294901760
  %4800 = vmatpush1.msra.mxu0 %v4799
  %4801 = vmatprep.subr.mxu0 0.0
  %v4802 = vand.u32 %v4407, 4294901760
  %4803 = vmatpush1.msra.mxu0 %v4802
  %4804 = vmatprep.subr.mxu0 0.0
  %v4805 = vand.u32 %v4406, 4294901760
  %4806 = vmatpush1.msra.mxu0 %v4805
  %4807 = vmatprep.subr.mxu0 0.0
  %v4808 = vand.u32 %v4405, 4294901760
  %4809 = vmatpush1.msra.mxu0 %v4808
  %4810 = vmatprep.subr.mxu0 0.0
  %v4811 = vand.u32 %v4404, 4294901760
  %4812 = vmatpush1.msra.mxu0 %v4811
  %4813 = vmatprep.subr.mxu0 0.0
  %v4814 = vand.u32 %v4403, 4294901760
  %4815 = vmatpush1.msra.mxu0 %v4814
  %4816 = vmatprep.subr.mxu0 0.0
  %v4817 = vand.u32 %v4402, 4294901760
  %4818 = vmatpush1.msra.mxu0 %v4817
  %4819 = vmatprep.subr.mxu0 0.0
  %v4820 = vand.u32 %v4401, 4294901760
  %4821 = vmatpush1.msra.mxu0 %v4820
  %4822 = vmatprep.subr.mxu0 0.0
  %v4823 = vand.u32 %v4400, 4294901760
  %4824 = vmatpush1.msra.mxu0 %v4823
  %4825 = vmatprep.subr.mxu0 0.0
  %v4826 = vand.u32 %v4399, 4294901760
  %4827 = vmatpush1.msra.mxu0 %v4826
  %4828 = vmatprep.subr.mxu0 0.0
  %v4829 = vand.u32 %v4398, 4294901760
  %4830 = vmatpush1.msra.mxu0 %v4829
  %4831 = vmatprep.subr.mxu0 0.0
  %4832 = vmatpush2.msra.mxu0 0.0
  %4833 = vmatprep.subr.mxu0 0.0
  %4834 = vmatpush2.msra.mxu0 0.0
  %4835 = vmatprep.subr.mxu0 0.0
  %4836 = vmatpush2.msra.mxu0 0.0
  %4837 = vmatprep.subr.mxu0 0.0
  %4838 = vmatpush2.msra.mxu0 0.0
  %4839 = vmatprep.subr.mxu0 0.0
  %4840 = vmatpush2.msra.mxu0 0.0
  %4841 = vmatprep.subr.mxu0 0.0
  %4842 = vmatpush2.msra.mxu0 0.0
  %4843 = vmatprep.subr.mxu0 0.0
  %4844 = vmatpush2.msra.mxu0 0.0
  %4845 = vmatprep.subr.mxu0 0.0
  %4846 = vmatpush2.msra.mxu0 0.0
  %4847 = vmatprep.subr.mxu0 0.0
  %4848 = vmatpush2.msra.mxu0 0.0
  %4849 = vmatprep.subr.mxu0 0.0
  %4850 = vmatpush2.msra.mxu0 0.0
  %4851 = vmatprep.subr.mxu0 0.0
  %4852 = vmatpush2.msra.mxu0 0.0
  %4853 = vmatprep.subr.mxu0 0.0
  %4854 = vmatpush2.msra.mxu0 0.0
  %4855 = vmatprep.subr.mxu0 0.0
  %4856 = vmatpush2.msra.mxu0 0.0
  %4857 = vmatprep.subr.mxu0 0.0
  %4858 = vmatpush2.msra.mxu0 0.0
  %4859 = vmatprep.subr.mxu0 0.0
  %4860 = vmatpush2.msra.mxu0 0.0
  %4861 = vmatprep.subr.mxu0 0.0
  %4862 = vmatpush2.msra.mxu0 0.0
  %4863 = vmatprep.mubr.f32.mxu0 0.0
  %v4864 = vand.u32 %v4395, 4294901760
  %v4865 = vsub.f32 %v4395, %v4864
  %v4866 = vand.u32 %v4865, 4294901760
  %4867 = vmatmul.mubr.f32.gmra.mxu0 %v4866
  %v4868 = vpop.f32.mrf.mxu0
  %v4869 = vadd.f32 %v4773, %v4868
  %v4870 = vpop.f32.mrf.mxu0
  %4871 = vmatprep.mubr.f32.mxu0 0.0
  %v4872 = vand.u32 %v4396, 4294901760
  %v4873 = vsub.f32 %v4396, %v4872
  %v4874 = vand.u32 %v4873, 4294901760
  %4875 = vmatmul.mubr.f32.gmra.mxu0 %v4874
  %v4876 = vpop.f32.mrf.mxu0
  %v4877 = vadd.f32 %v4780, %v4876
  %v4878 = vpop.f32.mrf.mxu0
  %4879 = vdwg.mxu0
  %4880 = vmatprep.subr.mxu0 0.0
  %v4881 = vand.u32 %v4413, 4294901760
  %v4882 = vsub.f32 %v4413, %v4881
  %v4883 = vand.u32 %v4882, 4294901760
  %4884 = vmatpush1.msra.mxu0 %v4883
  %4885 = vmatprep.subr.mxu0 0.0
  %v4886 = vand.u32 %v4412, 4294901760
  %v4887 = vsub.f32 %v4412, %v4886
  %v4888 = vand.u32 %v4887, 4294901760
  %4889 = vmatpush1.msra.mxu0 %v4888
  %4890 = vmatprep.subr.mxu0 0.0
  %v4891 = vand.u32 %v4411, 4294901760
  %v4892 = vsub.f32 %v4411, %v4891
  %v4893 = vand.u32 %v4892, 4294901760
  %4894 = vmatpush1.msra.mxu0 %v4893
  %4895 = vmatprep.subr.mxu0 0.0
  %v4896 = vand.u32 %v4410, 4294901760
  %v4897 = vsub.f32 %v4410, %v4896
  %v4898 = vand.u32 %v4897, 4294901760
  %4899 = vmatpush1.msra.mxu0 %v4898
  %4900 = vmatprep.subr.mxu0 0.0
  %v4901 = vand.u32 %v4409, 4294901760
  %v4902 = vsub.f32 %v4409, %v4901
  %v4903 = vand.u32 %v4902, 4294901760
  %4904 = vmatpush1.msra.mxu0 %v4903
  %4905 = vmatprep.subr.mxu0 0.0
  %v4906 = vand.u32 %v4408, 4294901760
  %v4907 = vsub.f32 %v4408, %v4906
  %v4908 = vand.u32 %v4907, 4294901760
  %4909 = vmatpush1.msra.mxu0 %v4908
  %4910 = vmatprep.subr.mxu0 0.0
  %v4911 = vand.u32 %v4407, 4294901760
  %v4912 = vsub.f32 %v4407, %v4911
  %v4913 = vand.u32 %v4912, 4294901760
  %4914 = vmatpush1.msra.mxu0 %v4913
  %4915 = vmatprep.subr.mxu0 0.0
  %v4916 = vand.u32 %v4406, 4294901760
  %v4917 = vsub.f32 %v4406, %v4916
  %v4918 = vand.u32 %v4917, 4294901760
  %4919 = vmatpush1.msra.mxu0 %v4918
  %4920 = vmatprep.subr.mxu0 0.0
  %v4921 = vand.u32 %v4405, 4294901760
  %v4922 = vsub.f32 %v4405, %v4921
  %v4923 = vand.u32 %v4922, 4294901760
  %4924 = vmatpush1.msra.mxu0 %v4923
  %4925 = vmatprep.subr.mxu0 0.0
  %v4926 = vand.u32 %v4404, 4294901760
  %v4927 = vsub.f32 %v4404, %v4926
  %v4928 = vand.u32 %v4927, 4294901760
  %4929 = vmatpush1.msra.mxu0 %v4928
  %4930 = vmatprep.subr.mxu0 0.0
  %v4931 = vand.u32 %v4403, 4294901760
  %v4932 = vsub.f32 %v4403, %v4931
  %v4933 = vand.u32 %v4932, 4294901760
  %4934 = vmatpush1.msra.mxu0 %v4933
  %4935 = vmatprep.subr.mxu0 0.0
  %v4936 = vand.u32 %v4402, 4294901760
  %v4937 = vsub.f32 %v4402, %v4936
  %v4938 = vand.u32 %v4937, 4294901760
  %4939 = vmatpush1.msra.mxu0 %v4938
  %4940 = vmatprep.subr.mxu0 0.0
  %v4941 = vand.u32 %v4401, 4294901760
  %v4942 = vsub.f32 %v4401, %v4941
  %v4943 = vand.u32 %v4942, 4294901760
  %4944 = vmatpush1.msra.mxu0 %v4943
  %4945 = vmatprep.subr.mxu0 0.0
  %v4946 = vand.u32 %v4400, 4294901760
  %v4947 = vsub.f32 %v4400, %v4946
  %v4948 = vand.u32 %v4947, 4294901760
  %4949 = vmatpush1.msra.mxu0 %v4948
  %4950 = vmatprep.subr.mxu0 0.0
  %v4951 = vand.u32 %v4399, 4294901760
  %v4952 = vsub.f32 %v4399, %v4951
  %v4953 = vand.u32 %v4952, 4294901760
  %4954 = vmatpush1.msra.mxu0 %v4953
  %4955 = vmatprep.subr.mxu0 0.0
  %v4956 = vand.u32 %v4398, 4294901760
  %v4957 = vsub.f32 %v4398, %v4956
  %v4958 = vand.u32 %v4957, 4294901760
  %4959 = vmatpush1.msra.mxu0 %v4958
  %4960 = vmatprep.subr.mxu0 0.0
  %4961 = vmatpush2.msra.mxu0 0.0
  %4962 = vmatprep.subr.mxu0 0.0
  %4963 = vmatpush2.msra.mxu0 0.0
  %4964 = vmatprep.subr.mxu0 0.0
  %4965 = vmatpush2.msra.mxu0 0.0
  %4966 = vmatprep.subr.mxu0 0.0
  %4967 = vmatpush2.msra.mxu0 0.0
  %4968 = vmatprep.subr.mxu0 0.0
  %4969 = vmatpush2.msra.mxu0 0.0
  %4970 = vmatprep.subr.mxu0 0.0
  %4971 = vmatpush2.msra.mxu0 0.0
  %4972 = vmatprep.subr.mxu0 0.0
  %4973 = vmatpush2.msra.mxu0 0.0
  %4974 = vmatprep.subr.mxu0 0.0
  %4975 = vmatpush2.msra.mxu0 0.0
  %4976 = vmatprep.subr.mxu0 0.0
  %4977 = vmatpush2.msra.mxu0 0.0
  %4978 = vmatprep.subr.mxu0 0.0
  %4979 = vmatpush2.msra.mxu0 0.0
  %4980 = vmatprep.subr.mxu0 0.0
  %4981 = vmatpush2.msra.mxu0 0.0
  %4982 = vmatprep.subr.mxu0 0.0
  %4983 = vmatpush2.msra.mxu0 0.0
  %4984 = vmatprep.subr.mxu0 0.0
  %4985 = vmatpush2.msra.mxu0 0.0
  %4986 = vmatprep.subr.mxu0 0.0
  %4987 = vmatpush2.msra.mxu0 0.0
  %4988 = vmatprep.subr.mxu0 0.0
  %4989 = vmatpush2.msra.mxu0 0.0
  %4990 = vmatprep.subr.mxu0 0.0
  %4991 = vmatpush2.msra.mxu0 0.0
  %4992 = vmatprep.mubr.f32.mxu0 0.0
  %v4993 = vand.u32 %v4395, 4294901760
  %4994 = vmatmul.mubr.f32.gmra.mxu0 %v4993
  %v4995 = vpop.f32.mrf.mxu0
  %v4996 = vadd.f32 %v4869, %v4995
  %v4997 = vpop.f32.mrf.mxu0
  %4998 = vmatprep.mubr.f32.mxu0 0.0
  %v4999 = vand.u32 %v4396, 4294901760
  %5000 = vmatmul.mubr.f32.gmra.mxu0 %v4999
  %v5001 = vpop.f32.mrf.mxu0
  %v5002 = vadd.f32 %v4877, %v5001
  %v5003 = vpop.f32.mrf.mxu0
  %5004 = vdwg.mxu0
  %5005 = vmatprep.subr.mxu0 0.0
  %v5006 = vand.u32 %v4413, 4294901760
  %5007 = vmatpush1.msra.mxu0 %v5006
  %5008 = vmatprep.subr.mxu0 0.0
  %v5009 = vand.u32 %v4412, 4294901760
  %5010 = vmatpush1.msra.mxu0 %v5009
  %5011 = vmatprep.subr.mxu0 0.0
  %v5012 = vand.u32 %v4411, 4294901760
  %5013 = vmatpush1.msra.mxu0 %v5012
  %5014 = vmatprep.subr.mxu0 0.0
  %v5015 = vand.u32 %v4410, 4294901760
  %5016 = vmatpush1.msra.mxu0 %v5015
  %5017 = vmatprep.subr.mxu0 0.0
  %v5018 = vand.u32 %v4409, 4294901760
  %5019 = vmatpush1.msra.mxu0 %v5018
  %5020 = vmatprep.subr.mxu0 0.0
  %v5021 = vand.u32 %v4408, 4294901760
  %5022 = vmatpush1.msra.mxu0 %v5021
  %5023 = vmatprep.subr.mxu0 0.0
  %v5024 = vand.u32 %v4407, 4294901760
  %5025 = vmatpush1.msra.mxu0 %v5024
  %5026 = vmatprep.subr.mxu0 0.0
  %v5027 = vand.u32 %v4406, 4294901760
  %5028 = vmatpush1.msra.mxu0 %v5027
  %5029 = vmatprep.subr.mxu0 0.0
  %v5030 = vand.u32 %v4405, 4294901760
  %5031 = vmatpush1.msra.mxu0 %v5030
  %5032 = vmatprep.subr.mxu0 0.0
  %v5033 = vand.u32 %v4404, 4294901760
  %5034 = vmatpush1.msra.mxu0 %v5033
  %5035 = vmatprep.subr.mxu0 0.0
  %v5036 = vand.u32 %v4403, 4294901760
  %5037 = vmatpush1.msra.mxu0 %v5036
  %5038 = vmatprep.subr.mxu0 0.0
  %v5039 = vand.u32 %v4402, 4294901760
  %5040 = vmatpush1.msra.mxu0 %v5039
  %5041 = vmatprep.subr.mxu0 0.0
  %v5042 = vand.u32 %v4401, 4294901760
  %5043 = vmatpush1.msra.mxu0 %v5042
  %5044 = vmatprep.subr.mxu0 0.0
  %v5045 = vand.u32 %v4400, 4294901760
  %5046 = vmatpush1.msra.mxu0 %v5045
  %5047 = vmatprep.subr.mxu0 0.0
  %v5048 = vand.u32 %v4399, 4294901760
  %5049 = vmatpush1.msra.mxu0 %v5048
  %5050 = vmatprep.subr.mxu0 0.0
  %v5051 = vand.u32 %v4398, 4294901760
  %5052 = vmatpush1.msra.mxu0 %v5051
  %5053 = vmatprep.subr.mxu0 0.0
  %5054 = vmatpush2.msra.mxu0 0.0
  %5055 = vmatprep.subr.mxu0 0.0
  %5056 = vmatpush2.msra.mxu0 0.0
  %5057 = vmatprep.subr.mxu0 0.0
  %5058 = vmatpush2.msra.mxu0 0.0
  %5059 = vmatprep.subr.mxu0 0.0
  %5060 = vmatpush2.msra.mxu0 0.0
  %5061 = vmatprep.subr.mxu0 0.0
  %5062 = vmatpush2.msra.mxu0 0.0
  %5063 = vmatprep.subr.mxu0 0.0
  %5064 = vmatpush2.msra.mxu0 0.0
  %5065 = vmatprep.subr.mxu0 0.0
  %5066 = vmatpush2.msra.mxu0 0.0
  %5067 = vmatprep.subr.mxu0 0.0
  %5068 = vmatpush2.msra.mxu0 0.0
  %5069 = vmatprep.subr.mxu0 0.0
  %5070 = vmatpush2.msra.mxu0 0.0
  %5071 = vmatprep.subr.mxu0 0.0
  %5072 = vmatpush2.msra.mxu0 0.0
  %5073 = vmatprep.subr.mxu0 0.0
  %5074 = vmatpush2.msra.mxu0 0.0
  %5075 = vmatprep.subr.mxu0 0.0
  %5076 = vmatpush2.msra.mxu0 0.0
  %5077 = vmatprep.subr.mxu0 0.0
  %5078 = vmatpush2.msra.mxu0 0.0
  %5079 = vmatprep.subr.mxu0 0.0
  %5080 = vmatpush2.msra.mxu0 0.0
  %5081 = vmatprep.subr.mxu0 0.0
  %5082 = vmatpush2.msra.mxu0 0.0
  %5083 = vmatprep.subr.mxu0 0.0
  %5084 = vmatpush2.msra.mxu0 0.0
  %5085 = vmatprep.mubr.f32.mxu0 0.0
  %v5086 = vand.u32 %v4395, 4294901760
  %5087 = vmatmul.mubr.f32.gmra.mxu0 %v5086
  %v5088 = vpop.f32.mrf.mxu0
  %v5089 = vadd.f32 %v4996, %v5088
  %v5090 = vpop.f32.mrf.mxu0
  %5091 = vmatprep.mubr.f32.mxu0 0.0
  %v5092 = vand.u32 %v4396, 4294901760
  %5093 = vmatmul.mubr.f32.gmra.mxu0 %v5092
  %v5094 = vpop.f32.mrf.mxu0
  %v5095 = vadd.f32 %v5002, %v5094
  %v5096 = vpop.f32.mrf.mxu0
  %5097 = vdwg.mxu0
  %5098 = vmatprep.subr.mxu0 0.0
  %v5099 = vand.u32 %v4394, 4294901760
  %5100 = vmatpush1.msra.mxu0 %v5099
  %5101 = vmatprep.subr.mxu0 0.0
  %v5102 = vand.u32 %v4393, 4294901760
  %5103 = vmatpush1.msra.mxu0 %v5102
  %5104 = vmatprep.subr.mxu0 0.0
  %v5105 = vand.u32 %v4392, 4294901760
  %5106 = vmatpush1.msra.mxu0 %v5105
  %5107 = vmatprep.subr.mxu0 0.0
  %v5108 = vand.u32 %v4391, 4294901760
  %5109 = vmatpush1.msra.mxu0 %v5108
  %5110 = vmatprep.subr.mxu0 0.0
  %v5111 = vand.u32 %v4390, 4294901760
  %5112 = vmatpush1.msra.mxu0 %v5111
  %5113 = vmatprep.subr.mxu0 0.0
  %v5114 = vand.u32 %v4389, 4294901760
  %5115 = vmatpush1.msra.mxu0 %v5114
  %5116 = vmatprep.subr.mxu0 0.0
  %v5117 = vand.u32 %v4388, 4294901760
  %5118 = vmatpush1.msra.mxu0 %v5117
  %5119 = vmatprep.subr.mxu0 0.0
  %v5120 = vand.u32 %v4387, 4294901760
  %5121 = vmatpush1.msra.mxu0 %v5120
  %5122 = vmatprep.subr.mxu0 0.0
  %v5123 = vand.u32 %v4386, 4294901760
  %5124 = vmatpush1.msra.mxu0 %v5123
  %5125 = vmatprep.subr.mxu0 0.0
  %v5126 = vand.u32 %v4385, 4294901760
  %5127 = vmatpush1.msra.mxu0 %v5126
  %5128 = vmatprep.subr.mxu0 0.0
  %v5129 = vand.u32 %v4384, 4294901760
  %5130 = vmatpush1.msra.mxu0 %v5129
  %5131 = vmatprep.subr.mxu0 0.0
  %v5132 = vand.u32 %v4383, 4294901760
  %5133 = vmatpush1.msra.mxu0 %v5132
  %5134 = vmatprep.subr.mxu0 0.0
  %v5135 = vand.u32 %v4382, 4294901760
  %5136 = vmatpush1.msra.mxu0 %v5135
  %5137 = vmatprep.subr.mxu0 0.0
  %v5138 = vand.u32 %v4381, 4294901760
  %5139 = vmatpush1.msra.mxu0 %v5138
  %5140 = vmatprep.subr.mxu0 0.0
  %v5141 = vand.u32 %v4380, 4294901760
  %5142 = vmatpush1.msra.mxu0 %v5141
  %5143 = vmatprep.subr.mxu0 0.0
  %v5144 = vand.u32 %v4379, 4294901760
  %5145 = vmatpush1.msra.mxu0 %v5144
  %5146 = vmatprep.subr.mxu0 0.0
  %5147 = vmatpush2.msra.mxu0 0.0
  %5148 = vmatprep.subr.mxu0 0.0
  %5149 = vmatpush2.msra.mxu0 0.0
  %5150 = vmatprep.subr.mxu0 0.0
  %5151 = vmatpush2.msra.mxu0 0.0
  %5152 = vmatprep.subr.mxu0 0.0
  %5153 = vmatpush2.msra.mxu0 0.0
  %5154 = vmatprep.subr.mxu0 0.0
  %5155 = vmatpush2.msra.mxu0 0.0
  %5156 = vmatprep.subr.mxu0 0.0
  %5157 = vmatpush2.msra.mxu0 0.0
  %5158 = vmatprep.subr.mxu0 0.0
  %5159 = vmatpush2.msra.mxu0 0.0
  %5160 = vmatprep.subr.mxu0 0.0
  %5161 = vmatpush2.msra.mxu0 0.0
  %5162 = vmatprep.subr.mxu0 0.0
  %5163 = vmatpush2.msra.mxu0 0.0
  %5164 = vmatprep.subr.mxu0 0.0
  %5165 = vmatpush2.msra.mxu0 0.0
  %5166 = vmatprep.subr.mxu0 0.0
  %5167 = vmatpush2.msra.mxu0 0.0
  %5168 = vmatprep.subr.mxu0 0.0
  %5169 = vmatpush2.msra.mxu0 0.0
  %5170 = vmatprep.subr.mxu0 0.0
  %5171 = vmatpush2.msra.mxu0 0.0
  %5172 = vmatprep.subr.mxu0 0.0
  %5173 = vmatpush2.msra.mxu0 0.0
  %5174 = vmatprep.subr.mxu0 0.0
  %5175 = vmatpush2.msra.mxu0 0.0
  %5176 = vmatprep.subr.mxu0 0.0
  %5177 = vmatpush2.msra.mxu0 0.0
  %5178 = vmatprep.mubr.f32.mxu0 0.0
  %v5179 = vand.u32 %v4377, 4294901760
  %v5180 = vsub.f32 %v4377, %v5179
  %v5181 = vand.u32 %v5180, 4294901760
  %v5182 = vsub.f32 %v5180, %v5181
  %v5183 = vand.u32 %v5182, 4294901760
  %5184 = vmatmul.mubr.f32.gmra.mxu0 %v5183
  %v5185 = vpop.f32.mrf.mxu0
  %v5186 = vadd.f32 %v5089, %v5185
  %v5187 = vpop.f32.mrf.mxu0
  %5188 = vmatprep.mubr.f32.mxu0 0.0
  %v5189 = vand.u32 %v4378, 4294901760
  %v5190 = vsub.f32 %v4378, %v5189
  %v5191 = vand.u32 %v5190, 4294901760
  %v5192 = vsub.f32 %v5190, %v5191
  %v5193 = vand.u32 %v5192, 4294901760
  %5194 = vmatmul.mubr.f32.gmra.mxu0 %v5193
  %v5195 = vpop.f32.mrf.mxu0
  %v5196 = vadd.f32 %v5095, %v5195
  %v5197 = vpop.f32.mrf.mxu0
  %5198 = vdwg.mxu0
  %5199 = vmatprep.subr.mxu0 0.0
  %v5200 = vand.u32 %v4394, 4294901760
  %v5201 = vsub.f32 %v4394, %v5200
  %v5202 = vand.u32 %v5201, 4294901760
  %v5203 = vsub.f32 %v5201, %v5202
  %v5204 = vand.u32 %v5203, 4294901760
  %5205 = vmatpush1.msra.mxu0 %v5204
  %5206 = vmatprep.subr.mxu0 0.0
  %v5207 = vand.u32 %v4393, 4294901760
  %v5208 = vsub.f32 %v4393, %v5207
  %v5209 = vand.u32 %v5208, 4294901760
  %v5210 = vsub.f32 %v5208, %v5209
  %v5211 = vand.u32 %v5210, 4294901760
  %5212 = vmatpush1.msra.mxu0 %v5211
  %5213 = vmatprep.subr.mxu0 0.0
  %v5214 = vand.u32 %v4392, 4294901760
  %v5215 = vsub.f32 %v4392, %v5214
  %v5216 = vand.u32 %v5215, 4294901760
  %v5217 = vsub.f32 %v5215, %v5216
  %v5218 = vand.u32 %v5217, 4294901760
  %5219 = vmatpush1.msra.mxu0 %v5218
  %5220 = vmatprep.subr.mxu0 0.0
  %v5221 = vand.u32 %v4391, 4294901760
  %v5222 = vsub.f32 %v4391, %v5221
  %v5223 = vand.u32 %v5222, 4294901760
  %v5224 = vsub.f32 %v5222, %v5223
  %v5225 = vand.u32 %v5224, 4294901760
  %5226 = vmatpush1.msra.mxu0 %v5225
  %5227 = vmatprep.subr.mxu0 0.0
  %v5228 = vand.u32 %v4390, 4294901760
  %v5229 = vsub.f32 %v4390, %v5228
  %v5230 = vand.u32 %v5229, 4294901760
  %v5231 = vsub.f32 %v5229, %v5230
  %v5232 = vand.u32 %v5231, 4294901760
  %5233 = vmatpush1.msra.mxu0 %v5232
  %5234 = vmatprep.subr.mxu0 0.0
  %v5235 = vand.u32 %v4389, 4294901760
  %v5236 = vsub.f32 %v4389, %v5235
  %v5237 = vand.u32 %v5236, 4294901760
  %v5238 = vsub.f32 %v5236, %v5237
  %v5239 = vand.u32 %v5238, 4294901760
  %5240 = vmatpush1.msra.mxu0 %v5239
  %5241 = vmatprep.subr.mxu0 0.0
  %v5242 = vand.u32 %v4388, 4294901760
  %v5243 = vsub.f32 %v4388, %v5242
  %v5244 = vand.u32 %v5243, 4294901760
  %v5245 = vsub.f32 %v5243, %v5244
  %v5246 = vand.u32 %v5245, 4294901760
  %5247 = vmatpush1.msra.mxu0 %v5246
  %5248 = vmatprep.subr.mxu0 0.0
  %v5249 = vand.u32 %v4387, 4294901760
  %v5250 = vsub.f32 %v4387, %v5249
  %v5251 = vand.u32 %v5250, 4294901760
  %v5252 = vsub.f32 %v5250, %v5251
  %v5253 = vand.u32 %v5252, 4294901760
  %5254 = vmatpush1.msra.mxu0 %v5253
  %5255 = vmatprep.subr.mxu0 0.0
  %v5256 = vand.u32 %v4386, 4294901760
  %v5257 = vsub.f32 %v4386, %v5256
  %v5258 = vand.u32 %v5257, 4294901760
  %v5259 = vsub.f32 %v5257, %v5258
  %v5260 = vand.u32 %v5259, 4294901760
  %5261 = vmatpush1.msra.mxu0 %v5260
  %5262 = vmatprep.subr.mxu0 0.0
  %v5263 = vand.u32 %v4385, 4294901760
  %v5264 = vsub.f32 %v4385, %v5263
  %v5265 = vand.u32 %v5264, 4294901760
  %v5266 = vsub.f32 %v5264, %v5265
  %v5267 = vand.u32 %v5266, 4294901760
  %5268 = vmatpush1.msra.mxu0 %v5267
  %5269 = vmatprep.subr.mxu0 0.0
  %v5270 = vand.u32 %v4384, 4294901760
  %v5271 = vsub.f32 %v4384, %v5270
  %v5272 = vand.u32 %v5271, 4294901760
  %v5273 = vsub.f32 %v5271, %v5272
  %v5274 = vand.u32 %v5273, 4294901760
  %5275 = vmatpush1.msra.mxu0 %v5274
  %5276 = vmatprep.subr.mxu0 0.0
  %v5277 = vand.u32 %v4383, 4294901760
  %v5278 = vsub.f32 %v4383, %v5277
  %v5279 = vand.u32 %v5278, 4294901760
  %v5280 = vsub.f32 %v5278, %v5279
  %v5281 = vand.u32 %v5280, 4294901760
  %5282 = vmatpush1.msra.mxu0 %v5281
  %5283 = vmatprep.subr.mxu0 0.0
  %v5284 = vand.u32 %v4382, 4294901760
  %v5285 = vsub.f32 %v4382, %v5284
  %v5286 = vand.u32 %v5285, 4294901760
  %v5287 = vsub.f32 %v5285, %v5286
  %v5288 = vand.u32 %v5287, 4294901760
  %5289 = vmatpush1.msra.mxu0 %v5288
  %5290 = vmatprep.subr.mxu0 0.0
  %v5291 = vand.u32 %v4381, 4294901760
  %v5292 = vsub.f32 %v4381, %v5291
  %v5293 = vand.u32 %v5292, 4294901760
  %v5294 = vsub.f32 %v5292, %v5293
  %v5295 = vand.u32 %v5294, 4294901760
  %5296 = vmatpush1.msra.mxu0 %v5295
  %5297 = vmatprep.subr.mxu0 0.0
  %v5298 = vand.u32 %v4380, 4294901760
  %v5299 = vsub.f32 %v4380, %v5298
  %v5300 = vand.u32 %v5299, 4294901760
  %v5301 = vsub.f32 %v5299, %v5300
  %v5302 = vand.u32 %v5301, 4294901760
  %5303 = vmatpush1.msra.mxu0 %v5302
  %5304 = vmatprep.subr.mxu0 0.0
  %v5305 = vand.u32 %v4379, 4294901760
  %v5306 = vsub.f32 %v4379, %v5305
  %v5307 = vand.u32 %v5306, 4294901760
  %v5308 = vsub.f32 %v5306, %v5307
  %v5309 = vand.u32 %v5308, 4294901760
  %5310 = vmatpush1.msra.mxu0 %v5309
  %5311 = vmatprep.subr.mxu0 0.0
  %5312 = vmatpush2.msra.mxu0 0.0
  %5313 = vmatprep.subr.mxu0 0.0
  %5314 = vmatpush2.msra.mxu0 0.0
  %5315 = vmatprep.subr.mxu0 0.0
  %5316 = vmatpush2.msra.mxu0 0.0
  %5317 = vmatprep.subr.mxu0 0.0
  %5318 = vmatpush2.msra.mxu0 0.0
  %5319 = vmatprep.subr.mxu0 0.0
  %5320 = vmatpush2.msra.mxu0 0.0
  %5321 = vmatprep.subr.mxu0 0.0
  %5322 = vmatpush2.msra.mxu0 0.0
  %5323 = vmatprep.subr.mxu0 0.0
  %5324 = vmatpush2.msra.mxu0 0.0
  %5325 = vmatprep.subr.mxu0 0.0
  %5326 = vmatpush2.msra.mxu0 0.0
  %5327 = vmatprep.subr.mxu0 0.0
  %5328 = vmatpush2.msra.mxu0 0.0
  %5329 = vmatprep.subr.mxu0 0.0
  %5330 = vmatpush2.msra.mxu0 0.0
  %5331 = vmatprep.subr.mxu0 0.0
  %5332 = vmatpush2.msra.mxu0 0.0
  %5333 = vmatprep.subr.mxu0 0.0
  %5334 = vmatpush2.msra.mxu0 0.0
  %5335 = vmatprep.subr.mxu0 0.0
  %5336 = vmatpush2.msra.mxu0 0.0
  %5337 = vmatprep.subr.mxu0 0.0
  %5338 = vmatpush2.msra.mxu0 0.0
  %5339 = vmatprep.subr.mxu0 0.0
  %5340 = vmatpush2.msra.mxu0 0.0
  %5341 = vmatprep.subr.mxu0 0.0
  %5342 = vmatpush2.msra.mxu0 0.0
  %5343 = vmatprep.mubr.f32.mxu0 0.0
  %v5344 = vand.u32 %v4377, 4294901760
  %5345 = vmatmul.mubr.f32.gmra.mxu0 %v5344
  %v5346 = vpop.f32.mrf.mxu0
  %v5347 = vadd.f32 %v5186, %v5346
  %v5348 = vpop.f32.mrf.mxu0
  %5349 = vmatprep.mubr.f32.mxu0 0.0
  %v5350 = vand.u32 %v4378, 4294901760
  %5351 = vmatmul.mubr.f32.gmra.mxu0 %v5350
  %v5352 = vpop.f32.mrf.mxu0
  %v5353 = vadd.f32 %v5196, %v5352
  %v5354 = vpop.f32.mrf.mxu0
  %5355 = vdwg.mxu0
  %5356 = vmatprep.subr.mxu0 0.0
  %v5357 = vand.u32 %v4394, 4294901760
  %v5358 = vsub.f32 %v4394, %v5357
  %5359 = vmatpush1.msra.mxu0 %v5358
  %5360 = vmatprep.subr.mxu0 0.0
  %v5361 = vand.u32 %v4393, 4294901760
  %v5362 = vsub.f32 %v4393, %v5361
  %5363 = vmatpush1.msra.mxu0 %v5362
  %5364 = vmatprep.subr.mxu0 0.0
  %v5365 = vand.u32 %v4392, 4294901760
  %v5366 = vsub.f32 %v4392, %v5365
  %5367 = vmatpush1.msra.mxu0 %v5366
  %5368 = vmatprep.subr.mxu0 0.0
  %v5369 = vand.u32 %v4391, 4294901760
  %v5370 = vsub.f32 %v4391, %v5369
  %5371 = vmatpush1.msra.mxu0 %v5370
  %5372 = vmatprep.subr.mxu0 0.0
  %v5373 = vand.u32 %v4390, 4294901760
  %v5374 = vsub.f32 %v4390, %v5373
  %5375 = vmatpush1.msra.mxu0 %v5374
  %5376 = vmatprep.subr.mxu0 0.0
  %v5377 = vand.u32 %v4389, 4294901760
  %v5378 = vsub.f32 %v4389, %v5377
  %5379 = vmatpush1.msra.mxu0 %v5378
  %5380 = vmatprep.subr.mxu0 0.0
  %v5381 = vand.u32 %v4388, 4294901760
  %v5382 = vsub.f32 %v4388, %v5381
  %5383 = vmatpush1.msra.mxu0 %v5382
  %5384 = vmatprep.subr.mxu0 0.0
  %v5385 = vand.u32 %v4387, 4294901760
  %v5386 = vsub.f32 %v4387, %v5385
  %5387 = vmatpush1.msra.mxu0 %v5386
  %5388 = vmatprep.subr.mxu0 0.0
  %v5389 = vand.u32 %v4386, 4294901760
  %v5390 = vsub.f32 %v4386, %v5389
  %5391 = vmatpush1.msra.mxu0 %v5390
  %5392 = vmatprep.subr.mxu0 0.0
  %v5393 = vand.u32 %v4385, 4294901760
  %v5394 = vsub.f32 %v4385, %v5393
  %5395 = vmatpush1.msra.mxu0 %v5394
  %5396 = vmatprep.subr.mxu0 0.0
  %v5397 = vand.u32 %v4384, 4294901760
  %v5398 = vsub.f32 %v4384, %v5397
  %5399 = vmatpush1.msra.mxu0 %v5398
  %5400 = vmatprep.subr.mxu0 0.0
  %v5401 = vand.u32 %v4383, 4294901760
  %v5402 = vsub.f32 %v4383, %v5401
  %5403 = vmatpush1.msra.mxu0 %v5402
  %5404 = vmatprep.subr.mxu0 0.0
  %v5405 = vand.u32 %v4382, 4294901760
  %v5406 = vsub.f32 %v4382, %v5405
  %5407 = vmatpush1.msra.mxu0 %v5406
  %5408 = vmatprep.subr.mxu0 0.0
  %v5409 = vand.u32 %v4381, 4294901760
  %v5410 = vsub.f32 %v4381, %v5409
  %5411 = vmatpush1.msra.mxu0 %v5410
  %5412 = vmatprep.subr.mxu0 0.0
  %v5413 = vand.u32 %v4380, 4294901760
  %v5414 = vsub.f32 %v4380, %v5413
  %5415 = vmatpush1.msra.mxu0 %v5414
  %5416 = vmatprep.subr.mxu0 0.0
  %v5417 = vand.u32 %v4379, 4294901760
  %v5418 = vsub.f32 %v4379, %v5417
  %5419 = vmatpush1.msra.mxu0 %v5418
  %5420 = vmatprep.subr.mxu0 0.0
  %5421 = vmatpush2.msra.mxu0 0.0
  %5422 = vmatprep.subr.mxu0 0.0
  %5423 = vmatpush2.msra.mxu0 0.0
  %5424 = vmatprep.subr.mxu0 0.0
  %5425 = vmatpush2.msra.mxu0 0.0
  %5426 = vmatprep.subr.mxu0 0.0
  %5427 = vmatpush2.msra.mxu0 0.0
  %5428 = vmatprep.subr.mxu0 0.0
  %5429 = vmatpush2.msra.mxu0 0.0
  %5430 = vmatprep.subr.mxu0 0.0
  %5431 = vmatpush2.msra.mxu0 0.0
  %5432 = vmatprep.subr.mxu0 0.0
  %5433 = vmatpush2.msra.mxu0 0.0
  %5434 = vmatprep.subr.mxu0 0.0
  %5435 = vmatpush2.msra.mxu0 0.0
  %5436 = vmatprep.subr.mxu0 0.0
  %5437 = vmatpush2.msra.mxu0 0.0
  %5438 = vmatprep.subr.mxu0 0.0
  %5439 = vmatpush2.msra.mxu0 0.0
  %5440 = vmatprep.subr.mxu0 0.0
  %5441 = vmatpush2.msra.mxu0 0.0
  %5442 = vmatprep.subr.mxu0 0.0
  %5443 = vmatpush2.msra.mxu0 0.0
  %5444 = vmatprep.subr.mxu0 0.0
  %5445 = vmatpush2.msra.mxu0 0.0
  %5446 = vmatprep.subr.mxu0 0.0
  %5447 = vmatpush2.msra.mxu0 0.0
  %5448 = vmatprep.subr.mxu0 0.0
  %5449 = vmatpush2.msra.mxu0 0.0
  %5450 = vmatprep.subr.mxu0 0.0
  %5451 = vmatpush2.msra.mxu0 0.0
  %5452 = vmatprep.mubr.f32.mxu0 0.0
  %v5453 = vand.u32 %v4377, 4294901760
  %v5454 = vsub.f32 %v4377, %v5453
  %5455 = vmatmul.mubr.f32.gmra.mxu0 %v5454
  %v5456 = vpop.f32.mrf.mxu0
  %v5457 = vadd.f32 %v5347, %v5456
  %v5458 = vpop.f32.mrf.mxu0
  %5459 = vmatprep.mubr.f32.mxu0 0.0
  %v5460 = vand.u32 %v4378, 4294901760
  %v5461 = vsub.f32 %v4378, %v5460
  %5462 = vmatmul.mubr.f32.gmra.mxu0 %v5461
  %v5463 = vpop.f32.mrf.mxu0
  %v5464 = vadd.f32 %v5353, %v5463
  %v5465 = vpop.f32.mrf.mxu0
  %5466 = vdwg.mxu0
  %5467 = vmatprep.subr.mxu0 0.0
  %v5468 = vand.u32 %v4394, 4294901760
  %5469 = vmatpush1.msra.mxu0 %v5468
  %5470 = vmatprep.subr.mxu0 0.0
  %v5471 = vand.u32 %v4393, 4294901760
  %5472 = vmatpush1.msra.mxu0 %v5471
  %5473 = vmatprep.subr.mxu0 0.0
  %v5474 = vand.u32 %v4392, 4294901760
  %5475 = vmatpush1.msra.mxu0 %v5474
  %5476 = vmatprep.subr.mxu0 0.0
  %v5477 = vand.u32 %v4391, 4294901760
  %5478 = vmatpush1.msra.mxu0 %v5477
  %5479 = vmatprep.subr.mxu0 0.0
  %v5480 = vand.u32 %v4390, 4294901760
  %5481 = vmatpush1.msra.mxu0 %v5480
  %5482 = vmatprep.subr.mxu0 0.0
  %v5483 = vand.u32 %v4389, 4294901760
  %5484 = vmatpush1.msra.mxu0 %v5483
  %5485 = vmatprep.subr.mxu0 0.0
  %v5486 = vand.u32 %v4388, 4294901760
  %5487 = vmatpush1.msra.mxu0 %v5486
  %5488 = vmatprep.subr.mxu0 0.0
  %v5489 = vand.u32 %v4387, 4294901760
  %5490 = vmatpush1.msra.mxu0 %v5489
  %5491 = vmatprep.subr.mxu0 0.0
  %v5492 = vand.u32 %v4386, 4294901760
  %5493 = vmatpush1.msra.mxu0 %v5492
  %5494 = vmatprep.subr.mxu0 0.0
  %v5495 = vand.u32 %v4385, 4294901760
  %5496 = vmatpush1.msra.mxu0 %v5495
  %5497 = vmatprep.subr.mxu0 0.0
  %v5498 = vand.u32 %v4384, 4294901760
  %5499 = vmatpush1.msra.mxu0 %v5498
  %5500 = vmatprep.subr.mxu0 0.0
  %v5501 = vand.u32 %v4383, 4294901760
  %5502 = vmatpush1.msra.mxu0 %v5501
  %5503 = vmatprep.subr.mxu0 0.0
  %v5504 = vand.u32 %v4382, 4294901760
  %5505 = vmatpush1.msra.mxu0 %v5504
  %5506 = vmatprep.subr.mxu0 0.0
  %v5507 = vand.u32 %v4381, 4294901760
  %5508 = vmatpush1.msra.mxu0 %v5507
  %5509 = vmatprep.subr.mxu0 0.0
  %v5510 = vand.u32 %v4380, 4294901760
  %5511 = vmatpush1.msra.mxu0 %v5510
  %5512 = vmatprep.subr.mxu0 0.0
  %v5513 = vand.u32 %v4379, 4294901760
  %5514 = vmatpush1.msra.mxu0 %v5513
  %5515 = vmatprep.subr.mxu0 0.0
  %5516 = vmatpush2.msra.mxu0 0.0
  %5517 = vmatprep.subr.mxu0 0.0
  %5518 = vmatpush2.msra.mxu0 0.0
  %5519 = vmatprep.subr.mxu0 0.0
  %5520 = vmatpush2.msra.mxu0 0.0
  %5521 = vmatprep.subr.mxu0 0.0
  %5522 = vmatpush2.msra.mxu0 0.0
  %5523 = vmatprep.subr.mxu0 0.0
  %5524 = vmatpush2.msra.mxu0 0.0
  %5525 = vmatprep.subr.mxu0 0.0
  %5526 = vmatpush2.msra.mxu0 0.0
  %5527 = vmatprep.subr.mxu0 0.0
  %5528 = vmatpush2.msra.mxu0 0.0
  %5529 = vmatprep.subr.mxu0 0.0
  %5530 = vmatpush2.msra.mxu0 0.0
  %5531 = vmatprep.subr.mxu0 0.0
  %5532 = vmatpush2.msra.mxu0 0.0
  %5533 = vmatprep.subr.mxu0 0.0
  %5534 = vmatpush2.msra.mxu0 0.0
  %5535 = vmatprep.subr.mxu0 0.0
  %5536 = vmatpush2.msra.mxu0 0.0
  %5537 = vmatprep.subr.mxu0 0.0
  %5538 = vmatpush2.msra.mxu0 0.0
  %5539 = vmatprep.subr.mxu0 0.0
  %5540 = vmatpush2.msra.mxu0 0.0
  %5541 = vmatprep.subr.mxu0 0.0
  %5542 = vmatpush2.msra.mxu0 0.0
  %5543 = vmatprep.subr.mxu0 0.0
  %5544 = vmatpush2.msra.mxu0 0.0
  %5545 = vmatprep.subr.mxu0 0.0
  %5546 = vmatpush2.msra.mxu0 0.0
  %5547 = vmatprep.mubr.f32.mxu0 0.0
  %v5548 = vand.u32 %v4377, 4294901760
  %v5549 = vsub.f32 %v4377, %v5548
  %v5550 = vand.u32 %v5549, 4294901760
  %5551 = vmatmul.mubr.f32.gmra.mxu0 %v5550
  %v5552 = vpop.f32.mrf.mxu0
  %v5553 = vadd.f32 %v5457, %v5552
  %v5554 = vpop.f32.mrf.mxu0
  %5555 = vmatprep.mubr.f32.mxu0 0.0
  %v5556 = vand.u32 %v4378, 4294901760
  %v5557 = vsub.f32 %v4378, %v5556
  %v5558 = vand.u32 %v5557, 4294901760
  %5559 = vmatmul.mubr.f32.gmra.mxu0 %v5558
  %v5560 = vpop.f32.mrf.mxu0
  %v5561 = vadd.f32 %v5464, %v5560
  %v5562 = vpop.f32.mrf.mxu0
  %5563 = vdwg.mxu0
  %5564 = vmatprep.subr.mxu0 0.0
  %v5565 = vand.u32 %v4394, 4294901760
  %v5566 = vsub.f32 %v4394, %v5565
  %v5567 = vand.u32 %v5566, 4294901760
  %5568 = vmatpush1.msra.mxu0 %v5567
  %5569 = vmatprep.subr.mxu0 0.0
  %v5570 = vand.u32 %v4393, 4294901760
  %v5571 = vsub.f32 %v4393, %v5570
  %v5572 = vand.u32 %v5571, 4294901760
  %5573 = vmatpush1.msra.mxu0 %v5572
  %5574 = vmatprep.subr.mxu0 0.0
  %v5575 = vand.u32 %v4392, 4294901760
  %v5576 = vsub.f32 %v4392, %v5575
  %v5577 = vand.u32 %v5576, 4294901760
  %5578 = vmatpush1.msra.mxu0 %v5577
  %5579 = vmatprep.subr.mxu0 0.0
  %v5580 = vand.u32 %v4391, 4294901760
  %v5581 = vsub.f32 %v4391, %v5580
  %v5582 = vand.u32 %v5581, 4294901760
  %5583 = vmatpush1.msra.mxu0 %v5582
  %5584 = vmatprep.subr.mxu0 0.0
  %v5585 = vand.u32 %v4390, 4294901760
  %v5586 = vsub.f32 %v4390, %v5585
  %v5587 = vand.u32 %v5586, 4294901760
  %5588 = vmatpush1.msra.mxu0 %v5587
  %5589 = vmatprep.subr.mxu0 0.0
  %v5590 = vand.u32 %v4389, 4294901760
  %v5591 = vsub.f32 %v4389, %v5590
  %v5592 = vand.u32 %v5591, 4294901760
  %5593 = vmatpush1.msra.mxu0 %v5592
  %5594 = vmatprep.subr.mxu0 0.0
  %v5595 = vand.u32 %v4388, 4294901760
  %v5596 = vsub.f32 %v4388, %v5595
  %v5597 = vand.u32 %v5596, 4294901760
  %5598 = vmatpush1.msra.mxu0 %v5597
  %5599 = vmatprep.subr.mxu0 0.0
  %v5600 = vand.u32 %v4387, 4294901760
  %v5601 = vsub.f32 %v4387, %v5600
  %v5602 = vand.u32 %v5601, 4294901760
  %5603 = vmatpush1.msra.mxu0 %v5602
  %5604 = vmatprep.subr.mxu0 0.0
  %v5605 = vand.u32 %v4386, 4294901760
  %v5606 = vsub.f32 %v4386, %v5605
  %v5607 = vand.u32 %v5606, 4294901760
  %5608 = vmatpush1.msra.mxu0 %v5607
  %5609 = vmatprep.subr.mxu0 0.0
  %v5610 = vand.u32 %v4385, 4294901760
  %v5611 = vsub.f32 %v4385, %v5610
  %v5612 = vand.u32 %v5611, 4294901760
  %5613 = vmatpush1.msra.mxu0 %v5612
  %5614 = vmatprep.subr.mxu0 0.0
  %v5615 = vand.u32 %v4384, 4294901760
  %v5616 = vsub.f32 %v4384, %v5615
  %v5617 = vand.u32 %v5616, 4294901760
  %5618 = vmatpush1.msra.mxu0 %v5617
  %5619 = vmatprep.subr.mxu0 0.0
  %v5620 = vand.u32 %v4383, 4294901760
  %v5621 = vsub.f32 %v4383, %v5620
  %v5622 = vand.u32 %v5621, 4294901760
  %5623 = vmatpush1.msra.mxu0 %v5622
  %5624 = vmatprep.subr.mxu0 0.0
  %v5625 = vand.u32 %v4382, 4294901760
  %v5626 = vsub.f32 %v4382, %v5625
  %v5627 = vand.u32 %v5626, 4294901760
  %5628 = vmatpush1.msra.mxu0 %v5627
  %5629 = vmatprep.subr.mxu0 0.0
  %v5630 = vand.u32 %v4381, 4294901760
  %v5631 = vsub.f32 %v4381, %v5630
  %v5632 = vand.u32 %v5631, 4294901760
  %5633 = vmatpush1.msra.mxu0 %v5632
  %5634 = vmatprep.subr.mxu0 0.0
  %v5635 = vand.u32 %v4380, 4294901760
  %v5636 = vsub.f32 %v4380, %v5635
  %v5637 = vand.u32 %v5636, 4294901760
  %5638 = vmatpush1.msra.mxu0 %v5637
  %5639 = vmatprep.subr.mxu0 0.0
  %v5640 = vand.u32 %v4379, 4294901760
  %v5641 = vsub.f32 %v4379, %v5640
  %v5642 = vand.u32 %v5641, 4294901760
  %5643 = vmatpush1.msra.mxu0 %v5642
  %5644 = vmatprep.subr.mxu0 0.0
  %5645 = vmatpush2.msra.mxu0 0.0
  %5646 = vmatprep.subr.mxu0 0.0
  %5647 = vmatpush2.msra.mxu0 0.0
  %5648 = vmatprep.subr.mxu0 0.0
  %5649 = vmatpush2.msra.mxu0 0.0
  %5650 = vmatprep.subr.mxu0 0.0
  %5651 = vmatpush2.msra.mxu0 0.0
  %5652 = vmatprep.subr.mxu0 0.0
  %5653 = vmatpush2.msra.mxu0 0.0
  %5654 = vmatprep.subr.mxu0 0.0
  %5655 = vmatpush2.msra.mxu0 0.0
  %5656 = vmatprep.subr.mxu0 0.0
  %5657 = vmatpush2.msra.mxu0 0.0
  %5658 = vmatprep.subr.mxu0 0.0
  %5659 = vmatpush2.msra.mxu0 0.0
  %5660 = vmatprep.subr.mxu0 0.0
  %5661 = vmatpush2.msra.mxu0 0.0
  %5662 = vmatprep.subr.mxu0 0.0
  %5663 = vmatpush2.msra.mxu0 0.0
  %5664 = vmatprep.subr.mxu0 0.0
  %5665 = vmatpush2.msra.mxu0 0.0
  %5666 = vmatprep.subr.mxu0 0.0
  %5667 = vmatpush2.msra.mxu0 0.0
  %5668 = vmatprep.subr.mxu0 0.0
  %5669 = vmatpush2.msra.mxu0 0.0
  %5670 = vmatprep.subr.mxu0 0.0
  %5671 = vmatpush2.msra.mxu0 0.0
  %5672 = vmatprep.subr.mxu0 0.0
  %5673 = vmatpush2.msra.mxu0 0.0
  %5674 = vmatprep.subr.mxu0 0.0
  %5675 = vmatpush2.msra.mxu0 0.0
  %5676 = vmatprep.mubr.f32.mxu0 0.0
  %v5677 = vand.u32 %v4377, 4294901760
  %5678 = vmatmul.mubr.f32.gmra.mxu0 %v5677
  %v5679 = vpop.f32.mrf.mxu0
  %v5680 = vadd.f32 %v5553, %v5679
  %v5681 = vpop.f32.mrf.mxu0
  %5682 = vmatprep.mubr.f32.mxu0 0.0
  %v5683 = vand.u32 %v4378, 4294901760
  %5684 = vmatmul.mubr.f32.gmra.mxu0 %v5683
  %v5685 = vpop.f32.mrf.mxu0
  %v5686 = vadd.f32 %v5561, %v5685
  %v5687 = vpop.f32.mrf.mxu0
  %5688 = vdwg.mxu0
  %5689 = vmatprep.subr.mxu0 0.0
  %v5690 = vand.u32 %v4394, 4294901760
  %5691 = vmatpush1.msra.mxu0 %v5690
  %5692 = vmatprep.subr.mxu0 0.0
  %v5693 = vand.u32 %v4393, 4294901760
  %5694 = vmatpush1.msra.mxu0 %v5693
  %5695 = vmatprep.subr.mxu0 0.0
  %v5696 = vand.u32 %v4392, 4294901760
  %5697 = vmatpush1.msra.mxu0 %v5696
  %5698 = vmatprep.subr.mxu0 0.0
  %v5699 = vand.u32 %v4391, 4294901760
  %5700 = vmatpush1.msra.mxu0 %v5699
  %5701 = vmatprep.subr.mxu0 0.0
  %v5702 = vand.u32 %v4390, 4294901760
  %5703 = vmatpush1.msra.mxu0 %v5702
  %5704 = vmatprep.subr.mxu0 0.0
  %v5705 = vand.u32 %v4389, 4294901760
  %5706 = vmatpush1.msra.mxu0 %v5705
  %5707 = vmatprep.subr.mxu0 0.0
  %v5708 = vand.u32 %v4388, 4294901760
  %5709 = vmatpush1.msra.mxu0 %v5708
  %5710 = vmatprep.subr.mxu0 0.0
  %v5711 = vand.u32 %v4387, 4294901760
  %5712 = vmatpush1.msra.mxu0 %v5711
  %5713 = vmatprep.subr.mxu0 0.0
  %v5714 = vand.u32 %v4386, 4294901760
  %5715 = vmatpush1.msra.mxu0 %v5714
  %5716 = vmatprep.subr.mxu0 0.0
  %v5717 = vand.u32 %v4385, 4294901760
  %5718 = vmatpush1.msra.mxu0 %v5717
  %5719 = vmatprep.subr.mxu0 0.0
  %v5720 = vand.u32 %v4384, 4294901760
  %5721 = vmatpush1.msra.mxu0 %v5720
  %5722 = vmatprep.subr.mxu0 0.0
  %v5723 = vand.u32 %v4383, 4294901760
  %5724 = vmatpush1.msra.mxu0 %v5723
  %5725 = vmatprep.subr.mxu0 0.0
  %v5726 = vand.u32 %v4382, 4294901760
  %5727 = vmatpush1.msra.mxu0 %v5726
  %5728 = vmatprep.subr.mxu0 0.0
  %v5729 = vand.u32 %v4381, 4294901760
  %5730 = vmatpush1.msra.mxu0 %v5729
  %5731 = vmatprep.subr.mxu0 0.0
  %v5732 = vand.u32 %v4380, 4294901760
  %5733 = vmatpush1.msra.mxu0 %v5732
  %5734 = vmatprep.subr.mxu0 0.0
  %v5735 = vand.u32 %v4379, 4294901760
  %5736 = vmatpush1.msra.mxu0 %v5735
  %5737 = vmatprep.subr.mxu0 0.0
  %5738 = vmatpush2.msra.mxu0 0.0
  %5739 = vmatprep.subr.mxu0 0.0
  %5740 = vmatpush2.msra.mxu0 0.0
  %5741 = vmatprep.subr.mxu0 0.0
  %5742 = vmatpush2.msra.mxu0 0.0
  %5743 = vmatprep.subr.mxu0 0.0
  %5744 = vmatpush2.msra.mxu0 0.0
  %5745 = vmatprep.subr.mxu0 0.0
  %5746 = vmatpush2.msra.mxu0 0.0
  %5747 = vmatprep.subr.mxu0 0.0
  %5748 = vmatpush2.msra.mxu0 0.0
  %5749 = vmatprep.subr.mxu0 0.0
  %5750 = vmatpush2.msra.mxu0 0.0
  %5751 = vmatprep.subr.mxu0 0.0
  %5752 = vmatpush2.msra.mxu0 0.0
  %5753 = vmatprep.subr.mxu0 0.0
  %5754 = vmatpush2.msra.mxu0 0.0
  %5755 = vmatprep.subr.mxu0 0.0
  %5756 = vmatpush2.msra.mxu0 0.0
  %5757 = vmatprep.subr.mxu0 0.0
  %5758 = vmatpush2.msra.mxu0 0.0
  %5759 = vmatprep.subr.mxu0 0.0
  %5760 = vmatpush2.msra.mxu0 0.0
  %5761 = vmatprep.subr.mxu0 0.0
  %5762 = vmatpush2.msra.mxu0 0.0
  %5763 = vmatprep.subr.mxu0 0.0
  %5764 = vmatpush2.msra.mxu0 0.0
  %5765 = vmatprep.subr.mxu0 0.0
  %5766 = vmatpush2.msra.mxu0 0.0
  %5767 = vmatprep.subr.mxu0 0.0
  %5768 = vmatpush2.msra.mxu0 0.0
  %5769 = vmatprep.mubr.f32.mxu0 0.0
  %v5770 = vand.u32 %v4377, 4294901760
  %5771 = vmatmul.mubr.f32.gmra.mxu0 %v5770
  %v5772 = vpop.f32.mrf.mxu0
  %v5773 = vadd.f32 %v5680, %v5772
  %v5774 = vpop.f32.mrf.mxu0
  %5775 = vmatprep.mubr.f32.mxu0 0.0
  %v5776 = vand.u32 %v4378, 4294901760
  %5777 = vmatmul.mubr.f32.gmra.mxu0 %v5776
  %v5778 = vpop.f32.mrf.mxu0
  %v5779 = vadd.f32 %v5686, %v5778
  %v5780 = vpop.f32.mrf.mxu0
  %5781 = vdwg.mxu0
  %v5782 = vld [vmem:[#allocation2 + $0x2] sm:$0xff]
  %v5783 = vld [vmem:[#allocation2 + $0x12] sm:$0xff]
  %s5784 = scalar_lea.vmem %s2, 256
  %v5785 = vld [vmem:[%s5784] sm:$0xff]
  %v5786 = vld [vmem:[%s5784 + $0x8] sm:$0xff]
  %v5787 = vld [vmem:[%s5784 + $0x10] sm:$0xff]
  %v5788 = vld [vmem:[%s5784 + $0x18] sm:$0xff]
  %v5789 = vld [vmem:[%s5784 + $0x20] sm:$0xff]
  %v5790 = vld [vmem:[%s5784 + $0x28] sm:$0xff]
  %v5791 = vld [vmem:[%s5784 + $0x30] sm:$0xff]
  %v5792 = vld [vmem:[%s5784 + $0x38] sm:$0xff]
  %v5793 = vld [vmem:[%s5784 + $0x40] sm:$0xff]
  %v5794 = vld [vmem:[%s5784 + $0x48] sm:$0xff]
  %v5795 = vld [vmem:[%s5784 + $0x50] sm:$0xff]
  %v5796 = vld [vmem:[%s5784 + $0x58] sm:$0xff]
  %v5797 = vld [vmem:[%s5784 + $0x60] sm:$0xff]
  %v5798 = vld [vmem:[%s5784 + $0x68] sm:$0xff]
  %v5799 = vld [vmem:[%s5784 + $0x70] sm:$0xff]
  %v5800 = vld [vmem:[%s5784 + $0x78] sm:$0xff]
  %5801 = vmatprep.subr.mxu0 0.0
  %v5802 = vand.u32 %v5800, 4294901760
  %5803 = vmatpush1.msra.mxu0 %v5802
  %5804 = vmatprep.subr.mxu0 0.0
  %v5805 = vand.u32 %v5799, 4294901760
  %5806 = vmatpush1.msra.mxu0 %v5805
  %5807 = vmatprep.subr.mxu0 0.0
  %v5808 = vand.u32 %v5798, 4294901760
  %5809 = vmatpush1.msra.mxu0 %v5808
  %5810 = vmatprep.subr.mxu0 0.0
  %v5811 = vand.u32 %v5797, 4294901760
  %5812 = vmatpush1.msra.mxu0 %v5811
  %5813 = vmatprep.subr.mxu0 0.0
  %v5814 = vand.u32 %v5796, 4294901760
  %5815 = vmatpush1.msra.mxu0 %v5814
  %5816 = vmatprep.subr.mxu0 0.0
  %v5817 = vand.u32 %v5795, 4294901760
  %5818 = vmatpush1.msra.mxu0 %v5817
  %5819 = vmatprep.subr.mxu0 0.0
  %v5820 = vand.u32 %v5794, 4294901760
  %5821 = vmatpush1.msra.mxu0 %v5820
  %5822 = vmatprep.subr.mxu0 0.0
  %v5823 = vand.u32 %v5793, 4294901760
  %5824 = vmatpush1.msra.mxu0 %v5823
  %5825 = vmatprep.subr.mxu0 0.0
  %v5826 = vand.u32 %v5792, 4294901760
  %5827 = vmatpush1.msra.mxu0 %v5826
  %5828 = vmatprep.subr.mxu0 0.0
  %v5829 = vand.u32 %v5791, 4294901760
  %5830 = vmatpush1.msra.mxu0 %v5829
  %5831 = vmatprep.subr.mxu0 0.0
  %v5832 = vand.u32 %v5790, 4294901760
  %5833 = vmatpush1.msra.mxu0 %v5832
  %5834 = vmatprep.subr.mxu0 0.0
  %v5835 = vand.u32 %v5789, 4294901760
  %5836 = vmatpush1.msra.mxu0 %v5835
  %5837 = vmatprep.subr.mxu0 0.0
  %v5838 = vand.u32 %v5788, 4294901760
  %5839 = vmatpush1.msra.mxu0 %v5838
  %5840 = vmatprep.subr.mxu0 0.0
  %v5841 = vand.u32 %v5787, 4294901760
  %5842 = vmatpush1.msra.mxu0 %v5841
  %5843 = vmatprep.subr.mxu0 0.0
  %v5844 = vand.u32 %v5786, 4294901760
  %5845 = vmatpush1.msra.mxu0 %v5844
  %5846 = vmatprep.subr.mxu0 0.0
  %v5847 = vand.u32 %v5785, 4294901760
  %5848 = vmatpush1.msra.mxu0 %v5847
  %5849 = vmatprep.subr.mxu0 0.0
  %5850 = vmatpush2.msra.mxu0 0.0
  %5851 = vmatprep.subr.mxu0 0.0
  %5852 = vmatpush2.msra.mxu0 0.0
  %5853 = vmatprep.subr.mxu0 0.0
  %5854 = vmatpush2.msra.mxu0 0.0
  %5855 = vmatprep.subr.mxu0 0.0
  %5856 = vmatpush2.msra.mxu0 0.0
  %5857 = vmatprep.subr.mxu0 0.0
  %5858 = vmatpush2.msra.mxu0 0.0
  %5859 = vmatprep.subr.mxu0 0.0
  %5860 = vmatpush2.msra.mxu0 0.0
  %5861 = vmatprep.subr.mxu0 0.0
  %5862 = vmatpush2.msra.mxu0 0.0
  %5863 = vmatprep.subr.mxu0 0.0
  %5864 = vmatpush2.msra.mxu0 0.0
  %5865 = vmatprep.subr.mxu0 0.0
  %5866 = vmatpush2.msra.mxu0 0.0
  %5867 = vmatprep.subr.mxu0 0.0
  %5868 = vmatpush2.msra.mxu0 0.0
  %5869 = vmatprep.subr.mxu0 0.0
  %5870 = vmatpush2.msra.mxu0 0.0
  %5871 = vmatprep.subr.mxu0 0.0
  %5872 = vmatpush2.msra.mxu0 0.0
  %5873 = vmatprep.subr.mxu0 0.0
  %5874 = vmatpush2.msra.mxu0 0.0
  %5875 = vmatprep.subr.mxu0 0.0
  %5876 = vmatpush2.msra.mxu0 0.0
  %5877 = vmatprep.subr.mxu0 0.0
  %5878 = vmatpush2.msra.mxu0 0.0
  %5879 = vmatprep.subr.mxu0 0.0
  %5880 = vmatpush2.msra.mxu0 0.0
  %5881 = vmatprep.mubr.f32.mxu0 0.0
  %v5882 = vand.u32 %v5782, 4294901760
  %v5883 = vsub.f32 %v5782, %v5882
  %v5884 = vand.u32 %v5883, 4294901760
  %v5885 = vsub.f32 %v5883, %v5884
  %v5886 = vand.u32 %v5885, 4294901760
  %5887 = vmatmul.mubr.f32.gmra.mxu0 %v5886
  %v5888 = vpop.f32.mrf.mxu0
  %v5889 = vadd.f32 0.0, %v5888
  %v5890 = vpop.f32.mrf.mxu0
  %5891 = vmatprep.mubr.f32.mxu0 0.0
  %v5892 = vand.u32 %v5783, 4294901760
  %v5893 = vsub.f32 %v5783, %v5892
  %v5894 = vand.u32 %v5893, 4294901760
  %v5895 = vsub.f32 %v5893, %v5894
  %v5896 = vand.u32 %v5895, 4294901760
  %5897 = vmatmul.mubr.f32.gmra.mxu0 %v5896
  %v5898 = vpop.f32.mrf.mxu0
  %v5899 = vadd.f32 0.0, %v5898
  %v5900 = vpop.f32.mrf.mxu0
  %5901 = vdwg.mxu0
  %5902 = vmatprep.subr.mxu0 0.0
  %v5903 = vand.u32 %v5800, 4294901760
  %v5904 = vsub.f32 %v5800, %v5903
  %v5905 = vand.u32 %v5904, 4294901760
  %v5906 = vsub.f32 %v5904, %v5905
  %v5907 = vand.u32 %v5906, 4294901760
  %5908 = vmatpush1.msra.mxu0 %v5907
  %5909 = vmatprep.subr.mxu0 0.0
  %v5910 = vand.u32 %v5799, 4294901760
  %v5911 = vsub.f32 %v5799, %v5910
  %v5912 = vand.u32 %v5911, 4294901760
  %v5913 = vsub.f32 %v5911, %v5912
  %v5914 = vand.u32 %v5913, 4294901760
  %5915 = vmatpush1.msra.mxu0 %v5914
  %5916 = vmatprep.subr.mxu0 0.0
  %v5917 = vand.u32 %v5798, 4294901760
  %v5918 = vsub.f32 %v5798, %v5917
  %v5919 = vand.u32 %v5918, 4294901760
  %v5920 = vsub.f32 %v5918, %v5919
  %v5921 = vand.u32 %v5920, 4294901760
  %5922 = vmatpush1.msra.mxu0 %v5921
  %5923 = vmatprep.subr.mxu0 0.0
  %v5924 = vand.u32 %v5797, 4294901760
  %v5925 = vsub.f32 %v5797, %v5924
  %v5926 = vand.u32 %v5925, 4294901760
  %v5927 = vsub.f32 %v5925, %v5926
  %v5928 = vand.u32 %v5927, 4294901760
  %5929 = vmatpush1.msra.mxu0 %v5928
  %5930 = vmatprep.subr.mxu0 0.0
  %v5931 = vand.u32 %v5796, 4294901760
  %v5932 = vsub.f32 %v5796, %v5931
  %v5933 = vand.u32 %v5932, 4294901760
  %v5934 = vsub.f32 %v5932, %v5933
  %v5935 = vand.u32 %v5934, 4294901760
  %5936 = vmatpush1.msra.mxu0 %v5935
  %5937 = vmatprep.subr.mxu0 0.0
  %v5938 = vand.u32 %v5795, 4294901760
  %v5939 = vsub.f32 %v5795, %v5938
  %v5940 = vand.u32 %v5939, 4294901760
  %v5941 = vsub.f32 %v5939, %v5940
  %v5942 = vand.u32 %v5941, 4294901760
  %5943 = vmatpush1.msra.mxu0 %v5942
  %5944 = vmatprep.subr.mxu0 0.0
  %v5945 = vand.u32 %v5794, 4294901760
  %v5946 = vsub.f32 %v5794, %v5945
  %v5947 = vand.u32 %v5946, 4294901760
  %v5948 = vsub.f32 %v5946, %v5947
  %v5949 = vand.u32 %v5948, 4294901760
  %5950 = vmatpush1.msra.mxu0 %v5949
  %5951 = vmatprep.subr.mxu0 0.0
  %v5952 = vand.u32 %v5793, 4294901760
  %v5953 = vsub.f32 %v5793, %v5952
  %v5954 = vand.u32 %v5953, 4294901760
  %v5955 = vsub.f32 %v5953, %v5954
  %v5956 = vand.u32 %v5955, 4294901760
  %5957 = vmatpush1.msra.mxu0 %v5956
  %5958 = vmatprep.subr.mxu0 0.0
  %v5959 = vand.u32 %v5792, 4294901760
  %v5960 = vsub.f32 %v5792, %v5959
  %v5961 = vand.u32 %v5960, 4294901760
  %v5962 = vsub.f32 %v5960, %v5961
  %v5963 = vand.u32 %v5962, 4294901760
  %5964 = vmatpush1.msra.mxu0 %v5963
  %5965 = vmatprep.subr.mxu0 0.0
  %v5966 = vand.u32 %v5791, 4294901760
  %v5967 = vsub.f32 %v5791, %v5966
  %v5968 = vand.u32 %v5967, 4294901760
  %v5969 = vsub.f32 %v5967, %v5968
  %v5970 = vand.u32 %v5969, 4294901760
  %5971 = vmatpush1.msra.mxu0 %v5970
  %5972 = vmatprep.subr.mxu0 0.0
  %v5973 = vand.u32 %v5790, 4294901760
  %v5974 = vsub.f32 %v5790, %v5973
  %v5975 = vand.u32 %v5974, 4294901760
  %v5976 = vsub.f32 %v5974, %v5975
  %v5977 = vand.u32 %v5976, 4294901760
  %5978 = vmatpush1.msra.mxu0 %v5977
  %5979 = vmatprep.subr.mxu0 0.0
  %v5980 = vand.u32 %v5789, 4294901760
  %v5981 = vsub.f32 %v5789, %v5980
  %v5982 = vand.u32 %v5981, 4294901760
  %v5983 = vsub.f32 %v5981, %v5982
  %v5984 = vand.u32 %v5983, 4294901760
  %5985 = vmatpush1.msra.mxu0 %v5984
  %5986 = vmatprep.subr.mxu0 0.0
  %v5987 = vand.u32 %v5788, 4294901760
  %v5988 = vsub.f32 %v5788, %v5987
  %v5989 = vand.u32 %v5988, 4294901760
  %v5990 = vsub.f32 %v5988, %v5989
  %v5991 = vand.u32 %v5990, 4294901760
  %5992 = vmatpush1.msra.mxu0 %v5991
  %5993 = vmatprep.subr.mxu0 0.0
  %v5994 = vand.u32 %v5787, 4294901760
  %v5995 = vsub.f32 %v5787, %v5994
  %v5996 = vand.u32 %v5995, 4294901760
  %v5997 = vsub.f32 %v5995, %v5996
  %v5998 = vand.u32 %v5997, 4294901760
  %5999 = vmatpush1.msra.mxu0 %v5998
  %6000 = vmatprep.subr.mxu0 0.0
  %v6001 = vand.u32 %v5786, 4294901760
  %v6002 = vsub.f32 %v5786, %v6001
  %v6003 = vand.u32 %v6002, 4294901760
  %v6004 = vsub.f32 %v6002, %v6003
  %v6005 = vand.u32 %v6004, 4294901760
  %6006 = vmatpush1.msra.mxu0 %v6005
  %6007 = vmatprep.subr.mxu0 0.0
  %v6008 = vand.u32 %v5785, 4294901760
  %v6009 = vsub.f32 %v5785, %v6008
  %v6010 = vand.u32 %v6009, 4294901760
  %v6011 = vsub.f32 %v6009, %v6010
  %v6012 = vand.u32 %v6011, 4294901760
  %6013 = vmatpush1.msra.mxu0 %v6012
  %6014 = vmatprep.subr.mxu0 0.0
  %6015 = vmatpush2.msra.mxu0 0.0
  %6016 = vmatprep.subr.mxu0 0.0
  %6017 = vmatpush2.msra.mxu0 0.0
  %6018 = vmatprep.subr.mxu0 0.0
  %6019 = vmatpush2.msra.mxu0 0.0
  %6020 = vmatprep.subr.mxu0 0.0
  %6021 = vmatpush2.msra.mxu0 0.0
  %6022 = vmatprep.subr.mxu0 0.0
  %6023 = vmatpush2.msra.mxu0 0.0
  %6024 = vmatprep.subr.mxu0 0.0
  %6025 = vmatpush2.msra.mxu0 0.0
  %6026 = vmatprep.subr.mxu0 0.0
  %6027 = vmatpush2.msra.mxu0 0.0
  %6028 = vmatprep.subr.mxu0 0.0
  %6029 = vmatpush2.msra.mxu0 0.0
  %6030 = vmatprep.subr.mxu0 0.0
  %6031 = vmatpush2.msra.mxu0 0.0
  %6032 = vmatprep.subr.mxu0 0.0
  %6033 = vmatpush2.msra.mxu0 0.0
  %6034 = vmatprep.subr.mxu0 0.0
  %6035 = vmatpush2.msra.mxu0 0.0
  %6036 = vmatprep.subr.mxu0 0.0
  %6037 = vmatpush2.msra.mxu0 0.0
  %6038 = vmatprep.subr.mxu0 0.0
  %6039 = vmatpush2.msra.mxu0 0.0
  %6040 = vmatprep.subr.mxu0 0.0
  %6041 = vmatpush2.msra.mxu0 0.0
  %6042 = vmatprep.subr.mxu0 0.0
  %6043 = vmatpush2.msra.mxu0 0.0
  %6044 = vmatprep.subr.mxu0 0.0
  %6045 = vmatpush2.msra.mxu0 0.0
  %6046 = vmatprep.mubr.f32.mxu0 0.0
  %v6047 = vand.u32 %v5782, 4294901760
  %6048 = vmatmul.mubr.f32.gmra.mxu0 %v6047
  %v6049 = vpop.f32.mrf.mxu0
  %v6050 = vadd.f32 %v5889, %v6049
  %v6051 = vpop.f32.mrf.mxu0
  %6052 = vmatprep.mubr.f32.mxu0 0.0
  %v6053 = vand.u32 %v5783, 4294901760
  %6054 = vmatmul.mubr.f32.gmra.mxu0 %v6053
  %v6055 = vpop.f32.mrf.mxu0
  %v6056 = vadd.f32 %v5899, %v6055
  %v6057 = vpop.f32.mrf.mxu0
  %6058 = vdwg.mxu0
  %6059 = vmatprep.subr.mxu0 0.0
  %v6060 = vand.u32 %v5800, 4294901760
  %v6061 = vsub.f32 %v5800, %v6060
  %6062 = vmatpush1.msra.mxu0 %v6061
  %6063 = vmatprep.subr.mxu0 0.0
  %v6064 = vand.u32 %v5799, 4294901760
  %v6065 = vsub.f32 %v5799, %v6064
  %6066 = vmatpush1.msra.mxu0 %v6065
  %6067 = vmatprep.subr.mxu0 0.0
  %v6068 = vand.u32 %v5798, 4294901760
  %v6069 = vsub.f32 %v5798, %v6068
  %6070 = vmatpush1.msra.mxu0 %v6069
  %6071 = vmatprep.subr.mxu0 0.0
  %v6072 = vand.u32 %v5797, 4294901760
  %v6073 = vsub.f32 %v5797, %v6072
  %6074 = vmatpush1.msra.mxu0 %v6073
  %6075 = vmatprep.subr.mxu0 0.0
  %v6076 = vand.u32 %v5796, 4294901760
  %v6077 = vsub.f32 %v5796, %v6076
  %6078 = vmatpush1.msra.mxu0 %v6077
  %6079 = vmatprep.subr.mxu0 0.0
  %v6080 = vand.u32 %v5795, 4294901760
  %v6081 = vsub.f32 %v5795, %v6080
  %6082 = vmatpush1.msra.mxu0 %v6081
  %6083 = vmatprep.subr.mxu0 0.0
  %v6084 = vand.u32 %v5794, 4294901760
  %v6085 = vsub.f32 %v5794, %v6084
  %6086 = vmatpush1.msra.mxu0 %v6085
  %6087 = vmatprep.subr.mxu0 0.0
  %v6088 = vand.u32 %v5793, 4294901760
  %v6089 = vsub.f32 %v5793, %v6088
  %6090 = vmatpush1.msra.mxu0 %v6089
  %6091 = vmatprep.subr.mxu0 0.0
  %v6092 = vand.u32 %v5792, 4294901760
  %v6093 = vsub.f32 %v5792, %v6092
  %6094 = vmatpush1.msra.mxu0 %v6093
  %6095 = vmatprep.subr.mxu0 0.0
  %v6096 = vand.u32 %v5791, 4294901760
  %v6097 = vsub.f32 %v5791, %v6096
  %6098 = vmatpush1.msra.mxu0 %v6097
  %6099 = vmatprep.subr.mxu0 0.0
  %v6100 = vand.u32 %v5790, 4294901760
  %v6101 = vsub.f32 %v5790, %v6100
  %6102 = vmatpush1.msra.mxu0 %v6101
  %6103 = vmatprep.subr.mxu0 0.0
  %v6104 = vand.u32 %v5789, 4294901760
  %v6105 = vsub.f32 %v5789, %v6104
  %6106 = vmatpush1.msra.mxu0 %v6105
  %6107 = vmatprep.subr.mxu0 0.0
  %v6108 = vand.u32 %v5788, 4294901760
  %v6109 = vsub.f32 %v5788, %v6108
  %6110 = vmatpush1.msra.mxu0 %v6109
  %6111 = vmatprep.subr.mxu0 0.0
  %v6112 = vand.u32 %v5787, 4294901760
  %v6113 = vsub.f32 %v5787, %v6112
  %6114 = vmatpush1.msra.mxu0 %v6113
  %6115 = vmatprep.subr.mxu0 0.0
  %v6116 = vand.u32 %v5786, 4294901760
  %v6117 = vsub.f32 %v5786, %v6116
  %6118 = vmatpush1.msra.mxu0 %v6117
  %6119 = vmatprep.subr.mxu0 0.0
  %v6120 = vand.u32 %v5785, 4294901760
  %v6121 = vsub.f32 %v5785, %v6120
  %6122 = vmatpush1.msra.mxu0 %v6121
  %6123 = vmatprep.subr.mxu0 0.0
  %6124 = vmatpush2.msra.mxu0 0.0
  %6125 = vmatprep.subr.mxu0 0.0
  %6126 = vmatpush2.msra.mxu0 0.0
  %6127 = vmatprep.subr.mxu0 0.0
  %6128 = vmatpush2.msra.mxu0 0.0
  %6129 = vmatprep.subr.mxu0 0.0
  %6130 = vmatpush2.msra.mxu0 0.0
  %6131 = vmatprep.subr.mxu0 0.0
  %6132 = vmatpush2.msra.mxu0 0.0
  %6133 = vmatprep.subr.mxu0 0.0
  %6134 = vmatpush2.msra.mxu0 0.0
  %6135 = vmatprep.subr.mxu0 0.0
  %6136 = vmatpush2.msra.mxu0 0.0
  %6137 = vmatprep.subr.mxu0 0.0
  %6138 = vmatpush2.msra.mxu0 0.0
  %6139 = vmatprep.subr.mxu0 0.0
  %6140 = vmatpush2.msra.mxu0 0.0
  %6141 = vmatprep.subr.mxu0 0.0
  %6142 = vmatpush2.msra.mxu0 0.0
  %6143 = vmatprep.subr.mxu0 0.0
  %6144 = vmatpush2.msra.mxu0 0.0
  %6145 = vmatprep.subr.mxu0 0.0
  %6146 = vmatpush2.msra.mxu0 0.0
  %6147 = vmatprep.subr.mxu0 0.0
  %6148 = vmatpush2.msra.mxu0 0.0
  %6149 = vmatprep.subr.mxu0 0.0
  %6150 = vmatpush2.msra.mxu0 0.0
  %6151 = vmatprep.subr.mxu0 0.0
  %6152 = vmatpush2.msra.mxu0 0.0
  %6153 = vmatprep.subr.mxu0 0.0
  %6154 = vmatpush2.msra.mxu0 0.0
  %6155 = vmatprep.mubr.f32.mxu0 0.0
  %v6156 = vand.u32 %v5782, 4294901760
  %v6157 = vsub.f32 %v5782, %v6156
  %6158 = vmatmul.mubr.f32.gmra.mxu0 %v6157
  %v6159 = vpop.f32.mrf.mxu0
  %v6160 = vadd.f32 %v6050, %v6159
  %v6161 = vpop.f32.mrf.mxu0
  %6162 = vmatprep.mubr.f32.mxu0 0.0
  %v6163 = vand.u32 %v5783, 4294901760
  %v6164 = vsub.f32 %v5783, %v6163
  %6165 = vmatmul.mubr.f32.gmra.mxu0 %v6164
  %v6166 = vpop.f32.mrf.mxu0
  %v6167 = vadd.f32 %v6056, %v6166
  %v6168 = vpop.f32.mrf.mxu0
  %6169 = vdwg.mxu0
  %6170 = vmatprep.subr.mxu0 0.0
  %v6171 = vand.u32 %v5800, 4294901760
  %6172 = vmatpush1.msra.mxu0 %v6171
  %6173 = vmatprep.subr.mxu0 0.0
  %v6174 = vand.u32 %v5799, 4294901760
  %6175 = vmatpush1.msra.mxu0 %v6174
  %6176 = vmatprep.subr.mxu0 0.0
  %v6177 = vand.u32 %v5798, 4294901760
  %6178 = vmatpush1.msra.mxu0 %v6177
  %6179 = vmatprep.subr.mxu0 0.0
  %v6180 = vand.u32 %v5797, 4294901760
  %6181 = vmatpush1.msra.mxu0 %v6180
  %6182 = vmatprep.subr.mxu0 0.0
  %v6183 = vand.u32 %v5796, 4294901760
  %6184 = vmatpush1.msra.mxu0 %v6183
  %6185 = vmatprep.subr.mxu0 0.0
  %v6186 = vand.u32 %v5795, 4294901760
  %6187 = vmatpush1.msra.mxu0 %v6186
  %6188 = vmatprep.subr.mxu0 0.0
  %v6189 = vand.u32 %v5794, 4294901760
  %6190 = vmatpush1.msra.mxu0 %v6189
  %6191 = vmatprep.subr.mxu0 0.0
  %v6192 = vand.u32 %v5793, 4294901760
  %6193 = vmatpush1.msra.mxu0 %v6192
  %6194 = vmatprep.subr.mxu0 0.0
  %v6195 = vand.u32 %v5792, 4294901760
  %6196 = vmatpush1.msra.mxu0 %v6195
  %6197 = vmatprep.subr.mxu0 0.0
  %v6198 = vand.u32 %v5791, 4294901760
  %6199 = vmatpush1.msra.mxu0 %v6198
  %6200 = vmatprep.subr.mxu0 0.0
  %v6201 = vand.u32 %v5790, 4294901760
  %6202 = vmatpush1.msra.mxu0 %v6201
  %6203 = vmatprep.subr.mxu0 0.0
  %v6204 = vand.u32 %v5789, 4294901760
  %6205 = vmatpush1.msra.mxu0 %v6204
  %6206 = vmatprep.subr.mxu0 0.0
  %v6207 = vand.u32 %v5788, 4294901760
  %6208 = vmatpush1.msra.mxu0 %v6207
  %6209 = vmatprep.subr.mxu0 0.0
  %v6210 = vand.u32 %v5787, 4294901760
  %6211 = vmatpush1.msra.mxu0 %v6210
  %6212 = vmatprep.subr.mxu0 0.0
  %v6213 = vand.u32 %v5786, 4294901760
  %6214 = vmatpush1.msra.mxu0 %v6213
  %6215 = vmatprep.subr.mxu0 0.0
  %v6216 = vand.u32 %v5785, 4294901760
  %6217 = vmatpush1.msra.mxu0 %v6216
  %6218 = vmatprep.subr.mxu0 0.0
  %6219 = vmatpush2.msra.mxu0 0.0
  %6220 = vmatprep.subr.mxu0 0.0
  %6221 = vmatpush2.msra.mxu0 0.0
  %6222 = vmatprep.subr.mxu0 0.0
  %6223 = vmatpush2.msra.mxu0 0.0
  %6224 = vmatprep.subr.mxu0 0.0
  %6225 = vmatpush2.msra.mxu0 0.0
  %6226 = vmatprep.subr.mxu0 0.0
  %6227 = vmatpush2.msra.mxu0 0.0
  %6228 = vmatprep.subr.mxu0 0.0
  %6229 = vmatpush2.msra.mxu0 0.0
  %6230 = vmatprep.subr.mxu0 0.0
  %6231 = vmatpush2.msra.mxu0 0.0
  %6232 = vmatprep.subr.mxu0 0.0
  %6233 = vmatpush2.msra.mxu0 0.0
  %6234 = vmatprep.subr.mxu0 0.0
  %6235 = vmatpush2.msra.mxu0 0.0
  %6236 = vmatprep.subr.mxu0 0.0
  %6237 = vmatpush2.msra.mxu0 0.0
  %6238 = vmatprep.subr.mxu0 0.0
  %6239 = vmatpush2.msra.mxu0 0.0
  %6240 = vmatprep.subr.mxu0 0.0
  %6241 = vmatpush2.msra.mxu0 0.0
  %6242 = vmatprep.subr.mxu0 0.0
  %6243 = vmatpush2.msra.mxu0 0.0
  %6244 = vmatprep.subr.mxu0 0.0
  %6245 = vmatpush2.msra.mxu0 0.0
  %6246 = vmatprep.subr.mxu0 0.0
  %6247 = vmatpush2.msra.mxu0 0.0
  %6248 = vmatprep.subr.mxu0 0.0
  %6249 = vmatpush2.msra.mxu0 0.0
  %6250 = vmatprep.mubr.f32.mxu0 0.0
  %v6251 = vand.u32 %v5782, 4294901760
  %v6252 = vsub.f32 %v5782, %v6251
  %v6253 = vand.u32 %v6252, 4294901760
  %6254 = vmatmul.mubr.f32.gmra.mxu0 %v6253
  %v6255 = vpop.f32.mrf.mxu0
  %v6256 = vadd.f32 %v6160, %v6255
  %v6257 = vpop.f32.mrf.mxu0
  %6258 = vmatprep.mubr.f32.mxu0 0.0
  %v6259 = vand.u32 %v5783, 4294901760
  %v6260 = vsub.f32 %v5783, %v6259
  %v6261 = vand.u32 %v6260, 4294901760
  %6262 = vmatmul.mubr.f32.gmra.mxu0 %v6261
  %v6263 = vpop.f32.mrf.mxu0
  %v6264 = vadd.f32 %v6167, %v6263
  %v6265 = vpop.f32.mrf.mxu0
  %6266 = vdwg.mxu0
  %6267 = vmatprep.subr.mxu0 0.0
  %v6268 = vand.u32 %v5800, 4294901760
  %v6269 = vsub.f32 %v5800, %v6268
  %v6270 = vand.u32 %v6269, 4294901760
  %6271 = vmatpush1.msra.mxu0 %v6270
  %6272 = vmatprep.subr.mxu0 0.0
  %v6273 = vand.u32 %v5799, 4294901760
  %v6274 = vsub.f32 %v5799, %v6273
  %v6275 = vand.u32 %v6274, 4294901760
  %6276 = vmatpush1.msra.mxu0 %v6275
  %6277 = vmatprep.subr.mxu0 0.0
  %v6278 = vand.u32 %v5798, 4294901760
  %v6279 = vsub.f32 %v5798, %v6278
  %v6280 = vand.u32 %v6279, 4294901760
  %6281 = vmatpush1.msra.mxu0 %v6280
  %6282 = vmatprep.subr.mxu0 0.0
  %v6283 = vand.u32 %v5797, 4294901760
  %v6284 = vsub.f32 %v5797, %v6283
  %v6285 = vand.u32 %v6284, 4294901760
  %6286 = vmatpush1.msra.mxu0 %v6285
  %6287 = vmatprep.subr.mxu0 0.0
  %v6288 = vand.u32 %v5796, 4294901760
  %v6289 = vsub.f32 %v5796, %v6288
  %v6290 = vand.u32 %v6289, 4294901760
  %6291 = vmatpush1.msra.mxu0 %v6290
  %6292 = vmatprep.subr.mxu0 0.0
  %v6293 = vand.u32 %v5795, 4294901760
  %v6294 = vsub.f32 %v5795, %v6293
  %v6295 = vand.u32 %v6294, 4294901760
  %6296 = vmatpush1.msra.mxu0 %v6295
  %6297 = vmatprep.subr.mxu0 0.0
  %v6298 = vand.u32 %v5794, 4294901760
  %v6299 = vsub.f32 %v5794, %v6298
  %v6300 = vand.u32 %v6299, 4294901760
  %6301 = vmatpush1.msra.mxu0 %v6300
  %6302 = vmatprep.subr.mxu0 0.0
  %v6303 = vand.u32 %v5793, 4294901760
  %v6304 = vsub.f32 %v5793, %v6303
  %v6305 = vand.u32 %v6304, 4294901760
  %6306 = vmatpush1.msra.mxu0 %v6305
  %6307 = vmatprep.subr.mxu0 0.0
  %v6308 = vand.u32 %v5792, 4294901760
  %v6309 = vsub.f32 %v5792, %v6308
  %v6310 = vand.u32 %v6309, 4294901760
  %6311 = vmatpush1.msra.mxu0 %v6310
  %6312 = vmatprep.subr.mxu0 0.0
  %v6313 = vand.u32 %v5791, 4294901760
  %v6314 = vsub.f32 %v5791, %v6313
  %v6315 = vand.u32 %v6314, 4294901760
  %6316 = vmatpush1.msra.mxu0 %v6315
  %6317 = vmatprep.subr.mxu0 0.0
  %v6318 = vand.u32 %v5790, 4294901760
  %v6319 = vsub.f32 %v5790, %v6318
  %v6320 = vand.u32 %v6319, 4294901760
  %6321 = vmatpush1.msra.mxu0 %v6320
  %6322 = vmatprep.subr.mxu0 0.0
  %v6323 = vand.u32 %v5789, 4294901760
  %v6324 = vsub.f32 %v5789, %v6323
  %v6325 = vand.u32 %v6324, 4294901760
  %6326 = vmatpush1.msra.mxu0 %v6325
  %6327 = vmatprep.subr.mxu0 0.0
  %v6328 = vand.u32 %v5788, 4294901760
  %v6329 = vsub.f32 %v5788, %v6328
  %v6330 = vand.u32 %v6329, 4294901760
  %6331 = vmatpush1.msra.mxu0 %v6330
  %6332 = vmatprep.subr.mxu0 0.0
  %v6333 = vand.u32 %v5787, 4294901760
  %v6334 = vsub.f32 %v5787, %v6333
  %v6335 = vand.u32 %v6334, 4294901760
  %6336 = vmatpush1.msra.mxu0 %v6335
  %6337 = vmatprep.subr.mxu0 0.0
  %v6338 = vand.u32 %v5786, 4294901760
  %v6339 = vsub.f32 %v5786, %v6338
  %v6340 = vand.u32 %v6339, 4294901760
  %6341 = vmatpush1.msra.mxu0 %v6340
  %6342 = vmatprep.subr.mxu0 0.0
  %v6343 = vand.u32 %v5785, 4294901760
  %v6344 = vsub.f32 %v5785, %v6343
  %v6345 = vand.u32 %v6344, 4294901760
  %6346 = vmatpush1.msra.mxu0 %v6345
  %6347 = vmatprep.subr.mxu0 0.0
  %6348 = vmatpush2.msra.mxu0 0.0
  %6349 = vmatprep.subr.mxu0 0.0
  %6350 = vmatpush2.msra.mxu0 0.0
  %6351 = vmatprep.subr.mxu0 0.0
  %6352 = vmatpush2.msra.mxu0 0.0
  %6353 = vmatprep.subr.mxu0 0.0
  %6354 = vmatpush2.msra.mxu0 0.0
  %6355 = vmatprep.subr.mxu0 0.0
  %6356 = vmatpush2.msra.mxu0 0.0
  %6357 = vmatprep.subr.mxu0 0.0
  %6358 = vmatpush2.msra.mxu0 0.0
  %6359 = vmatprep.subr.mxu0 0.0
  %6360 = vmatpush2.msra.mxu0 0.0
  %6361 = vmatprep.subr.mxu0 0.0
  %6362 = vmatpush2.msra.mxu0 0.0
  %6363 = vmatprep.subr.mxu0 0.0
  %6364 = vmatpush2.msra.mxu0 0.0
  %6365 = vmatprep.subr.mxu0 0.0
  %6366 = vmatpush2.msra.mxu0 0.0
  %6367 = vmatprep.subr.mxu0 0.0
  %6368 = vmatpush2.msra.mxu0 0.0
  %6369 = vmatprep.subr.mxu0 0.0
  %6370 = vmatpush2.msra.mxu0 0.0
  %6371 = vmatprep.subr.mxu0 0.0
  %6372 = vmatpush2.msra.mxu0 0.0
  %6373 = vmatprep.subr.mxu0 0.0
  %6374 = vmatpush2.msra.mxu0 0.0
  %6375 = vmatprep.subr.mxu0 0.0
  %6376 = vmatpush2.msra.mxu0 0.0
  %6377 = vmatprep.subr.mxu0 0.0
  %6378 = vmatpush2.msra.mxu0 0.0
  %6379 = vmatprep.mubr.f32.mxu0 0.0
  %v6380 = vand.u32 %v5782, 4294901760
  %6381 = vmatmul.mubr.f32.gmra.mxu0 %v6380
  %v6382 = vpop.f32.mrf.mxu0
  %v6383 = vadd.f32 %v6256, %v6382
  %v6384 = vpop.f32.mrf.mxu0
  %6385 = vmatprep.mubr.f32.mxu0 0.0
  %v6386 = vand.u32 %v5783, 4294901760
  %6387 = vmatmul.mubr.f32.gmra.mxu0 %v6386
  %v6388 = vpop.f32.mrf.mxu0
  %v6389 = vadd.f32 %v6264, %v6388
  %v6390 = vpop.f32.mrf.mxu0
  %6391 = vdwg.mxu0
  %6392 = vmatprep.subr.mxu0 0.0
  %v6393 = vand.u32 %v5800, 4294901760
  %6394 = vmatpush1.msra.mxu0 %v6393
  %6395 = vmatprep.subr.mxu0 0.0
  %v6396 = vand.u32 %v5799, 4294901760
  %6397 = vmatpush1.msra.mxu0 %v6396
  %6398 = vmatprep.subr.mxu0 0.0
  %v6399 = vand.u32 %v5798, 4294901760
  %6400 = vmatpush1.msra.mxu0 %v6399
  %6401 = vmatprep.subr.mxu0 0.0
  %v6402 = vand.u32 %v5797, 4294901760
  %6403 = vmatpush1.msra.mxu0 %v6402
  %6404 = vmatprep.subr.mxu0 0.0
  %v6405 = vand.u32 %v5796, 4294901760
  %6406 = vmatpush1.msra.mxu0 %v6405
  %6407 = vmatprep.subr.mxu0 0.0
  %v6408 = vand.u32 %v5795, 4294901760
  %6409 = vmatpush1.msra.mxu0 %v6408
  %6410 = vmatprep.subr.mxu0 0.0
  %v6411 = vand.u32 %v5794, 4294901760
  %6412 = vmatpush1.msra.mxu0 %v6411
  %6413 = vmatprep.subr.mxu0 0.0
  %v6414 = vand.u32 %v5793, 4294901760
  %6415 = vmatpush1.msra.mxu0 %v6414
  %6416 = vmatprep.subr.mxu0 0.0
  %v6417 = vand.u32 %v5792, 4294901760
  %6418 = vmatpush1.msra.mxu0 %v6417
  %6419 = vmatprep.subr.mxu0 0.0
  %v6420 = vand.u32 %v5791, 4294901760
  %6421 = vmatpush1.msra.mxu0 %v6420
  %6422 = vmatprep.subr.mxu0 0.0
  %v6423 = vand.u32 %v5790, 4294901760
  %6424 = vmatpush1.msra.mxu0 %v6423
  %6425 = vmatprep.subr.mxu0 0.0
  %v6426 = vand.u32 %v5789, 4294901760
  %6427 = vmatpush1.msra.mxu0 %v6426
  %6428 = vmatprep.subr.mxu0 0.0
  %v6429 = vand.u32 %v5788, 4294901760
  %6430 = vmatpush1.msra.mxu0 %v6429
  %6431 = vmatprep.subr.mxu0 0.0
  %v6432 = vand.u32 %v5787, 4294901760
  %6433 = vmatpush1.msra.mxu0 %v6432
  %6434 = vmatprep.subr.mxu0 0.0
  %v6435 = vand.u32 %v5786, 4294901760
  %6436 = vmatpush1.msra.mxu0 %v6435
  %6437 = vmatprep.subr.mxu0 0.0
  %v6438 = vand.u32 %v5785, 4294901760
  %6439 = vmatpush1.msra.mxu0 %v6438
  %6440 = vmatprep.subr.mxu0 0.0
  %6441 = vmatpush2.msra.mxu0 0.0
  %6442 = vmatprep.subr.mxu0 0.0
  %6443 = vmatpush2.msra.mxu0 0.0
  %6444 = vmatprep.subr.mxu0 0.0
  %6445 = vmatpush2.msra.mxu0 0.0
  %6446 = vmatprep.subr.mxu0 0.0
  %6447 = vmatpush2.msra.mxu0 0.0
  %6448 = vmatprep.subr.mxu0 0.0
  %6449 = vmatpush2.msra.mxu0 0.0
  %6450 = vmatprep.subr.mxu0 0.0
  %6451 = vmatpush2.msra.mxu0 0.0
  %6452 = vmatprep.subr.mxu0 0.0
  %6453 = vmatpush2.msra.mxu0 0.0
  %6454 = vmatprep.subr.mxu0 0.0
  %6455 = vmatpush2.msra.mxu0 0.0
  %6456 = vmatprep.subr.mxu0 0.0
  %6457 = vmatpush2.msra.mxu0 0.0
  %6458 = vmatprep.subr.mxu0 0.0
  %6459 = vmatpush2.msra.mxu0 0.0
  %6460 = vmatprep.subr.mxu0 0.0
  %6461 = vmatpush2.msra.mxu0 0.0
  %6462 = vmatprep.subr.mxu0 0.0
  %6463 = vmatpush2.msra.mxu0 0.0
  %6464 = vmatprep.subr.mxu0 0.0
  %6465 = vmatpush2.msra.mxu0 0.0
  %6466 = vmatprep.subr.mxu0 0.0
  %6467 = vmatpush2.msra.mxu0 0.0
  %6468 = vmatprep.subr.mxu0 0.0
  %6469 = vmatpush2.msra.mxu0 0.0
  %6470 = vmatprep.subr.mxu0 0.0
  %6471 = vmatpush2.msra.mxu0 0.0
  %6472 = vmatprep.mubr.f32.mxu0 0.0
  %v6473 = vand.u32 %v5782, 4294901760
  %6474 = vmatmul.mubr.f32.gmra.mxu0 %v6473
  %v6475 = vpop.f32.mrf.mxu0
  %v6476 = vadd.f32 %v6383, %v6475
  %v6477 = vpop.f32.mrf.mxu0
  %6478 = vmatprep.mubr.f32.mxu0 0.0
  %v6479 = vand.u32 %v5783, 4294901760
  %6480 = vmatmul.mubr.f32.gmra.mxu0 %v6479
  %v6481 = vpop.f32.mrf.mxu0
  %v6482 = vadd.f32 %v6389, %v6481
  %v6483 = vpop.f32.mrf.mxu0
  %6484 = vdwg.mxu0
  %v6485 = vadd.f32 %v5773, %v6476
  %v6486 = vadd.f32 %v5779, %v6482
  %6487 = vmatprep.subr.mxu0 0.0
  %6488 = vmatpush1.msra.mxu0 0.0
  %6489 = vmatprep.subr.mxu0 0.0
  %6490 = vmatpush1.msra.mxu0 0.0
  %6491 = vmatprep.subr.mxu0 0.0
  %6492 = vmatpush1.msra.mxu0 0.0
  %6493 = vmatprep.subr.mxu0 0.0
  %6494 = vmatpush1.msra.mxu0 0.0
  %6495 = vmatprep.subr.mxu0 0.0
  %6496 = vmatpush1.msra.mxu0 0.0
  %6497 = vmatprep.subr.mxu0 0.0
  %6498 = vmatpush1.msra.mxu0 0.0
  %6499 = vmatprep.subr.mxu0 0.0
  %6500 = vmatpush1.msra.mxu0 0.0
  %6501 = vmatprep.subr.mxu0 0.0
  %6502 = vmatpush1.msra.mxu0 0.0
  %6503 = vmatprep.subr.mxu0 0.0
  %6504 = vmatpush1.msra.mxu0 0.0
  %6505 = vmatprep.subr.mxu0 0.0
  %6506 = vmatpush1.msra.mxu0 0.0
  %6507 = vmatprep.subr.mxu0 0.0
  %6508 = vmatpush1.msra.mxu0 0.0
  %6509 = vmatprep.subr.mxu0 0.0
  %6510 = vmatpush1.msra.mxu0 0.0
  %6511 = vmatprep.subr.mxu0 0.0
  %6512 = vmatpush1.msra.mxu0 0.0
  %6513 = vmatprep.subr.mxu0 0.0
  %6514 = vmatpush1.msra.mxu0 0.0
  %6515 = vmatprep.subr.mxu0 0.0
  %v6516 = vand.u32 %v6486, 4294901760
  %6517 = vmatpush1.msra.mxu0 %v6516
  %6518 = vmatprep.subr.mxu0 0.0
  %v6519 = vand.u32 %v6485, 4294901760
  %6520 = vmatpush1.msra.mxu0 %v6519
  %6521 = vmatprep.subr.mxu0 0.0
  %6522 = vmatpush2.msra.mxu0 0.0
  %6523 = vmatprep.subr.mxu0 0.0
  %6524 = vmatpush2.msra.mxu0 0.0
  %6525 = vmatprep.subr.mxu0 0.0
  %6526 = vmatpush2.msra.mxu0 0.0
  %6527 = vmatprep.subr.mxu0 0.0
  %6528 = vmatpush2.msra.mxu0 0.0
  %6529 = vmatprep.subr.mxu0 0.0
  %6530 = vmatpush2.msra.mxu0 0.0
  %6531 = vmatprep.subr.mxu0 0.0
  %6532 = vmatpush2.msra.mxu0 0.0
  %6533 = vmatprep.subr.mxu0 0.0
  %6534 = vmatpush2.msra.mxu0 0.0
  %6535 = vmatprep.subr.mxu0 0.0
  %6536 = vmatpush2.msra.mxu0 0.0
  %6537 = vmatprep.subr.mxu0 0.0
  %6538 = vmatpush2.msra.mxu0 0.0
  %6539 = vmatprep.subr.mxu0 0.0
  %6540 = vmatpush2.msra.mxu0 0.0
  %6541 = vmatprep.subr.mxu0 0.0
  %6542 = vmatpush2.msra.mxu0 0.0
  %6543 = vmatprep.subr.mxu0 0.0
  %6544 = vmatpush2.msra.mxu0 0.0
  %6545 = vmatprep.subr.mxu0 0.0
  %6546 = vmatpush2.msra.mxu0 0.0
  %6547 = vmatprep.subr.mxu0 0.0
  %6548 = vmatpush2.msra.mxu0 0.0
  %6549 = vmatprep.subr.mxu0 0.0
  %6550 = vmatpush2.msra.mxu0 0.0
  %6551 = vmatprep.subr.mxu0 0.0
  %6552 = vmatpush2.msra.mxu0 0.0
  %6553 = vmatprep.mubr.f32.mxu0 0.0
  %v6554 = vand.u32 %v2153, 4294901760
  %v6555 = vsub.f32 %v2153, %v6554
  %v6556 = vand.u32 %v6555, 4294901760
  %v6557 = vsub.f32 %v6555, %v6556
  %v6558 = vand.u32 %v6557, 4294901760
  %6559 = vmatmul.mubr.f32.gmra.mxu0 %v6558
  %v6560 = vpop.f32.mrf.mxu0
  %v6561 = vadd.f32 0.0, %v6560
  %v6562 = vpop.f32.mrf.mxu0
  %6563 = vdwg.mxu0
  %6564 = vmatprep.subr.mxu0 0.0
  %6565 = vmatpush1.msra.mxu0 0.0
  %6566 = vmatprep.subr.mxu0 0.0
  %6567 = vmatpush1.msra.mxu0 0.0
  %6568 = vmatprep.subr.mxu0 0.0
  %6569 = vmatpush1.msra.mxu0 0.0
  %6570 = vmatprep.subr.mxu0 0.0
  %6571 = vmatpush1.msra.mxu0 0.0
  %6572 = vmatprep.subr.mxu0 0.0
  %6573 = vmatpush1.msra.mxu0 0.0
  %6574 = vmatprep.subr.mxu0 0.0
  %6575 = vmatpush1.msra.mxu0 0.0
  %6576 = vmatprep.subr.mxu0 0.0
  %6577 = vmatpush1.msra.mxu0 0.0
  %6578 = vmatprep.subr.mxu0 0.0
  %6579 = vmatpush1.msra.mxu0 0.0
  %6580 = vmatprep.subr.mxu0 0.0
  %6581 = vmatpush1.msra.mxu0 0.0
  %6582 = vmatprep.subr.mxu0 0.0
  %6583 = vmatpush1.msra.mxu0 0.0
  %6584 = vmatprep.subr.mxu0 0.0
  %6585 = vmatpush1.msra.mxu0 0.0
  %6586 = vmatprep.subr.mxu0 0.0
  %6587 = vmatpush1.msra.mxu0 0.0
  %6588 = vmatprep.subr.mxu0 0.0
  %6589 = vmatpush1.msra.mxu0 0.0
  %6590 = vmatprep.subr.mxu0 0.0
  %6591 = vmatpush1.msra.mxu0 0.0
  %6592 = vmatprep.subr.mxu0 0.0
  %v6593 = vand.u32 %v6486, 4294901760
  %v6594 = vsub.f32 %v6486, %v6593
  %v6595 = vand.u32 %v6594, 4294901760
  %v6596 = vsub.f32 %v6594, %v6595
  %v6597 = vand.u32 %v6596, 4294901760
  %6598 = vmatpush1.msra.mxu0 %v6597
  %6599 = vmatprep.subr.mxu0 0.0
  %v6600 = vand.u32 %v6485, 4294901760
  %v6601 = vsub.f32 %v6485, %v6600
  %v6602 = vand.u32 %v6601, 4294901760
  %v6603 = vsub.f32 %v6601, %v6602
  %v6604 = vand.u32 %v6603, 4294901760
  %6605 = vmatpush1.msra.mxu0 %v6604
  %6606 = vmatprep.subr.mxu0 0.0
  %6607 = vmatpush2.msra.mxu0 0.0
  %6608 = vmatprep.subr.mxu0 0.0
  %6609 = vmatpush2.msra.mxu0 0.0
  %6610 = vmatprep.subr.mxu0 0.0
  %6611 = vmatpush2.msra.mxu0 0.0
  %6612 = vmatprep.subr.mxu0 0.0
  %6613 = vmatpush2.msra.mxu0 0.0
  %6614 = vmatprep.subr.mxu0 0.0
  %6615 = vmatpush2.msra.mxu0 0.0
  %6616 = vmatprep.subr.mxu0 0.0
  %6617 = vmatpush2.msra.mxu0 0.0
  %6618 = vmatprep.subr.mxu0 0.0
  %6619 = vmatpush2.msra.mxu0 0.0
  %6620 = vmatprep.subr.mxu0 0.0
  %6621 = vmatpush2.msra.mxu0 0.0
  %6622 = vmatprep.subr.mxu0 0.0
  %6623 = vmatpush2.msra.mxu0 0.0
  %6624 = vmatprep.subr.mxu0 0.0
  %6625 = vmatpush2.msra.mxu0 0.0
  %6626 = vmatprep.subr.mxu0 0.0
  %6627 = vmatpush2.msra.mxu0 0.0
  %6628 = vmatprep.subr.mxu0 0.0
  %6629 = vmatpush2.msra.mxu0 0.0
  %6630 = vmatprep.subr.mxu0 0.0
  %6631 = vmatpush2.msra.mxu0 0.0
  %6632 = vmatprep.subr.mxu0 0.0
  %6633 = vmatpush2.msra.mxu0 0.0
  %6634 = vmatprep.subr.mxu0 0.0
  %6635 = vmatpush2.msra.mxu0 0.0
  %6636 = vmatprep.subr.mxu0 0.0
  %6637 = vmatpush2.msra.mxu0 0.0
  %6638 = vmatprep.mubr.f32.mxu0 0.0
  %v6639 = vand.u32 %v2153, 4294901760
  %6640 = vmatmul.mubr.f32.gmra.mxu0 %v6639
  %v6641 = vpop.f32.mrf.mxu0
  %v6642 = vadd.f32 %v6561, %v6641
  %v6643 = vpop.f32.mrf.mxu0
  %6644 = vdwg.mxu0
  %6645 = vmatprep.subr.mxu0 0.0
  %6646 = vmatpush1.msra.mxu0 0.0
  %6647 = vmatprep.subr.mxu0 0.0
  %6648 = vmatpush1.msra.mxu0 0.0
  %6649 = vmatprep.subr.mxu0 0.0
  %6650 = vmatpush1.msra.mxu0 0.0
  %6651 = vmatprep.subr.mxu0 0.0
  %6652 = vmatpush1.msra.mxu0 0.0
  %6653 = vmatprep.subr.mxu0 0.0
  %6654 = vmatpush1.msra.mxu0 0.0
  %6655 = vmatprep.subr.mxu0 0.0
  %6656 = vmatpush1.msra.mxu0 0.0
  %6657 = vmatprep.subr.mxu0 0.0
  %6658 = vmatpush1.msra.mxu0 0.0
  %6659 = vmatprep.subr.mxu0 0.0
  %6660 = vmatpush1.msra.mxu0 0.0
  %6661 = vmatprep.subr.mxu0 0.0
  %6662 = vmatpush1.msra.mxu0 0.0
  %6663 = vmatprep.subr.mxu0 0.0
  %6664 = vmatpush1.msra.mxu0 0.0
  %6665 = vmatprep.subr.mxu0 0.0
  %6666 = vmatpush1.msra.mxu0 0.0
  %6667 = vmatprep.subr.mxu0 0.0
  %6668 = vmatpush1.msra.mxu0 0.0
  %6669 = vmatprep.subr.mxu0 0.0
  %6670 = vmatpush1.msra.mxu0 0.0
  %6671 = vmatprep.subr.mxu0 0.0
  %6672 = vmatpush1.msra.mxu0 0.0
  %6673 = vmatprep.subr.mxu0 0.0
  %v6674 = vand.u32 %v6486, 4294901760
  %v6675 = vsub.f32 %v6486, %v6674
  %6676 = vmatpush1.msra.mxu0 %v6675
  %6677 = vmatprep.subr.mxu0 0.0
  %v6678 = vand.u32 %v6485, 4294901760
  %v6679 = vsub.f32 %v6485, %v6678
  %6680 = vmatpush1.msra.mxu0 %v6679
  %6681 = vmatprep.subr.mxu0 0.0
  %6682 = vmatpush2.msra.mxu0 0.0
  %6683 = vmatprep.subr.mxu0 0.0
  %6684 = vmatpush2.msra.mxu0 0.0
  %6685 = vmatprep.subr.mxu0 0.0
  %6686 = vmatpush2.msra.mxu0 0.0
  %6687 = vmatprep.subr.mxu0 0.0
  %6688 = vmatpush2.msra.mxu0 0.0
  %6689 = vmatprep.subr.mxu0 0.0
  %6690 = vmatpush2.msra.mxu0 0.0
  %6691 = vmatprep.subr.mxu0 0.0
  %6692 = vmatpush2.msra.mxu0 0.0
  %6693 = vmatprep.subr.mxu0 0.0
  %6694 = vmatpush2.msra.mxu0 0.0
  %6695 = vmatprep.subr.mxu0 0.0
  %6696 = vmatpush2.msra.mxu0 0.0
  %6697 = vmatprep.subr.mxu0 0.0
  %6698 = vmatpush2.msra.mxu0 0.0
  %6699 = vmatprep.subr.mxu0 0.0
  %6700 = vmatpush2.msra.mxu0 0.0
  %6701 = vmatprep.subr.mxu0 0.0
  %6702 = vmatpush2.msra.mxu0 0.0
  %6703 = vmatprep.subr.mxu0 0.0
  %6704 = vmatpush2.msra.mxu0 0.0
  %6705 = vmatprep.subr.mxu0 0.0
  %6706 = vmatpush2.msra.mxu0 0.0
  %6707 = vmatprep.subr.mxu0 0.0
  %6708 = vmatpush2.msra.mxu0 0.0
  %6709 = vmatprep.subr.mxu0 0.0
  %6710 = vmatpush2.msra.mxu0 0.0
  %6711 = vmatprep.subr.mxu0 0.0
  %6712 = vmatpush2.msra.mxu0 0.0
  %6713 = vmatprep.mubr.f32.mxu0 0.0
  %v6714 = vand.u32 %v2153, 4294901760
  %v6715 = vsub.f32 %v2153, %v6714
  %6716 = vmatmul.mubr.f32.gmra.mxu0 %v6715
  %v6717 = vpop.f32.mrf.mxu0
  %v6718 = vadd.f32 %v6642, %v6717
  %v6719 = vpop.f32.mrf.mxu0
  %6720 = vdwg.mxu0
  %6721 = vmatprep.subr.mxu0 0.0
  %6722 = vmatpush1.msra.mxu0 0.0
  %6723 = vmatprep.subr.mxu0 0.0
  %6724 = vmatpush1.msra.mxu0 0.0
  %6725 = vmatprep.subr.mxu0 0.0
  %6726 = vmatpush1.msra.mxu0 0.0
  %6727 = vmatprep.subr.mxu0 0.0
  %6728 = vmatpush1.msra.mxu0 0.0
  %6729 = vmatprep.subr.mxu0 0.0
  %6730 = vmatpush1.msra.mxu0 0.0
  %6731 = vmatprep.subr.mxu0 0.0
  %6732 = vmatpush1.msra.mxu0 0.0
  %6733 = vmatprep.subr.mxu0 0.0
  %6734 = vmatpush1.msra.mxu0 0.0
  %6735 = vmatprep.subr.mxu0 0.0
  %6736 = vmatpush1.msra.mxu0 0.0
  %6737 = vmatprep.subr.mxu0 0.0
  %6738 = vmatpush1.msra.mxu0 0.0
  %6739 = vmatprep.subr.mxu0 0.0
  %6740 = vmatpush1.msra.mxu0 0.0
  %6741 = vmatprep.subr.mxu0 0.0
  %6742 = vmatpush1.msra.mxu0 0.0
  %6743 = vmatprep.subr.mxu0 0.0
  %6744 = vmatpush1.msra.mxu0 0.0
  %6745 = vmatprep.subr.mxu0 0.0
  %6746 = vmatpush1.msra.mxu0 0.0
  %6747 = vmatprep.subr.mxu0 0.0
  %6748 = vmatpush1.msra.mxu0 0.0
  %6749 = vmatprep.subr.mxu0 0.0
  %v6750 = vand.u32 %v6486, 4294901760
  %6751 = vmatpush1.msra.mxu0 %v6750
  %6752 = vmatprep.subr.mxu0 0.0
  %v6753 = vand.u32 %v6485, 4294901760
  %6754 = vmatpush1.msra.mxu0 %v6753
  %6755 = vmatprep.subr.mxu0 0.0
  %6756 = vmatpush2.msra.mxu0 0.0
  %6757 = vmatprep.subr.mxu0 0.0
  %6758 = vmatpush2.msra.mxu0 0.0
  %6759 = vmatprep.subr.mxu0 0.0
  %6760 = vmatpush2.msra.mxu0 0.0
  %6761 = vmatprep.subr.mxu0 0.0
  %6762 = vmatpush2.msra.mxu0 0.0
  %6763 = vmatprep.subr.mxu0 0.0
  %6764 = vmatpush2.msra.mxu0 0.0
  %6765 = vmatprep.subr.mxu0 0.0
  %6766 = vmatpush2.msra.mxu0 0.0
  %6767 = vmatprep.subr.mxu0 0.0
  %6768 = vmatpush2.msra.mxu0 0.0
  %6769 = vmatprep.subr.mxu0 0.0
  %6770 = vmatpush2.msra.mxu0 0.0
  %6771 = vmatprep.subr.mxu0 0.0
  %6772 = vmatpush2.msra.mxu0 0.0
  %6773 = vmatprep.subr.mxu0 0.0
  %6774 = vmatpush2.msra.mxu0 0.0
  %6775 = vmatprep.subr.mxu0 0.0
  %6776 = vmatpush2.msra.mxu0 0.0
  %6777 = vmatprep.subr.mxu0 0.0
  %6778 = vmatpush2.msra.mxu0 0.0
  %6779 = vmatprep.subr.mxu0 0.0
  %6780 = vmatpush2.msra.mxu0 0.0
  %6781 = vmatprep.subr.mxu0 0.0
  %6782 = vmatpush2.msra.mxu0 0.0
  %6783 = vmatprep.subr.mxu0 0.0
  %6784 = vmatpush2.msra.mxu0 0.0
  %6785 = vmatprep.subr.mxu0 0.0
  %6786 = vmatpush2.msra.mxu0 0.0
  %6787 = vmatprep.mubr.f32.mxu0 0.0
  %v6788 = vand.u32 %v2153, 4294901760
  %v6789 = vsub.f32 %v2153, %v6788
  %v6790 = vand.u32 %v6789, 4294901760
  %6791 = vmatmul.mubr.f32.gmra.mxu0 %v6790
  %v6792 = vpop.f32.mrf.mxu0
  %v6793 = vadd.f32 %v6718, %v6792
  %v6794 = vpop.f32.mrf.mxu0
  %6795 = vdwg.mxu0
  %6796 = vmatprep.subr.mxu0 0.0
  %6797 = vmatpush1.msra.mxu0 0.0
  %6798 = vmatprep.subr.mxu0 0.0
  %6799 = vmatpush1.msra.mxu0 0.0
  %6800 = vmatprep.subr.mxu0 0.0
  %6801 = vmatpush1.msra.mxu0 0.0
  %6802 = vmatprep.subr.mxu0 0.0
  %6803 = vmatpush1.msra.mxu0 0.0
  %6804 = vmatprep.subr.mxu0 0.0
  %6805 = vmatpush1.msra.mxu0 0.0
  %6806 = vmatprep.subr.mxu0 0.0
  %6807 = vmatpush1.msra.mxu0 0.0
  %6808 = vmatprep.subr.mxu0 0.0
  %6809 = vmatpush1.msra.mxu0 0.0
  %6810 = vmatprep.subr.mxu0 0.0
  %6811 = vmatpush1.msra.mxu0 0.0
  %6812 = vmatprep.subr.mxu0 0.0
  %6813 = vmatpush1.msra.mxu0 0.0
  %6814 = vmatprep.subr.mxu0 0.0
  %6815 = vmatpush1.msra.mxu0 0.0
  %6816 = vmatprep.subr.mxu0 0.0
  %6817 = vmatpush1.msra.mxu0 0.0
  %6818 = vmatprep.subr.mxu0 0.0
  %6819 = vmatpush1.msra.mxu0 0.0
  %6820 = vmatprep.subr.mxu0 0.0
  %6821 = vmatpush1.msra.mxu0 0.0
  %6822 = vmatprep.subr.mxu0 0.0
  %6823 = vmatpush1.msra.mxu0 0.0
  %6824 = vmatprep.subr.mxu0 0.0
  %v6825 = vand.u32 %v6486, 4294901760
  %v6826 = vsub.f32 %v6486, %v6825
  %v6827 = vand.u32 %v6826, 4294901760
  %6828 = vmatpush1.msra.mxu0 %v6827
  %6829 = vmatprep.subr.mxu0 0.0
  %v6830 = vand.u32 %v6485, 4294901760
  %v6831 = vsub.f32 %v6485, %v6830
  %v6832 = vand.u32 %v6831, 4294901760
  %6833 = vmatpush1.msra.mxu0 %v6832
  %6834 = vmatprep.subr.mxu0 0.0
  %6835 = vmatpush2.msra.mxu0 0.0
  %6836 = vmatprep.subr.mxu0 0.0
  %6837 = vmatpush2.msra.mxu0 0.0
  %6838 = vmatprep.subr.mxu0 0.0
  %6839 = vmatpush2.msra.mxu0 0.0
  %6840 = vmatprep.subr.mxu0 0.0
  %6841 = vmatpush2.msra.mxu0 0.0
  %6842 = vmatprep.subr.mxu0 0.0
  %6843 = vmatpush2.msra.mxu0 0.0
  %6844 = vmatprep.subr.mxu0 0.0
  %6845 = vmatpush2.msra.mxu0 0.0
  %6846 = vmatprep.subr.mxu0 0.0
  %6847 = vmatpush2.msra.mxu0 0.0
  %6848 = vmatprep.subr.mxu0 0.0
  %6849 = vmatpush2.msra.mxu0 0.0
  %6850 = vmatprep.subr.mxu0 0.0
  %6851 = vmatpush2.msra.mxu0 0.0
  %6852 = vmatprep.subr.mxu0 0.0
  %6853 = vmatpush2.msra.mxu0 0.0
  %6854 = vmatprep.subr.mxu0 0.0
  %6855 = vmatpush2.msra.mxu0 0.0
  %6856 = vmatprep.subr.mxu0 0.0
  %6857 = vmatpush2.msra.mxu0 0.0
  %6858 = vmatprep.subr.mxu0 0.0
  %6859 = vmatpush2.msra.mxu0 0.0
  %6860 = vmatprep.subr.mxu0 0.0
  %6861 = vmatpush2.msra.mxu0 0.0
  %6862 = vmatprep.subr.mxu0 0.0
  %6863 = vmatpush2.msra.mxu0 0.0
  %6864 = vmatprep.subr.mxu0 0.0
  %6865 = vmatpush2.msra.mxu0 0.0
  %6866 = vmatprep.mubr.f32.mxu0 0.0
  %v6867 = vand.u32 %v2153, 4294901760
  %6868 = vmatmul.mubr.f32.gmra.mxu0 %v6867
  %v6869 = vpop.f32.mrf.mxu0
  %v6870 = vadd.f32 %v6793, %v6869
  %v6871 = vpop.f32.mrf.mxu0
  %6872 = vdwg.mxu0
  %6873 = vmatprep.subr.mxu0 0.0
  %6874 = vmatpush1.msra.mxu0 0.0
  %6875 = vmatprep.subr.mxu0 0.0
  %6876 = vmatpush1.msra.mxu0 0.0
  %6877 = vmatprep.subr.mxu0 0.0
  %6878 = vmatpush1.msra.mxu0 0.0
  %6879 = vmatprep.subr.mxu0 0.0
  %6880 = vmatpush1.msra.mxu0 0.0
  %6881 = vmatprep.subr.mxu0 0.0
  %6882 = vmatpush1.msra.mxu0 0.0
  %6883 = vmatprep.subr.mxu0 0.0
  %6884 = vmatpush1.msra.mxu0 0.0
  %6885 = vmatprep.subr.mxu0 0.0
  %6886 = vmatpush1.msra.mxu0 0.0
  %6887 = vmatprep.subr.mxu0 0.0
  %6888 = vmatpush1.msra.mxu0 0.0
  %6889 = vmatprep.subr.mxu0 0.0
  %6890 = vmatpush1.msra.mxu0 0.0
  %6891 = vmatprep.subr.mxu0 0.0
  %6892 = vmatpush1.msra.mxu0 0.0
  %6893 = vmatprep.subr.mxu0 0.0
  %6894 = vmatpush1.msra.mxu0 0.0
  %6895 = vmatprep.subr.mxu0 0.0
  %6896 = vmatpush1.msra.mxu0 0.0
  %6897 = vmatprep.subr.mxu0 0.0
  %6898 = vmatpush1.msra.mxu0 0.0
  %6899 = vmatprep.subr.mxu0 0.0
  %6900 = vmatpush1.msra.mxu0 0.0
  %6901 = vmatprep.subr.mxu0 0.0
  %v6902 = vand.u32 %v6486, 4294901760
  %6903 = vmatpush1.msra.mxu0 %v6902
  %6904 = vmatprep.subr.mxu0 0.0
  %v6905 = vand.u32 %v6485, 4294901760
  %6906 = vmatpush1.msra.mxu0 %v6905
  %6907 = vmatprep.subr.mxu0 0.0
  %6908 = vmatpush2.msra.mxu0 0.0
  %6909 = vmatprep.subr.mxu0 0.0
  %6910 = vmatpush2.msra.mxu0 0.0
  %6911 = vmatprep.subr.mxu0 0.0
  %6912 = vmatpush2.msra.mxu0 0.0
  %6913 = vmatprep.subr.mxu0 0.0
  %6914 = vmatpush2.msra.mxu0 0.0
  %6915 = vmatprep.subr.mxu0 0.0
  %6916 = vmatpush2.msra.mxu0 0.0
  %6917 = vmatprep.subr.mxu0 0.0
  %6918 = vmatpush2.msra.mxu0 0.0
  %6919 = vmatprep.subr.mxu0 0.0
  %6920 = vmatpush2.msra.mxu0 0.0
  %6921 = vmatprep.subr.mxu0 0.0
  %6922 = vmatpush2.msra.mxu0 0.0
  %6923 = vmatprep.subr.mxu0 0.0
  %6924 = vmatpush2.msra.mxu0 0.0
  %6925 = vmatprep.subr.mxu0 0.0
  %6926 = vmatpush2.msra.mxu0 0.0
  %6927 = vmatprep.subr.mxu0 0.0
  %6928 = vmatpush2.msra.mxu0 0.0
  %6929 = vmatprep.subr.mxu0 0.0
  %6930 = vmatpush2.msra.mxu0 0.0
  %6931 = vmatprep.subr.mxu0 0.0
  %6932 = vmatpush2.msra.mxu0 0.0
  %6933 = vmatprep.subr.mxu0 0.0
  %6934 = vmatpush2.msra.mxu0 0.0
  %6935 = vmatprep.subr.mxu0 0.0
  %6936 = vmatpush2.msra.mxu0 0.0
  %6937 = vmatprep.subr.mxu0 0.0
  %6938 = vmatpush2.msra.mxu0 0.0
  %6939 = vmatprep.mubr.f32.mxu0 0.0
  %v6940 = vand.u32 %v2153, 4294901760
  %6941 = vmatmul.mubr.f32.gmra.mxu0 %v6940
  %v6942 = vpop.f32.mrf.mxu0
  %v6943 = vadd.f32 %v6870, %v6942
  %v6944 = vpop.f32.mrf.mxu0
  %6945 = vdwg.mxu0
  %6946 = vmatprep.subr.mxu0 0.0
  %v6947 = vand.u32 %v32, 4294901760
  %6948 = vmatpush1.msra.mxu0 %v6947
  %6949 = vmatprep.subr.mxu0 0.0
  %v6950 = vand.u32 %v31, 4294901760
  %6951 = vmatpush1.msra.mxu0 %v6950
  %6952 = vmatprep.subr.mxu0 0.0
  %v6953 = vand.u32 %v30, 4294901760
  %6954 = vmatpush1.msra.mxu0 %v6953
  %6955 = vmatprep.subr.mxu0 0.0
  %v6956 = vand.u32 %v29, 4294901760
  %6957 = vmatpush1.msra.mxu0 %v6956
  %6958 = vmatprep.subr.mxu0 0.0
  %v6959 = vand.u32 %v28, 4294901760
  %6960 = vmatpush1.msra.mxu0 %v6959
  %6961 = vmatprep.subr.mxu0 0.0
  %v6962 = vand.u32 %v27, 4294901760
  %6963 = vmatpush1.msra.mxu0 %v6962
  %6964 = vmatprep.subr.mxu0 0.0
  %v6965 = vand.u32 %v26, 4294901760
  %6966 = vmatpush1.msra.mxu0 %v6965
  %6967 = vmatprep.subr.mxu0 0.0
  %v6968 = vand.u32 %v25, 4294901760
  %6969 = vmatpush1.msra.mxu0 %v6968
  %6970 = vmatprep.subr.mxu0 0.0
  %v6971 = vand.u32 %v24, 4294901760
  %6972 = vmatpush1.msra.mxu0 %v6971
  %6973 = vmatprep.subr.mxu0 0.0
  %v6974 = vand.u32 %v23, 4294901760
  %6975 = vmatpush1.msra.mxu0 %v6974
  %6976 = vmatprep.subr.mxu0 0.0
  %v6977 = vand.u32 %v22, 4294901760
  %6978 = vmatpush1.msra.mxu0 %v6977
  %6979 = vmatprep.subr.mxu0 0.0
  %v6980 = vand.u32 %v21, 4294901760
  %6981 = vmatpush1.msra.mxu0 %v6980
  %6982 = vmatprep.subr.mxu0 0.0
  %v6983 = vand.u32 %v20, 4294901760
  %6984 = vmatpush1.msra.mxu0 %v6983
  %6985 = vmatprep.subr.mxu0 0.0
  %v6986 = vand.u32 %v19, 4294901760
  %6987 = vmatpush1.msra.mxu0 %v6986
  %6988 = vmatprep.subr.mxu0 0.0
  %v6989 = vand.u32 %v18, 4294901760
  %6990 = vmatpush1.msra.mxu0 %v6989
  %6991 = vmatprep.subr.mxu0 0.0
  %v6992 = vand.u32 %v17, 4294901760
  %6993 = vmatpush1.msra.mxu0 %v6992
  %6994 = vmatprep.subr.mxu0 0.0
  %6995 = vmatpush2.msra.mxu0 0.0
  %6996 = vmatprep.subr.mxu0 0.0
  %6997 = vmatpush2.msra.mxu0 0.0
  %6998 = vmatprep.subr.mxu0 0.0
  %6999 = vmatpush2.msra.mxu0 0.0
  %7000 = vmatprep.subr.mxu0 0.0
  %7001 = vmatpush2.msra.mxu0 0.0
  %7002 = vmatprep.subr.mxu0 0.0
  %7003 = vmatpush2.msra.mxu0 0.0
  %7004 = vmatprep.subr.mxu0 0.0
  %7005 = vmatpush2.msra.mxu0 0.0
  %7006 = vmatprep.subr.mxu0 0.0
  %7007 = vmatpush2.msra.mxu0 0.0
  %7008 = vmatprep.subr.mxu0 0.0
  %7009 = vmatpush2.msra.mxu0 0.0
  %7010 = vmatprep.subr.mxu0 0.0
  %7011 = vmatpush2.msra.mxu0 0.0
  %7012 = vmatprep.subr.mxu0 0.0
  %7013 = vmatpush2.msra.mxu0 0.0
  %7014 = vmatprep.subr.mxu0 0.0
  %7015 = vmatpush2.msra.mxu0 0.0
  %7016 = vmatprep.subr.mxu0 0.0
  %7017 = vmatpush2.msra.mxu0 0.0
  %7018 = vmatprep.subr.mxu0 0.0
  %7019 = vmatpush2.msra.mxu0 0.0
  %7020 = vmatprep.subr.mxu0 0.0
  %7021 = vmatpush2.msra.mxu0 0.0
  %7022 = vmatprep.subr.mxu0 0.0
  %7023 = vmatpush2.msra.mxu0 0.0
  %7024 = vmatprep.subr.mxu0 0.0
  %7025 = vmatpush2.msra.mxu0 0.0
  %7026 = vmatprep.mubr.f32.mxu0 0.0
  %v7027 = vand.u32 %v6943, 4294901760
  %v7028 = vsub.f32 %v6943, %v7027
  %v7029 = vand.u32 %v7028, 4294901760
  %v7030 = vsub.f32 %v7028, %v7029
  %v7031 = vand.u32 %v7030, 4294901760
  %7032 = vmatmul.mubr.f32.gmra.mxu0 %v7031
  %v7033 = vpop.f32.mrf.mxu0
  %v7034 = vadd.f32 0.0, %v7033
  %v7035 = vpop.f32.mrf.mxu0
  %7036 = vdwg.mxu0
  %7037 = vmatprep.subr.mxu0 0.0
  %v7038 = vand.u32 %v32, 4294901760
  %v7039 = vsub.f32 %v32, %v7038
  %v7040 = vand.u32 %v7039, 4294901760
  %v7041 = vsub.f32 %v7039, %v7040
  %v7042 = vand.u32 %v7041, 4294901760
  %7043 = vmatpush1.msra.mxu0 %v7042
  %7044 = vmatprep.subr.mxu0 0.0
  %v7045 = vand.u32 %v31, 4294901760
  %v7046 = vsub.f32 %v31, %v7045
  %v7047 = vand.u32 %v7046, 4294901760
  %v7048 = vsub.f32 %v7046, %v7047
  %v7049 = vand.u32 %v7048, 4294901760
  %7050 = vmatpush1.msra.mxu0 %v7049
  %7051 = vmatprep.subr.mxu0 0.0
  %v7052 = vand.u32 %v30, 4294901760
  %v7053 = vsub.f32 %v30, %v7052
  %v7054 = vand.u32 %v7053, 4294901760
  %v7055 = vsub.f32 %v7053, %v7054
  %v7056 = vand.u32 %v7055, 4294901760
  %7057 = vmatpush1.msra.mxu0 %v7056
  %7058 = vmatprep.subr.mxu0 0.0
  %v7059 = vand.u32 %v29, 4294901760
  %v7060 = vsub.f32 %v29, %v7059
  %v7061 = vand.u32 %v7060, 4294901760
  %v7062 = vsub.f32 %v7060, %v7061
  %v7063 = vand.u32 %v7062, 4294901760
  %7064 = vmatpush1.msra.mxu0 %v7063
  %7065 = vmatprep.subr.mxu0 0.0
  %v7066 = vand.u32 %v28, 4294901760
  %v7067 = vsub.f32 %v28, %v7066
  %v7068 = vand.u32 %v7067, 4294901760
  %v7069 = vsub.f32 %v7067, %v7068
  %v7070 = vand.u32 %v7069, 4294901760
  %7071 = vmatpush1.msra.mxu0 %v7070
  %7072 = vmatprep.subr.mxu0 0.0
  %v7073 = vand.u32 %v27, 4294901760
  %v7074 = vsub.f32 %v27, %v7073
  %v7075 = vand.u32 %v7074, 4294901760
  %v7076 = vsub.f32 %v7074, %v7075
  %v7077 = vand.u32 %v7076, 4294901760
  %7078 = vmatpush1.msra.mxu0 %v7077
  %7079 = vmatprep.subr.mxu0 0.0
  %v7080 = vand.u32 %v26, 4294901760
  %v7081 = vsub.f32 %v26, %v7080
  %v7082 = vand.u32 %v7081, 4294901760
  %v7083 = vsub.f32 %v7081, %v7082
  %v7084 = vand.u32 %v7083, 4294901760
  %7085 = vmatpush1.msra.mxu0 %v7084
  %7086 = vmatprep.subr.mxu0 0.0
  %v7087 = vand.u32 %v25, 4294901760
  %v7088 = vsub.f32 %v25, %v7087
  %v7089 = vand.u32 %v7088, 4294901760
  %v7090 = vsub.f32 %v7088, %v7089
  %v7091 = vand.u32 %v7090, 4294901760
  %7092 = vmatpush1.msra.mxu0 %v7091
  %7093 = vmatprep.subr.mxu0 0.0
  %v7094 = vand.u32 %v24, 4294901760
  %v7095 = vsub.f32 %v24, %v7094
  %v7096 = vand.u32 %v7095, 4294901760
  %v7097 = vsub.f32 %v7095, %v7096
  %v7098 = vand.u32 %v7097, 4294901760
  %7099 = vmatpush1.msra.mxu0 %v7098
  %7100 = vmatprep.subr.mxu0 0.0
  %v7101 = vand.u32 %v23, 4294901760
  %v7102 = vsub.f32 %v23, %v7101
  %v7103 = vand.u32 %v7102, 4294901760
  %v7104 = vsub.f32 %v7102, %v7103
  %v7105 = vand.u32 %v7104, 4294901760
  %7106 = vmatpush1.msra.mxu0 %v7105
  %7107 = vmatprep.subr.mxu0 0.0
  %v7108 = vand.u32 %v22, 4294901760
  %v7109 = vsub.f32 %v22, %v7108
  %v7110 = vand.u32 %v7109, 4294901760
  %v7111 = vsub.f32 %v7109, %v7110
  %v7112 = vand.u32 %v7111, 4294901760
  %7113 = vmatpush1.msra.mxu0 %v7112
  %7114 = vmatprep.subr.mxu0 0.0
  %v7115 = vand.u32 %v21, 4294901760
  %v7116 = vsub.f32 %v21, %v7115
  %v7117 = vand.u32 %v7116, 4294901760
  %v7118 = vsub.f32 %v7116, %v7117
  %v7119 = vand.u32 %v7118, 4294901760
  %7120 = vmatpush1.msra.mxu0 %v7119
  %7121 = vmatprep.subr.mxu0 0.0
  %v7122 = vand.u32 %v20, 4294901760
  %v7123 = vsub.f32 %v20, %v7122
  %v7124 = vand.u32 %v7123, 4294901760
  %v7125 = vsub.f32 %v7123, %v7124
  %v7126 = vand.u32 %v7125, 4294901760
  %7127 = vmatpush1.msra.mxu0 %v7126
  %7128 = vmatprep.subr.mxu0 0.0
  %v7129 = vand.u32 %v19, 4294901760
  %v7130 = vsub.f32 %v19, %v7129
  %v7131 = vand.u32 %v7130, 4294901760
  %v7132 = vsub.f32 %v7130, %v7131
  %v7133 = vand.u32 %v7132, 4294901760
  %7134 = vmatpush1.msra.mxu0 %v7133
  %7135 = vmatprep.subr.mxu0 0.0
  %v7136 = vand.u32 %v18, 4294901760
  %v7137 = vsub.f32 %v18, %v7136
  %v7138 = vand.u32 %v7137, 4294901760
  %v7139 = vsub.f32 %v7137, %v7138
  %v7140 = vand.u32 %v7139, 4294901760
  %7141 = vmatpush1.msra.mxu0 %v7140
  %7142 = vmatprep.subr.mxu0 0.0
  %v7143 = vand.u32 %v17, 4294901760
  %v7144 = vsub.f32 %v17, %v7143
  %v7145 = vand.u32 %v7144, 4294901760
  %v7146 = vsub.f32 %v7144, %v7145
  %v7147 = vand.u32 %v7146, 4294901760
  %7148 = vmatpush1.msra.mxu0 %v7147
  %7149 = vmatprep.subr.mxu0 0.0
  %7150 = vmatpush2.msra.mxu0 0.0
  %7151 = vmatprep.subr.mxu0 0.0
  %7152 = vmatpush2.msra.mxu0 0.0
  %7153 = vmatprep.subr.mxu0 0.0
  %7154 = vmatpush2.msra.mxu0 0.0
  %7155 = vmatprep.subr.mxu0 0.0
  %7156 = vmatpush2.msra.mxu0 0.0
  %7157 = vmatprep.subr.mxu0 0.0
  %7158 = vmatpush2.msra.mxu0 0.0
  %7159 = vmatprep.subr.mxu0 0.0
  %7160 = vmatpush2.msra.mxu0 0.0
  %7161 = vmatprep.subr.mxu0 0.0
  %7162 = vmatpush2.msra.mxu0 0.0
  %7163 = vmatprep.subr.mxu0 0.0
  %7164 = vmatpush2.msra.mxu0 0.0
  %7165 = vmatprep.subr.mxu0 0.0
  %7166 = vmatpush2.msra.mxu0 0.0
  %7167 = vmatprep.subr.mxu0 0.0
  %7168 = vmatpush2.msra.mxu0 0.0
  %7169 = vmatprep.subr.mxu0 0.0
  %7170 = vmatpush2.msra.mxu0 0.0
  %7171 = vmatprep.subr.mxu0 0.0
  %7172 = vmatpush2.msra.mxu0 0.0
  %7173 = vmatprep.subr.mxu0 0.0
  %7174 = vmatpush2.msra.mxu0 0.0
  %7175 = vmatprep.subr.mxu0 0.0
  %7176 = vmatpush2.msra.mxu0 0.0
  %7177 = vmatprep.subr.mxu0 0.0
  %7178 = vmatpush2.msra.mxu0 0.0
  %7179 = vmatprep.subr.mxu0 0.0
  %7180 = vmatpush2.msra.mxu0 0.0
  %7181 = vmatprep.mubr.f32.mxu0 0.0
  %v7182 = vand.u32 %v6943, 4294901760
  %7183 = vmatmul.mubr.f32.gmra.mxu0 %v7182
  %v7184 = vpop.f32.mrf.mxu0
  %v7185 = vadd.f32 %v7034, %v7184
  %v7186 = vpop.f32.mrf.mxu0
  %7187 = vdwg.mxu0
  %7188 = vmatprep.subr.mxu0 0.0
  %v7189 = vand.u32 %v32, 4294901760
  %v7190 = vsub.f32 %v32, %v7189
  %7191 = vmatpush1.msra.mxu0 %v7190
  %7192 = vmatprep.subr.mxu0 0.0
  %v7193 = vand.u32 %v31, 4294901760
  %v7194 = vsub.f32 %v31, %v7193
  %7195 = vmatpush1.msra.mxu0 %v7194
  %7196 = vmatprep.subr.mxu0 0.0
  %v7197 = vand.u32 %v30, 4294901760
  %v7198 = vsub.f32 %v30, %v7197
  %7199 = vmatpush1.msra.mxu0 %v7198
  %7200 = vmatprep.subr.mxu0 0.0
  %v7201 = vand.u32 %v29, 4294901760
  %v7202 = vsub.f32 %v29, %v7201
  %7203 = vmatpush1.msra.mxu0 %v7202
  %7204 = vmatprep.subr.mxu0 0.0
  %v7205 = vand.u32 %v28, 4294901760
  %v7206 = vsub.f32 %v28, %v7205
  %7207 = vmatpush1.msra.mxu0 %v7206
  %7208 = vmatprep.subr.mxu0 0.0
  %v7209 = vand.u32 %v27, 4294901760
  %v7210 = vsub.f32 %v27, %v7209
  %7211 = vmatpush1.msra.mxu0 %v7210
  %7212 = vmatprep.subr.mxu0 0.0
  %v7213 = vand.u32 %v26, 4294901760
  %v7214 = vsub.f32 %v26, %v7213
  %7215 = vmatpush1.msra.mxu0 %v7214
  %7216 = vmatprep.subr.mxu0 0.0
  %v7217 = vand.u32 %v25, 4294901760
  %v7218 = vsub.f32 %v25, %v7217
  %7219 = vmatpush1.msra.mxu0 %v7218
  %7220 = vmatprep.subr.mxu0 0.0
  %v7221 = vand.u32 %v24, 4294901760
  %v7222 = vsub.f32 %v24, %v7221
  %7223 = vmatpush1.msra.mxu0 %v7222
  %7224 = vmatprep.subr.mxu0 0.0
  %v7225 = vand.u32 %v23, 4294901760
  %v7226 = vsub.f32 %v23, %v7225
  %7227 = vmatpush1.msra.mxu0 %v7226
  %7228 = vmatprep.subr.mxu0 0.0
  %v7229 = vand.u32 %v22, 4294901760
  %v7230 = vsub.f32 %v22, %v7229
  %7231 = vmatpush1.msra.mxu0 %v7230
  %7232 = vmatprep.subr.mxu0 0.0
  %v7233 = vand.u32 %v21, 4294901760
  %v7234 = vsub.f32 %v21, %v7233
  %7235 = vmatpush1.msra.mxu0 %v7234
  %7236 = vmatprep.subr.mxu0 0.0
  %v7237 = vand.u32 %v20, 4294901760
  %v7238 = vsub.f32 %v20, %v7237
  %7239 = vmatpush1.msra.mxu0 %v7238
  %7240 = vmatprep.subr.mxu0 0.0
  %v7241 = vand.u32 %v19, 4294901760
  %v7242 = vsub.f32 %v19, %v7241
  %7243 = vmatpush1.msra.mxu0 %v7242
  %7244 = vmatprep.subr.mxu0 0.0
  %v7245 = vand.u32 %v18, 4294901760
  %v7246 = vsub.f32 %v18, %v7245
  %7247 = vmatpush1.msra.mxu0 %v7246
  %7248 = vmatprep.subr.mxu0 0.0
  %v7249 = vand.u32 %v17, 4294901760
  %v7250 = vsub.f32 %v17, %v7249
  %7251 = vmatpush1.msra.mxu0 %v7250
  %7252 = vmatprep.subr.mxu0 0.0
  %7253 = vmatpush2.msra.mxu0 0.0
  %7254 = vmatprep.subr.mxu0 0.0
  %7255 = vmatpush2.msra.mxu0 0.0
  %7256 = vmatprep.subr.mxu0 0.0
  %7257 = vmatpush2.msra.mxu0 0.0
  %7258 = vmatprep.subr.mxu0 0.0
  %7259 = vmatpush2.msra.mxu0 0.0
  %7260 = vmatprep.subr.mxu0 0.0
  %7261 = vmatpush2.msra.mxu0 0.0
  %7262 = vmatprep.subr.mxu0 0.0
  %7263 = vmatpush2.msra.mxu0 0.0
  %7264 = vmatprep.subr.mxu0 0.0
  %7265 = vmatpush2.msra.mxu0 0.0
  %7266 = vmatprep.subr.mxu0 0.0
  %7267 = vmatpush2.msra.mxu0 0.0
  %7268 = vmatprep.subr.mxu0 0.0
  %7269 = vmatpush2.msra.mxu0 0.0
  %7270 = vmatprep.subr.mxu0 0.0
  %7271 = vmatpush2.msra.mxu0 0.0
  %7272 = vmatprep.subr.mxu0 0.0
  %7273 = vmatpush2.msra.mxu0 0.0
  %7274 = vmatprep.subr.mxu0 0.0
  %7275 = vmatpush2.msra.mxu0 0.0
  %7276 = vmatprep.subr.mxu0 0.0
  %7277 = vmatpush2.msra.mxu0 0.0
  %7278 = vmatprep.subr.mxu0 0.0
  %7279 = vmatpush2.msra.mxu0 0.0
  %7280 = vmatprep.subr.mxu0 0.0
  %7281 = vmatpush2.msra.mxu0 0.0
  %7282 = vmatprep.subr.mxu0 0.0
  %7283 = vmatpush2.msra.mxu0 0.0
  %7284 = vmatprep.mubr.f32.mxu0 0.0
  %v7285 = vand.u32 %v6943, 4294901760
  %v7286 = vsub.f32 %v6943, %v7285
  %7287 = vmatmul.mubr.f32.gmra.mxu0 %v7286
  %v7288 = vpop.f32.mrf.mxu0
  %v7289 = vadd.f32 %v7185, %v7288
  %v7290 = vpop.f32.mrf.mxu0
  %7291 = vdwg.mxu0
  %7292 = vmatprep.subr.mxu0 0.0
  %v7293 = vand.u32 %v32, 4294901760
  %7294 = vmatpush1.msra.mxu0 %v7293
  %7295 = vmatprep.subr.mxu0 0.0
  %v7296 = vand.u32 %v31, 4294901760
  %7297 = vmatpush1.msra.mxu0 %v7296
  %7298 = vmatprep.subr.mxu0 0.0
  %v7299 = vand.u32 %v30, 4294901760
  %7300 = vmatpush1.msra.mxu0 %v7299
  %7301 = vmatprep.subr.mxu0 0.0
  %v7302 = vand.u32 %v29, 4294901760
  %7303 = vmatpush1.msra.mxu0 %v7302
  %7304 = vmatprep.subr.mxu0 0.0
  %v7305 = vand.u32 %v28, 4294901760
  %7306 = vmatpush1.msra.mxu0 %v7305
  %7307 = vmatprep.subr.mxu0 0.0
  %v7308 = vand.u32 %v27, 4294901760
  %7309 = vmatpush1.msra.mxu0 %v7308
  %7310 = vmatprep.subr.mxu0 0.0
  %v7311 = vand.u32 %v26, 4294901760
  %7312 = vmatpush1.msra.mxu0 %v7311
  %7313 = vmatprep.subr.mxu0 0.0
  %v7314 = vand.u32 %v25, 4294901760
  %7315 = vmatpush1.msra.mxu0 %v7314
  %7316 = vmatprep.subr.mxu0 0.0
  %v7317 = vand.u32 %v24, 4294901760
  %7318 = vmatpush1.msra.mxu0 %v7317
  %7319 = vmatprep.subr.mxu0 0.0
  %v7320 = vand.u32 %v23, 4294901760
  %7321 = vmatpush1.msra.mxu0 %v7320
  %7322 = vmatprep.subr.mxu0 0.0
  %v7323 = vand.u32 %v22, 4294901760
  %7324 = vmatpush1.msra.mxu0 %v7323
  %7325 = vmatprep.subr.mxu0 0.0
  %v7326 = vand.u32 %v21, 4294901760
  %7327 = vmatpush1.msra.mxu0 %v7326
  %7328 = vmatprep.subr.mxu0 0.0
  %v7329 = vand.u32 %v20, 4294901760
  %7330 = vmatpush1.msra.mxu0 %v7329
  %7331 = vmatprep.subr.mxu0 0.0
  %v7332 = vand.u32 %v19, 4294901760
  %7333 = vmatpush1.msra.mxu0 %v7332
  %7334 = vmatprep.subr.mxu0 0.0
  %v7335 = vand.u32 %v18, 4294901760
  %7336 = vmatpush1.msra.mxu0 %v7335
  %7337 = vmatprep.subr.mxu0 0.0
  %v7338 = vand.u32 %v17, 4294901760
  %7339 = vmatpush1.msra.mxu0 %v7338
  %7340 = vmatprep.subr.mxu0 0.0
  %7341 = vmatpush2.msra.mxu0 0.0
  %7342 = vmatprep.subr.mxu0 0.0
  %7343 = vmatpush2.msra.mxu0 0.0
  %7344 = vmatprep.subr.mxu0 0.0
  %7345 = vmatpush2.msra.mxu0 0.0
  %7346 = vmatprep.subr.mxu0 0.0
  %7347 = vmatpush2.msra.mxu0 0.0
  %7348 = vmatprep.subr.mxu0 0.0
  %7349 = vmatpush2.msra.mxu0 0.0
  %7350 = vmatprep.subr.mxu0 0.0
  %7351 = vmatpush2.msra.mxu0 0.0
  %7352 = vmatprep.subr.mxu0 0.0
  %7353 = vmatpush2.msra.mxu0 0.0
  %7354 = vmatprep.subr.mxu0 0.0
  %7355 = vmatpush2.msra.mxu0 0.0
  %7356 = vmatprep.subr.mxu0 0.0
  %7357 = vmatpush2.msra.mxu0 0.0
  %7358 = vmatprep.subr.mxu0 0.0
  %7359 = vmatpush2.msra.mxu0 0.0
  %7360 = vmatprep.subr.mxu0 0.0
  %7361 = vmatpush2.msra.mxu0 0.0
  %7362 = vmatprep.subr.mxu0 0.0
  %7363 = vmatpush2.msra.mxu0 0.0
  %7364 = vmatprep.subr.mxu0 0.0
  %7365 = vmatpush2.msra.mxu0 0.0
  %7366 = vmatprep.subr.mxu0 0.0
  %7367 = vmatpush2.msra.mxu0 0.0
  %7368 = vmatprep.subr.mxu0 0.0
  %7369 = vmatpush2.msra.mxu0 0.0
  %7370 = vmatprep.subr.mxu0 0.0
  %7371 = vmatpush2.msra.mxu0 0.0
  %7372 = vmatprep.mubr.f32.mxu0 0.0
  %v7373 = vand.u32 %v6943, 4294901760
  %v7374 = vsub.f32 %v6943, %v7373
  %v7375 = vand.u32 %v7374, 4294901760
  %7376 = vmatmul.mubr.f32.gmra.mxu0 %v7375
  %v7377 = vpop.f32.mrf.mxu0
  %v7378 = vadd.f32 %v7289, %v7377
  %v7379 = vpop.f32.mrf.mxu0
  %7380 = vdwg.mxu0
  %7381 = vmatprep.subr.mxu0 0.0
  %v7382 = vand.u32 %v32, 4294901760
  %v7383 = vsub.f32 %v32, %v7382
  %v7384 = vand.u32 %v7383, 4294901760
  %7385 = vmatpush1.msra.mxu0 %v7384
  %7386 = vmatprep.subr.mxu0 0.0
  %v7387 = vand.u32 %v31, 4294901760
  %v7388 = vsub.f32 %v31, %v7387
  %v7389 = vand.u32 %v7388, 4294901760
  %7390 = vmatpush1.msra.mxu0 %v7389
  %7391 = vmatprep.subr.mxu0 0.0
  %v7392 = vand.u32 %v30, 4294901760
  %v7393 = vsub.f32 %v30, %v7392
  %v7394 = vand.u32 %v7393, 4294901760
  %7395 = vmatpush1.msra.mxu0 %v7394
  %7396 = vmatprep.subr.mxu0 0.0
  %v7397 = vand.u32 %v29, 4294901760
  %v7398 = vsub.f32 %v29, %v7397
  %v7399 = vand.u32 %v7398, 4294901760
  %7400 = vmatpush1.msra.mxu0 %v7399
  %7401 = vmatprep.subr.mxu0 0.0
  %v7402 = vand.u32 %v28, 4294901760
  %v7403 = vsub.f32 %v28, %v7402
  %v7404 = vand.u32 %v7403, 4294901760
  %7405 = vmatpush1.msra.mxu0 %v7404
  %7406 = vmatprep.subr.mxu0 0.0
  %v7407 = vand.u32 %v27, 4294901760
  %v7408 = vsub.f32 %v27, %v7407
  %v7409 = vand.u32 %v7408, 4294901760
  %7410 = vmatpush1.msra.mxu0 %v7409
  %7411 = vmatprep.subr.mxu0 0.0
  %v7412 = vand.u32 %v26, 4294901760
  %v7413 = vsub.f32 %v26, %v7412
  %v7414 = vand.u32 %v7413, 4294901760
  %7415 = vmatpush1.msra.mxu0 %v7414
  %7416 = vmatprep.subr.mxu0 0.0
  %v7417 = vand.u32 %v25, 4294901760
  %v7418 = vsub.f32 %v25, %v7417
  %v7419 = vand.u32 %v7418, 4294901760
  %7420 = vmatpush1.msra.mxu0 %v7419
  %7421 = vmatprep.subr.mxu0 0.0
  %v7422 = vand.u32 %v24, 4294901760
  %v7423 = vsub.f32 %v24, %v7422
  %v7424 = vand.u32 %v7423, 4294901760
  %7425 = vmatpush1.msra.mxu0 %v7424
  %7426 = vmatprep.subr.mxu0 0.0
  %v7427 = vand.u32 %v23, 4294901760
  %v7428 = vsub.f32 %v23, %v7427
  %v7429 = vand.u32 %v7428, 4294901760
  %7430 = vmatpush1.msra.mxu0 %v7429
  %7431 = vmatprep.subr.mxu0 0.0
  %v7432 = vand.u32 %v22, 4294901760
  %v7433 = vsub.f32 %v22, %v7432
  %v7434 = vand.u32 %v7433, 4294901760
  %7435 = vmatpush1.msra.mxu0 %v7434
  %7436 = vmatprep.subr.mxu0 0.0
  %v7437 = vand.u32 %v21, 4294901760
  %v7438 = vsub.f32 %v21, %v7437
  %v7439 = vand.u32 %v7438, 4294901760
  %7440 = vmatpush1.msra.mxu0 %v7439
  %7441 = vmatprep.subr.mxu0 0.0
  %v7442 = vand.u32 %v20, 4294901760
  %v7443 = vsub.f32 %v20, %v7442
  %v7444 = vand.u32 %v7443, 4294901760
  %7445 = vmatpush1.msra.mxu0 %v7444
  %7446 = vmatprep.subr.mxu0 0.0
  %v7447 = vand.u32 %v19, 4294901760
  %v7448 = vsub.f32 %v19, %v7447
  %v7449 = vand.u32 %v7448, 4294901760
  %7450 = vmatpush1.msra.mxu0 %v7449
  %7451 = vmatprep.subr.mxu0 0.0
  %v7452 = vand.u32 %v18, 4294901760
  %v7453 = vsub.f32 %v18, %v7452
  %v7454 = vand.u32 %v7453, 4294901760
  %7455 = vmatpush1.msra.mxu0 %v7454
  %7456 = vmatprep.subr.mxu0 0.0
  %v7457 = vand.u32 %v17, 4294901760
  %v7458 = vsub.f32 %v17, %v7457
  %v7459 = vand.u32 %v7458, 4294901760
  %7460 = vmatpush1.msra.mxu0 %v7459
  %7461 = vmatprep.subr.mxu0 0.0
  %7462 = vmatpush2.msra.mxu0 0.0
  %7463 = vmatprep.subr.mxu0 0.0
  %7464 = vmatpush2.msra.mxu0 0.0
  %7465 = vmatprep.subr.mxu0 0.0
  %7466 = vmatpush2.msra.mxu0 0.0
  %7467 = vmatprep.subr.mxu0 0.0
  %7468 = vmatpush2.msra.mxu0 0.0
  %7469 = vmatprep.subr.mxu0 0.0
  %7470 = vmatpush2.msra.mxu0 0.0
  %7471 = vmatprep.subr.mxu0 0.0
  %7472 = vmatpush2.msra.mxu0 0.0
  %7473 = vmatprep.subr.mxu0 0.0
  %7474 = vmatpush2.msra.mxu0 0.0
  %7475 = vmatprep.subr.mxu0 0.0
  %7476 = vmatpush2.msra.mxu0 0.0
  %7477 = vmatprep.subr.mxu0 0.0
  %7478 = vmatpush2.msra.mxu0 0.0
  %7479 = vmatprep.subr.mxu0 0.0
  %7480 = vmatpush2.msra.mxu0 0.0
  %7481 = vmatprep.subr.mxu0 0.0
  %7482 = vmatpush2.msra.mxu0 0.0
  %7483 = vmatprep.subr.mxu0 0.0
  %7484 = vmatpush2.msra.mxu0 0.0
  %7485 = vmatprep.subr.mxu0 0.0
  %7486 = vmatpush2.msra.mxu0 0.0
  %7487 = vmatprep.subr.mxu0 0.0
  %7488 = vmatpush2.msra.mxu0 0.0
  %7489 = vmatprep.subr.mxu0 0.0
  %7490 = vmatpush2.msra.mxu0 0.0
  %7491 = vmatprep.subr.mxu0 0.0
  %7492 = vmatpush2.msra.mxu0 0.0
  %7493 = vmatprep.mubr.f32.mxu0 0.0
  %v7494 = vand.u32 %v6943, 4294901760
  %7495 = vmatmul.mubr.f32.gmra.mxu0 %v7494
  %v7496 = vpop.f32.mrf.mxu0
  %v7497 = vadd.f32 %v7378, %v7496
  %v7498 = vpop.f32.mrf.mxu0
  %7499 = vdwg.mxu0
  %7500 = vmatprep.subr.mxu0 0.0
  %v7501 = vand.u32 %v32, 4294901760
  %7502 = vmatpush1.msra.mxu0 %v7501
  %7503 = vmatprep.subr.mxu0 0.0
  %v7504 = vand.u32 %v31, 4294901760
  %7505 = vmatpush1.msra.mxu0 %v7504
  %7506 = vmatprep.subr.mxu0 0.0
  %v7507 = vand.u32 %v30, 4294901760
  %7508 = vmatpush1.msra.mxu0 %v7507
  %7509 = vmatprep.subr.mxu0 0.0
  %v7510 = vand.u32 %v29, 4294901760
  %7511 = vmatpush1.msra.mxu0 %v7510
  %7512 = vmatprep.subr.mxu0 0.0
  %v7513 = vand.u32 %v28, 4294901760
  %7514 = vmatpush1.msra.mxu0 %v7513
  %7515 = vmatprep.subr.mxu0 0.0
  %v7516 = vand.u32 %v27, 4294901760
  %7517 = vmatpush1.msra.mxu0 %v7516
  %7518 = vmatprep.subr.mxu0 0.0
  %v7519 = vand.u32 %v26, 4294901760
  %7520 = vmatpush1.msra.mxu0 %v7519
  %7521 = vmatprep.subr.mxu0 0.0
  %v7522 = vand.u32 %v25, 4294901760
  %7523 = vmatpush1.msra.mxu0 %v7522
  %7524 = vmatprep.subr.mxu0 0.0
  %v7525 = vand.u32 %v24, 4294901760
  %7526 = vmatpush1.msra.mxu0 %v7525
  %7527 = vmatprep.subr.mxu0 0.0
  %v7528 = vand.u32 %v23, 4294901760
  %7529 = vmatpush1.msra.mxu0 %v7528
  %7530 = vmatprep.subr.mxu0 0.0
  %v7531 = vand.u32 %v22, 4294901760
  %7532 = vmatpush1.msra.mxu0 %v7531
  %7533 = vmatprep.subr.mxu0 0.0
  %v7534 = vand.u32 %v21, 4294901760
  %7535 = vmatpush1.msra.mxu0 %v7534
  %7536 = vmatprep.subr.mxu0 0.0
  %v7537 = vand.u32 %v20, 4294901760
  %7538 = vmatpush1.msra.mxu0 %v7537
  %7539 = vmatprep.subr.mxu0 0.0
  %v7540 = vand.u32 %v19, 4294901760
  %7541 = vmatpush1.msra.mxu0 %v7540
  %7542 = vmatprep.subr.mxu0 0.0
  %v7543 = vand.u32 %v18, 4294901760
  %7544 = vmatpush1.msra.mxu0 %v7543
  %7545 = vmatprep.subr.mxu0 0.0
  %v7546 = vand.u32 %v17, 4294901760
  %7547 = vmatpush1.msra.mxu0 %v7546
  %7548 = vmatprep.subr.mxu0 0.0
  %7549 = vmatpush2.msra.mxu0 0.0
  %7550 = vmatprep.subr.mxu0 0.0
  %7551 = vmatpush2.msra.mxu0 0.0
  %7552 = vmatprep.subr.mxu0 0.0
  %7553 = vmatpush2.msra.mxu0 0.0
  %7554 = vmatprep.subr.mxu0 0.0
  %7555 = vmatpush2.msra.mxu0 0.0
  %7556 = vmatprep.subr.mxu0 0.0
  %7557 = vmatpush2.msra.mxu0 0.0
  %7558 = vmatprep.subr.mxu0 0.0
  %7559 = vmatpush2.msra.mxu0 0.0
  %7560 = vmatprep.subr.mxu0 0.0
  %7561 = vmatpush2.msra.mxu0 0.0
  %7562 = vmatprep.subr.mxu0 0.0
  %7563 = vmatpush2.msra.mxu0 0.0
  %7564 = vmatprep.subr.mxu0 0.0
  %7565 = vmatpush2.msra.mxu0 0.0
  %7566 = vmatprep.subr.mxu0 0.0
  %7567 = vmatpush2.msra.mxu0 0.0
  %7568 = vmatprep.subr.mxu0 0.0
  %7569 = vmatpush2.msra.mxu0 0.0
  %7570 = vmatprep.subr.mxu0 0.0
  %7571 = vmatpush2.msra.mxu0 0.0
  %7572 = vmatprep.subr.mxu0 0.0
  %7573 = vmatpush2.msra.mxu0 0.0
  %7574 = vmatprep.subr.mxu0 0.0
  %7575 = vmatpush2.msra.mxu0 0.0
  %7576 = vmatprep.subr.mxu0 0.0
  %7577 = vmatpush2.msra.mxu0 0.0
  %7578 = vmatprep.subr.mxu0 0.0
  %7579 = vmatpush2.msra.mxu0 0.0
  %7580 = vmatprep.mubr.f32.mxu0 0.0
  %v7581 = vand.u32 %v6943, 4294901760
  %7582 = vmatmul.mubr.f32.gmra.mxu0 %v7581
  %v7583 = vpop.f32.mrf.mxu0
  %v7584 = vadd.f32 %v7497, %v7583
  %v7585 = vpop.f32.mrf.mxu0
  %7586 = vdwg.mxu0
  %v7587 = vmul.f32 %v7584, 0.001953125
  %v7588 = vlaneseq
  %v7589 = vshrl.u32 %v7588, 7
  %v7590 = vsub.s32 0, %v7589
  %v7591 = vrot.slane %v7587, %v7590
  %v7592 = vsub.f32 %v6485, %v7591
  %v7593 = vsub.f32 %v6486, %v7591
  %v7594 = vmul.f32 %v7592, %v7592
  %v7595 = vmul.f32 %v7593, %v7593
  %7596 = vmatprep.subr.mxu0 0.0
  %7597 = vmatpush1.msra.mxu0 0.0
  %7598 = vmatprep.subr.mxu0 0.0
  %7599 = vmatpush1.msra.mxu0 0.0
  %7600 = vmatprep.subr.mxu0 0.0
  %7601 = vmatpush1.msra.mxu0 0.0
  %7602 = vmatprep.subr.mxu0 0.0
  %7603 = vmatpush1.msra.mxu0 0.0
  %7604 = vmatprep.subr.mxu0 0.0
  %7605 = vmatpush1.msra.mxu0 0.0
  %7606 = vmatprep.subr.mxu0 0.0
  %7607 = vmatpush1.msra.mxu0 0.0
  %7608 = vmatprep.subr.mxu0 0.0
  %7609 = vmatpush1.msra.mxu0 0.0
  %7610 = vmatprep.subr.mxu0 0.0
  %7611 = vmatpush1.msra.mxu0 0.0
  %7612 = vmatprep.subr.mxu0 0.0
  %7613 = vmatpush1.msra.mxu0 0.0
  %7614 = vmatprep.subr.mxu0 0.0
  %7615 = vmatpush1.msra.mxu0 0.0
  %7616 = vmatprep.subr.mxu0 0.0
  %7617 = vmatpush1.msra.mxu0 0.0
  %7618 = vmatprep.subr.mxu0 0.0
  %7619 = vmatpush1.msra.mxu0 0.0
  %7620 = vmatprep.subr.mxu0 0.0
  %7621 = vmatpush1.msra.mxu0 0.0
  %7622 = vmatprep.subr.mxu0 0.0
  %7623 = vmatpush1.msra.mxu0 0.0
  %7624 = vmatprep.subr.mxu0 0.0
  %v7625 = vand.u32 %v7595, 4294901760
  %7626 = vmatpush1.msra.mxu0 %v7625
  %7627 = vmatprep.subr.mxu0 0.0
  %v7628 = vand.u32 %v7594, 4294901760
  %7629 = vmatpush1.msra.mxu0 %v7628
  %7630 = vmatprep.subr.mxu0 0.0
  %7631 = vmatpush2.msra.mxu0 0.0
  %7632 = vmatprep.subr.mxu0 0.0
  %7633 = vmatpush2.msra.mxu0 0.0
  %7634 = vmatprep.subr.mxu0 0.0
  %7635 = vmatpush2.msra.mxu0 0.0
  %7636 = vmatprep.subr.mxu0 0.0
  %7637 = vmatpush2.msra.mxu0 0.0
  %7638 = vmatprep.subr.mxu0 0.0
  %7639 = vmatpush2.msra.mxu0 0.0
  %7640 = vmatprep.subr.mxu0 0.0
  %7641 = vmatpush2.msra.mxu0 0.0
  %7642 = vmatprep.subr.mxu0 0.0
  %7643 = vmatpush2.msra.mxu0 0.0
  %7644 = vmatprep.subr.mxu0 0.0
  %7645 = vmatpush2.msra.mxu0 0.0
  %7646 = vmatprep.subr.mxu0 0.0
  %7647 = vmatpush2.msra.mxu0 0.0
  %7648 = vmatprep.subr.mxu0 0.0
  %7649 = vmatpush2.msra.mxu0 0.0
  %7650 = vmatprep.subr.mxu0 0.0
  %7651 = vmatpush2.msra.mxu0 0.0
  %7652 = vmatprep.subr.mxu0 0.0
  %7653 = vmatpush2.msra.mxu0 0.0
  %7654 = vmatprep.subr.mxu0 0.0
  %7655 = vmatpush2.msra.mxu0 0.0
  %7656 = vmatprep.subr.mxu0 0.0
  %7657 = vmatpush2.msra.mxu0 0.0
  %7658 = vmatprep.subr.mxu0 0.0
  %7659 = vmatpush2.msra.mxu0 0.0
  %7660 = vmatprep.subr.mxu0 0.0
  %7661 = vmatpush2.msra.mxu0 0.0
  %7662 = vmatprep.mubr.f32.mxu0 0.0
  %v7663 = vand.u32 %v2153, 4294901760
  %v7664 = vsub.f32 %v2153, %v7663
  %v7665 = vand.u32 %v7664, 4294901760
  %v7666 = vsub.f32 %v7664, %v7665
  %v7667 = vand.u32 %v7666, 4294901760
  %7668 = vmatmul.mubr.f32.gmra.mxu0 %v7667
  %v7669 = vpop.f32.mrf.mxu0
  %v7670 = vadd.f32 0.0, %v7669
  %v7671 = vpop.f32.mrf.mxu0
  %7672 = vdwg.mxu0
  %7673 = vmatprep.subr.mxu0 0.0
  %7674 = vmatpush1.msra.mxu0 0.0
  %7675 = vmatprep.subr.mxu0 0.0
  %7676 = vmatpush1.msra.mxu0 0.0
  %7677 = vmatprep.subr.mxu0 0.0
  %7678 = vmatpush1.msra.mxu0 0.0
  %7679 = vmatprep.subr.mxu0 0.0
  %7680 = vmatpush1.msra.mxu0 0.0
  %7681 = vmatprep.subr.mxu0 0.0
  %7682 = vmatpush1.msra.mxu0 0.0
  %7683 = vmatprep.subr.mxu0 0.0
  %7684 = vmatpush1.msra.mxu0 0.0
  %7685 = vmatprep.subr.mxu0 0.0
  %7686 = vmatpush1.msra.mxu0 0.0
  %7687 = vmatprep.subr.mxu0 0.0
  %7688 = vmatpush1.msra.mxu0 0.0
  %7689 = vmatprep.subr.mxu0 0.0
  %7690 = vmatpush1.msra.mxu0 0.0
  %7691 = vmatprep.subr.mxu0 0.0
  %7692 = vmatpush1.msra.mxu0 0.0
  %7693 = vmatprep.subr.mxu0 0.0
  %7694 = vmatpush1.msra.mxu0 0.0
  %7695 = vmatprep.subr.mxu0 0.0
  %7696 = vmatpush1.msra.mxu0 0.0
  %7697 = vmatprep.subr.mxu0 0.0
  %7698 = vmatpush1.msra.mxu0 0.0
  %7699 = vmatprep.subr.mxu0 0.0
  %7700 = vmatpush1.msra.mxu0 0.0
  %7701 = vmatprep.subr.mxu0 0.0
  %v7702 = vand.u32 %v7595, 4294901760
  %v7703 = vsub.f32 %v7595, %v7702
  %v7704 = vand.u32 %v7703, 4294901760
  %v7705 = vsub.f32 %v7703, %v7704
  %v7706 = vand.u32 %v7705, 4294901760
  %7707 = vmatpush1.msra.mxu0 %v7706
  %7708 = vmatprep.subr.mxu0 0.0
  %v7709 = vand.u32 %v7594, 4294901760
  %v7710 = vsub.f32 %v7594, %v7709
  %v7711 = vand.u32 %v7710, 4294901760
  %v7712 = vsub.f32 %v7710, %v7711
  %v7713 = vand.u32 %v7712, 4294901760
  %7714 = vmatpush1.msra.mxu0 %v7713
  %7715 = vmatprep.subr.mxu0 0.0
  %7716 = vmatpush2.msra.mxu0 0.0
  %7717 = vmatprep.subr.mxu0 0.0
  %7718 = vmatpush2.msra.mxu0 0.0
  %7719 = vmatprep.subr.mxu0 0.0
  %7720 = vmatpush2.msra.mxu0 0.0
  %7721 = vmatprep.subr.mxu0 0.0
  %7722 = vmatpush2.msra.mxu0 0.0
  %7723 = vmatprep.subr.mxu0 0.0
  %7724 = vmatpush2.msra.mxu0 0.0
  %7725 = vmatprep.subr.mxu0 0.0
  %7726 = vmatpush2.msra.mxu0 0.0
  %7727 = vmatprep.subr.mxu0 0.0
  %7728 = vmatpush2.msra.mxu0 0.0
  %7729 = vmatprep.subr.mxu0 0.0
  %7730 = vmatpush2.msra.mxu0 0.0
  %7731 = vmatprep.subr.mxu0 0.0
  %7732 = vmatpush2.msra.mxu0 0.0
  %7733 = vmatprep.subr.mxu0 0.0
  %7734 = vmatpush2.msra.mxu0 0.0
  %7735 = vmatprep.subr.mxu0 0.0
  %7736 = vmatpush2.msra.mxu0 0.0
  %7737 = vmatprep.subr.mxu0 0.0
  %7738 = vmatpush2.msra.mxu0 0.0
  %7739 = vmatprep.subr.mxu0 0.0
  %7740 = vmatpush2.msra.mxu0 0.0
  %7741 = vmatprep.subr.mxu0 0.0
  %7742 = vmatpush2.msra.mxu0 0.0
  %7743 = vmatprep.subr.mxu0 0.0
  %7744 = vmatpush2.msra.mxu0 0.0
  %7745 = vmatprep.subr.mxu0 0.0
  %7746 = vmatpush2.msra.mxu0 0.0
  %7747 = vmatprep.mubr.f32.mxu0 0.0
  %v7748 = vand.u32 %v2153, 4294901760
  %7749 = vmatmul.mubr.f32.gmra.mxu0 %v7748
  %v7750 = vpop.f32.mrf.mxu0
  %v7751 = vadd.f32 %v7670, %v7750
  %v7752 = vpop.f32.mrf.mxu0
  %7753 = vdwg.mxu0
  %7754 = vmatprep.subr.mxu0 0.0
  %7755 = vmatpush1.msra.mxu0 0.0
  %7756 = vmatprep.subr.mxu0 0.0
  %7757 = vmatpush1.msra.mxu0 0.0
  %7758 = vmatprep.subr.mxu0 0.0
  %7759 = vmatpush1.msra.mxu0 0.0
  %7760 = vmatprep.subr.mxu0 0.0
  %7761 = vmatpush1.msra.mxu0 0.0
  %7762 = vmatprep.subr.mxu0 0.0
  %7763 = vmatpush1.msra.mxu0 0.0
  %7764 = vmatprep.subr.mxu0 0.0
  %7765 = vmatpush1.msra.mxu0 0.0
  %7766 = vmatprep.subr.mxu0 0.0
  %7767 = vmatpush1.msra.mxu0 0.0
  %7768 = vmatprep.subr.mxu0 0.0
  %7769 = vmatpush1.msra.mxu0 0.0
  %7770 = vmatprep.subr.mxu0 0.0
  %7771 = vmatpush1.msra.mxu0 0.0
  %7772 = vmatprep.subr.mxu0 0.0
  %7773 = vmatpush1.msra.mxu0 0.0
  %7774 = vmatprep.subr.mxu0 0.0
  %7775 = vmatpush1.msra.mxu0 0.0
  %7776 = vmatprep.subr.mxu0 0.0
  %7777 = vmatpush1.msra.mxu0 0.0
  %7778 = vmatprep.subr.mxu0 0.0
  %7779 = vmatpush1.msra.mxu0 0.0
  %7780 = vmatprep.subr.mxu0 0.0
  %7781 = vmatpush1.msra.mxu0 0.0
  %7782 = vmatprep.subr.mxu0 0.0
  %v7783 = vand.u32 %v7595, 4294901760
  %v7784 = vsub.f32 %v7595, %v7783
  %7785 = vmatpush1.msra.mxu0 %v7784
  %7786 = vmatprep.subr.mxu0 0.0
  %v7787 = vand.u32 %v7594, 4294901760
  %v7788 = vsub.f32 %v7594, %v7787
  %7789 = vmatpush1.msra.mxu0 %v7788
  %7790 = vmatprep.subr.mxu0 0.0
  %7791 = vmatpush2.msra.mxu0 0.0
  %7792 = vmatprep.subr.mxu0 0.0
  %7793 = vmatpush2.msra.mxu0 0.0
  %7794 = vmatprep.subr.mxu0 0.0
  %7795 = vmatpush2.msra.mxu0 0.0
  %7796 = vmatprep.subr.mxu0 0.0
  %7797 = vmatpush2.msra.mxu0 0.0
  %7798 = vmatprep.subr.mxu0 0.0
  %7799 = vmatpush2.msra.mxu0 0.0
  %7800 = vmatprep.subr.mxu0 0.0
  %7801 = vmatpush2.msra.mxu0 0.0
  %7802 = vmatprep.subr.mxu0 0.0
  %7803 = vmatpush2.msra.mxu0 0.0
  %7804 = vmatprep.subr.mxu0 0.0
  %7805 = vmatpush2.msra.mxu0 0.0
  %7806 = vmatprep.subr.mxu0 0.0
  %7807 = vmatpush2.msra.mxu0 0.0
  %7808 = vmatprep.subr.mxu0 0.0
  %7809 = vmatpush2.msra.mxu0 0.0
  %7810 = vmatprep.subr.mxu0 0.0
  %7811 = vmatpush2.msra.mxu0 0.0
  %7812 = vmatprep.subr.mxu0 0.0
  %7813 = vmatpush2.msra.mxu0 0.0
  %7814 = vmatprep.subr.mxu0 0.0
  %7815 = vmatpush2.msra.mxu0 0.0
  %7816 = vmatprep.subr.mxu0 0.0
  %7817 = vmatpush2.msra.mxu0 0.0
  %7818 = vmatprep.subr.mxu0 0.0
  %7819 = vmatpush2.msra.mxu0 0.0
  %7820 = vmatprep.subr.mxu0 0.0
  %7821 = vmatpush2.msra.mxu0 0.0
  %7822 = vmatprep.mubr.f32.mxu0 0.0
  %v7823 = vand.u32 %v2153, 4294901760
  %v7824 = vsub.f32 %v2153, %v7823
  %7825 = vmatmul.mubr.f32.gmra.mxu0 %v7824
  %v7826 = vpop.f32.mrf.mxu0
  %v7827 = vadd.f32 %v7751, %v7826
  %v7828 = vpop.f32.mrf.mxu0
  %7829 = vdwg.mxu0
  %7830 = vmatprep.subr.mxu0 0.0
  %7831 = vmatpush1.msra.mxu0 0.0
  %7832 = vmatprep.subr.mxu0 0.0
  %7833 = vmatpush1.msra.mxu0 0.0
  %7834 = vmatprep.subr.mxu0 0.0
  %7835 = vmatpush1.msra.mxu0 0.0
  %7836 = vmatprep.subr.mxu0 0.0
  %7837 = vmatpush1.msra.mxu0 0.0
  %7838 = vmatprep.subr.mxu0 0.0
  %7839 = vmatpush1.msra.mxu0 0.0
  %7840 = vmatprep.subr.mxu0 0.0
  %7841 = vmatpush1.msra.mxu0 0.0
  %7842 = vmatprep.subr.mxu0 0.0
  %7843 = vmatpush1.msra.mxu0 0.0
  %7844 = vmatprep.subr.mxu0 0.0
  %7845 = vmatpush1.msra.mxu0 0.0
  %7846 = vmatprep.subr.mxu0 0.0
  %7847 = vmatpush1.msra.mxu0 0.0
  %7848 = vmatprep.subr.mxu0 0.0
  %7849 = vmatpush1.msra.mxu0 0.0
  %7850 = vmatprep.subr.mxu0 0.0
  %7851 = vmatpush1.msra.mxu0 0.0
  %7852 = vmatprep.subr.mxu0 0.0
  %7853 = vmatpush1.msra.mxu0 0.0
  %7854 = vmatprep.subr.mxu0 0.0
  %7855 = vmatpush1.msra.mxu0 0.0
  %7856 = vmatprep.subr.mxu0 0.0
  %7857 = vmatpush1.msra.mxu0 0.0
  %7858 = vmatprep.subr.mxu0 0.0
  %v7859 = vand.u32 %v7595, 4294901760
  %7860 = vmatpush1.msra.mxu0 %v7859
  %7861 = vmatprep.subr.mxu0 0.0
  %v7862 = vand.u32 %v7594, 4294901760
  %7863 = vmatpush1.msra.mxu0 %v7862
  %7864 = vmatprep.subr.mxu0 0.0
  %7865 = vmatpush2.msra.mxu0 0.0
  %7866 = vmatprep.subr.mxu0 0.0
  %7867 = vmatpush2.msra.mxu0 0.0
  %7868 = vmatprep.subr.mxu0 0.0
  %7869 = vmatpush2.msra.mxu0 0.0
  %7870 = vmatprep.subr.mxu0 0.0
  %7871 = vmatpush2.msra.mxu0 0.0
  %7872 = vmatprep.subr.mxu0 0.0
  %7873 = vmatpush2.msra.mxu0 0.0
  %7874 = vmatprep.subr.mxu0 0.0
  %7875 = vmatpush2.msra.mxu0 0.0
  %7876 = vmatprep.subr.mxu0 0.0
  %7877 = vmatpush2.msra.mxu0 0.0
  %7878 = vmatprep.subr.mxu0 0.0
  %7879 = vmatpush2.msra.mxu0 0.0
  %7880 = vmatprep.subr.mxu0 0.0
  %7881 = vmatpush2.msra.mxu0 0.0
  %7882 = vmatprep.subr.mxu0 0.0
  %7883 = vmatpush2.msra.mxu0 0.0
  %7884 = vmatprep.subr.mxu0 0.0
  %7885 = vmatpush2.msra.mxu0 0.0
  %7886 = vmatprep.subr.mxu0 0.0
  %7887 = vmatpush2.msra.mxu0 0.0
  %7888 = vmatprep.subr.mxu0 0.0
  %7889 = vmatpush2.msra.mxu0 0.0
  %7890 = vmatprep.subr.mxu0 0.0
  %7891 = vmatpush2.msra.mxu0 0.0
  %7892 = vmatprep.subr.mxu0 0.0
  %7893 = vmatpush2.msra.mxu0 0.0
  %7894 = vmatprep.subr.mxu0 0.0
  %7895 = vmatpush2.msra.mxu0 0.0
  %7896 = vmatprep.mubr.f32.mxu0 0.0
  %v7897 = vand.u32 %v2153, 4294901760
  %v7898 = vsub.f32 %v2153, %v7897
  %v7899 = vand.u32 %v7898, 4294901760
  %7900 = vmatmul.mubr.f32.gmra.mxu0 %v7899
  %v7901 = vpop.f32.mrf.mxu0
  %v7902 = vadd.f32 %v7827, %v7901
  %v7903 = vpop.f32.mrf.mxu0
  %7904 = vdwg.mxu0
  %7905 = vmatprep.subr.mxu0 0.0
  %7906 = vmatpush1.msra.mxu0 0.0
  %7907 = vmatprep.subr.mxu0 0.0
  %7908 = vmatpush1.msra.mxu0 0.0
  %7909 = vmatprep.subr.mxu0 0.0
  %7910 = vmatpush1.msra.mxu0 0.0
  %7911 = vmatprep.subr.mxu0 0.0
  %7912 = vmatpush1.msra.mxu0 0.0
  %7913 = vmatprep.subr.mxu0 0.0
  %7914 = vmatpush1.msra.mxu0 0.0
  %7915 = vmatprep.subr.mxu0 0.0
  %7916 = vmatpush1.msra.mxu0 0.0
  %7917 = vmatprep.subr.mxu0 0.0
  %7918 = vmatpush1.msra.mxu0 0.0
  %7919 = vmatprep.subr.mxu0 0.0
  %7920 = vmatpush1.msra.mxu0 0.0
  %7921 = vmatprep.subr.mxu0 0.0
  %7922 = vmatpush1.msra.mxu0 0.0
  %7923 = vmatprep.subr.mxu0 0.0
  %7924 = vmatpush1.msra.mxu0 0.0
  %7925 = vmatprep.subr.mxu0 0.0
  %7926 = vmatpush1.msra.mxu0 0.0
  %7927 = vmatprep.subr.mxu0 0.0
  %7928 = vmatpush1.msra.mxu0 0.0
  %7929 = vmatprep.subr.mxu0 0.0
  %7930 = vmatpush1.msra.mxu0 0.0
  %7931 = vmatprep.subr.mxu0 0.0
  %7932 = vmatpush1.msra.mxu0 0.0
  %7933 = vmatprep.subr.mxu0 0.0
  %v7934 = vand.u32 %v7595, 4294901760
  %v7935 = vsub.f32 %v7595, %v7934
  %v7936 = vand.u32 %v7935, 4294901760
  %7937 = vmatpush1.msra.mxu0 %v7936
  %7938 = vmatprep.subr.mxu0 0.0
  %v7939 = vand.u32 %v7594, 4294901760
  %v7940 = vsub.f32 %v7594, %v7939
  %v7941 = vand.u32 %v7940, 4294901760
  %7942 = vmatpush1.msra.mxu0 %v7941
  %7943 = vmatprep.subr.mxu0 0.0
  %7944 = vmatpush2.msra.mxu0 0.0
  %7945 = vmatprep.subr.mxu0 0.0
  %7946 = vmatpush2.msra.mxu0 0.0
  %7947 = vmatprep.subr.mxu0 0.0
  %7948 = vmatpush2.msra.mxu0 0.0
  %7949 = vmatprep.subr.mxu0 0.0
  %7950 = vmatpush2.msra.mxu0 0.0
  %7951 = vmatprep.subr.mxu0 0.0
  %7952 = vmatpush2.msra.mxu0 0.0
  %7953 = vmatprep.subr.mxu0 0.0
  %7954 = vmatpush2.msra.mxu0 0.0
  %7955 = vmatprep.subr.mxu0 0.0
  %7956 = vmatpush2.msra.mxu0 0.0
  %7957 = vmatprep.subr.mxu0 0.0
  %7958 = vmatpush2.msra.mxu0 0.0
  %7959 = vmatprep.subr.mxu0 0.0
  %7960 = vmatpush2.msra.mxu0 0.0
  %7961 = vmatprep.subr.mxu0 0.0
  %7962 = vmatpush2.msra.mxu0 0.0
  %7963 = vmatprep.subr.mxu0 0.0
  %7964 = vmatpush2.msra.mxu0 0.0
  %7965 = vmatprep.subr.mxu0 0.0
  %7966 = vmatpush2.msra.mxu0 0.0
  %7967 = vmatprep.subr.mxu0 0.0
  %7968 = vmatpush2.msra.mxu0 0.0
  %7969 = vmatprep.subr.mxu0 0.0
  %7970 = vmatpush2.msra.mxu0 0.0
  %7971 = vmatprep.subr.mxu0 0.0
  %7972 = vmatpush2.msra.mxu0 0.0
  %7973 = vmatprep.subr.mxu0 0.0
  %7974 = vmatpush2.msra.mxu0 0.0
  %7975 = vmatprep.mubr.f32.mxu0 0.0
  %v7976 = vand.u32 %v2153, 4294901760
  %7977 = vmatmul.mubr.f32.gmra.mxu0 %v7976
  %v7978 = vpop.f32.mrf.mxu0
  %v7979 = vadd.f32 %v7902, %v7978
  %v7980 = vpop.f32.mrf.mxu0
  %7981 = vdwg.mxu0
  %7982 = vmatprep.subr.mxu0 0.0
  %7983 = vmatpush1.msra.mxu0 0.0
  %7984 = vmatprep.subr.mxu0 0.0
  %7985 = vmatpush1.msra.mxu0 0.0
  %7986 = vmatprep.subr.mxu0 0.0
  %7987 = vmatpush1.msra.mxu0 0.0
  %7988 = vmatprep.subr.mxu0 0.0
  %7989 = vmatpush1.msra.mxu0 0.0
  %7990 = vmatprep.subr.mxu0 0.0
  %7991 = vmatpush1.msra.mxu0 0.0
  %7992 = vmatprep.subr.mxu0 0.0
  %7993 = vmatpush1.msra.mxu0 0.0
  %7994 = vmatprep.subr.mxu0 0.0
  %7995 = vmatpush1.msra.mxu0 0.0
  %7996 = vmatprep.subr.mxu0 0.0
  %7997 = vmatpush1.msra.mxu0 0.0
  %7998 = vmatprep.subr.mxu0 0.0
  %7999 = vmatpush1.msra.mxu0 0.0
  %8000 = vmatprep.subr.mxu0 0.0
  %8001 = vmatpush1.msra.mxu0 0.0
  %8002 = vmatprep.subr.mxu0 0.0
  %8003 = vmatpush1.msra.mxu0 0.0
  %8004 = vmatprep.subr.mxu0 0.0
  %8005 = vmatpush1.msra.mxu0 0.0
  %8006 = vmatprep.subr.mxu0 0.0
  %8007 = vmatpush1.msra.mxu0 0.0
  %8008 = vmatprep.subr.mxu0 0.0
  %8009 = vmatpush1.msra.mxu0 0.0
  %8010 = vmatprep.subr.mxu0 0.0
  %v8011 = vand.u32 %v7595, 4294901760
  %8012 = vmatpush1.msra.mxu0 %v8011
  %8013 = vmatprep.subr.mxu0 0.0
  %v8014 = vand.u32 %v7594, 4294901760
  %8015 = vmatpush1.msra.mxu0 %v8014
  %8016 = vmatprep.subr.mxu0 0.0
  %8017 = vmatpush2.msra.mxu0 0.0
  %8018 = vmatprep.subr.mxu0 0.0
  %8019 = vmatpush2.msra.mxu0 0.0
  %8020 = vmatprep.subr.mxu0 0.0
  %8021 = vmatpush2.msra.mxu0 0.0
  %8022 = vmatprep.subr.mxu0 0.0
  %8023 = vmatpush2.msra.mxu0 0.0
  %8024 = vmatprep.subr.mxu0 0.0
  %8025 = vmatpush2.msra.mxu0 0.0
  %8026 = vmatprep.subr.mxu0 0.0
  %8027 = vmatpush2.msra.mxu0 0.0
  %8028 = vmatprep.subr.mxu0 0.0
  %8029 = vmatpush2.msra.mxu0 0.0
  %8030 = vmatprep.subr.mxu0 0.0
  %8031 = vmatpush2.msra.mxu0 0.0
  %8032 = vmatprep.subr.mxu0 0.0
  %8033 = vmatpush2.msra.mxu0 0.0
  %8034 = vmatprep.subr.mxu0 0.0
  %8035 = vmatpush2.msra.mxu0 0.0
  %8036 = vmatprep.subr.mxu0 0.0
  %8037 = vmatpush2.msra.mxu0 0.0
  %8038 = vmatprep.subr.mxu0 0.0
  %8039 = vmatpush2.msra.mxu0 0.0
  %8040 = vmatprep.subr.mxu0 0.0
  %8041 = vmatpush2.msra.mxu0 0.0
  %8042 = vmatprep.subr.mxu0 0.0
  %8043 = vmatpush2.msra.mxu0 0.0
  %8044 = vmatprep.subr.mxu0 0.0
  %8045 = vmatpush2.msra.mxu0 0.0
  %8046 = vmatprep.subr.mxu0 0.0
  %8047 = vmatpush2.msra.mxu0 0.0
  %8048 = vmatprep.mubr.f32.mxu0 0.0
  %v8049 = vand.u32 %v2153, 4294901760
  %8050 = vmatmul.mubr.f32.gmra.mxu0 %v8049
  %v8051 = vpop.f32.mrf.mxu0
  %v8052 = vadd.f32 %v7979, %v8051
  %v8053 = vpop.f32.mrf.mxu0
  %8054 = vdwg.mxu0
  %8055 = vmatprep.subr.mxu0 0.0
  %v8056 = vand.u32 %v32, 4294901760
  %8057 = vmatpush1.msra.mxu0 %v8056
  %8058 = vmatprep.subr.mxu0 0.0
  %v8059 = vand.u32 %v31, 4294901760
  %8060 = vmatpush1.msra.mxu0 %v8059
  %8061 = vmatprep.subr.mxu0 0.0
  %v8062 = vand.u32 %v30, 4294901760
  %8063 = vmatpush1.msra.mxu0 %v8062
  %8064 = vmatprep.subr.mxu0 0.0
  %v8065 = vand.u32 %v29, 4294901760
  %8066 = vmatpush1.msra.mxu0 %v8065
  %8067 = vmatprep.subr.mxu0 0.0
  %v8068 = vand.u32 %v28, 4294901760
  %8069 = vmatpush1.msra.mxu0 %v8068
  %8070 = vmatprep.subr.mxu0 0.0
  %v8071 = vand.u32 %v27, 4294901760
  %8072 = vmatpush1.msra.mxu0 %v8071
  %8073 = vmatprep.subr.mxu0 0.0
  %v8074 = vand.u32 %v26, 4294901760
  %8075 = vmatpush1.msra.mxu0 %v8074
  %8076 = vmatprep.subr.mxu0 0.0
  %v8077 = vand.u32 %v25, 4294901760
  %8078 = vmatpush1.msra.mxu0 %v8077
  %8079 = vmatprep.subr.mxu0 0.0
  %v8080 = vand.u32 %v24, 4294901760
  %8081 = vmatpush1.msra.mxu0 %v8080
  %8082 = vmatprep.subr.mxu0 0.0
  %v8083 = vand.u32 %v23, 4294901760
  %8084 = vmatpush1.msra.mxu0 %v8083
  %8085 = vmatprep.subr.mxu0 0.0
  %v8086 = vand.u32 %v22, 4294901760
  %8087 = vmatpush1.msra.mxu0 %v8086
  %8088 = vmatprep.subr.mxu0 0.0
  %v8089 = vand.u32 %v21, 4294901760
  %8090 = vmatpush1.msra.mxu0 %v8089
  %8091 = vmatprep.subr.mxu0 0.0
  %v8092 = vand.u32 %v20, 4294901760
  %8093 = vmatpush1.msra.mxu0 %v8092
  %8094 = vmatprep.subr.mxu0 0.0
  %v8095 = vand.u32 %v19, 4294901760
  %8096 = vmatpush1.msra.mxu0 %v8095
  %8097 = vmatprep.subr.mxu0 0.0
  %v8098 = vand.u32 %v18, 4294901760
  %8099 = vmatpush1.msra.mxu0 %v8098
  %8100 = vmatprep.subr.mxu0 0.0
  %v8101 = vand.u32 %v17, 4294901760
  %8102 = vmatpush1.msra.mxu0 %v8101
  %8103 = vmatprep.subr.mxu0 0.0
  %8104 = vmatpush2.msra.mxu0 0.0
  %8105 = vmatprep.subr.mxu0 0.0
  %8106 = vmatpush2.msra.mxu0 0.0
  %8107 = vmatprep.subr.mxu0 0.0
  %8108 = vmatpush2.msra.mxu0 0.0
  %8109 = vmatprep.subr.mxu0 0.0
  %8110 = vmatpush2.msra.mxu0 0.0
  %8111 = vmatprep.subr.mxu0 0.0
  %8112 = vmatpush2.msra.mxu0 0.0
  %8113 = vmatprep.subr.mxu0 0.0
  %8114 = vmatpush2.msra.mxu0 0.0
  %8115 = vmatprep.subr.mxu0 0.0
  %8116 = vmatpush2.msra.mxu0 0.0
  %8117 = vmatprep.subr.mxu0 0.0
  %8118 = vmatpush2.msra.mxu0 0.0
  %8119 = vmatprep.subr.mxu0 0.0
  %8120 = vmatpush2.msra.mxu0 0.0
  %8121 = vmatprep.subr.mxu0 0.0
  %8122 = vmatpush2.msra.mxu0 0.0
  %8123 = vmatprep.subr.mxu0 0.0
  %8124 = vmatpush2.msra.mxu0 0.0
  %8125 = vmatprep.subr.mxu0 0.0
  %8126 = vmatpush2.msra.mxu0 0.0
  %8127 = vmatprep.subr.mxu0 0.0
  %8128 = vmatpush2.msra.mxu0 0.0
  %8129 = vmatprep.subr.mxu0 0.0
  %8130 = vmatpush2.msra.mxu0 0.0
  %8131 = vmatprep.subr.mxu0 0.0
  %8132 = vmatpush2.msra.mxu0 0.0
  %8133 = vmatprep.subr.mxu0 0.0
  %8134 = vmatpush2.msra.mxu0 0.0
  %8135 = vmatprep.mubr.f32.mxu0 0.0
  %v8136 = vand.u32 %v8052, 4294901760
  %v8137 = vsub.f32 %v8052, %v8136
  %v8138 = vand.u32 %v8137, 4294901760
  %v8139 = vsub.f32 %v8137, %v8138
  %v8140 = vand.u32 %v8139, 4294901760
  %8141 = vmatmul.mubr.f32.gmra.mxu0 %v8140
  %v8142 = vpop.f32.mrf.mxu0
  %v8143 = vadd.f32 0.0, %v8142
  %v8144 = vpop.f32.mrf.mxu0
  %8145 = vdwg.mxu0
  %8146 = vmatprep.subr.mxu0 0.0
  %v8147 = vand.u32 %v32, 4294901760
  %v8148 = vsub.f32 %v32, %v8147
  %v8149 = vand.u32 %v8148, 4294901760
  %v8150 = vsub.f32 %v8148, %v8149
  %v8151 = vand.u32 %v8150, 4294901760
  %8152 = vmatpush1.msra.mxu0 %v8151
  %8153 = vmatprep.subr.mxu0 0.0
  %v8154 = vand.u32 %v31, 4294901760
  %v8155 = vsub.f32 %v31, %v8154
  %v8156 = vand.u32 %v8155, 4294901760
  %v8157 = vsub.f32 %v8155, %v8156
  %v8158 = vand.u32 %v8157, 4294901760
  %8159 = vmatpush1.msra.mxu0 %v8158
  %8160 = vmatprep.subr.mxu0 0.0
  %v8161 = vand.u32 %v30, 4294901760
  %v8162 = vsub.f32 %v30, %v8161
  %v8163 = vand.u32 %v8162, 4294901760
  %v8164 = vsub.f32 %v8162, %v8163
  %v8165 = vand.u32 %v8164, 4294901760
  %8166 = vmatpush1.msra.mxu0 %v8165
  %8167 = vmatprep.subr.mxu0 0.0
  %v8168 = vand.u32 %v29, 4294901760
  %v8169 = vsub.f32 %v29, %v8168
  %v8170 = vand.u32 %v8169, 4294901760
  %v8171 = vsub.f32 %v8169, %v8170
  %v8172 = vand.u32 %v8171, 4294901760
  %8173 = vmatpush1.msra.mxu0 %v8172
  %8174 = vmatprep.subr.mxu0 0.0
  %v8175 = vand.u32 %v28, 4294901760
  %v8176 = vsub.f32 %v28, %v8175
  %v8177 = vand.u32 %v8176, 4294901760
  %v8178 = vsub.f32 %v8176, %v8177
  %v8179 = vand.u32 %v8178, 4294901760
  %8180 = vmatpush1.msra.mxu0 %v8179
  %8181 = vmatprep.subr.mxu0 0.0
  %v8182 = vand.u32 %v27, 4294901760
  %v8183 = vsub.f32 %v27, %v8182
  %v8184 = vand.u32 %v8183, 4294901760
  %v8185 = vsub.f32 %v8183, %v8184
  %v8186 = vand.u32 %v8185, 4294901760
  %8187 = vmatpush1.msra.mxu0 %v8186
  %8188 = vmatprep.subr.mxu0 0.0
  %v8189 = vand.u32 %v26, 4294901760
  %v8190 = vsub.f32 %v26, %v8189
  %v8191 = vand.u32 %v8190, 4294901760
  %v8192 = vsub.f32 %v8190, %v8191
  %v8193 = vand.u32 %v8192, 4294901760
  %8194 = vmatpush1.msra.mxu0 %v8193
  %8195 = vmatprep.subr.mxu0 0.0
  %v8196 = vand.u32 %v25, 4294901760
  %v8197 = vsub.f32 %v25, %v8196
  %v8198 = vand.u32 %v8197, 4294901760
  %v8199 = vsub.f32 %v8197, %v8198
  %v8200 = vand.u32 %v8199, 4294901760
  %8201 = vmatpush1.msra.mxu0 %v8200
  %8202 = vmatprep.subr.mxu0 0.0
  %v8203 = vand.u32 %v24, 4294901760
  %v8204 = vsub.f32 %v24, %v8203
  %v8205 = vand.u32 %v8204, 4294901760
  %v8206 = vsub.f32 %v8204, %v8205
  %v8207 = vand.u32 %v8206, 4294901760
  %8208 = vmatpush1.msra.mxu0 %v8207
  %8209 = vmatprep.subr.mxu0 0.0
  %v8210 = vand.u32 %v23, 4294901760
  %v8211 = vsub.f32 %v23, %v8210
  %v8212 = vand.u32 %v8211, 4294901760
  %v8213 = vsub.f32 %v8211, %v8212
  %v8214 = vand.u32 %v8213, 4294901760
  %8215 = vmatpush1.msra.mxu0 %v8214
  %8216 = vmatprep.subr.mxu0 0.0
  %v8217 = vand.u32 %v22, 4294901760
  %v8218 = vsub.f32 %v22, %v8217
  %v8219 = vand.u32 %v8218, 4294901760
  %v8220 = vsub.f32 %v8218, %v8219
  %v8221 = vand.u32 %v8220, 4294901760
  %8222 = vmatpush1.msra.mxu0 %v8221
  %8223 = vmatprep.subr.mxu0 0.0
  %v8224 = vand.u32 %v21, 4294901760
  %v8225 = vsub.f32 %v21, %v8224
  %v8226 = vand.u32 %v8225, 4294901760
  %v8227 = vsub.f32 %v8225, %v8226
  %v8228 = vand.u32 %v8227, 4294901760
  %8229 = vmatpush1.msra.mxu0 %v8228
  %8230 = vmatprep.subr.mxu0 0.0
  %v8231 = vand.u32 %v20, 4294901760
  %v8232 = vsub.f32 %v20, %v8231
  %v8233 = vand.u32 %v8232, 4294901760
  %v8234 = vsub.f32 %v8232, %v8233
  %v8235 = vand.u32 %v8234, 4294901760
  %8236 = vmatpush1.msra.mxu0 %v8235
  %8237 = vmatprep.subr.mxu0 0.0
  %v8238 = vand.u32 %v19, 4294901760
  %v8239 = vsub.f32 %v19, %v8238
  %v8240 = vand.u32 %v8239, 4294901760
  %v8241 = vsub.f32 %v8239, %v8240
  %v8242 = vand.u32 %v8241, 4294901760
  %8243 = vmatpush1.msra.mxu0 %v8242
  %8244 = vmatprep.subr.mxu0 0.0
  %v8245 = vand.u32 %v18, 4294901760
  %v8246 = vsub.f32 %v18, %v8245
  %v8247 = vand.u32 %v8246, 4294901760
  %v8248 = vsub.f32 %v8246, %v8247
  %v8249 = vand.u32 %v8248, 4294901760
  %8250 = vmatpush1.msra.mxu0 %v8249
  %8251 = vmatprep.subr.mxu0 0.0
  %v8252 = vand.u32 %v17, 4294901760
  %v8253 = vsub.f32 %v17, %v8252
  %v8254 = vand.u32 %v8253, 4294901760
  %v8255 = vsub.f32 %v8253, %v8254
  %v8256 = vand.u32 %v8255, 4294901760
  %8257 = vmatpush1.msra.mxu0 %v8256
  %8258 = vmatprep.subr.mxu0 0.0
  %8259 = vmatpush2.msra.mxu0 0.0
  %8260 = vmatprep.subr.mxu0 0.0
  %8261 = vmatpush2.msra.mxu0 0.0
  %8262 = vmatprep.subr.mxu0 0.0
  %8263 = vmatpush2.msra.mxu0 0.0
  %8264 = vmatprep.subr.mxu0 0.0
  %8265 = vmatpush2.msra.mxu0 0.0
  %8266 = vmatprep.subr.mxu0 0.0
  %8267 = vmatpush2.msra.mxu0 0.0
  %8268 = vmatprep.subr.mxu0 0.0
  %8269 = vmatpush2.msra.mxu0 0.0
  %8270 = vmatprep.subr.mxu0 0.0
  %8271 = vmatpush2.msra.mxu0 0.0
  %8272 = vmatprep.subr.mxu0 0.0
  %8273 = vmatpush2.msra.mxu0 0.0
  %8274 = vmatprep.subr.mxu0 0.0
  %8275 = vmatpush2.msra.mxu0 0.0
  %8276 = vmatprep.subr.mxu0 0.0
  %8277 = vmatpush2.msra.mxu0 0.0
  %8278 = vmatprep.subr.mxu0 0.0
  %8279 = vmatpush2.msra.mxu0 0.0
  %8280 = vmatprep.subr.mxu0 0.0
  %8281 = vmatpush2.msra.mxu0 0.0
  %8282 = vmatprep.subr.mxu0 0.0
  %8283 = vmatpush2.msra.mxu0 0.0
  %8284 = vmatprep.subr.mxu0 0.0
  %8285 = vmatpush2.msra.mxu0 0.0
  %8286 = vmatprep.subr.mxu0 0.0
  %8287 = vmatpush2.msra.mxu0 0.0
  %8288 = vmatprep.subr.mxu0 0.0
  %8289 = vmatpush2.msra.mxu0 0.0
  %8290 = vmatprep.mubr.f32.mxu0 0.0
  %v8291 = vand.u32 %v8052, 4294901760
  %8292 = vmatmul.mubr.f32.gmra.mxu0 %v8291
  %v8293 = vpop.f32.mrf.mxu0
  %v8294 = vadd.f32 %v8143, %v8293
  %v8295 = vpop.f32.mrf.mxu0
  %8296 = vdwg.mxu0
  %8297 = vmatprep.subr.mxu0 0.0
  %v8298 = vand.u32 %v32, 4294901760
  %v8299 = vsub.f32 %v32, %v8298
  %8300 = vmatpush1.msra.mxu0 %v8299
  %8301 = vmatprep.subr.mxu0 0.0
  %v8302 = vand.u32 %v31, 4294901760
  %v8303 = vsub.f32 %v31, %v8302
  %8304 = vmatpush1.msra.mxu0 %v8303
  %8305 = vmatprep.subr.mxu0 0.0
  %v8306 = vand.u32 %v30, 4294901760
  %v8307 = vsub.f32 %v30, %v8306
  %8308 = vmatpush1.msra.mxu0 %v8307
  %8309 = vmatprep.subr.mxu0 0.0
  %v8310 = vand.u32 %v29, 4294901760
  %v8311 = vsub.f32 %v29, %v8310
  %8312 = vmatpush1.msra.mxu0 %v8311
  %8313 = vmatprep.subr.mxu0 0.0
  %v8314 = vand.u32 %v28, 4294901760
  %v8315 = vsub.f32 %v28, %v8314
  %8316 = vmatpush1.msra.mxu0 %v8315
  %8317 = vmatprep.subr.mxu0 0.0
  %v8318 = vand.u32 %v27, 4294901760
  %v8319 = vsub.f32 %v27, %v8318
  %8320 = vmatpush1.msra.mxu0 %v8319
  %8321 = vmatprep.subr.mxu0 0.0
  %v8322 = vand.u32 %v26, 4294901760
  %v8323 = vsub.f32 %v26, %v8322
  %8324 = vmatpush1.msra.mxu0 %v8323
  %8325 = vmatprep.subr.mxu0 0.0
  %v8326 = vand.u32 %v25, 4294901760
  %v8327 = vsub.f32 %v25, %v8326
  %8328 = vmatpush1.msra.mxu0 %v8327
  %8329 = vmatprep.subr.mxu0 0.0
  %v8330 = vand.u32 %v24, 4294901760
  %v8331 = vsub.f32 %v24, %v8330
  %8332 = vmatpush1.msra.mxu0 %v8331
  %8333 = vmatprep.subr.mxu0 0.0
  %v8334 = vand.u32 %v23, 4294901760
  %v8335 = vsub.f32 %v23, %v8334
  %8336 = vmatpush1.msra.mxu0 %v8335
  %8337 = vmatprep.subr.mxu0 0.0
  %v8338 = vand.u32 %v22, 4294901760
  %v8339 = vsub.f32 %v22, %v8338
  %8340 = vmatpush1.msra.mxu0 %v8339
  %8341 = vmatprep.subr.mxu0 0.0
  %v8342 = vand.u32 %v21, 4294901760
  %v8343 = vsub.f32 %v21, %v8342
  %8344 = vmatpush1.msra.mxu0 %v8343
  %8345 = vmatprep.subr.mxu0 0.0
  %v8346 = vand.u32 %v20, 4294901760
  %v8347 = vsub.f32 %v20, %v8346
  %8348 = vmatpush1.msra.mxu0 %v8347
  %8349 = vmatprep.subr.mxu0 0.0
  %v8350 = vand.u32 %v19, 4294901760
  %v8351 = vsub.f32 %v19, %v8350
  %8352 = vmatpush1.msra.mxu0 %v8351
  %8353 = vmatprep.subr.mxu0 0.0
  %v8354 = vand.u32 %v18, 4294901760
  %v8355 = vsub.f32 %v18, %v8354
  %8356 = vmatpush1.msra.mxu0 %v8355
  %8357 = vmatprep.subr.mxu0 0.0
  %v8358 = vand.u32 %v17, 4294901760
  %v8359 = vsub.f32 %v17, %v8358
  %8360 = vmatpush1.msra.mxu0 %v8359
  %8361 = vmatprep.subr.mxu0 0.0
  %8362 = vmatpush2.msra.mxu0 0.0
  %8363 = vmatprep.subr.mxu0 0.0
  %8364 = vmatpush2.msra.mxu0 0.0
  %8365 = vmatprep.subr.mxu0 0.0
  %8366 = vmatpush2.msra.mxu0 0.0
  %8367 = vmatprep.subr.mxu0 0.0
  %8368 = vmatpush2.msra.mxu0 0.0
  %8369 = vmatprep.subr.mxu0 0.0
  %8370 = vmatpush2.msra.mxu0 0.0
  %8371 = vmatprep.subr.mxu0 0.0
  %8372 = vmatpush2.msra.mxu0 0.0
  %8373 = vmatprep.subr.mxu0 0.0
  %8374 = vmatpush2.msra.mxu0 0.0
  %8375 = vmatprep.subr.mxu0 0.0
  %8376 = vmatpush2.msra.mxu0 0.0
  %8377 = vmatprep.subr.mxu0 0.0
  %8378 = vmatpush2.msra.mxu0 0.0
  %8379 = vmatprep.subr.mxu0 0.0
  %8380 = vmatpush2.msra.mxu0 0.0
  %8381 = vmatprep.subr.mxu0 0.0
  %8382 = vmatpush2.msra.mxu0 0.0
  %8383 = vmatprep.subr.mxu0 0.0
  %8384 = vmatpush2.msra.mxu0 0.0
  %8385 = vmatprep.subr.mxu0 0.0
  %8386 = vmatpush2.msra.mxu0 0.0
  %8387 = vmatprep.subr.mxu0 0.0
  %8388 = vmatpush2.msra.mxu0 0.0
  %8389 = vmatprep.subr.mxu0 0.0
  %8390 = vmatpush2.msra.mxu0 0.0
  %8391 = vmatprep.subr.mxu0 0.0
  %8392 = vmatpush2.msra.mxu0 0.0
  %8393 = vmatprep.mubr.f32.mxu0 0.0
  %v8394 = vand.u32 %v8052, 4294901760
  %v8395 = vsub.f32 %v8052, %v8394
  %8396 = vmatmul.mubr.f32.gmra.mxu0 %v8395
  %v8397 = vpop.f32.mrf.mxu0
  %v8398 = vadd.f32 %v8294, %v8397
  %v8399 = vpop.f32.mrf.mxu0
  %8400 = vdwg.mxu0
  %8401 = vmatprep.subr.mxu0 0.0
  %v8402 = vand.u32 %v32, 4294901760
  %8403 = vmatpush1.msra.mxu0 %v8402
  %8404 = vmatprep.subr.mxu0 0.0
  %v8405 = vand.u32 %v31, 4294901760
  %8406 = vmatpush1.msra.mxu0 %v8405
  %8407 = vmatprep.subr.mxu0 0.0
  %v8408 = vand.u32 %v30, 4294901760
  %8409 = vmatpush1.msra.mxu0 %v8408
  %8410 = vmatprep.subr.mxu0 0.0
  %v8411 = vand.u32 %v29, 4294901760
  %8412 = vmatpush1.msra.mxu0 %v8411
  %8413 = vmatprep.subr.mxu0 0.0
  %v8414 = vand.u32 %v28, 4294901760
  %8415 = vmatpush1.msra.mxu0 %v8414
  %8416 = vmatprep.subr.mxu0 0.0
  %v8417 = vand.u32 %v27, 4294901760
  %8418 = vmatpush1.msra.mxu0 %v8417
  %8419 = vmatprep.subr.mxu0 0.0
  %v8420 = vand.u32 %v26, 4294901760
  %8421 = vmatpush1.msra.mxu0 %v8420
  %8422 = vmatprep.subr.mxu0 0.0
  %v8423 = vand.u32 %v25, 4294901760
  %8424 = vmatpush1.msra.mxu0 %v8423
  %8425 = vmatprep.subr.mxu0 0.0
  %v8426 = vand.u32 %v24, 4294901760
  %8427 = vmatpush1.msra.mxu0 %v8426
  %8428 = vmatprep.subr.mxu0 0.0
  %v8429 = vand.u32 %v23, 4294901760
  %8430 = vmatpush1.msra.mxu0 %v8429
  %8431 = vmatprep.subr.mxu0 0.0
  %v8432 = vand.u32 %v22, 4294901760
  %8433 = vmatpush1.msra.mxu0 %v8432
  %8434 = vmatprep.subr.mxu0 0.0
  %v8435 = vand.u32 %v21, 4294901760
  %8436 = vmatpush1.msra.mxu0 %v8435
  %8437 = vmatprep.subr.mxu0 0.0
  %v8438 = vand.u32 %v20, 4294901760
  %8439 = vmatpush1.msra.mxu0 %v8438
  %8440 = vmatprep.subr.mxu0 0.0
  %v8441 = vand.u32 %v19, 4294901760
  %8442 = vmatpush1.msra.mxu0 %v8441
  %8443 = vmatprep.subr.mxu0 0.0
  %v8444 = vand.u32 %v18, 4294901760
  %8445 = vmatpush1.msra.mxu0 %v8444
  %8446 = vmatprep.subr.mxu0 0.0
  %v8447 = vand.u32 %v17, 4294901760
  %8448 = vmatpush1.msra.mxu0 %v8447
  %8449 = vmatprep.subr.mxu0 0.0
  %8450 = vmatpush2.msra.mxu0 0.0
  %8451 = vmatprep.subr.mxu0 0.0
  %8452 = vmatpush2.msra.mxu0 0.0
  %8453 = vmatprep.subr.mxu0 0.0
  %8454 = vmatpush2.msra.mxu0 0.0
  %8455 = vmatprep.subr.mxu0 0.0
  %8456 = vmatpush2.msra.mxu0 0.0
  %8457 = vmatprep.subr.mxu0 0.0
  %8458 = vmatpush2.msra.mxu0 0.0
  %8459 = vmatprep.subr.mxu0 0.0
  %8460 = vmatpush2.msra.mxu0 0.0
  %8461 = vmatprep.subr.mxu0 0.0
  %8462 = vmatpush2.msra.mxu0 0.0
  %8463 = vmatprep.subr.mxu0 0.0
  %8464 = vmatpush2.msra.mxu0 0.0
  %8465 = vmatprep.subr.mxu0 0.0
  %8466 = vmatpush2.msra.mxu0 0.0
  %8467 = vmatprep.subr.mxu0 0.0
  %8468 = vmatpush2.msra.mxu0 0.0
  %8469 = vmatprep.subr.mxu0 0.0
  %8470 = vmatpush2.msra.mxu0 0.0
  %8471 = vmatprep.subr.mxu0 0.0
  %8472 = vmatpush2.msra.mxu0 0.0
  %8473 = vmatprep.subr.mxu0 0.0
  %8474 = vmatpush2.msra.mxu0 0.0
  %8475 = vmatprep.subr.mxu0 0.0
  %8476 = vmatpush2.msra.mxu0 0.0
  %8477 = vmatprep.subr.mxu0 0.0
  %8478 = vmatpush2.msra.mxu0 0.0
  %8479 = vmatprep.subr.mxu0 0.0
  %8480 = vmatpush2.msra.mxu0 0.0
  %8481 = vmatprep.mubr.f32.mxu0 0.0
  %v8482 = vand.u32 %v8052, 4294901760
  %v8483 = vsub.f32 %v8052, %v8482
  %v8484 = vand.u32 %v8483, 4294901760
  %8485 = vmatmul.mubr.f32.gmra.mxu0 %v8484
  %v8486 = vpop.f32.mrf.mxu0
  %v8487 = vadd.f32 %v8398, %v8486
  %v8488 = vpop.f32.mrf.mxu0
  %8489 = vdwg.mxu0
  %8490 = vmatprep.subr.mxu0 0.0
  %v8491 = vand.u32 %v32, 4294901760
  %v8492 = vsub.f32 %v32, %v8491
  %v8493 = vand.u32 %v8492, 4294901760
  %8494 = vmatpush1.msra.mxu0 %v8493
  %8495 = vmatprep.subr.mxu0 0.0
  %v8496 = vand.u32 %v31, 4294901760
  %v8497 = vsub.f32 %v31, %v8496
  %v8498 = vand.u32 %v8497, 4294901760
  %8499 = vmatpush1.msra.mxu0 %v8498
  %8500 = vmatprep.subr.mxu0 0.0
  %v8501 = vand.u32 %v30, 4294901760
  %v8502 = vsub.f32 %v30, %v8501
  %v8503 = vand.u32 %v8502, 4294901760
  %8504 = vmatpush1.msra.mxu0 %v8503
  %8505 = vmatprep.subr.mxu0 0.0
  %v8506 = vand.u32 %v29, 4294901760
  %v8507 = vsub.f32 %v29, %v8506
  %v8508 = vand.u32 %v8507, 4294901760
  %8509 = vmatpush1.msra.mxu0 %v8508
  %8510 = vmatprep.subr.mxu0 0.0
  %v8511 = vand.u32 %v28, 4294901760
  %v8512 = vsub.f32 %v28, %v8511
  %v8513 = vand.u32 %v8512, 4294901760
  %8514 = vmatpush1.msra.mxu0 %v8513
  %8515 = vmatprep.subr.mxu0 0.0
  %v8516 = vand.u32 %v27, 4294901760
  %v8517 = vsub.f32 %v27, %v8516
  %v8518 = vand.u32 %v8517, 4294901760
  %8519 = vmatpush1.msra.mxu0 %v8518
  %8520 = vmatprep.subr.mxu0 0.0
  %v8521 = vand.u32 %v26, 4294901760
  %v8522 = vsub.f32 %v26, %v8521
  %v8523 = vand.u32 %v8522, 4294901760
  %8524 = vmatpush1.msra.mxu0 %v8523
  %8525 = vmatprep.subr.mxu0 0.0
  %v8526 = vand.u32 %v25, 4294901760
  %v8527 = vsub.f32 %v25, %v8526
  %v8528 = vand.u32 %v8527, 4294901760
  %8529 = vmatpush1.msra.mxu0 %v8528
  %8530 = vmatprep.subr.mxu0 0.0
  %v8531 = vand.u32 %v24, 4294901760
  %v8532 = vsub.f32 %v24, %v8531
  %v8533 = vand.u32 %v8532, 4294901760
  %8534 = vmatpush1.msra.mxu0 %v8533
  %8535 = vmatprep.subr.mxu0 0.0
  %v8536 = vand.u32 %v23, 4294901760
  %v8537 = vsub.f32 %v23, %v8536
  %v8538 = vand.u32 %v8537, 4294901760
  %8539 = vmatpush1.msra.mxu0 %v8538
  %8540 = vmatprep.subr.mxu0 0.0
  %v8541 = vand.u32 %v22, 4294901760
  %v8542 = vsub.f32 %v22, %v8541
  %v8543 = vand.u32 %v8542, 4294901760
  %8544 = vmatpush1.msra.mxu0 %v8543
  %8545 = vmatprep.subr.mxu0 0.0
  %v8546 = vand.u32 %v21, 4294901760
  %v8547 = vsub.f32 %v21, %v8546
  %v8548 = vand.u32 %v8547, 4294901760
  %8549 = vmatpush1.msra.mxu0 %v8548
  %8550 = vmatprep.subr.mxu0 0.0
  %v8551 = vand.u32 %v20, 4294901760
  %v8552 = vsub.f32 %v20, %v8551
  %v8553 = vand.u32 %v8552, 4294901760
  %8554 = vmatpush1.msra.mxu0 %v8553
  %8555 = vmatprep.subr.mxu0 0.0
  %v8556 = vand.u32 %v19, 4294901760
  %v8557 = vsub.f32 %v19, %v8556
  %v8558 = vand.u32 %v8557, 4294901760
  %8559 = vmatpush1.msra.mxu0 %v8558
  %8560 = vmatprep.subr.mxu0 0.0
  %v8561 = vand.u32 %v18, 4294901760
  %v8562 = vsub.f32 %v18, %v8561
  %v8563 = vand.u32 %v8562, 4294901760
  %8564 = vmatpush1.msra.mxu0 %v8563
  %8565 = vmatprep.subr.mxu0 0.0
  %v8566 = vand.u32 %v17, 4294901760
  %v8567 = vsub.f32 %v17, %v8566
  %v8568 = vand.u32 %v8567, 4294901760
  %8569 = vmatpush1.msra.mxu0 %v8568
  %8570 = vmatprep.subr.mxu0 0.0
  %8571 = vmatpush2.msra.mxu0 0.0
  %8572 = vmatprep.subr.mxu0 0.0
  %8573 = vmatpush2.msra.mxu0 0.0
  %8574 = vmatprep.subr.mxu0 0.0
  %8575 = vmatpush2.msra.mxu0 0.0
  %8576 = vmatprep.subr.mxu0 0.0
  %8577 = vmatpush2.msra.mxu0 0.0
  %8578 = vmatprep.subr.mxu0 0.0
  %8579 = vmatpush2.msra.mxu0 0.0
  %8580 = vmatprep.subr.mxu0 0.0
  %8581 = vmatpush2.msra.mxu0 0.0
  %8582 = vmatprep.subr.mxu0 0.0
  %8583 = vmatpush2.msra.mxu0 0.0
  %8584 = vmatprep.subr.mxu0 0.0
  %8585 = vmatpush2.msra.mxu0 0.0
  %8586 = vmatprep.subr.mxu0 0.0
  %8587 = vmatpush2.msra.mxu0 0.0
  %8588 = vmatprep.subr.mxu0 0.0
  %8589 = vmatpush2.msra.mxu0 0.0
  %8590 = vmatprep.subr.mxu0 0.0
  %8591 = vmatpush2.msra.mxu0 0.0
  %8592 = vmatprep.subr.mxu0 0.0
  %8593 = vmatpush2.msra.mxu0 0.0
  %8594 = vmatprep.subr.mxu0 0.0
  %8595 = vmatpush2.msra.mxu0 0.0
  %8596 = vmatprep.subr.mxu0 0.0
  %8597 = vmatpush2.msra.mxu0 0.0
  %8598 = vmatprep.subr.mxu0 0.0
  %8599 = vmatpush2.msra.mxu0 0.0
  %8600 = vmatprep.subr.mxu0 0.0
  %8601 = vmatpush2.msra.mxu0 0.0
  %8602 = vmatprep.mubr.f32.mxu0 0.0
  %v8603 = vand.u32 %v8052, 4294901760
  %8604 = vmatmul.mubr.f32.gmra.mxu0 %v8603
  %v8605 = vpop.f32.mrf.mxu0
  %v8606 = vadd.f32 %v8487, %v8605
  %v8607 = vpop.f32.mrf.mxu0
  %8608 = vdwg.mxu0
  %8609 = vmatprep.subr.mxu0 0.0
  %v8610 = vand.u32 %v32, 4294901760
  %8611 = vmatpush1.msra.mxu0 %v8610
  %8612 = vmatprep.subr.mxu0 0.0
  %v8613 = vand.u32 %v31, 4294901760
  %8614 = vmatpush1.msra.mxu0 %v8613
  %8615 = vmatprep.subr.mxu0 0.0
  %v8616 = vand.u32 %v30, 4294901760
  %8617 = vmatpush1.msra.mxu0 %v8616
  %8618 = vmatprep.subr.mxu0 0.0
  %v8619 = vand.u32 %v29, 4294901760
  %8620 = vmatpush1.msra.mxu0 %v8619
  %8621 = vmatprep.subr.mxu0 0.0
  %v8622 = vand.u32 %v28, 4294901760
  %8623 = vmatpush1.msra.mxu0 %v8622
  %8624 = vmatprep.subr.mxu0 0.0
  %v8625 = vand.u32 %v27, 4294901760
  %8626 = vmatpush1.msra.mxu0 %v8625
  %8627 = vmatprep.subr.mxu0 0.0
  %v8628 = vand.u32 %v26, 4294901760
  %8629 = vmatpush1.msra.mxu0 %v8628
  %8630 = vmatprep.subr.mxu0 0.0
  %v8631 = vand.u32 %v25, 4294901760
  %8632 = vmatpush1.msra.mxu0 %v8631
  %8633 = vmatprep.subr.mxu0 0.0
  %v8634 = vand.u32 %v24, 4294901760
  %8635 = vmatpush1.msra.mxu0 %v8634
  %8636 = vmatprep.subr.mxu0 0.0
  %v8637 = vand.u32 %v23, 4294901760
  %8638 = vmatpush1.msra.mxu0 %v8637
  %8639 = vmatprep.subr.mxu0 0.0
  %v8640 = vand.u32 %v22, 4294901760
  %8641 = vmatpush1.msra.mxu0 %v8640
  %8642 = vmatprep.subr.mxu0 0.0
  %v8643 = vand.u32 %v21, 4294901760
  %8644 = vmatpush1.msra.mxu0 %v8643
  %8645 = vmatprep.subr.mxu0 0.0
  %v8646 = vand.u32 %v20, 4294901760
  %8647 = vmatpush1.msra.mxu0 %v8646
  %8648 = vmatprep.subr.mxu0 0.0
  %v8649 = vand.u32 %v19, 4294901760
  %8650 = vmatpush1.msra.mxu0 %v8649
  %8651 = vmatprep.subr.mxu0 0.0
  %v8652 = vand.u32 %v18, 4294901760
  %8653 = vmatpush1.msra.mxu0 %v8652
  %8654 = vmatprep.subr.mxu0 0.0
  %v8655 = vand.u32 %v17, 4294901760
  %8656 = vmatpush1.msra.mxu0 %v8655
  %8657 = vmatprep.subr.mxu0 0.0
  %8658 = vmatpush2.msra.mxu0 0.0
  %8659 = vmatprep.subr.mxu0 0.0
  %8660 = vmatpush2.msra.mxu0 0.0
  %8661 = vmatprep.subr.mxu0 0.0
  %8662 = vmatpush2.msra.mxu0 0.0
  %8663 = vmatprep.subr.mxu0 0.0
  %8664 = vmatpush2.msra.mxu0 0.0
  %8665 = vmatprep.subr.mxu0 0.0
  %8666 = vmatpush2.msra.mxu0 0.0
  %8667 = vmatprep.subr.mxu0 0.0
  %8668 = vmatpush2.msra.mxu0 0.0
  %8669 = vmatprep.subr.mxu0 0.0
  %8670 = vmatpush2.msra.mxu0 0.0
  %8671 = vmatprep.subr.mxu0 0.0
  %8672 = vmatpush2.msra.mxu0 0.0
  %8673 = vmatprep.subr.mxu0 0.0
  %8674 = vmatpush2.msra.mxu0 0.0
  %8675 = vmatprep.subr.mxu0 0.0
  %8676 = vmatpush2.msra.mxu0 0.0
  %8677 = vmatprep.subr.mxu0 0.0
  %8678 = vmatpush2.msra.mxu0 0.0
  %8679 = vmatprep.subr.mxu0 0.0
  %8680 = vmatpush2.msra.mxu0 0.0
  %8681 = vmatprep.subr.mxu0 0.0
  %8682 = vmatpush2.msra.mxu0 0.0
  %8683 = vmatprep.subr.mxu0 0.0
  %8684 = vmatpush2.msra.mxu0 0.0
  %8685 = vmatprep.subr.mxu0 0.0
  %8686 = vmatpush2.msra.mxu0 0.0
  %8687 = vmatprep.subr.mxu0 0.0
  %8688 = vmatpush2.msra.mxu0 0.0
  %8689 = vmatprep.mubr.f32.mxu0 0.0
  %v8690 = vand.u32 %v8052, 4294901760
  %8691 = vmatmul.mubr.f32.gmra.mxu0 %v8690
  %v8692 = vpop.f32.mrf.mxu0
  %v8693 = vadd.f32 %v8606, %v8692
  %v8694 = vpop.f32.mrf.mxu0
  %8695 = vdwg.mxu0
  %v8696 = vmul.f32 %v8693, 0.001953125
  %v8697 = vadd.f32 %v8696, 1e-05
  %v8698 = vrsqrt.pop %v8697
  %v8699 = vlaneseq
  %v8700 = vshrl.u32 %v8699, 7
  %v8701 = vsub.s32 0, %v8700
  %v8702 = vrot.slane %v8698, %v8701
  %v8703 = vmul.f32 %v7592, %v8702
  %v8704 = vmul.f32 %v7593, %v8702
  %v8705 = vadd.f32 %v8703, %v37
  %v8706 = vadd.f32 %v8704, %v38
  %v8707 = vmax.f32 %v8705, 0.0
  %v8708 = vmax.f32 %v8706, 0.0
  %8709 = vst [vmem:[%s4] sm:$0xff] %v8707
  %8710 = vst [vmem:[%s4 + $0x8] sm:$0xff] %v8708
  // Predicated region
  $region18: #{identity_block.1} parent=0 // pred_check
    _
  $region19: #{identity_block.1} parent=0 // pred_check_branch
    %8712 = sbr.rel (0) target = $region21
  $region20: #{identity_block.1} parent=0 // pred_region
    _
  $region21: #{identity_block.1} parent=0 // pred_fallthru
    _
  // Predicated region
  $region22: #{identity_block.1} parent=0 // pred_check
    _
  $region23: #{identity_block.1} parent=0 // pred_check_branch
    %8714 = sbr.rel (0) target = $region25
  $region24: #{identity_block.1} parent=0 // pred_region
    _
  $region25: #{identity_block.1} parent=0 // pred_fallthru
    _

</llo_original>
